<compile_context>
chip_gen: v7x
topology: tpu7x:2x2x1
jax: 0.10.0
libtpu: 0.0.40
codegen_flags: <defaults>
</compile_context>

<pallas_src>
import jax
import jax.numpy as jnp
from jax.experimental import pallas as pl
from jax.experimental.pallas import tpu as pltpu


# ----------------------------- Pallas kernels ------------------------------

def _conv_row_kernel(x_ref, w_ref, b_ref, o_ref):
    """Fused 3x3 'same' conv + bias + ReLU for one image.

    x_ref: (H+2, (W+2)*Cin)        bf16  padded image, W and Cin merged (lanes)
    w_ref: (3, (W+2)*Cin, W*Cout)  bf16  banded weights, one slab per dh
    b_ref: (1, W*Cout)             f32   bias tiled over the W output pixels
    o_ref: (H, W*Cout)             bf16
    """
    H = o_ref.shape[0]
    xv = x_ref[...]                                   # (H+2, Kp) bf16, one load
    acc = jnp.dot(xv[0:H, :], w_ref[0], preferred_element_type=jnp.float32)
    acc += jnp.dot(xv[1:H + 1, :], w_ref[1], preferred_element_type=jnp.float32)
    acc += jnp.dot(xv[2:H + 2, :], w_ref[2], preferred_element_type=jnp.float32)
    acc = jnp.maximum(acc + b_ref[...], 0.0)          # f32 epilogue (VPU)
    o_ref[...] = acc.astype(o_ref.dtype)


def _fc_fused_kernel(x_ref, w1_ref, b1_ref, w2_ref, b2_ref, w3_ref, b3_ref,
                     o_ref):
    """fc1+ReLU -> (dropout = identity) -> fc2+ReLU -> fc3, all in one kernel."""
    h = jnp.dot(x_ref[...], w1_ref[...], preferred_element_type=jnp.float32)
    h = jnp.maximum(h + b1_ref[...], 0.0)
    # TODO(synk): nn.Dropout(p=0.2) is identity in inference mode; no RNG mask.
    h = jnp.dot(h.astype(jnp.bfloat16), w2_ref[...],
                preferred_element_type=jnp.float32)
    h = jnp.maximum(h + b2_ref[...], 0.0)
    y = jnp.dot(h.astype(jnp.bfloat16), w3_ref[...],
                preferred_element_type=jnp.float32)
    o_ref[...] = (y + b3_ref[...]).astype(o_ref.dtype)


# ----------------------------- Pallas wrappers ------------------------------

def conv3x3_relu(x_nhwc, w_banded, b_tiled):
    """x_nhwc: (B, H, W, Cin) bf16 -> (B, H, W, Cout) bf16, conv+bias+ReLU."""
    B, H, W, Cin = x_nhwc.shape
    Kp = (W + 2) * Cin
    N = w_banded.shape[2]
    Cout = N // W

    xp = jnp.pad(x_nhwc, ((0, 0), (1, 1), (1, 1), (0, 0)))   # small halo pad
    xf = xp.reshape(B, H + 2, Kp)                             # contiguous view

    flops = 2 * B * 3 * H * Kp * N
    bytes_accessed = 2 * (B * (H + 2) * Kp + 3 * Kp * N + B * H * N) + 4 * N

    out = pl.pallas_call(
        _conv_row_kernel,
        out_shape=jax.ShapeDtypeStruct((B, H, N), jnp.bfloat16),
        grid=(B,),
        in_specs=[
            pl.BlockSpec((None, H + 2, Kp), lambda b: (b, 0, 0)),
            pl.BlockSpec((3, Kp, N), lambda b: (0, 0, 0)),   # VMEM-resident
            pl.BlockSpec((1, N), lambda b: (0, 0)),
        ],
        out_specs=pl.BlockSpec((None, H, N), lambda b: (b, 0, 0)),
        compiler_params=pltpu.CompilerParams(
            dimension_semantics=("parallel",),            # shard batch on v7x
            vmem_limit_bytes=32 * 1024 * 1024),
        cost_estimate=pl.CostEstimate(flops=flops, transcendentals=0,
                                      bytes_accessed=bytes_accessed),
    )(xf, w_banded, b_tiled)
    return out.reshape(B, H, W, Cout)


def maxpool2x2(x):
    """2x2 / stride-2 max pool on NHWC via strided maxes (no rearrangement)."""
    x = jnp.maximum(x[:, 0::2, :, :], x[:, 1::2, :, :])
    return jnp.maximum(x[:, :, 0::2, :], x[:, :, 1::2, :])


def fc_head(x_flat, params):
    """Fused fc1(+ReLU) -> fc2(+ReLU) -> fc3; one Pallas call, weights in VMEM."""
    B, K = x_flat.shape
    N1 = params["fc1_w"].shape[1]
    N2 = params["fc2_w"].shape[1]
    N3 = params["fc3_w"].shape[1]

    def _full(shape):
        return pl.BlockSpec(shape, lambda i: (0, 0))

    return pl.pallas_call(
        _fc_fused_kernel,
        out_shape=jax.ShapeDtypeStruct((B, N3), jnp.float32),
        grid=(1,),
        in_specs=[
            _full((B, K)),
            _full((K, N1)), _full((1, N1)),
            _full((N1, N2)), _full((1, N2)),
            _full((N2, N3)), _full((1, N3)),
        ],
        out_specs=_full((B, N3)),
        compiler_params=pltpu.CompilerParams(
            dimension_semantics=("arbitrary",),
            vmem_limit_bytes=32 * 1024 * 1024),
    )(x_flat, params["fc1_w"], params["fc1_b"], params["fc2_w"],
      params["fc2_b"], params["fc3_w"], params["fc3_b"])


# ------------------------- parameter preparation ----------------------------

def _banded_conv_weights(w_oihw, out_w):
    """PyTorch (Cout, Cin, 3, 3) -> (3, (out_w+2)*Cin, out_w*Cout) bf16 banded
    matrices so that  y[r, c*Cout+o] = sum_dh  x_padded_row[r+dh, :] @ W[dh]."""
    w_hwio = jnp.transpose(w_oihw, (2, 3, 1, 0)).astype(jnp.float32)
    cin, cout = int(w_hwio.shape[2]), int(w_hwio.shape[3])
    wp = out_w + 2
    mats = []
    for dh in range(3):
        m = jnp.zeros((wp * cin, out_w * cout), jnp.float32)
        for dw in range(3):
            sel = jnp.eye(wp, out_w, k=-dw, dtype=jnp.float32)  # sel[c+dw, c]=1
            m = m + jnp.kron(sel, w_hwio[dh, dw])
        mats.append(m)
    return jnp.stack(mats).astype(jnp.bfloat16)


def _tiled_bias(b, out_w):
    return jnp.tile(b.astype(jnp.float32), out_w)[None, :]


def prep_params(raw):
    """Convert PyTorch-convention weights into the kernel-ready layout.
    raw conv*_w: (Cout, Cin, 3, 3); raw fc*_w: (out, in) like nn.Linear."""
    p = {}
    # spatial output widths of each conv layer for a 32x32 input
    for name, out_w in (("conv1", 32), ("conv2", 16), ("conv3", 8)):
        p[name + "_w"] = _banded_conv_weights(raw[name + "_w"], out_w)
        p[name + "_b"] = _tiled_bias(raw[name + "_b"], out_w)
    # fc1: (out,in) -> (in,out), then permute input rows from NCHW-flatten
    # order (c,h,w) to NHWC-flatten order (h,w,c) so no transpose at runtime.
    w1 = raw["fc1_w"].astype(jnp.float32).T                       # (1024, 512)
    w1 = w1.reshape(64, 4, 4, 512).transpose(1, 2, 0, 3).reshape(1024, 512)
    p["fc1_w"] = w1.astype(jnp.bfloat16)
    p["fc1_b"] = raw["fc1_b"].astype(jnp.float32)[None, :]
    p["fc2_w"] = raw["fc2_w"].astype(jnp.float32).T.astype(jnp.bfloat16)
    p["fc2_b"] = raw["fc2_b"].astype(jnp.float32)[None, :]
    p["fc3_w"] = raw["fc3_w"].astype(jnp.float32).T.astype(jnp.bfloat16)
    p["fc3_b"] = raw["fc3_b"].astype(jnp.float32)[None, :]
    return p


def init_raw_params(key, num_classes):
    ks = jax.random.split(key, 6)

    def w(k, shape, fan_in):
        return jax.random.normal(k, shape, jnp.float32) * (fan_in ** -0.5)

    return {
        "conv1_w": w(ks[0], (16, 3, 3, 3), 3 * 9),
        "conv1_b": jnp.zeros((16,), jnp.float32),
        "conv2_w": w(ks[1], (32, 16, 3, 3), 16 * 9),
        "conv2_b": jnp.zeros((32,), jnp.float32),
        "conv3_w": w(ks[2], (64, 32, 3, 3), 32 * 9),
        "conv3_b": jnp.zeros((64,), jnp.float32),
        "fc1_w": w(ks[3], (512, 1024), 1024),
        "fc1_b": jnp.zeros((512,), jnp.float32),
        "fc2_w": w(ks[4], (256, 512), 512),
        "fc2_b": jnp.zeros((256,), jnp.float32),
        "fc3_w": w(ks[5], (num_classes, 256), 256),
        "fc3_b": jnp.zeros((num_classes,), jnp.float32),
    }


# ----------------------------- Model (Net) ----------------------------------

@jax.jit
def net_forward(params, x_nchw):
    # NCHW (PyTorch) -> NHWC once, activations kept bf16 between layers.
    x = jnp.transpose(x_nchw, (0, 2, 3, 1)).astype(jnp.bfloat16)

    x = maxpool2x2(conv3x3_relu(x, params["conv1_w"], params["conv1_b"]))
    x = maxpool2x2(conv3x3_relu(x, params["conv2_w"], params["conv2_b"]))
    x = maxpool2x2(conv3x3_relu(x, params["conv3_w"], params["conv3_b"]))

    # NHWC flatten; fc1 rows were pre-permuted at init to match torch.flatten
    # of the NCHW tensor, so no transpose is needed here.
    B = x.shape[0]
    x = x.reshape(B, -1)                                   # (B, 1024) bf16
    return fc_head(x, params)                              # (B, num_classes) f32


if __name__ == "__main__":
    num_classes = 10
    key = jax.random.PRNGKey(0)
    k_param, k_input = jax.random.split(key)

    raw = init_raw_params(k_param, num_classes)
    params = prep_params(raw)

    # Input spatial must be 32x32 so that 64*4*4 = 1024 features feed fc1.
    x = jax.random.normal(k_input, (2, 3, 32, 32), jnp.float32)

    logits = net_forward(params, x)
    logits = jax.block_until_ready(logits)
    assert logits.shape == (2, num_classes), logits.shape
    print("KERNEL_OK")
</pallas_src>

<mosaic_0001>
module attributes {stable_mosaic.version = 11 : i64} {
  func.func @_conv_row_kernel(%arg0: i32, %arg1: memref<1x34x102xbf16, #tpu.memory_space<vmem>>, %arg2: memref<3x102x512xbf16, #tpu.memory_space<vmem>>, %arg3: memref<1x512xf32, #tpu.memory_space<vmem>>, %arg4: memref<1x32x512xbf16, #tpu.memory_space<vmem>>) attributes {dimension_semantics = [#tpu.dimension_semantics<parallel>], iteration_bounds = array<i64: 2>, scalar_prefetch = 0 : i64, scratch_operands = 0 : i64, tpu.core_type = #tpu.core_type<tc>, window_params = [{transform_indices = @transform_0, window_bounds = array<i64: 1, 34, 102>}, {pipeline_mode = #tpu.pipeline_mode<synchronous>, transform_indices = @transform_1, window_bounds = array<i64: 3, 102, 512>}, {pipeline_mode = #tpu.pipeline_mode<synchronous>, transform_indices = @transform_2, window_bounds = array<i64: 1, 512>}, {transform_indices = @transform_3, window_bounds = array<i64: 1, 32, 512>}]} {
    %c0 = arith.constant 0 : index
    %c0_0 = arith.constant 0 : index
    %c0_1 = arith.constant 0 : index
    %0 = vector.load %arg1[%c0, %c0_0, %c0_1] : memref<1x34x102xbf16, #tpu.memory_space<vmem>>, vector<1x34x102xbf16>
    %1 = vector.shape_cast %0 : vector<1x34x102xbf16> to vector<34x102xbf16>
    %2 = vector.extract_strided_slice %1 {offsets = [0, 0], sizes = [32, 102], strides = [1, 1]} : vector<34x102xbf16> to vector<32x102xbf16>
    %c0_2 = arith.constant 0 : index
    %c0_3 = arith.constant 0 : index
    %c0_4 = arith.constant 0 : index
    %3 = vector.load %arg2[%c0_2, %c0_3, %c0_4] : memref<3x102x512xbf16, #tpu.memory_space<vmem>>, vector<1x102x512xbf16>
    %4 = vector.shape_cast %3 : vector<1x102x512xbf16> to vector<102x512xbf16>
    %cst = arith.constant dense<0.000000e+00> : vector<32x512xf32>
    %5 = tpu.matmul %2, %4, %cst {dimension_numbers = #tpu.dot_dimension_numbers<[1], [0], [0], [1], [0, 0, 1, 1], [], []>} : vector<32x102xbf16>, vector<102x512xbf16>, vector<32x512xf32> -> vector<32x512xf32>
    %6 = vector.extract_strided_slice %1 {offsets = [1, 0], sizes = [32, 102], strides = [1, 1]} : vector<34x102xbf16> to vector<32x102xbf16>
    %c1 = arith.constant 1 : index
    %c0_5 = arith.constant 0 : index
    %c0_6 = arith.constant 0 : index
    %7 = vector.load %arg2[%c1, %c0_5, %c0_6] : memref<3x102x512xbf16, #tpu.memory_space<vmem>>, vector<1x102x512xbf16>
    %8 = vector.shape_cast %7 : vector<1x102x512xbf16> to vector<102x512xbf16>
    %cst_7 = arith.constant dense<0.000000e+00> : vector<32x512xf32>
    %9 = tpu.matmul %6, %8, %cst_7 {dimension_numbers = #tpu.dot_dimension_numbers<[1], [0], [0], [1], [0, 0, 1, 1], [], []>} : vector<32x102xbf16>, vector<102x512xbf16>, vector<32x512xf32> -> vector<32x512xf32>
    %10 = arith.addf %5, %9 : vector<32x512xf32>
    %11 = vector.extract_strided_slice %1 {offsets = [2, 0], sizes = [32, 102], strides = [1, 1]} : vector<34x102xbf16> to vector<32x102xbf16>
    %c2 = arith.constant 2 : index
    %c0_8 = arith.constant 0 : index
    %c0_9 = arith.constant 0 : index
    %12 = vector.load %arg2[%c2, %c0_8, %c0_9] : memref<3x102x512xbf16, #tpu.memory_space<vmem>>, vector<1x102x512xbf16>
    %13 = vector.shape_cast %12 : vector<1x102x512xbf16> to vector<102x512xbf16>
    %cst_10 = arith.constant dense<0.000000e+00> : vector<32x512xf32>
    %14 = tpu.matmul %11, %13, %cst_10 {dimension_numbers = #tpu.dot_dimension_numbers<[1], [0], [0], [1], [0, 0, 1, 1], [], []>} : vector<32x102xbf16>, vector<102x512xbf16>, vector<32x512xf32> -> vector<32x512xf32>
    %15 = arith.addf %10, %14 : vector<32x512xf32>
    %c0_11 = arith.constant 0 : index
    %c0_12 = arith.constant 0 : index
    %16 = vector.load %arg3[%c0_11, %c0_12] : memref<1x512xf32, #tpu.memory_space<vmem>>, vector<1x512xf32>
    %17 = vector.broadcast %16 : vector<1x512xf32> to vector<32x512xf32>
    %18 = arith.addf %15, %17 : vector<32x512xf32>
    %cst_13 = arith.constant 0.000000e+00 : f32
    %19 = vector.broadcast %cst_13 : f32 to vector<32x512xf32>
    %20 = arith.maximumf %18, %19 : vector<32x512xf32>
    %21 = arith.truncf %20 : vector<32x512xf32> to vector<32x512xbf16>
    %c0_14 = arith.constant 0 : index
    %c0_15 = arith.constant 0 : index
    %c0_16 = arith.constant 0 : index
    %22 = vector.load %arg4[%c0_14, %c0_15, %c0_16] : memref<1x32x512xbf16, #tpu.memory_space<vmem>>, vector<1x32x512xbf16>
    %23 = vector.shape_cast %22 : vector<1x32x512xbf16> to vector<32x512xbf16>
    %24 = vector.shape_cast %21 : vector<32x512xbf16> to vector<1x32x512xbf16>
    tpu.vector_store %arg4[%c0_14, %c0_15, %c0_16], %24 {strides = array<i32>} : memref<1x32x512xbf16, #tpu.memory_space<vmem>>, vector<1x32x512xbf16>,
    return
  }
  func.func @transform_0(%arg0: i32) -> (i32, i32, i32) {
    %c0_i32 = arith.constant 0 : i32
    %c0_i32_0 = arith.constant 0 : i32
    %c0_i32_1 = arith.constant 0 : i32
    return %arg0, %c0_i32, %c0_i32_0 : i32, i32, i32
  }
  func.func @transform_1(%arg0: i32) -> (i32, i32, i32) {
    %c0_i32 = arith.constant 0 : i32
    %c0_i32_0 = arith.constant 0 : i32
    %c0_i32_1 = arith.constant 0 : i32
    %c0_i32_2 = arith.constant 0 : i32
    return %c0_i32, %c0_i32_0, %c0_i32_1 : i32, i32, i32
  }
  func.func @transform_2(%arg0: i32) -> (i32, i32) {
    %c0_i32 = arith.constant 0 : i32
    %c0_i32_0 = arith.constant 0 : i32
    %c0_i32_1 = arith.constant 0 : i32
    return %c0_i32, %c0_i32_0 : i32, i32
  }
  func.func @transform_3(%arg0: i32) -> (i32, i32, i32) {
    %c0_i32 = arith.constant 0 : i32
    %c0_i32_0 = arith.constant 0 : i32
    %c0_i32_1 = arith.constant 0 : i32
    return %arg0, %c0_i32, %c0_i32_0 : i32, i32, i32
  }
}

module attributes {stable_mosaic.version = 11 : i64} {
  func.func @_conv_row_kernel(%arg0: i32, %arg1: memref<1x18x288xbf16, #tpu.memory_space<vmem>>, %arg2: memref<3x288x512xbf16, #tpu.memory_space<vmem>>, %arg3: memref<1x512xf32, #tpu.memory_space<vmem>>, %arg4: memref<1x16x512xbf16, #tpu.memory_space<vmem>>) attributes {dimension_semantics = [#tpu.dimension_semantics<parallel>], iteration_bounds = array<i64: 2>, scalar_prefetch = 0 : i64, scratch_operands = 0 : i64, tpu.core_type = #tpu.core_type<tc>, window_params = [{transform_indices = @transform_0, window_bounds = array<i64: 1, 18, 288>}, {pipeline_mode = #tpu.pipeline_mode<synchronous>, transform_indices = @transform_1, window_bounds = array<i64: 3, 288, 512>}, {pipeline_mode = #tpu.pipeline_mode<synchronous>, transform_indices = @transform_2, window_bounds = array<i64: 1, 512>}, {transform_indices = @transform_3, window_bounds = array<i64: 1, 16, 512>}]} {
    %c0 = arith.constant 0 : index
    %c0_0 = arith.constant 0 : index
    %c0_1 = arith.constant 0 : index
    %0 = vector.load %arg1[%c0, %c0_0, %c0_1] : memref<1x18x288xbf16, #tpu.memory_space<vmem>>, vector<1x18x288xbf16>
    %1 = vector.shape_cast %0 : vector<1x18x288xbf16> to vector<18x288xbf16>
    %2 = vector.extract_strided_slice %1 {offsets = [0, 0], sizes = [16, 288], strides = [1, 1]} : vector<18x288xbf16> to vector<16x288xbf16>
    %c0_2 = arith.constant 0 : index
    %c0_3 = arith.constant 0 : index
    %c0_4 = arith.constant 0 : index
    %3 = vector.load %arg2[%c0_2, %c0_3, %c0_4] : memref<3x288x512xbf16, #tpu.memory_space<vmem>>, vector<1x288x512xbf16>
    %4 = vector.shape_cast %3 : vector<1x288x512xbf16> to vector<288x512xbf16>
    %cst = arith.constant dense<0.000000e+00> : vector<16x512xf32>
    %5 = tpu.matmul %2, %4, %cst {dimension_numbers = #tpu.dot_dimension_numbers<[1], [0], [0], [1], [0, 0, 1, 1], [], []>} : vector<16x288xbf16>, vector<288x512xbf16>, vector<16x512xf32> -> vector<16x512xf32>
    %6 = vector.extract_strided_slice %1 {offsets = [1, 0], sizes = [16, 288], strides = [1, 1]} : vector<18x288xbf16> to vector<16x288xbf16>
    %c1 = arith.constant 1 : index
    %c0_5 = arith.constant 0 : index
    %c0_6 = arith.constant 0 : index
    %7 = vector.load %arg2[%c1, %c0_5, %c0_6] : memref<3x288x512xbf16, #tpu.memory_space<vmem>>, vector<1x288x512xbf16>
    %8 = vector.shape_cast %7 : vector<1x288x512xbf16> to vector<288x512xbf16>
    %cst_7 = arith.constant dense<0.000000e+00> : vector<16x512xf32>
    %9 = tpu.matmul %6, %8, %cst_7 {dimension_numbers = #tpu.dot_dimension_numbers<[1], [0], [0], [1], [0, 0, 1, 1], [], []>} : vector<16x288xbf16>, vector<288x512xbf16>, vector<16x512xf32> -> vector<16x512xf32>
    %10 = arith.addf %5, %9 : vector<16x512xf32>
    %11 = vector.extract_strided_slice %1 {offsets = [2, 0], sizes = [16, 288], strides = [1, 1]} : vector<18x288xbf16> to vector<16x288xbf16>
    %c2 = arith.constant 2 : index
    %c0_8 = arith.constant 0 : index
    %c0_9 = arith.constant 0 : index
    %12 = vector.load %arg2[%c2, %c0_8, %c0_9] : memref<3x288x512xbf16, #tpu.memory_space<vmem>>, vector<1x288x512xbf16>
    %13 = vector.shape_cast %12 : vector<1x288x512xbf16> to vector<288x512xbf16>
    %cst_10 = arith.constant dense<0.000000e+00> : vector<16x512xf32>
    %14 = tpu.matmul %11, %13, %cst_10 {dimension_numbers = #tpu.dot_dimension_numbers<[1], [0], [0], [1], [0, 0, 1, 1], [], []>} : vector<16x288xbf16>, vector<288x512xbf16>, vector<16x512xf32> -> vector<16x512xf32>
    %15 = arith.addf %10, %14 : vector<16x512xf32>
    %c0_11 = arith.constant 0 : index
    %c0_12 = arith.constant 0 : index
    %16 = vector.load %arg3[%c0_11, %c0_12] : memref<1x512xf32, #tpu.memory_space<vmem>>, vector<1x512xf32>
    %17 = vector.broadcast %16 : vector<1x512xf32> to vector<16x512xf32>
    %18 = arith.addf %15, %17 : vector<16x512xf32>
    %cst_13 = arith.constant 0.000000e+00 : f32
    %19 = vector.broadcast %cst_13 : f32 to vector<16x512xf32>
    %20 = arith.maximumf %18, %19 : vector<16x512xf32>
    %21 = arith.truncf %20 : vector<16x512xf32> to vector<16x512xbf16>
    %c0_14 = arith.constant 0 : index
    %c0_15 = arith.constant 0 : index
    %c0_16 = arith.constant 0 : index
    %22 = vector.load %arg4[%c0_14, %c0_15, %c0_16] : memref<1x16x512xbf16, #tpu.memory_space<vmem>>, vector<1x16x512xbf16>
    %23 = vector.shape_cast %22 : vector<1x16x512xbf16> to vector<16x512xbf16>
    %24 = vector.shape_cast %21 : vector<16x512xbf16> to vector<1x16x512xbf16>
    tpu.vector_store %arg4[%c0_14, %c0_15, %c0_16], %24 {strides = array<i32>} : memref<1x16x512xbf16, #tpu.memory_space<vmem>>, vector<1x16x512xbf16>,
    return
  }
  func.func @transform_0(%arg0: i32) -> (i32, i32, i32) {
    %c0_i32 = arith.constant 0 : i32
    %c0_i32_0 = arith.constant 0 : i32
    %c0_i32_1 = arith.constant 0 : i32
    return %arg0, %c0_i32, %c0_i32_0 : i32, i32, i32
  }
  func.func @transform_1(%arg0: i32) -> (i32, i32, i32) {
    %c0_i32 = arith.constant 0 : i32
    %c0_i32_0 = arith.constant 0 : i32
    %c0_i32_1 = arith.constant 0 : i32
    %c0_i32_2 = arith.constant 0 : i32
    return %c0_i32, %c0_i32_0, %c0_i32_1 : i32, i32, i32
  }
  func.func @transform_2(%arg0: i32) -> (i32, i32) {
    %c0_i32 = arith.constant 0 : i32
    %c0_i32_0 = arith.constant 0 : i32
    %c0_i32_1 = arith.constant 0 : i32
    return %c0_i32, %c0_i32_0 : i32, i32
  }
  func.func @transform_3(%arg0: i32) -> (i32, i32, i32) {
    %c0_i32 = arith.constant 0 : i32
    %c0_i32_0 = arith.constant 0 : i32
    %c0_i32_1 = arith.constant 0 : i32
    return %arg0, %c0_i32, %c0_i32_0 : i32, i32, i32
  }
}

module attributes {stable_mosaic.version = 11 : i64} {
  func.func @_conv_row_kernel(%arg0: i32, %arg1: memref<1x10x320xbf16, #tpu.memory_space<vmem>>, %arg2: memref<3x320x512xbf16, #tpu.memory_space<vmem>>, %arg3: memref<1x512xf32, #tpu.memory_space<vmem>>, %arg4: memref<1x8x512xbf16, #tpu.memory_space<vmem>>) attributes {dimension_semantics = [#tpu.dimension_semantics<parallel>], iteration_bounds = array<i64: 2>, scalar_prefetch = 0 : i64, scratch_operands = 0 : i64, tpu.core_type = #tpu.core_type<tc>, window_params = [{transform_indices = @transform_0, window_bounds = array<i64: 1, 10, 320>}, {pipeline_mode = #tpu.pipeline_mode<synchronous>, transform_indices = @transform_1, window_bounds = array<i64: 3, 320, 512>}, {pipeline_mode = #tpu.pipeline_mode<synchronous>, transform_indices = @transform_2, window_bounds = array<i64: 1, 512>}, {transform_indices = @transform_3, window_bounds = array<i64: 1, 8, 512>}]} {
    %c0 = arith.constant 0 : index
    %c0_0 = arith.constant 0 : index
    %c0_1 = arith.constant 0 : index
    %0 = vector.load %arg1[%c0, %c0_0, %c0_1] : memref<1x10x320xbf16, #tpu.memory_space<vmem>>, vector<1x10x320xbf16>
    %1 = vector.shape_cast %0 : vector<1x10x320xbf16> to vector<10x320xbf16>
    %2 = vector.extract_strided_slice %1 {offsets = [0, 0], sizes = [8, 320], strides = [1, 1]} : vector<10x320xbf16> to vector<8x320xbf16>
    %c0_2 = arith.constant 0 : index
    %c0_3 = arith.constant 0 : index
    %c0_4 = arith.constant 0 : index
    %3 = vector.load %arg2[%c0_2, %c0_3, %c0_4] : memref<3x320x512xbf16, #tpu.memory_space<vmem>>, vector<1x320x512xbf16>
    %4 = vector.shape_cast %3 : vector<1x320x512xbf16> to vector<320x512xbf16>
    %cst = arith.constant dense<0.000000e+00> : vector<8x512xf32>
    %5 = tpu.matmul %2, %4, %cst {dimension_numbers = #tpu.dot_dimension_numbers<[1], [0], [0], [1], [0, 0, 1, 1], [], []>} : vector<8x320xbf16>, vector<320x512xbf16>, vector<8x512xf32> -> vector<8x512xf32>
    %6 = vector.extract_strided_slice %1 {offsets = [1, 0], sizes = [8, 320], strides = [1, 1]} : vector<10x320xbf16> to vector<8x320xbf16>
    %c1 = arith.constant 1 : index
    %c0_5 = arith.constant 0 : index
    %c0_6 = arith.constant 0 : index
    %7 = vector.load %arg2[%c1, %c0_5, %c0_6] : memref<3x320x512xbf16, #tpu.memory_space<vmem>>, vector<1x320x512xbf16>
    %8 = vector.shape_cast %7 : vector<1x320x512xbf16> to vector<320x512xbf16>
    %cst_7 = arith.constant dense<0.000000e+00> : vector<8x512xf32>
    %9 = tpu.matmul %6, %8, %cst_7 {dimension_numbers = #tpu.dot_dimension_numbers<[1], [0], [0], [1], [0, 0, 1, 1], [], []>} : vector<8x320xbf16>, vector<320x512xbf16>, vector<8x512xf32> -> vector<8x512xf32>
    %10 = arith.addf %5, %9 : vector<8x512xf32>
    %11 = vector.extract_strided_slice %1 {offsets = [2, 0], sizes = [8, 320], strides = [1, 1]} : vector<10x320xbf16> to vector<8x320xbf16>
    %c2 = arith.constant 2 : index
    %c0_8 = arith.constant 0 : index
    %c0_9 = arith.constant 0 : index
    %12 = vector.load %arg2[%c2, %c0_8, %c0_9] : memref<3x320x512xbf16, #tpu.memory_space<vmem>>, vector<1x320x512xbf16>
    %13 = vector.shape_cast %12 : vector<1x320x512xbf16> to vector<320x512xbf16>
    %cst_10 = arith.constant dense<0.000000e+00> : vector<8x512xf32>
    %14 = tpu.matmul %11, %13, %cst_10 {dimension_numbers = #tpu.dot_dimension_numbers<[1], [0], [0], [1], [0, 0, 1, 1], [], []>} : vector<8x320xbf16>, vector<320x512xbf16>, vector<8x512xf32> -> vector<8x512xf32>
    %15 = arith.addf %10, %14 : vector<8x512xf32>
    %c0_11 = arith.constant 0 : index
    %c0_12 = arith.constant 0 : index
    %16 = vector.load %arg3[%c0_11, %c0_12] : memref<1x512xf32, #tpu.memory_space<vmem>>, vector<1x512xf32>
    %17 = vector.broadcast %16 : vector<1x512xf32> to vector<8x512xf32>
    %18 = arith.addf %15, %17 : vector<8x512xf32>
    %cst_13 = arith.constant 0.000000e+00 : f32
    %19 = vector.broadcast %cst_13 : f32 to vector<8x512xf32>
    %20 = arith.maximumf %18, %19 : vector<8x512xf32>
    %21 = arith.truncf %20 : vector<8x512xf32> to vector<8x512xbf16>
    %c0_14 = arith.constant 0 : index
    %c0_15 = arith.constant 0 : index
    %c0_16 = arith.constant 0 : index
    %22 = vector.load %arg4[%c0_14, %c0_15, %c0_16] : memref<1x8x512xbf16, #tpu.memory_space<vmem>>, vector<1x8x512xbf16>
    %23 = vector.shape_cast %22 : vector<1x8x512xbf16> to vector<8x512xbf16>
    %24 = vector.shape_cast %21 : vector<8x512xbf16> to vector<1x8x512xbf16>
    tpu.vector_store %arg4[%c0_14, %c0_15, %c0_16], %24 {strides = array<i32>} : memref<1x8x512xbf16, #tpu.memory_space<vmem>>, vector<1x8x512xbf16>,
    return
  }
  func.func @transform_0(%arg0: i32) -> (i32, i32, i32) {
    %c0_i32 = arith.constant 0 : i32
    %c0_i32_0 = arith.constant 0 : i32
    %c0_i32_1 = arith.constant 0 : i32
    return %arg0, %c0_i32, %c0_i32_0 : i32, i32, i32
  }
  func.func @transform_1(%arg0: i32) -> (i32, i32, i32) {
    %c0_i32 = arith.constant 0 : i32
    %c0_i32_0 = arith.constant 0 : i32
    %c0_i32_1 = arith.constant 0 : i32
    %c0_i32_2 = arith.constant 0 : i32
    return %c0_i32, %c0_i32_0, %c0_i32_1 : i32, i32, i32
  }
  func.func @transform_2(%arg0: i32) -> (i32, i32) {
    %c0_i32 = arith.constant 0 : i32
    %c0_i32_0 = arith.constant 0 : i32
    %c0_i32_1 = arith.constant 0 : i32
    return %c0_i32, %c0_i32_0 : i32, i32
  }
  func.func @transform_3(%arg0: i32) -> (i32, i32, i32) {
    %c0_i32 = arith.constant 0 : i32
    %c0_i32_0 = arith.constant 0 : i32
    %c0_i32_1 = arith.constant 0 : i32
    return %arg0, %c0_i32, %c0_i32_0 : i32, i32, i32
  }
}

module attributes {stable_mosaic.version = 11 : i64} {
  func.func @_fc_fused_kernel(%arg0: i32, %arg1: memref<2x1024xbf16, #tpu.memory_space<vmem>>, %arg2: memref<1024x512xbf16, #tpu.memory_space<vmem>>, %arg3: memref<1x512xf32, #tpu.memory_space<vmem>>, %arg4: memref<512x256xbf16, #tpu.memory_space<vmem>>, %arg5: memref<1x256xf32, #tpu.memory_space<vmem>>, %arg6: memref<256x10xbf16, #tpu.memory_space<vmem>>, %arg7: memref<1x10xf32, #tpu.memory_space<vmem>>, %arg8: memref<2x10xf32, #tpu.memory_space<vmem>>) attributes {dimension_semantics = [#tpu.dimension_semantics<arbitrary>], iteration_bounds = array<i64: 1>, scalar_prefetch = 0 : i64, scratch_operands = 0 : i64, tpu.core_type = #tpu.core_type<tc>, window_params = [{pipeline_mode = #tpu.pipeline_mode<synchronous>, transform_indices = @transform_0, window_bounds = array<i64: 2, 1024>}, {pipeline_mode = #tpu.pipeline_mode<synchronous>, transform_indices = @transform_1, window_bounds = array<i64: 1024, 512>}, {pipeline_mode = #tpu.pipeline_mode<synchronous>, transform_indices = @transform_2, window_bounds = array<i64: 1, 512>}, {pipeline_mode = #tpu.pipeline_mode<synchronous>, transform_indices = @transform_3, window_bounds = array<i64: 512, 256>}, {pipeline_mode = #tpu.pipeline_mode<synchronous>, transform_indices = @transform_4, window_bounds = array<i64: 1, 256>}, {pipeline_mode = #tpu.pipeline_mode<synchronous>, transform_indices = @transform_5, window_bounds = array<i64: 256, 10>}, {pipeline_mode = #tpu.pipeline_mode<synchronous>, transform_indices = @transform_6, window_bounds = array<i64: 1, 10>}, {pipeline_mode = #tpu.pipeline_mode<synchronous>, transform_indices = @transform_7, window_bounds = array<i64: 2, 10>}]} {
    %c0 = arith.constant 0 : index
    %c0_0 = arith.constant 0 : index
    %0 = vector.load %arg1[%c0, %c0_0] : memref<2x1024xbf16, #tpu.memory_space<vmem>>, vector<2x1024xbf16>
    %c0_1 = arith.constant 0 : index
    %c0_2 = arith.constant 0 : index
    %1 = vector.load %arg2[%c0_1, %c0_2] : memref<1024x512xbf16, #tpu.memory_space<vmem>>, vector<1024x512xbf16>
    %cst = arith.constant dense<0.000000e+00> : vector<2x512xf32>
    %2 = tpu.matmul %0, %1, %cst {dimension_numbers = #tpu.dot_dimension_numbers<[1], [0], [0], [1], [0, 0, 1, 1], [], []>} : vector<2x1024xbf16>, vector<1024x512xbf16>, vector<2x512xf32> -> vector<2x512xf32>
    %c0_3 = arith.constant 0 : index
    %c0_4 = arith.constant 0 : index
    %3 = vector.load %arg3[%c0_3, %c0_4] : memref<1x512xf32, #tpu.memory_space<vmem>>, vector<1x512xf32>
    %4 = vector.broadcast %3 : vector<1x512xf32> to vector<2x512xf32>
    %5 = arith.addf %2, %4 : vector<2x512xf32>
    %cst_5 = arith.constant 0.000000e+00 : f32
    %6 = vector.broadcast %cst_5 : f32 to vector<2x512xf32>
    %7 = arith.maximumf %5, %6 : vector<2x512xf32>
    %8 = arith.truncf %7 : vector<2x512xf32> to vector<2x512xbf16>
    %c0_6 = arith.constant 0 : index
    %c0_7 = arith.constant 0 : index
    %9 = vector.load %arg4[%c0_6, %c0_7] : memref<512x256xbf16, #tpu.memory_space<vmem>>, vector<512x256xbf16>
    %cst_8 = arith.constant dense<0.000000e+00> : vector<2x256xf32>
    %10 = tpu.matmul %8, %9, %cst_8 {dimension_numbers = #tpu.dot_dimension_numbers<[1], [0], [0], [1], [0, 0, 1, 1], [], []>} : vector<2x512xbf16>, vector<512x256xbf16>, vector<2x256xf32> -> vector<2x256xf32>
    %c0_9 = arith.constant 0 : index
    %c0_10 = arith.constant 0 : index
    %11 = vector.load %arg5[%c0_9, %c0_10] : memref<1x256xf32, #tpu.memory_space<vmem>>, vector<1x256xf32>
    %12 = vector.broadcast %11 : vector<1x256xf32> to vector<2x256xf32>
    %13 = arith.addf %10, %12 : vector<2x256xf32>
    %cst_11 = arith.constant 0.000000e+00 : f32
    %14 = vector.broadcast %cst_11 : f32 to vector<2x256xf32>
    %15 = arith.maximumf %13, %14 : vector<2x256xf32>
    %16 = arith.truncf %15 : vector<2x256xf32> to vector<2x256xbf16>
    %c0_12 = arith.constant 0 : index
    %c0_13 = arith.constant 0 : index
    %17 = vector.load %arg6[%c0_12, %c0_13] : memref<256x10xbf16, #tpu.memory_space<vmem>>, vector<256x10xbf16>
    %cst_14 = arith.constant dense<0.000000e+00> : vector<2x10xf32>
    %18 = tpu.matmul %16, %17, %cst_14 {dimension_numbers = #tpu.dot_dimension_numbers<[1], [0], [0], [1], [0, 0, 1, 1], [], []>} : vector<2x256xbf16>, vector<256x10xbf16>, vector<2x10xf32> -> vector<2x10xf32>
    %c0_15 = arith.constant 0 : index
    %c0_16 = arith.constant 0 : index
    %19 = vector.load %arg7[%c0_15, %c0_16] : memref<1x10xf32, #tpu.memory_space<vmem>>, vector<1x10xf32>
    %20 = vector.broadcast %19 : vector<1x10xf32> to vector<2x10xf32>
    %21 = arith.addf %18, %20 : vector<2x10xf32>
    %c0_17 = arith.constant 0 : index
    %c0_18 = arith.constant 0 : index
    %22 = vector.load %arg8[%c0_17, %c0_18] : memref<2x10xf32, #tpu.memory_space<vmem>>, vector<2x10xf32>
    tpu.vector_store %arg8[%c0_17, %c0_18], %21 {strides = array<i32>} : memref<2x10xf32, #tpu.memory_space<vmem>>, vector<2x10xf32>,
    return
  }
  func.func @transform_0(%arg0: i32) -> (i32, i32) {
    %c0_i32 = arith.constant 0 : i32
    %c0_i32_0 = arith.constant 0 : i32
    %c0_i32_1 = arith.constant 0 : i32
    return %c0_i32, %c0_i32_0 : i32, i32
  }
  func.func @transform_1(%arg0: i32) -> (i32, i32) {
    %c0_i32 = arith.constant 0 : i32
    %c0_i32_0 = arith.constant 0 : i32
    %c0_i32_1 = arith.constant 0 : i32
    return %c0_i32, %c0_i32_0 : i32, i32
  }
  func.func @transform_2(%arg0: i32) -> (i32, i32) {
    %c0_i32 = arith.constant 0 : i32
    %c0_i32_0 = arith.constant 0 : i32
    %c0_i32_1 = arith.constant 0 : i32
    return %c0_i32, %c0_i32_0 : i32, i32
  }
  func.func @transform_3(%arg0: i32) -> (i32, i32) {
    %c0_i32 = arith.constant 0 : i32
    %c0_i32_0 = arith.constant 0 : i32
    %c0_i32_1 = arith.constant 0 : i32
    return %c0_i32, %c0_i32_0 : i32, i32
  }
  func.func @transform_4(%arg0: i32) -> (i32, i32) {
    %c0_i32 = arith.constant 0 : i32
    %c0_i32_0 = arith.constant 0 : i32
    %c0_i32_1 = arith.constant 0 : i32
    return %c0_i32, %c0_i32_0 : i32, i32
  }
  func.func @transform_5(%arg0: i32) -> (i32, i32) {
    %c0_i32 = arith.constant 0 : i32
    %c0_i32_0 = arith.constant 0 : i32
    %c0_i32_1 = arith.constant 0 : i32
    return %c0_i32, %c0_i32_0 : i32, i32
  }
  func.func @transform_6(%arg0: i32) -> (i32, i32) {
    %c0_i32 = arith.constant 0 : i32
    %c0_i32_0 = arith.constant 0 : i32
    %c0_i32_1 = arith.constant 0 : i32
    return %c0_i32, %c0_i32_0 : i32, i32
  }
  func.func @transform_7(%arg0: i32) -> (i32, i32) {
    %c0_i32 = arith.constant 0 : i32
    %c0_i32_0 = arith.constant 0 : i32
    %c0_i32_1 = arith.constant 0 : i32
    return %c0_i32, %c0_i32_0 : i32, i32
  }
}

</mosaic_0001>

<llo_original>
// kernel: net_forward.4
$region0: #{net_forward.4}
  #allocation0 [shape = 'u32[]', space=smem, size = 0x4, offset = 0x4, fixed_abs, tag = 'smem constant byte address 0x4 - core index']
  #allocation1 [shape = 'u32[144,128]{1,0:T(1,128)}', space=vmem, size = 0x12000, scoped, tag = 'internal scratch']
  %s0 = inlined_call_operand.vmem [shape: bf16[2,34,102], index: 0, kind: input, shape index: {}]
  %s1 = inlined_call_operand.vmem [shape: bf16[3,102,512], index: 1, kind: input, shape index: {}]
  %s2 = inlined_call_operand.vmem [shape: f32[1,512], index: 2, kind: input, shape index: {}]
  %s3 = inlined_call_operand.vmem [shape: bf16[2,32,512], index: 3, kind: output, shape index: {}]
  %s4 = sld [smem:[#allocation0]]
  $region45: #{net_forward.4} parent=0
    _
  %s6 = ssub.s32 1, %s4
  %s7 = scalar_select 0, %s6, %s4
  loop: start=0, step=1, limit=4
  $region2: #{net_forward.4} parent=0 // loop_pre_header
    _
  $region3: #{net_forward.4} parent=0 // loop_header
    %s9 = sphi 0, %s13
    %p10 = scmp.ge.s32.totalorder %s9, 4
    %s19 = sphi 0, %s21
    %s22 = sphi 0, %s19
    %s23 = sphi 0, %s22
    %s39 = sphi 0, %s23
    %s43 = sphi 0, %s43
    %s45 = sphi 0, %s43
    %s46 = sphi 0, %s45
    %s60 = sphi 0, %s46
    %s64 = sphi 0, %s64
    %s66 = sphi 0, %s64
    %s67 = sphi 0, %s66
    %s81 = sphi 0, %s67
    %s87 = sphi 0, %s89
    %s90 = sphi 0, %s87
    %s91 = sphi 0, %s90
    %s107 = sphi 0, %s91
  $region4: #{net_forward.4} parent=0 // loop_header_branch
    %12 = sbr.rel (%p10) target = $region8
  $region5: #{net_forward.4} parent=0 // loop_body
    %s14 = ssub.s32 %s9, 1
    %s15 = ssub.s32 %s9, 2
    %s16 = sadd.s32 %s9, 1
    %s17 = ssub.s32 %s9, %s16
    %p18 = scmp.eq.s32.totalorder %s17, 0
    %s20 = sadd.s32 %s19, 1
    %s21 = scalar_select %p18, %s19, %s20
    %p24 = pneg %p18
    %p25 = scmp.eq.s32.totalorder %s9, 1
    %p26 = por %p24, %p25
    %p27 = scmp.ne.s32.totalorder %s19, %s22
    %p28 = scmp.eq.s32.totalorder %s9, 0
    %p29 = por %p27, %p28
    %p30 = scmp.ne.s32.totalorder %s19, %s22
    %p31 = scmp.eq.s32.totalorder %s14, 1
    %p32 = por %p30, %p31
    %p33 = scmp.ne.s32.totalorder %s22, %s23
    %p34 = scmp.eq.s32.totalorder %s14, 0
    %p35 = por %p33, %p34
    %p36 = scmp.ne.s32.totalorder %s22, %s23
    %p37 = scmp.eq.s32.totalorder %s15, 1
    %p38 = por %p36, %p37
    %p40 = scmp.ne.s32.totalorder %s23, %s39
    %p41 = scmp.eq.s32.totalorder %s15, 0
    %p42 = por %p40, %p41
    %s44 = sadd.s32 %s43, 1
    %p47 = scmp.eq.s32.totalorder %s9, 1
    %p48 = scmp.ne.s32.totalorder %s43, %s45
    %p49 = scmp.eq.s32.totalorder %s9, 0
    %p50 = por %p48, %p49
    %p51 = scmp.ne.s32.totalorder %s43, %s45
    %p52 = scmp.eq.s32.totalorder %s14, 1
    %p53 = por %p51, %p52
    %p54 = scmp.ne.s32.totalorder %s45, %s46
    %p55 = scmp.eq.s32.totalorder %s14, 0
    %p56 = por %p54, %p55
    %p57 = scmp.ne.s32.totalorder %s45, %s46
    %p58 = scmp.eq.s32.totalorder %s15, 1
    %p59 = por %p57, %p58
    %p61 = scmp.ne.s32.totalorder %s46, %s60
    %p62 = scmp.eq.s32.totalorder %s15, 0
    %p63 = por %p61, %p62
    %s65 = sadd.s32 %s64, 1
    %p68 = scmp.eq.s32.totalorder %s9, 1
    %p69 = scmp.ne.s32.totalorder %s64, %s66
    %p70 = scmp.eq.s32.totalorder %s9, 0
    %p71 = por %p69, %p70
    %p72 = scmp.ne.s32.totalorder %s64, %s66
    %p73 = scmp.eq.s32.totalorder %s14, 1
    %p74 = por %p72, %p73
    %p75 = scmp.ne.s32.totalorder %s66, %s67
    %p76 = scmp.eq.s32.totalorder %s14, 0
    %p77 = por %p75, %p76
    %p78 = scmp.ne.s32.totalorder %s66, %s67
    %p79 = scmp.eq.s32.totalorder %s15, 1
    %p80 = por %p78, %p79
    %p82 = scmp.ne.s32.totalorder %s67, %s81
    %p83 = scmp.eq.s32.totalorder %s15, 0
    %p84 = por %p82, %p83
    %s85 = ssub.s32 %s9, %s16
    %p86 = scmp.eq.s32.totalorder %s85, 0
    %s88 = sadd.s32 %s87, 1
    %s89 = scalar_select %p86, %s87, %s88
    %p92 = pneg %p86
    %p93 = scmp.eq.s32.totalorder %s9, 1
    %p94 = por %p92, %p93
    %p95 = scmp.ne.s32.totalorder %s87, %s90
    %p96 = scmp.eq.s32.totalorder %s9, 0
    %p97 = por %p95, %p96
    %p98 = scmp.ne.s32.totalorder %s87, %s90
    %p99 = scmp.eq.s32.totalorder %s14, 1
    %p100 = por %p98, %p99
    %p101 = scmp.ne.s32.totalorder %s90, %s91
    %p102 = scmp.eq.s32.totalorder %s14, 0
    %p103 = por %p101, %p102
    %p104 = scmp.ne.s32.totalorder %s90, %s91
    %p105 = scmp.eq.s32.totalorder %s15, 1
    %p106 = por %p104, %p105
    %p108 = scmp.ne.s32.totalorder %s91, %s107
    %p109 = scmp.eq.s32.totalorder %s15, 0
    %p110 = por %p108, %p109
    %p111 = scmp.le.s32.totalorder 1, %s9
    %p112 = scmp.lt.s32.totalorder %s9, 3
    %p113 = pnand %p111, %p112
    %p114 = pneg %p113
    // Predicated region
    $region9: #{net_forward.4} parent=5 // pred_check
      _
    $region10: #{net_forward.4} parent=5 // pred_check_branch
      %116 = sbr.rel (%p113) target = $region12
    $region11: #{net_forward.4} parent=5 // pred_region
      %s117 = ssub.s32 %s9, 1
      // Predicated region
      $region13: #{net_forward.4} parent=11 // pred_check
        %p118 = pneg %p56
      $region14: #{net_forward.4} parent=11 // pred_check_branch
        %120 = sbr.rel (%p118) target = $region16
      $region15: #{net_forward.4} parent=11 // pred_region
        _
      $region16: #{net_forward.4} parent=11 // pred_fallthru
        _
      // Predicated region
      $region17: #{net_forward.4} parent=11 // pred_check
        %p121 = pneg %p77
      $region18: #{net_forward.4} parent=11 // pred_check_branch
        %123 = sbr.rel (%p121) target = $region20
      $region19: #{net_forward.4} parent=11 // pred_region
        _
      $region20: #{net_forward.4} parent=11 // pred_fallthru
        _
    $region12: #{net_forward.4} parent=5 // pred_fallthru
      _
    %p124 = scmp.lt.s32.totalorder %s9, 2
    // Predicated region
    $region21: #{net_forward.4} parent=5 // pred_check
      %p125 = pneg %p124
    $region22: #{net_forward.4} parent=5 // pred_check_branch
      %127 = sbr.rel (%p125) target = $region24
    $region23: #{net_forward.4} parent=5 // pred_region
      // Predicated region
      $region25: #{net_forward.4} parent=23 // pred_check
        %p128 = pneg %p29
      $region26: #{net_forward.4} parent=23 // pred_check_branch
        %130 = sbr.rel (%p128) target = $region28
      $region27: #{net_forward.4} parent=23 // pred_region
        %p131 = scmp.lt.s32.totalorder %s9, 1
        %s132 = scalar_select %p131, %s9, 1
        %s133 = smul.addr %s132, 5
        %s134 = smul.addr %s133, 4
        %s135 = scalar_lea.vmem %s0, %s134
      $region28: #{net_forward.4} parent=23 // pred_fallthru
        _
    $region24: #{net_forward.4} parent=5 // pred_fallthru
      _
    %p136 = scmp.le.s32.totalorder 1, %s9
    %p137 = scmp.lt.s32.totalorder %s9, 3
    %p138 = pnand %p136, %p137
    %p139 = pneg %p138
    // Predicated region
    $region29: #{net_forward.4} parent=5 // pred_check
      _
    $region30: #{net_forward.4} parent=5 // pred_check_branch
      %141 = sbr.rel (%p138) target = $region32
    $region31: #{net_forward.4} parent=5 // pred_region
      %s142 = ssub.s32 %s9, 1
      %p143 = scmp.lt.s32.totalorder %s14, 1
      %s144 = scalar_select %p143, %s14, 1
      %s145 = smul.addr %s144, 5
      %s146 = smul.addr %s145, 4
      %s147 = scalar_lea.vmem %s0, %s146
      %p148 = pneg %p35
      %p149 = pneg %p32
      %p150 = pneg %p56
      %p151 = pneg %p53
      %p152 = pneg %p77
      %p153 = pneg %p74
      %p154 = pneg %p103
      %p155 = pneg %p100
      %p156 = scmp.lt.s32.totalorder %s14, 1
      %s157 = scalar_select %p156, %s14, 1
      %s158 = smul.addr %s157, 16
      %s159 = smul.addr %s158, 4
      %s160 = scalar_lea.vmem %s3, %s159
      %p161 = scmp.lt.s32.totalorder %s14, 1
      %s162 = scalar_select %p161, %s14, 1
      %s163 = smul.addr %s162, 5
      %s164 = smul.addr %s163, 4
      %s165 = scalar_lea.vmem %s0, %s164
      %p166 = scmp.lt.s32.totalorder %s14, 1
      %s167 = scalar_select %p166, %s14, 1
      %s168 = smul.addr %s167, 16
      %s169 = smul.addr %s168, 4
      %s170 = scalar_lea.vmem %s3, %s169
      %v172 = vld [vmem:[%s165] sm:$0xf]
      %v173 = vld [vmem:[%s165 + $0x4] sm:$0xf]
      %v174 = vld [vmem:[%s165 + $0x8] sm:$0xf]
      %v175 = vld [vmem:[%s165 + $0xc] sm:$0xf]
      %v176 = vld [vmem:[%s165 + $0x10] sm:$0x1]
      %v177 = vld [vmem:[%s1] sm:$0xff]
      %v178 = vld [vmem:[%s1 + $0x8] sm:$0xff]
      %v179 = vld [vmem:[%s1 + $0x10] sm:$0xff]
      %v180 = vld [vmem:[%s1 + $0x18] sm:$0xff]
      %v181 = vld [vmem:[%s1 + $0x20] sm:$0xff]
      %v182 = vld [vmem:[%s1 + $0x28] sm:$0xff]
      %v183 = vld [vmem:[%s1 + $0x30] sm:$0xff]
      %v184 = vld [vmem:[%s1 + $0x38] sm:$0xff]
      %v185 = vld [vmem:[%s1 + $0x40] sm:$0xff]
      %v186 = vld [vmem:[%s1 + $0x48] sm:$0xff]
      %v187 = vld [vmem:[%s1 + $0x50] sm:$0xff]
      %v188 = vld [vmem:[%s1 + $0x58] sm:$0xff]
      %v189 = vld [vmem:[%s1 + $0x60] sm:$0xff]
      %v190 = vld [vmem:[%s1 + $0x68] sm:$0xff]
      %v191 = vld [vmem:[%s1 + $0x70] sm:$0xff]
      %v192 = vld [vmem:[%s1 + $0x78] sm:$0xff]
      %v193 = vld [vmem:[%s1 + $0x80] sm:$0xff]
      %v194 = vld [vmem:[%s1 + $0x88] sm:$0xff]
      %v195 = vld [vmem:[%s1 + $0x90] sm:$0xff]
      %v196 = vld [vmem:[%s1 + $0x98] sm:$0xff]
      %v197 = vld [vmem:[%s1 + $0xa0] sm:$0xff]
      %v198 = vld [vmem:[%s1 + $0xa8] sm:$0xff]
      %v199 = vld [vmem:[%s1 + $0xb0] sm:$0xff]
      %v200 = vld [vmem:[%s1 + $0xb8] sm:$0xff]
      %v201 = vld [vmem:[%s1 + $0xc0] sm:$0x77]
      %v202 = vld [vmem:[%s1 + $0xc8] sm:$0x77]
      %s203 = scalar_lea.vmem %s1, 208
      %v204 = vld [vmem:[%s203] sm:$0xff]
      %v205 = vld [vmem:[%s203 + $0x8] sm:$0xff]
      %v206 = vld [vmem:[%s203 + $0x10] sm:$0xff]
      %v207 = vld [vmem:[%s203 + $0x18] sm:$0xff]
      %v208 = vld [vmem:[%s203 + $0x20] sm:$0xff]
      %v209 = vld [vmem:[%s203 + $0x28] sm:$0xff]
      %v210 = vld [vmem:[%s203 + $0x30] sm:$0xff]
      %v211 = vld [vmem:[%s203 + $0x38] sm:$0xff]
      %v212 = vld [vmem:[%s203 + $0x40] sm:$0xff]
      %v213 = vld [vmem:[%s203 + $0x48] sm:$0xff]
      %v214 = vld [vmem:[%s203 + $0x50] sm:$0xff]
      %v215 = vld [vmem:[%s203 + $0x58] sm:$0xff]
      %v216 = vld [vmem:[%s203 + $0x60] sm:$0xff]
      %v217 = vld [vmem:[%s203 + $0x68] sm:$0xff]
      %v218 = vld [vmem:[%s203 + $0x70] sm:$0xff]
      %v219 = vld [vmem:[%s203 + $0x78] sm:$0xff]
      %v220 = vld [vmem:[%s203 + $0x80] sm:$0xff]
      %v221 = vld [vmem:[%s203 + $0x88] sm:$0xff]
      %v222 = vld [vmem:[%s203 + $0x90] sm:$0xff]
      %v223 = vld [vmem:[%s203 + $0x98] sm:$0xff]
      %v224 = vld [vmem:[%s203 + $0xa0] sm:$0xff]
      %v225 = vld [vmem:[%s203 + $0xa8] sm:$0xff]
      %v226 = vld [vmem:[%s203 + $0xb0] sm:$0xff]
      %v227 = vld [vmem:[%s203 + $0xb8] sm:$0xff]
      %v228 = vld [vmem:[%s203 + $0xc0] sm:$0x77]
      %v229 = vld [vmem:[%s203 + $0xc8] sm:$0x77]
      %v235 = vunpack.c.l.b16 %v172
      %v236 = vunpack.c.l.b16 %v173
      %v237 = vunpack.c.l.b16 %v174
      %v238 = vunpack.c.l.b16 %v175
      %v239 = vunpack.c.l.b16 %v176
      %v240 = vpack.c.b16 %v236, %v235
      %v241 = vpack.c.b16 %v238, %v237
      %v242 = vpack.c.b16 %v239, %v239
      %vm243 = vsmask.f32 7424
      %v245 = vshrl.u32 %v240, 16
      %v247 = vshll.u32 %v240, 16
      %v249 = vrot.slane %v247, 1
      %v250 = vor.u32 %v245, %v249
      %v252 = vshll.u32 %v241, 16
      %v254 = vrot.slane %v252, 1
      %v255 = vsel %vm243, %v250, %v254
      %v256 = vshrl.u32 %v241, 16
      %v258 = vor.u32 %v256, %v254
      %v260 = vshll.u32 %v242, 16
      %v262 = vrot.slane %v260, 1
      %v263 = vsel %vm243, %v258, %v262
      %v290 = vunpack.c.l.b16 %v204
      %v291 = vunpack.c.h.b16 %v204
      %v292 = vunpack.c.l.b16 %v205
      %v293 = vunpack.c.h.b16 %v205
      %v294 = vunpack.c.l.b16 %v206
      %v295 = vunpack.c.h.b16 %v206
      %v296 = vunpack.c.l.b16 %v207
      %v297 = vunpack.c.h.b16 %v207
      %v298 = vunpack.c.l.b16 %v208
      %v299 = vunpack.c.h.b16 %v208
      %v300 = vunpack.c.l.b16 %v209
      %v301 = vunpack.c.h.b16 %v209
      %v302 = vunpack.c.l.b16 %v210
      %v303 = vunpack.c.h.b16 %v210
      %v304 = vunpack.c.l.b16 %v211
      %v305 = vunpack.c.h.b16 %v211
      %v306 = vunpack.c.l.b16 %v212
      %v307 = vunpack.c.h.b16 %v212
      %v308 = vunpack.c.l.b16 %v213
      %v309 = vunpack.c.h.b16 %v213
      %v310 = vunpack.c.l.b16 %v214
      %v311 = vunpack.c.h.b16 %v214
      %v312 = vunpack.c.l.b16 %v215
      %v313 = vunpack.c.h.b16 %v215
      %v314 = vunpack.c.l.b16 %v216
      %v315 = vunpack.c.h.b16 %v216
      %v316 = vunpack.c.l.b16 %v217
      %v317 = vunpack.c.h.b16 %v217
      %v318 = vunpack.c.l.b16 %v218
      %v319 = vunpack.c.h.b16 %v218
      %v320 = vunpack.c.l.b16 %v219
      %v321 = vunpack.c.h.b16 %v219
      %v322 = vunpack.c.l.b16 %v220
      %v323 = vunpack.c.h.b16 %v220
      %v324 = vunpack.c.l.b16 %v221
      %v325 = vunpack.c.h.b16 %v221
      %v326 = vunpack.c.l.b16 %v222
      %v327 = vunpack.c.h.b16 %v222
      %v328 = vunpack.c.l.b16 %v223
      %v329 = vunpack.c.h.b16 %v223
      %v330 = vunpack.c.l.b16 %v224
      %v331 = vunpack.c.h.b16 %v224
      %v332 = vunpack.c.l.b16 %v225
      %v333 = vunpack.c.h.b16 %v225
      %v334 = vunpack.c.l.b16 %v226
      %v335 = vunpack.c.h.b16 %v226
      %v336 = vunpack.c.l.b16 %v227
      %v337 = vunpack.c.h.b16 %v227
      %v338 = vunpack.c.l.b16 %v228
      %v339 = vunpack.c.h.b16 %v228
      %v340 = vunpack.c.l.b16 %v229
      %v341 = vunpack.c.h.b16 %v229
      %v342 = vpack.c.b16 %v294, %v290
      %v343 = vpack.c.b16 %v295, %v291
      %v344 = vpack.c.b16 %v296, %v292
      %v345 = vpack.c.b16 %v297, %v293
      %v346 = vpack.c.b16 %v302, %v298
      %v347 = vpack.c.b16 %v303, %v299
      %v348 = vpack.c.b16 %v304, %v300
      %v349 = vpack.c.b16 %v305, %v301
      %v350 = vpack.c.b16 %v310, %v306
      %v351 = vpack.c.b16 %v311, %v307
      %v352 = vpack.c.b16 %v312, %v308
      %v353 = vpack.c.b16 %v313, %v309
      %v354 = vpack.c.b16 %v318, %v314
      %v355 = vpack.c.b16 %v319, %v315
      %v356 = vpack.c.b16 %v320, %v316
      %v357 = vpack.c.b16 %v321, %v317
      %v358 = vpack.c.b16 %v326, %v322
      %v359 = vpack.c.b16 %v327, %v323
      %v360 = vpack.c.b16 %v328, %v324
      %v361 = vpack.c.b16 %v329, %v325
      %v362 = vpack.c.b16 %v334, %v330
      %v363 = vpack.c.b16 %v335, %v331
      %v364 = vpack.c.b16 %v336, %v332
      %v365 = vpack.c.b16 %v337, %v333
      %v366 = vpack.c.b16 %v338, %v338
      %v367 = vpack.c.b16 %v339, %v339
      %v368 = vpack.c.b16 %v340, %v340
      %v369 = vpack.c.b16 %v341, %v341
      %vm394 = vcmask 834560
      %v396 = vsel %vm394, %v255, 0
      %v399 = vsel %vm394, %v263, 0
      %vm401 = vcmask 1042432
      %v403 = vsel %vm401, %v366, 0
      %v406 = vsel %vm401, %v367, 0
      %v409 = vsel %vm401, %v368, 0
      %v412 = vsel %vm401, %v369, 0
      %414 = vmatprep.subr.bf16.mxu0 %v343
      %415 = vmatpush1.bf16.msra.mxu0 %v342
      %416 = vmatprep.subr.bf16.mxu0 %v347
      %417 = vmatpush1.bf16.msra.mxu0 %v346
      %418 = vmatprep.subr.bf16.mxu0 %v351
      %419 = vmatpush1.bf16.msra.mxu0 %v350
      %420 = vmatprep.subr.bf16.mxu0 %v355
      %421 = vmatpush1.bf16.msra.mxu0 %v354
      %422 = vmatprep.subr.bf16.mxu0 %v359
      %423 = vmatpush1.bf16.msra.mxu0 %v358
      %424 = vmatprep.subr.bf16.mxu0 %v363
      %425 = vmatpush1.bf16.msra.mxu0 %v362
      %426 = vmatprep.subr.bf16.mxu0 %v406
      %427 = vmatpush1.bf16.msra.mxu0 %v403
      %428 = vmatprep.subr.bf16.mxu0 0
      %429 = vmatpush1.bf16.msra.mxu0 0
      %430 = vmatprep.subr.bf16.mxu0 0
      %431 = vmatpush1.bf16.msra.mxu0 0
      %432 = vmatprep.subr.bf16.mxu0 0
      %433 = vmatpush1.bf16.msra.mxu0 0
      %434 = vmatprep.subr.bf16.mxu0 0
      %435 = vmatpush1.bf16.msra.mxu0 0
      %436 = vmatprep.subr.bf16.mxu0 0
      %437 = vmatpush1.bf16.msra.mxu0 0
      %438 = vmatprep.subr.bf16.mxu0 0
      %439 = vmatpush1.bf16.msra.mxu0 0
      %440 = vmatprep.subr.bf16.mxu0 0
      %441 = vmatpush1.bf16.msra.mxu0 0
      %442 = vmatprep.subr.bf16.mxu0 0
      %443 = vmatpush1.bf16.msra.mxu0 0
      %444 = vmatprep.subr.bf16.mxu0 0
      %445 = vmatpush1.bf16.msra.mxu0 0
      %446 = vmatprep.mubr.bf16.mxu0 0
      %447 = vmatmul.mubr.bf16.gmra.mrb[0].mxu0 %v396
      %v448 = vpop.f32.mrb[0].mxu0
      %v449 = vadd.f32 0.0, %v448
      %v450 = vpop.f32.mrb[0].mxu0
      %v451 = vadd.f32 0.0, %v450
      %v452 = vpop.f32.mrb[0].mxu0
      %v453 = vadd.f32 0.0, %v452
      %v454 = vpop.f32.mrb[0].mxu0
      %v455 = vadd.f32 0.0, %v454
      %456 = vmatprep.mubr.bf16.mxu0 0
      %457 = vmatmul.mubr.bf16.gmra.mrb[0].mxu0 %v399
      %v458 = vpop.f32.mrb[0].mxu0
      %v459 = vadd.f32 0.0, %v458
      %v460 = vpop.f32.mrb[0].mxu0
      %v461 = vadd.f32 0.0, %v460
      %v462 = vpop.f32.mrb[0].mxu0
      %v463 = vadd.f32 0.0, %v462
      %v464 = vpop.f32.mrb[0].mxu0
      %v465 = vadd.f32 0.0, %v464
      %466 = vdwg.mxu0
      %467 = vmatprep.subr.bf16.mxu0 %v345
      %468 = vmatpush1.bf16.msra.mxu0 %v344
      %469 = vmatprep.subr.bf16.mxu0 %v349
      %470 = vmatpush1.bf16.msra.mxu0 %v348
      %471 = vmatprep.subr.bf16.mxu0 %v353
      %472 = vmatpush1.bf16.msra.mxu0 %v352
      %473 = vmatprep.subr.bf16.mxu0 %v357
      %474 = vmatpush1.bf16.msra.mxu0 %v356
      %475 = vmatprep.subr.bf16.mxu0 %v361
      %476 = vmatpush1.bf16.msra.mxu0 %v360
      %477 = vmatprep.subr.bf16.mxu0 %v365
      %478 = vmatpush1.bf16.msra.mxu0 %v364
      %479 = vmatprep.subr.bf16.mxu0 %v412
      %480 = vmatpush1.bf16.msra.mxu0 %v409
      %481 = vmatprep.subr.bf16.mxu0 0
      %482 = vmatpush1.bf16.msra.mxu0 0
      %483 = vmatprep.subr.bf16.mxu0 0
      %484 = vmatpush1.bf16.msra.mxu0 0
      %485 = vmatprep.subr.bf16.mxu0 0
      %486 = vmatpush1.bf16.msra.mxu0 0
      %487 = vmatprep.subr.bf16.mxu0 0
      %488 = vmatpush1.bf16.msra.mxu0 0
      %489 = vmatprep.subr.bf16.mxu0 0
      %490 = vmatpush1.bf16.msra.mxu0 0
      %491 = vmatprep.subr.bf16.mxu0 0
      %492 = vmatpush1.bf16.msra.mxu0 0
      %493 = vmatprep.subr.bf16.mxu0 0
      %494 = vmatpush1.bf16.msra.mxu0 0
      %495 = vmatprep.subr.bf16.mxu0 0
      %496 = vmatpush1.bf16.msra.mxu0 0
      %497 = vmatprep.subr.bf16.mxu0 0
      %498 = vmatpush1.bf16.msra.mxu0 0
      %499 = vmatprep.mubr.bf16.mxu0 0
      %500 = vmatmul.mubr.bf16.gmra.mrb[0].mxu0 %v396
      %v501 = vpop.f32.mrb[0].mxu0
      %v502 = vadd.f32 0.0, %v501
      %v503 = vpop.f32.mrb[0].mxu0
      %v504 = vadd.f32 0.0, %v503
      %v505 = vpop.f32.mrb[0].mxu0
      %v506 = vadd.f32 0.0, %v505
      %v507 = vpop.f32.mrb[0].mxu0
      %v508 = vadd.f32 0.0, %v507
      %509 = vmatprep.mubr.bf16.mxu0 0
      %510 = vmatmul.mubr.bf16.gmra.mrb[0].mxu0 %v399
      %v511 = vpop.f32.mrb[0].mxu0
      %v512 = vadd.f32 0.0, %v511
      %v513 = vpop.f32.mrb[0].mxu0
      %v514 = vadd.f32 0.0, %v513
      %v515 = vpop.f32.mrb[0].mxu0
      %v516 = vadd.f32 0.0, %v515
      %v517 = vpop.f32.mrb[0].mxu0
      %v518 = vadd.f32 0.0, %v517
      %519 = vdwg.mxu0
      %v546 = vunpack.c.l.b16 %v177
      %v547 = vunpack.c.h.b16 %v177
      %v548 = vunpack.c.l.b16 %v178
      %v549 = vunpack.c.h.b16 %v178
      %v550 = vunpack.c.l.b16 %v179
      %v551 = vunpack.c.h.b16 %v179
      %v552 = vunpack.c.l.b16 %v180
      %v553 = vunpack.c.h.b16 %v180
      %v554 = vunpack.c.l.b16 %v181
      %v555 = vunpack.c.h.b16 %v181
      %v556 = vunpack.c.l.b16 %v182
      %v557 = vunpack.c.h.b16 %v182
      %v558 = vunpack.c.l.b16 %v183
      %v559 = vunpack.c.h.b16 %v183
      %v560 = vunpack.c.l.b16 %v184
      %v561 = vunpack.c.h.b16 %v184
      %v562 = vunpack.c.l.b16 %v185
      %v563 = vunpack.c.h.b16 %v185
      %v564 = vunpack.c.l.b16 %v186
      %v565 = vunpack.c.h.b16 %v186
      %v566 = vunpack.c.l.b16 %v187
      %v567 = vunpack.c.h.b16 %v187
      %v568 = vunpack.c.l.b16 %v188
      %v569 = vunpack.c.h.b16 %v188
      %v570 = vunpack.c.l.b16 %v189
      %v571 = vunpack.c.h.b16 %v189
      %v572 = vunpack.c.l.b16 %v190
      %v573 = vunpack.c.h.b16 %v190
      %v574 = vunpack.c.l.b16 %v191
      %v575 = vunpack.c.h.b16 %v191
      %v576 = vunpack.c.l.b16 %v192
      %v577 = vunpack.c.h.b16 %v192
      %v578 = vunpack.c.l.b16 %v193
      %v579 = vunpack.c.h.b16 %v193
      %v580 = vunpack.c.l.b16 %v194
      %v581 = vunpack.c.h.b16 %v194
      %v582 = vunpack.c.l.b16 %v195
      %v583 = vunpack.c.h.b16 %v195
      %v584 = vunpack.c.l.b16 %v196
      %v585 = vunpack.c.h.b16 %v196
      %v586 = vunpack.c.l.b16 %v197
      %v587 = vunpack.c.h.b16 %v197
      %v588 = vunpack.c.l.b16 %v198
      %v589 = vunpack.c.h.b16 %v198
      %v590 = vunpack.c.l.b16 %v199
      %v591 = vunpack.c.h.b16 %v199
      %v592 = vunpack.c.l.b16 %v200
      %v593 = vunpack.c.h.b16 %v200
      %v594 = vunpack.c.l.b16 %v201
      %v595 = vunpack.c.h.b16 %v201
      %v596 = vunpack.c.l.b16 %v202
      %v597 = vunpack.c.h.b16 %v202
      %v598 = vpack.c.b16 %v550, %v546
      %v599 = vpack.c.b16 %v551, %v547
      %v600 = vpack.c.b16 %v552, %v548
      %v601 = vpack.c.b16 %v553, %v549
      %v602 = vpack.c.b16 %v558, %v554
      %v603 = vpack.c.b16 %v559, %v555
      %v604 = vpack.c.b16 %v560, %v556
      %v605 = vpack.c.b16 %v561, %v557
      %v606 = vpack.c.b16 %v566, %v562
      %v607 = vpack.c.b16 %v567, %v563
      %v608 = vpack.c.b16 %v568, %v564
      %v609 = vpack.c.b16 %v569, %v565
      %v610 = vpack.c.b16 %v574, %v570
      %v611 = vpack.c.b16 %v575, %v571
      %v612 = vpack.c.b16 %v576, %v572
      %v613 = vpack.c.b16 %v577, %v573
      %v614 = vpack.c.b16 %v582, %v578
      %v615 = vpack.c.b16 %v583, %v579
      %v616 = vpack.c.b16 %v584, %v580
      %v617 = vpack.c.b16 %v585, %v581
      %v618 = vpack.c.b16 %v590, %v586
      %v619 = vpack.c.b16 %v591, %v587
      %v620 = vpack.c.b16 %v592, %v588
      %v621 = vpack.c.b16 %v593, %v589
      %v622 = vpack.c.b16 %v594, %v594
      %v623 = vpack.c.b16 %v595, %v595
      %v624 = vpack.c.b16 %v596, %v596
      %v625 = vpack.c.b16 %v597, %v597
      %v650 = vsel %vm394, %v240, 0
      %v652 = vsel %vm394, %v241, 0
      %v655 = vsel %vm401, %v622, 0
      %v658 = vsel %vm401, %v623, 0
      %v661 = vsel %vm401, %v624, 0
      %v664 = vsel %vm401, %v625, 0
      %666 = vmatprep.subr.bf16.mxu0 %v599
      %667 = vmatpush1.bf16.msra.mxu0 %v598
      %668 = vmatprep.subr.bf16.mxu0 %v603
      %669 = vmatpush1.bf16.msra.mxu0 %v602
      %670 = vmatprep.subr.bf16.mxu0 %v607
      %671 = vmatpush1.bf16.msra.mxu0 %v606
      %672 = vmatprep.subr.bf16.mxu0 %v611
      %673 = vmatpush1.bf16.msra.mxu0 %v610
      %674 = vmatprep.subr.bf16.mxu0 %v615
      %675 = vmatpush1.bf16.msra.mxu0 %v614
      %676 = vmatprep.subr.bf16.mxu0 %v619
      %677 = vmatpush1.bf16.msra.mxu0 %v618
      %678 = vmatprep.subr.bf16.mxu0 %v658
      %679 = vmatpush1.bf16.msra.mxu0 %v655
      %680 = vmatprep.subr.bf16.mxu0 0
      %681 = vmatpush1.bf16.msra.mxu0 0
      %682 = vmatprep.subr.bf16.mxu0 0
      %683 = vmatpush1.bf16.msra.mxu0 0
      %684 = vmatprep.subr.bf16.mxu0 0
      %685 = vmatpush1.bf16.msra.mxu0 0
      %686 = vmatprep.subr.bf16.mxu0 0
      %687 = vmatpush1.bf16.msra.mxu0 0
      %688 = vmatprep.subr.bf16.mxu0 0
      %689 = vmatpush1.bf16.msra.mxu0 0
      %690 = vmatprep.subr.bf16.mxu0 0
      %691 = vmatpush1.bf16.msra.mxu0 0
      %692 = vmatprep.subr.bf16.mxu0 0
      %693 = vmatpush1.bf16.msra.mxu0 0
      %694 = vmatprep.subr.bf16.mxu0 0
      %695 = vmatpush1.bf16.msra.mxu0 0
      %696 = vmatprep.subr.bf16.mxu0 0
      %697 = vmatpush1.bf16.msra.mxu0 0
      %698 = vmatprep.mubr.bf16.mxu0 0
      %699 = vmatmul.mubr.bf16.gmra.mrb[0].mxu0 %v650
      %v700 = vpop.f32.mrb[0].mxu0
      %v701 = vadd.f32 %v449, %v700
      %v702 = vpop.f32.mrb[0].mxu0
      %v703 = vadd.f32 %v451, %v702
      %v704 = vpop.f32.mrb[0].mxu0
      %v705 = vadd.f32 %v453, %v704
      %v706 = vpop.f32.mrb[0].mxu0
      %v707 = vadd.f32 %v455, %v706
      %708 = vmatprep.mubr.bf16.mxu0 0
      %709 = vmatmul.mubr.bf16.gmra.mrb[0].mxu0 %v652
      %v710 = vpop.f32.mrb[0].mxu0
      %v711 = vadd.f32 %v459, %v710
      %v712 = vpop.f32.mrb[0].mxu0
      %v713 = vadd.f32 %v461, %v712
      %v714 = vpop.f32.mrb[0].mxu0
      %v715 = vadd.f32 %v463, %v714
      %v716 = vpop.f32.mrb[0].mxu0
      %v717 = vadd.f32 %v465, %v716
      %718 = vdwg.mxu0
      %719 = vmatprep.subr.bf16.mxu0 %v601
      %720 = vmatpush1.bf16.msra.mxu0 %v600
      %721 = vmatprep.subr.bf16.mxu0 %v605
      %722 = vmatpush1.bf16.msra.mxu0 %v604
      %723 = vmatprep.subr.bf16.mxu0 %v609
      %724 = vmatpush1.bf16.msra.mxu0 %v608
      %725 = vmatprep.subr.bf16.mxu0 %v613
      %726 = vmatpush1.bf16.msra.mxu0 %v612
      %727 = vmatprep.subr.bf16.mxu0 %v617
      %728 = vmatpush1.bf16.msra.mxu0 %v616
      %729 = vmatprep.subr.bf16.mxu0 %v621
      %730 = vmatpush1.bf16.msra.mxu0 %v620
      %731 = vmatprep.subr.bf16.mxu0 %v664
      %732 = vmatpush1.bf16.msra.mxu0 %v661
      %733 = vmatprep.subr.bf16.mxu0 0
      %734 = vmatpush1.bf16.msra.mxu0 0
      %735 = vmatprep.subr.bf16.mxu0 0
      %736 = vmatpush1.bf16.msra.mxu0 0
      %737 = vmatprep.subr.bf16.mxu0 0
      %738 = vmatpush1.bf16.msra.mxu0 0
      %739 = vmatprep.subr.bf16.mxu0 0
      %740 = vmatpush1.bf16.msra.mxu0 0
      %741 = vmatprep.subr.bf16.mxu0 0
      %742 = vmatpush1.bf16.msra.mxu0 0
      %743 = vmatprep.subr.bf16.mxu0 0
      %744 = vmatpush1.bf16.msra.mxu0 0
      %745 = vmatprep.subr.bf16.mxu0 0
      %746 = vmatpush1.bf16.msra.mxu0 0
      %747 = vmatprep.subr.bf16.mxu0 0
      %748 = vmatpush1.bf16.msra.mxu0 0
      %749 = vmatprep.subr.bf16.mxu0 0
      %750 = vmatpush1.bf16.msra.mxu0 0
      %751 = vmatprep.mubr.bf16.mxu0 0
      %752 = vmatmul.mubr.bf16.gmra.mrb[0].mxu0 %v650
      %v753 = vpop.f32.mrb[0].mxu0
      %v754 = vadd.f32 %v502, %v753
      %v755 = vpop.f32.mrb[0].mxu0
      %v756 = vadd.f32 %v504, %v755
      %v757 = vpop.f32.mrb[0].mxu0
      %v758 = vadd.f32 %v506, %v757
      %v759 = vpop.f32.mrb[0].mxu0
      %v760 = vadd.f32 %v508, %v759
      %761 = vmatprep.mubr.bf16.mxu0 0
      %762 = vmatmul.mubr.bf16.gmra.mrb[0].mxu0 %v652
      %v763 = vpop.f32.mrb[0].mxu0
      %v764 = vadd.f32 %v512, %v763
      %v765 = vpop.f32.mrb[0].mxu0
      %v766 = vadd.f32 %v514, %v765
      %v767 = vpop.f32.mrb[0].mxu0
      %v768 = vadd.f32 %v516, %v767
      %v769 = vpop.f32.mrb[0].mxu0
      %v770 = vadd.f32 %v518, %v769
      %771 = vdwg.mxu0
      %s772 = scalar_lea.vmem %s1, 416
      %v773 = vld [vmem:[%s772] sm:$0xff]
      %v774 = vld [vmem:[%s772 + $0x8] sm:$0xff]
      %v775 = vld [vmem:[%s772 + $0x10] sm:$0xff]
      %v776 = vld [vmem:[%s772 + $0x18] sm:$0xff]
      %v777 = vld [vmem:[%s772 + $0x20] sm:$0xff]
      %v778 = vld [vmem:[%s772 + $0x28] sm:$0xff]
      %v779 = vld [vmem:[%s772 + $0x30] sm:$0xff]
      %v780 = vld [vmem:[%s772 + $0x38] sm:$0xff]
      %v781 = vld [vmem:[%s772 + $0x40] sm:$0xff]
      %v782 = vld [vmem:[%s772 + $0x48] sm:$0xff]
      %v783 = vld [vmem:[%s772 + $0x50] sm:$0xff]
      %v784 = vld [vmem:[%s772 + $0x58] sm:$0xff]
      %v785 = vld [vmem:[%s772 + $0x60] sm:$0xff]
      %v786 = vld [vmem:[%s772 + $0x68] sm:$0xff]
      %v787 = vld [vmem:[%s772 + $0x70] sm:$0xff]
      %v788 = vld [vmem:[%s772 + $0x78] sm:$0xff]
      %v789 = vld [vmem:[%s772 + $0x80] sm:$0xff]
      %v790 = vld [vmem:[%s772 + $0x88] sm:$0xff]
      %v791 = vld [vmem:[%s772 + $0x90] sm:$0xff]
      %v792 = vld [vmem:[%s772 + $0x98] sm:$0xff]
      %v793 = vld [vmem:[%s772 + $0xa0] sm:$0xff]
      %v794 = vld [vmem:[%s772 + $0xa8] sm:$0xff]
      %v795 = vld [vmem:[%s772 + $0xb0] sm:$0xff]
      %v796 = vld [vmem:[%s772 + $0xb8] sm:$0xff]
      %v797 = vld [vmem:[%s772 + $0xc0] sm:$0x77]
      %v798 = vld [vmem:[%s772 + $0xc8] sm:$0x77]
      %vm799 = vcmask 1046528
      %v800 = vrot.slane %v240, 1
      %v801 = vrot.slane %v241, 1
      %v802 = vsel %vm799, %v800, %v801
      %v803 = vrot.slane %v242, 1
      %v804 = vsel %vm799, %v801, %v803
      %v831 = vunpack.c.l.b16 %v773
      %v832 = vunpack.c.h.b16 %v773
      %v833 = vunpack.c.l.b16 %v774
      %v834 = vunpack.c.h.b16 %v774
      %v835 = vunpack.c.l.b16 %v775
      %v836 = vunpack.c.h.b16 %v775
      %v837 = vunpack.c.l.b16 %v776
      %v838 = vunpack.c.h.b16 %v776
      %v839 = vunpack.c.l.b16 %v777
      %v840 = vunpack.c.h.b16 %v777
      %v841 = vunpack.c.l.b16 %v778
      %v842 = vunpack.c.h.b16 %v778
      %v843 = vunpack.c.l.b16 %v779
      %v844 = vunpack.c.h.b16 %v779
      %v845 = vunpack.c.l.b16 %v780
      %v846 = vunpack.c.h.b16 %v780
      %v847 = vunpack.c.l.b16 %v781
      %v848 = vunpack.c.h.b16 %v781
      %v849 = vunpack.c.l.b16 %v782
      %v850 = vunpack.c.h.b16 %v782
      %v851 = vunpack.c.l.b16 %v783
      %v852 = vunpack.c.h.b16 %v783
      %v853 = vunpack.c.l.b16 %v784
      %v854 = vunpack.c.h.b16 %v784
      %v855 = vunpack.c.l.b16 %v785
      %v856 = vunpack.c.h.b16 %v785
      %v857 = vunpack.c.l.b16 %v786
      %v858 = vunpack.c.h.b16 %v786
      %v859 = vunpack.c.l.b16 %v787
      %v860 = vunpack.c.h.b16 %v787
      %v861 = vunpack.c.l.b16 %v788
      %v862 = vunpack.c.h.b16 %v788
      %v863 = vunpack.c.l.b16 %v789
      %v864 = vunpack.c.h.b16 %v789
      %v865 = vunpack.c.l.b16 %v790
      %v866 = vunpack.c.h.b16 %v790
      %v867 = vunpack.c.l.b16 %v791
      %v868 = vunpack.c.h.b16 %v791
      %v869 = vunpack.c.l.b16 %v792
      %v870 = vunpack.c.h.b16 %v792
      %v871 = vunpack.c.l.b16 %v793
      %v872 = vunpack.c.h.b16 %v793
      %v873 = vunpack.c.l.b16 %v794
      %v874 = vunpack.c.h.b16 %v794
      %v875 = vunpack.c.l.b16 %v795
      %v876 = vunpack.c.h.b16 %v795
      %v877 = vunpack.c.l.b16 %v796
      %v878 = vunpack.c.h.b16 %v796
      %v879 = vunpack.c.l.b16 %v797
      %v880 = vunpack.c.h.b16 %v797
      %v881 = vunpack.c.l.b16 %v798
      %v882 = vunpack.c.h.b16 %v798
      %v883 = vpack.c.b16 %v835, %v831
      %v884 = vpack.c.b16 %v836, %v832
      %v885 = vpack.c.b16 %v837, %v833
      %v886 = vpack.c.b16 %v838, %v834
      %v887 = vpack.c.b16 %v843, %v839
      %v888 = vpack.c.b16 %v844, %v840
      %v889 = vpack.c.b16 %v845, %v841
      %v890 = vpack.c.b16 %v846, %v842
      %v891 = vpack.c.b16 %v851, %v847
      %v892 = vpack.c.b16 %v852, %v848
      %v893 = vpack.c.b16 %v853, %v849
      %v894 = vpack.c.b16 %v854, %v850
      %v895 = vpack.c.b16 %v859, %v855
      %v896 = vpack.c.b16 %v860, %v856
      %v897 = vpack.c.b16 %v861, %v857
      %v898 = vpack.c.b16 %v862, %v858
      %v899 = vpack.c.b16 %v867, %v863
      %v900 = vpack.c.b16 %v868, %v864
      %v901 = vpack.c.b16 %v869, %v865
      %v902 = vpack.c.b16 %v870, %v866
      %v903 = vpack.c.b16 %v875, %v871
      %v904 = vpack.c.b16 %v876, %v872
      %v905 = vpack.c.b16 %v877, %v873
      %v906 = vpack.c.b16 %v878, %v874
      %v907 = vpack.c.b16 %v879, %v879
      %v908 = vpack.c.b16 %v880, %v880
      %v909 = vpack.c.b16 %v881, %v881
      %v910 = vpack.c.b16 %v882, %v882
      %v936 = vsel %vm394, %v802, 0
      %v939 = vsel %vm394, %v804, 0
      %v942 = vsel %vm401, %v907, 0
      %v945 = vsel %vm401, %v908, 0
      %v948 = vsel %vm401, %v909, 0
      %v951 = vsel %vm401, %v910, 0
      %953 = vmatprep.subr.bf16.mxu0 %v884
      %954 = vmatpush1.bf16.msra.mxu0 %v883
      %955 = vmatprep.subr.bf16.mxu0 %v888
      %956 = vmatpush1.bf16.msra.mxu0 %v887
      %957 = vmatprep.subr.bf16.mxu0 %v892
      %958 = vmatpush1.bf16.msra.mxu0 %v891
      %959 = vmatprep.subr.bf16.mxu0 %v896
      %960 = vmatpush1.bf16.msra.mxu0 %v895
      %961 = vmatprep.subr.bf16.mxu0 %v900
      %962 = vmatpush1.bf16.msra.mxu0 %v899
      %963 = vmatprep.subr.bf16.mxu0 %v904
      %964 = vmatpush1.bf16.msra.mxu0 %v903
      %965 = vmatprep.subr.bf16.mxu0 %v945
      %966 = vmatpush1.bf16.msra.mxu0 %v942
      %967 = vmatprep.subr.bf16.mxu0 0
      %968 = vmatpush1.bf16.msra.mxu0 0
      %969 = vmatprep.subr.bf16.mxu0 0
      %970 = vmatpush1.bf16.msra.mxu0 0
      %971 = vmatprep.subr.bf16.mxu0 0
      %972 = vmatpush1.bf16.msra.mxu0 0
      %973 = vmatprep.subr.bf16.mxu0 0
      %974 = vmatpush1.bf16.msra.mxu0 0
      %975 = vmatprep.subr.bf16.mxu0 0
      %976 = vmatpush1.bf16.msra.mxu0 0
      %977 = vmatprep.subr.bf16.mxu0 0
      %978 = vmatpush1.bf16.msra.mxu0 0
      %979 = vmatprep.subr.bf16.mxu0 0
      %980 = vmatpush1.bf16.msra.mxu0 0
      %981 = vmatprep.subr.bf16.mxu0 0
      %982 = vmatpush1.bf16.msra.mxu0 0
      %983 = vmatprep.subr.bf16.mxu0 0
      %984 = vmatpush1.bf16.msra.mxu0 0
      %985 = vmatprep.mubr.bf16.mxu0 0
      %986 = vmatmul.mubr.bf16.gmra.mrb[0].mxu0 %v936
      %v987 = vpop.f32.mrb[0].mxu0
      %v988 = vadd.f32 0.0, %v987
      %v989 = vpop.f32.mrb[0].mxu0
      %v990 = vadd.f32 0.0, %v989
      %v991 = vpop.f32.mrb[0].mxu0
      %v992 = vadd.f32 0.0, %v991
      %v993 = vpop.f32.mrb[0].mxu0
      %v994 = vadd.f32 0.0, %v993
      %995 = vmatprep.mubr.bf16.mxu0 0
      %996 = vmatmul.mubr.bf16.gmra.mrb[0].mxu0 %v939
      %v997 = vpop.f32.mrb[0].mxu0
      %v998 = vadd.f32 0.0, %v997
      %v999 = vpop.f32.mrb[0].mxu0
      %v1000 = vadd.f32 0.0, %v999
      %v1001 = vpop.f32.mrb[0].mxu0
      %v1002 = vadd.f32 0.0, %v1001
      %v1003 = vpop.f32.mrb[0].mxu0
      %v1004 = vadd.f32 0.0, %v1003
      %1005 = vdwg.mxu0
      %1006 = vmatprep.subr.bf16.mxu0 %v886
      %1007 = vmatpush1.bf16.msra.mxu0 %v885
      %1008 = vmatprep.subr.bf16.mxu0 %v890
      %1009 = vmatpush1.bf16.msra.mxu0 %v889
      %1010 = vmatprep.subr.bf16.mxu0 %v894
      %1011 = vmatpush1.bf16.msra.mxu0 %v893
      %1012 = vmatprep.subr.bf16.mxu0 %v898
      %1013 = vmatpush1.bf16.msra.mxu0 %v897
      %1014 = vmatprep.subr.bf16.mxu0 %v902
      %1015 = vmatpush1.bf16.msra.mxu0 %v901
      %1016 = vmatprep.subr.bf16.mxu0 %v906
      %1017 = vmatpush1.bf16.msra.mxu0 %v905
      %1018 = vmatprep.subr.bf16.mxu0 %v951
      %1019 = vmatpush1.bf16.msra.mxu0 %v948
      %1020 = vmatprep.subr.bf16.mxu0 0
      %1021 = vmatpush1.bf16.msra.mxu0 0
      %1022 = vmatprep.subr.bf16.mxu0 0
      %1023 = vmatpush1.bf16.msra.mxu0 0
      %1024 = vmatprep.subr.bf16.mxu0 0
      %1025 = vmatpush1.bf16.msra.mxu0 0
      %1026 = vmatprep.subr.bf16.mxu0 0
      %1027 = vmatpush1.bf16.msra.mxu0 0
      %1028 = vmatprep.subr.bf16.mxu0 0
      %1029 = vmatpush1.bf16.msra.mxu0 0
      %1030 = vmatprep.subr.bf16.mxu0 0
      %1031 = vmatpush1.bf16.msra.mxu0 0
      %1032 = vmatprep.subr.bf16.mxu0 0
      %1033 = vmatpush1.bf16.msra.mxu0 0
      %1034 = vmatprep.subr.bf16.mxu0 0
      %1035 = vmatpush1.bf16.msra.mxu0 0
      %1036 = vmatprep.subr.bf16.mxu0 0
      %1037 = vmatpush1.bf16.msra.mxu0 0
      %1038 = vmatprep.mubr.bf16.mxu0 0
      %1039 = vmatmul.mubr.bf16.gmra.mrb[0].mxu0 %v936
      %v1040 = vpop.f32.mrb[0].mxu0
      %v1041 = vadd.f32 0.0, %v1040
      %v1042 = vpop.f32.mrb[0].mxu0
      %v1043 = vadd.f32 0.0, %v1042
      %v1044 = vpop.f32.mrb[0].mxu0
      %v1045 = vadd.f32 0.0, %v1044
      %v1046 = vpop.f32.mrb[0].mxu0
      %v1047 = vadd.f32 0.0, %v1046
      %1048 = vmatprep.mubr.bf16.mxu0 0
      %1049 = vmatmul.mubr.bf16.gmra.mrb[0].mxu0 %v939
      %v1050 = vpop.f32.mrb[0].mxu0
      %v1051 = vadd.f32 0.0, %v1050
      %v1052 = vpop.f32.mrb[0].mxu0
      %v1053 = vadd.f32 0.0, %v1052
      %v1054 = vpop.f32.mrb[0].mxu0
      %v1055 = vadd.f32 0.0, %v1054
      %v1056 = vpop.f32.mrb[0].mxu0
      %v1057 = vadd.f32 0.0, %v1056
      %1058 = vdwg.mxu0
      %v1059 = vadd.f32 %v701, %v988
      %v1060 = vadd.f32 %v703, %v990
      %v1061 = vadd.f32 %v754, %v1041
      %v1062 = vadd.f32 %v756, %v1043
      %v1063 = vadd.f32 %v705, %v992
      %v1064 = vadd.f32 %v707, %v994
      %v1065 = vadd.f32 %v758, %v1045
      %v1066 = vadd.f32 %v760, %v1047
      %v1067 = vadd.f32 %v711, %v998
      %v1068 = vadd.f32 %v713, %v1000
      %v1069 = vadd.f32 %v764, %v1051
      %v1070 = vadd.f32 %v766, %v1053
      %v1071 = vadd.f32 %v715, %v1002
      %v1072 = vadd.f32 %v717, %v1004
      %v1073 = vadd.f32 %v768, %v1055
      %v1074 = vadd.f32 %v770, %v1057
      %v1075 = vld [vmem:[%s2] sm:$0xf]
      %v1077 = vlaneseq
      %v1078 = vshrl.u32 %v1077, 7
      %v1079 = vsub.s32 0, %v1078
      %v1080 = vrot.slane %v1075, %v1079
      %v1081 = vlaneseq
      %v1082 = vshrl.u32 %v1081, 7
      %v1083 = vsub.s32 1, %v1082
      %v1084 = vrot.slane %v1075, %v1083
      %v1085 = vlaneseq
      %v1086 = vshrl.u32 %v1085, 7
      %v1087 = vsub.s32 2, %v1086
      %v1088 = vrot.slane %v1075, %v1087
      %v1089 = vlaneseq
      %v1090 = vshrl.u32 %v1089, 7
      %v1091 = vsub.s32 3, %v1090
      %v1092 = vrot.slane %v1075, %v1091
      %v1097 = vadd.f32 %v1059, %v1080
      %v1098 = vadd.f32 %v1060, %v1084
      %v1099 = vadd.f32 %v1061, %v1088
      %v1100 = vadd.f32 %v1062, %v1092
      %v1101 = vadd.f32 %v1063, %v1080
      %v1102 = vadd.f32 %v1064, %v1084
      %v1103 = vadd.f32 %v1065, %v1088
      %v1104 = vadd.f32 %v1066, %v1092
      %v1105 = vadd.f32 %v1067, %v1080
      %v1106 = vadd.f32 %v1068, %v1084
      %v1107 = vadd.f32 %v1069, %v1088
      %v1108 = vadd.f32 %v1070, %v1092
      %v1109 = vadd.f32 %v1071, %v1080
      %v1110 = vadd.f32 %v1072, %v1084
      %v1111 = vadd.f32 %v1073, %v1088
      %v1112 = vadd.f32 %v1074, %v1092
      %v1113 = vmax.f32 %v1097, 0.0
      %v1114 = vmax.f32 %v1098, 0.0
      %v1115 = vmax.f32 %v1099, 0.0
      %v1116 = vmax.f32 %v1100, 0.0
      %v1117 = vmax.f32 %v1101, 0.0
      %v1118 = vmax.f32 %v1102, 0.0
      %v1119 = vmax.f32 %v1103, 0.0
      %v1120 = vmax.f32 %v1104, 0.0
      %v1121 = vmax.f32 %v1105, 0.0
      %v1122 = vmax.f32 %v1106, 0.0
      %v1123 = vmax.f32 %v1107, 0.0
      %v1124 = vmax.f32 %v1108, 0.0
      %v1125 = vmax.f32 %v1109, 0.0
      %v1126 = vmax.f32 %v1110, 0.0
      %v1127 = vmax.f32 %v1111, 0.0
      %v1128 = vmax.f32 %v1112, 0.0
      %v1129 = vpack.c.bf16 %v1117, %v1113
      %v1130 = vpack.c.bf16 %v1118, %v1114
      %v1131 = vpack.c.bf16 %v1119, %v1115
      %v1132 = vpack.c.bf16 %v1120, %v1116
      %v1133 = vpack.c.bf16 %v1125, %v1121
      %v1134 = vpack.c.bf16 %v1126, %v1122
      %v1135 = vpack.c.bf16 %v1127, %v1123
      %v1136 = vpack.c.bf16 %v1128, %v1124
      %v1145 = vunpack.c.l.b16 %v1129
      %v1146 = vunpack.c.l.b16 %v1130
      %v1147 = vunpack.c.l.b16 %v1131
      %v1148 = vunpack.c.l.b16 %v1132
      %v1149 = vunpack.c.h.b16 %v1129
      %v1150 = vunpack.c.h.b16 %v1130
      %v1151 = vunpack.c.h.b16 %v1131
      %v1152 = vunpack.c.h.b16 %v1132
      %v1153 = vunpack.c.l.b16 %v1133
      %v1154 = vunpack.c.l.b16 %v1134
      %v1155 = vunpack.c.l.b16 %v1135
      %v1156 = vunpack.c.l.b16 %v1136
      %v1157 = vunpack.c.h.b16 %v1133
      %v1158 = vunpack.c.h.b16 %v1134
      %v1159 = vunpack.c.h.b16 %v1135
      %v1160 = vunpack.c.h.b16 %v1136
      %v1161 = vpack.c.b16 %v1146, %v1145
      %v1162 = vpack.c.b16 %v1148, %v1147
      %v1163 = vpack.c.b16 %v1150, %v1149
      %v1164 = vpack.c.b16 %v1152, %v1151
      %v1165 = vpack.c.b16 %v1154, %v1153
      %v1166 = vpack.c.b16 %v1156, %v1155
      %v1167 = vpack.c.b16 %v1158, %v1157
      %v1168 = vpack.c.b16 %v1160, %v1159
      %1177 = vst [vmem:[%s170] sm:$0xff] %v1161
      %1178 = vst [vmem:[%s170 + $0x8] sm:$0xff] %v1162
      %1179 = vst [vmem:[%s170 + $0x10] sm:$0xff] %v1163
      %1180 = vst [vmem:[%s170 + $0x18] sm:$0xff] %v1164
      %1181 = vst [vmem:[%s170 + $0x20] sm:$0xff] %v1165
      %1182 = vst [vmem:[%s170 + $0x28] sm:$0xff] %v1166
      %1183 = vst [vmem:[%s170 + $0x30] sm:$0xff] %v1167
      %1184 = vst [vmem:[%s170 + $0x38] sm:$0xff] %v1168
      %p1185 = scmp.lt.s32.totalorder %s14, 1
      %s1186 = scalar_select %p1185, %s14, 1
      %s1187 = smul.addr %s1186, 16
      %s1188 = smul.addr %s1187, 4
      %s1189 = scalar_lea.vmem %s3, %s1188
      // Predicated region
      $region33: #{net_forward.4} parent=31 // pred_check
        %p1190 = pneg %p100
      $region34: #{net_forward.4} parent=31 // pred_check_branch
        %1192 = sbr.rel (%p1190) target = $region36
      $region35: #{net_forward.4} parent=31 // pred_region
        _
      $region36: #{net_forward.4} parent=31 // pred_fallthru
        _
    $region32: #{net_forward.4} parent=5 // pred_fallthru
      _
    %p1193 = scmp.le.s32.totalorder 2, %s9
    // Predicated region
    $region37: #{net_forward.4} parent=5 // pred_check
      %p1194 = pneg %p1193
    $region38: #{net_forward.4} parent=5 // pred_check_branch
      %1196 = sbr.rel (%p1194) target = $region40
    $region39: #{net_forward.4} parent=5 // pred_region
      %s1197 = ssub.s32 %s9, 2
      // Predicated region
      $region41: #{net_forward.4} parent=39 // pred_check
        %p1198 = pneg %p106
      $region42: #{net_forward.4} parent=39 // pred_check_branch
        %1200 = sbr.rel (%p1198) target = $region44
      $region43: #{net_forward.4} parent=39 // pred_region
        %p1201 = scmp.lt.s32.totalorder %s15, 1
        %s1202 = scalar_select %p1201, %s15, 1
        %s1203 = smul.addr %s1202, 16
        %s1204 = smul.addr %s1203, 4
        %s1205 = scalar_lea.vmem %s3, %s1204
      $region44: #{net_forward.4} parent=39 // pred_fallthru
        _
    $region40: #{net_forward.4} parent=5 // pred_fallthru
      _
  $region6: #{net_forward.4} parent=0 // loop_footer
    %s13 = sadd.s32 1, %s9
  $region7: #{net_forward.4} parent=0 // loop_footer_branch
    %8 = sbr.rel target = $region3
  $region8: #{net_forward.4} parent=0 // loop_exit
    _

// kernel: net_forward.5
$region0: #{net_forward.5}
  #allocation0 [shape = 'u32[]', space=smem, size = 0x4, offset = 0x4, fixed_abs, tag = 'smem constant byte address 0x4 - core index']
  #allocation1 [shape = 'u32[144,128]{1,0:T(1,128)}', space=vmem, size = 0x12000, scoped, tag = 'internal scratch']
  %s0 = inlined_call_operand.vmem [shape: bf16[2,18,288], index: 0, kind: input, shape index: {}]
  %s1 = inlined_call_operand.vmem [shape: bf16[3,288,512], index: 1, kind: input, shape index: {}]
  %s2 = inlined_call_operand.vmem [shape: f32[1,512], index: 2, kind: input, shape index: {}]
  %s3 = inlined_call_operand.vmem [shape: bf16[2,16,512], index: 3, kind: output, shape index: {}]
  %s4 = sld [smem:[#allocation0]]
  $region45: #{net_forward.5} parent=0
    _
  %s6 = ssub.s32 1, %s4
  %s7 = scalar_select 0, %s6, %s4
  loop: start=0, step=1, limit=4
  $region2: #{net_forward.5} parent=0 // loop_pre_header
    _
  $region3: #{net_forward.5} parent=0 // loop_header
    %s9 = sphi 0, %s13
    %p10 = scmp.ge.s32.totalorder %s9, 4
    %s19 = sphi 0, %s21
    %s22 = sphi 0, %s19
    %s23 = sphi 0, %s22
    %s39 = sphi 0, %s23
    %s43 = sphi 0, %s43
    %s45 = sphi 0, %s43
    %s46 = sphi 0, %s45
    %s60 = sphi 0, %s46
    %s64 = sphi 0, %s64
    %s66 = sphi 0, %s64
    %s67 = sphi 0, %s66
    %s81 = sphi 0, %s67
    %s87 = sphi 0, %s89
    %s90 = sphi 0, %s87
    %s91 = sphi 0, %s90
    %s107 = sphi 0, %s91
  $region4: #{net_forward.5} parent=0 // loop_header_branch
    %12 = sbr.rel (%p10) target = $region8
  $region5: #{net_forward.5} parent=0 // loop_body
    %s14 = ssub.s32 %s9, 1
    %s15 = ssub.s32 %s9, 2
    %s16 = sadd.s32 %s9, 1
    %s17 = ssub.s32 %s9, %s16
    %p18 = scmp.eq.s32.totalorder %s17, 0
    %s20 = sadd.s32 %s19, 1
    %s21 = scalar_select %p18, %s19, %s20
    %p24 = pneg %p18
    %p25 = scmp.eq.s32.totalorder %s9, 1
    %p26 = por %p24, %p25
    %p27 = scmp.ne.s32.totalorder %s19, %s22
    %p28 = scmp.eq.s32.totalorder %s9, 0
    %p29 = por %p27, %p28
    %p30 = scmp.ne.s32.totalorder %s19, %s22
    %p31 = scmp.eq.s32.totalorder %s14, 1
    %p32 = por %p30, %p31
    %p33 = scmp.ne.s32.totalorder %s22, %s23
    %p34 = scmp.eq.s32.totalorder %s14, 0
    %p35 = por %p33, %p34
    %p36 = scmp.ne.s32.totalorder %s22, %s23
    %p37 = scmp.eq.s32.totalorder %s15, 1
    %p38 = por %p36, %p37
    %p40 = scmp.ne.s32.totalorder %s23, %s39
    %p41 = scmp.eq.s32.totalorder %s15, 0
    %p42 = por %p40, %p41
    %s44 = sadd.s32 %s43, 1
    %p47 = scmp.eq.s32.totalorder %s9, 1
    %p48 = scmp.ne.s32.totalorder %s43, %s45
    %p49 = scmp.eq.s32.totalorder %s9, 0
    %p50 = por %p48, %p49
    %p51 = scmp.ne.s32.totalorder %s43, %s45
    %p52 = scmp.eq.s32.totalorder %s14, 1
    %p53 = por %p51, %p52
    %p54 = scmp.ne.s32.totalorder %s45, %s46
    %p55 = scmp.eq.s32.totalorder %s14, 0
    %p56 = por %p54, %p55
    %p57 = scmp.ne.s32.totalorder %s45, %s46
    %p58 = scmp.eq.s32.totalorder %s15, 1
    %p59 = por %p57, %p58
    %p61 = scmp.ne.s32.totalorder %s46, %s60
    %p62 = scmp.eq.s32.totalorder %s15, 0
    %p63 = por %p61, %p62
    %s65 = sadd.s32 %s64, 1
    %p68 = scmp.eq.s32.totalorder %s9, 1
    %p69 = scmp.ne.s32.totalorder %s64, %s66
    %p70 = scmp.eq.s32.totalorder %s9, 0
    %p71 = por %p69, %p70
    %p72 = scmp.ne.s32.totalorder %s64, %s66
    %p73 = scmp.eq.s32.totalorder %s14, 1
    %p74 = por %p72, %p73
    %p75 = scmp.ne.s32.totalorder %s66, %s67
    %p76 = scmp.eq.s32.totalorder %s14, 0
    %p77 = por %p75, %p76
    %p78 = scmp.ne.s32.totalorder %s66, %s67
    %p79 = scmp.eq.s32.totalorder %s15, 1
    %p80 = por %p78, %p79
    %p82 = scmp.ne.s32.totalorder %s67, %s81
    %p83 = scmp.eq.s32.totalorder %s15, 0
    %p84 = por %p82, %p83
    %s85 = ssub.s32 %s9, %s16
    %p86 = scmp.eq.s32.totalorder %s85, 0
    %s88 = sadd.s32 %s87, 1
    %s89 = scalar_select %p86, %s87, %s88
    %p92 = pneg %p86
    %p93 = scmp.eq.s32.totalorder %s9, 1
    %p94 = por %p92, %p93
    %p95 = scmp.ne.s32.totalorder %s87, %s90
    %p96 = scmp.eq.s32.totalorder %s9, 0
    %p97 = por %p95, %p96
    %p98 = scmp.ne.s32.totalorder %s87, %s90
    %p99 = scmp.eq.s32.totalorder %s14, 1
    %p100 = por %p98, %p99
    %p101 = scmp.ne.s32.totalorder %s90, %s91
    %p102 = scmp.eq.s32.totalorder %s14, 0
    %p103 = por %p101, %p102
    %p104 = scmp.ne.s32.totalorder %s90, %s91
    %p105 = scmp.eq.s32.totalorder %s15, 1
    %p106 = por %p104, %p105
    %p108 = scmp.ne.s32.totalorder %s91, %s107
    %p109 = scmp.eq.s32.totalorder %s15, 0
    %p110 = por %p108, %p109
    %p111 = scmp.le.s32.totalorder 1, %s9
    %p112 = scmp.lt.s32.totalorder %s9, 3
    %p113 = pnand %p111, %p112
    %p114 = pneg %p113
    // Predicated region
    $region9: #{net_forward.5} parent=5 // pred_check
      _
    $region10: #{net_forward.5} parent=5 // pred_check_branch
      %116 = sbr.rel (%p113) target = $region12
    $region11: #{net_forward.5} parent=5 // pred_region
      %s117 = ssub.s32 %s9, 1
      // Predicated region
      $region13: #{net_forward.5} parent=11 // pred_check
        %p118 = pneg %p56
      $region14: #{net_forward.5} parent=11 // pred_check_branch
        %120 = sbr.rel (%p118) target = $region16
      $region15: #{net_forward.5} parent=11 // pred_region
        _
      $region16: #{net_forward.5} parent=11 // pred_fallthru
        _
      // Predicated region
      $region17: #{net_forward.5} parent=11 // pred_check
        %p121 = pneg %p77
      $region18: #{net_forward.5} parent=11 // pred_check_branch
        %123 = sbr.rel (%p121) target = $region20
      $region19: #{net_forward.5} parent=11 // pred_region
        _
      $region20: #{net_forward.5} parent=11 // pred_fallthru
        _
    $region12: #{net_forward.5} parent=5 // pred_fallthru
      _
    %p124 = scmp.lt.s32.totalorder %s9, 2
    // Predicated region
    $region21: #{net_forward.5} parent=5 // pred_check
      %p125 = pneg %p124
    $region22: #{net_forward.5} parent=5 // pred_check_branch
      %127 = sbr.rel (%p125) target = $region24
    $region23: #{net_forward.5} parent=5 // pred_region
      // Predicated region
      $region25: #{net_forward.5} parent=23 // pred_check
        %p128 = pneg %p29
      $region26: #{net_forward.5} parent=23 // pred_check_branch
        %130 = sbr.rel (%p128) target = $region28
      $region27: #{net_forward.5} parent=23 // pred_region
        %p131 = scmp.lt.s32.totalorder %s9, 1
        %s132 = scalar_select %p131, %s9, 1
        %s133 = smul.addr %s132, 9
        %s134 = smul.addr %s133, 4
        %s135 = scalar_lea.vmem %s0, %s134
      $region28: #{net_forward.5} parent=23 // pred_fallthru
        _
    $region24: #{net_forward.5} parent=5 // pred_fallthru
      _
    %p136 = scmp.le.s32.totalorder 1, %s9
    %p137 = scmp.lt.s32.totalorder %s9, 3
    %p138 = pnand %p136, %p137
    %p139 = pneg %p138
    // Predicated region
    $region29: #{net_forward.5} parent=5 // pred_check
      _
    $region30: #{net_forward.5} parent=5 // pred_check_branch
      %141 = sbr.rel (%p138) target = $region32
    $region31: #{net_forward.5} parent=5 // pred_region
      %s142 = ssub.s32 %s9, 1
      %p143 = scmp.lt.s32.totalorder %s14, 1
      %s144 = scalar_select %p143, %s14, 1
      %s145 = smul.addr %s144, 9
      %s146 = smul.addr %s145, 4
      %s147 = scalar_lea.vmem %s0, %s146
      %p148 = pneg %p35
      %p149 = pneg %p32
      %p150 = pneg %p56
      %p151 = pneg %p53
      %p152 = pneg %p77
      %p153 = pneg %p74
      %p154 = pneg %p103
      %p155 = pneg %p100
      %p156 = scmp.lt.s32.totalorder %s14, 1
      %s157 = scalar_select %p156, %s14, 1
      %s158 = smul.addr %s157, 8
      %s159 = smul.addr %s158, 4
      %s160 = scalar_lea.vmem %s3, %s159
      %p161 = scmp.lt.s32.totalorder %s14, 1
      %s162 = scalar_select %p161, %s14, 1
      %s163 = smul.addr %s162, 9
      %s164 = smul.addr %s163, 4
      %s165 = scalar_lea.vmem %s0, %s164
      %p166 = scmp.lt.s32.totalorder %s14, 1
      %s167 = scalar_select %p166, %s14, 1
      %s168 = smul.addr %s167, 8
      %s169 = smul.addr %s168, 4
      %s170 = scalar_lea.vmem %s3, %s169
      %v172 = vld [vmem:[%s165] sm:$0xff]
      %v173 = vld [vmem:[%s165 + $0x8] sm:$0xf]
      %v174 = vld [vmem:[%s165 + $0xc] sm:$0xff]
      %v175 = vld [vmem:[%s165 + $0x14] sm:$0xf]
      %v176 = vld [vmem:[%s165 + $0x18] sm:$0x11]
      %v177 = vld [vmem:[%s165 + $0x20] sm:$0x1]
      %v178 = vld [vmem:[%s1] sm:$0xff]
      %v179 = vld [vmem:[%s1 + $0x8] sm:$0xff]
      %v180 = vld [vmem:[%s1 + $0x10] sm:$0xff]
      %v181 = vld [vmem:[%s1 + $0x18] sm:$0xff]
      %v182 = vld [vmem:[%s1 + $0x20] sm:$0xff]
      %v183 = vld [vmem:[%s1 + $0x28] sm:$0xff]
      %v184 = vld [vmem:[%s1 + $0x30] sm:$0xff]
      %v185 = vld [vmem:[%s1 + $0x38] sm:$0xff]
      %v186 = vld [vmem:[%s1 + $0x40] sm:$0xff]
      %v187 = vld [vmem:[%s1 + $0x48] sm:$0xff]
      %v188 = vld [vmem:[%s1 + $0x50] sm:$0xff]
      %v189 = vld [vmem:[%s1 + $0x58] sm:$0xff]
      %v190 = vld [vmem:[%s1 + $0x60] sm:$0xff]
      %v191 = vld [vmem:[%s1 + $0x68] sm:$0xff]
      %v192 = vld [vmem:[%s1 + $0x70] sm:$0xff]
      %v193 = vld [vmem:[%s1 + $0x78] sm:$0xff]
      %v194 = vld [vmem:[%s1 + $0x80] sm:$0xff]
      %v195 = vld [vmem:[%s1 + $0x88] sm:$0xff]
      %v196 = vld [vmem:[%s1 + $0x90] sm:$0xff]
      %v197 = vld [vmem:[%s1 + $0x98] sm:$0xff]
      %v198 = vld [vmem:[%s1 + $0xa0] sm:$0xff]
      %v199 = vld [vmem:[%s1 + $0xa8] sm:$0xff]
      %v200 = vld [vmem:[%s1 + $0xb0] sm:$0xff]
      %v201 = vld [vmem:[%s1 + $0xb8] sm:$0xff]
      %v202 = vld [vmem:[%s1 + $0xc0] sm:$0xff]
      %v203 = vld [vmem:[%s1 + $0xc8] sm:$0xff]
      %v204 = vld [vmem:[%s1 + $0xd0] sm:$0xff]
      %v205 = vld [vmem:[%s1 + $0xd8] sm:$0xff]
      %v206 = vld [vmem:[%s1 + $0xe0] sm:$0xff]
      %v207 = vld [vmem:[%s1 + $0xe8] sm:$0xff]
      %v208 = vld [vmem:[%s1 + $0xf0] sm:$0xff]
      %v209 = vld [vmem:[%s1 + $0xf8] sm:$0xff]
      %v210 = vld [vmem:[%s1 + $0x100] sm:$0xff]
      %v211 = vld [vmem:[%s1 + $0x108] sm:$0xff]
      %v212 = vld [vmem:[%s1 + $0x110] sm:$0xff]
      %v213 = vld [vmem:[%s1 + $0x118] sm:$0xff]
      %v214 = vld [vmem:[%s1 + $0x120] sm:$0xff]
      %v215 = vld [vmem:[%s1 + $0x128] sm:$0xff]
      %v216 = vld [vmem:[%s1 + $0x130] sm:$0xff]
      %v217 = vld [vmem:[%s1 + $0x138] sm:$0xff]
      %v218 = vld [vmem:[%s1 + $0x140] sm:$0xff]
      %v219 = vld [vmem:[%s1 + $0x148] sm:$0xff]
      %v220 = vld [vmem:[%s1 + $0x150] sm:$0xff]
      %v221 = vld [vmem:[%s1 + $0x158] sm:$0xff]
      %v222 = vld [vmem:[%s1 + $0x160] sm:$0xff]
      %v223 = vld [vmem:[%s1 + $0x168] sm:$0xff]
      %v224 = vld [vmem:[%s1 + $0x170] sm:$0xff]
      %v225 = vld [vmem:[%s1 + $0x178] sm:$0xff]
      %v226 = vld [vmem:[%s1 + $0x180] sm:$0xff]
      %v227 = vld [vmem:[%s1 + $0x188] sm:$0xff]
      %v228 = vld [vmem:[%s1 + $0x190] sm:$0xff]
      %v229 = vld [vmem:[%s1 + $0x198] sm:$0xff]
      %v230 = vld [vmem:[%s1 + $0x1a0] sm:$0xff]
      %v231 = vld [vmem:[%s1 + $0x1a8] sm:$0xff]
      %v232 = vld [vmem:[%s1 + $0x1b0] sm:$0xff]
      %v233 = vld [vmem:[%s1 + $0x1b8] sm:$0xff]
      %v234 = vld [vmem:[%s1 + $0x1c0] sm:$0xff]
      %v235 = vld [vmem:[%s1 + $0x1c8] sm:$0xff]
      %v236 = vld [vmem:[%s1 + $0x1d0] sm:$0xff]
      %v237 = vld [vmem:[%s1 + $0x1d8] sm:$0xff]
      %v238 = vld [vmem:[%s1 + $0x1e0] sm:$0xff]
      %v239 = vld [vmem:[%s1 + $0x1e8] sm:$0xff]
      %v240 = vld [vmem:[%s1 + $0x1f0] sm:$0xff]
      %v241 = vld [vmem:[%s1 + $0x1f8] sm:$0xff]
      %v242 = vld [vmem:[%s1 + $0x200] sm:$0xff]
      %v243 = vld [vmem:[%s1 + $0x208] sm:$0xff]
      %v244 = vld [vmem:[%s1 + $0x210] sm:$0xff]
      %v245 = vld [vmem:[%s1 + $0x218] sm:$0xff]
      %v246 = vld [vmem:[%s1 + $0x220] sm:$0xff]
      %v247 = vld [vmem:[%s1 + $0x228] sm:$0xff]
      %v248 = vld [vmem:[%s1 + $0x230] sm:$0xff]
      %v249 = vld [vmem:[%s1 + $0x238] sm:$0xff]
      %s250 = scalar_lea.vmem %s1, 576
      %v251 = vld [vmem:[%s250] sm:$0xff]
      %v252 = vld [vmem:[%s250 + $0x8] sm:$0xff]
      %v253 = vld [vmem:[%s250 + $0x10] sm:$0xff]
      %v254 = vld [vmem:[%s250 + $0x18] sm:$0xff]
      %v255 = vld [vmem:[%s250 + $0x20] sm:$0xff]
      %v256 = vld [vmem:[%s250 + $0x28] sm:$0xff]
      %v257 = vld [vmem:[%s250 + $0x30] sm:$0xff]
      %v258 = vld [vmem:[%s250 + $0x38] sm:$0xff]
      %v259 = vld [vmem:[%s250 + $0x40] sm:$0xff]
      %v260 = vld [vmem:[%s250 + $0x48] sm:$0xff]
      %v261 = vld [vmem:[%s250 + $0x50] sm:$0xff]
      %v262 = vld [vmem:[%s250 + $0x58] sm:$0xff]
      %v263 = vld [vmem:[%s250 + $0x60] sm:$0xff]
      %v264 = vld [vmem:[%s250 + $0x68] sm:$0xff]
      %v265 = vld [vmem:[%s250 + $0x70] sm:$0xff]
      %v266 = vld [vmem:[%s250 + $0x78] sm:$0xff]
      %v267 = vld [vmem:[%s250 + $0x80] sm:$0xff]
      %v268 = vld [vmem:[%s250 + $0x88] sm:$0xff]
      %v269 = vld [vmem:[%s250 + $0x90] sm:$0xff]
      %v270 = vld [vmem:[%s250 + $0x98] sm:$0xff]
      %v271 = vld [vmem:[%s250 + $0xa0] sm:$0xff]
      %v272 = vld [vmem:[%s250 + $0xa8] sm:$0xff]
      %v273 = vld [vmem:[%s250 + $0xb0] sm:$0xff]
      %v274 = vld [vmem:[%s250 + $0xb8] sm:$0xff]
      %v275 = vld [vmem:[%s250 + $0xc0] sm:$0xff]
      %v276 = vld [vmem:[%s250 + $0xc8] sm:$0xff]
      %v277 = vld [vmem:[%s250 + $0xd0] sm:$0xff]
      %v278 = vld [vmem:[%s250 + $0xd8] sm:$0xff]
      %v279 = vld [vmem:[%s250 + $0xe0] sm:$0xff]
      %v280 = vld [vmem:[%s250 + $0xe8] sm:$0xff]
      %v281 = vld [vmem:[%s250 + $0xf0] sm:$0xff]
      %v282 = vld [vmem:[%s250 + $0xf8] sm:$0xff]
      %v283 = vld [vmem:[%s250 + $0x100] sm:$0xff]
      %v284 = vld [vmem:[%s250 + $0x108] sm:$0xff]
      %v285 = vld [vmem:[%s250 + $0x110] sm:$0xff]
      %v286 = vld [vmem:[%s250 + $0x118] sm:$0xff]
      %v287 = vld [vmem:[%s250 + $0x120] sm:$0xff]
      %v288 = vld [vmem:[%s250 + $0x128] sm:$0xff]
      %v289 = vld [vmem:[%s250 + $0x130] sm:$0xff]
      %v290 = vld [vmem:[%s250 + $0x138] sm:$0xff]
      %v291 = vld [vmem:[%s250 + $0x140] sm:$0xff]
      %v292 = vld [vmem:[%s250 + $0x148] sm:$0xff]
      %v293 = vld [vmem:[%s250 + $0x150] sm:$0xff]
      %v294 = vld [vmem:[%s250 + $0x158] sm:$0xff]
      %v295 = vld [vmem:[%s250 + $0x160] sm:$0xff]
      %v296 = vld [vmem:[%s250 + $0x168] sm:$0xff]
      %v297 = vld [vmem:[%s250 + $0x170] sm:$0xff]
      %v298 = vld [vmem:[%s250 + $0x178] sm:$0xff]
      %v299 = vld [vmem:[%s250 + $0x180] sm:$0xff]
      %v300 = vld [vmem:[%s250 + $0x188] sm:$0xff]
      %v301 = vld [vmem:[%s250 + $0x190] sm:$0xff]
      %v302 = vld [vmem:[%s250 + $0x198] sm:$0xff]
      %v303 = vld [vmem:[%s250 + $0x1a0] sm:$0xff]
      %v304 = vld [vmem:[%s250 + $0x1a8] sm:$0xff]
      %v305 = vld [vmem:[%s250 + $0x1b0] sm:$0xff]
      %v306 = vld [vmem:[%s250 + $0x1b8] sm:$0xff]
      %v307 = vld [vmem:[%s250 + $0x1c0] sm:$0xff]
      %v308 = vld [vmem:[%s250 + $0x1c8] sm:$0xff]
      %v309 = vld [vmem:[%s250 + $0x1d0] sm:$0xff]
      %v310 = vld [vmem:[%s250 + $0x1d8] sm:$0xff]
      %v311 = vld [vmem:[%s250 + $0x1e0] sm:$0xff]
      %v312 = vld [vmem:[%s250 + $0x1e8] sm:$0xff]
      %v313 = vld [vmem:[%s250 + $0x1f0] sm:$0xff]
      %v314 = vld [vmem:[%s250 + $0x1f8] sm:$0xff]
      %v315 = vld [vmem:[%s250 + $0x200] sm:$0xff]
      %v316 = vld [vmem:[%s250 + $0x208] sm:$0xff]
      %v317 = vld [vmem:[%s250 + $0x210] sm:$0xff]
      %v318 = vld [vmem:[%s250 + $0x218] sm:$0xff]
      %v319 = vld [vmem:[%s250 + $0x220] sm:$0xff]
      %v320 = vld [vmem:[%s250 + $0x228] sm:$0xff]
      %v321 = vld [vmem:[%s250 + $0x230] sm:$0xff]
      %v322 = vld [vmem:[%s250 + $0x238] sm:$0xff]
      %v329 = vunpack.c.l.b16 %v172
      %v330 = vunpack.c.h.b16 %v172
      %v331 = vunpack.c.l.b16 %v173
      %v332 = vunpack.c.l.b16 %v174
      %v333 = vunpack.c.h.b16 %v174
      %v334 = vunpack.c.l.b16 %v175
      %v335 = vunpack.c.l.b16 %v176
      %v336 = vunpack.c.h.b16 %v176
      %v337 = vunpack.c.l.b16 %v177
      %v338 = vpack.c.b16 %v332, %v329
      %v339 = vpack.c.b16 %v333, %v330
      %v340 = vpack.c.b16 %v334, %v331
      %v341 = vpack.c.b16 %v335, %v335
      %v342 = vpack.c.b16 %v336, %v336
      %v343 = vpack.c.b16 %v337, %v337
      %vm344 = vsmask.f32 7424
      %v346 = vshrl.u32 %v338, 16
      %v348 = vshll.u32 %v338, 16
      %v350 = vrot.slane %v348, 1
      %v351 = vor.u32 %v346, %v350
      %v353 = vshll.u32 %v341, 16
      %v355 = vrot.slane %v353, 1
      %v356 = vsel %vm344, %v351, %v355
      %v358 = vshrl.u32 %v339, 16
      %v360 = vshll.u32 %v339, 16
      %v362 = vrot.slane %v360, 1
      %v363 = vor.u32 %v358, %v362
      %v365 = vshll.u32 %v342, 16
      %v367 = vrot.slane %v365, 1
      %v368 = vsel %vm344, %v363, %v367
      %v370 = vshrl.u32 %v340, 16
      %v372 = vshll.u32 %v340, 16
      %v374 = vrot.slane %v372, 1
      %v375 = vor.u32 %v370, %v374
      %v377 = vshll.u32 %v343, 16
      %v379 = vrot.slane %v377, 1
      %v380 = vsel %vm344, %v375, %v379
      %v455 = vunpack.c.l.b16 %v251
      %v456 = vunpack.c.h.b16 %v251
      %v457 = vunpack.c.l.b16 %v252
      %v458 = vunpack.c.h.b16 %v252
      %v459 = vunpack.c.l.b16 %v253
      %v460 = vunpack.c.h.b16 %v253
      %v461 = vunpack.c.l.b16 %v254
      %v462 = vunpack.c.h.b16 %v254
      %v463 = vunpack.c.l.b16 %v255
      %v464 = vunpack.c.h.b16 %v255
      %v465 = vunpack.c.l.b16 %v256
      %v466 = vunpack.c.h.b16 %v256
      %v467 = vunpack.c.l.b16 %v257
      %v468 = vunpack.c.h.b16 %v257
      %v469 = vunpack.c.l.b16 %v258
      %v470 = vunpack.c.h.b16 %v258
      %v471 = vunpack.c.l.b16 %v259
      %v472 = vunpack.c.h.b16 %v259
      %v473 = vunpack.c.l.b16 %v260
      %v474 = vunpack.c.h.b16 %v260
      %v475 = vunpack.c.l.b16 %v261
      %v476 = vunpack.c.h.b16 %v261
      %v477 = vunpack.c.l.b16 %v262
      %v478 = vunpack.c.h.b16 %v262
      %v479 = vunpack.c.l.b16 %v263
      %v480 = vunpack.c.h.b16 %v263
      %v481 = vunpack.c.l.b16 %v264
      %v482 = vunpack.c.h.b16 %v264
      %v483 = vunpack.c.l.b16 %v265
      %v484 = vunpack.c.h.b16 %v265
      %v485 = vunpack.c.l.b16 %v266
      %v486 = vunpack.c.h.b16 %v266
      %v487 = vunpack.c.l.b16 %v267
      %v488 = vunpack.c.h.b16 %v267
      %v489 = vunpack.c.l.b16 %v268
      %v490 = vunpack.c.h.b16 %v268
      %v491 = vunpack.c.l.b16 %v269
      %v492 = vunpack.c.h.b16 %v269
      %v493 = vunpack.c.l.b16 %v270
      %v494 = vunpack.c.h.b16 %v270
      %v495 = vunpack.c.l.b16 %v271
      %v496 = vunpack.c.h.b16 %v271
      %v497 = vunpack.c.l.b16 %v272
      %v498 = vunpack.c.h.b16 %v272
      %v499 = vunpack.c.l.b16 %v273
      %v500 = vunpack.c.h.b16 %v273
      %v501 = vunpack.c.l.b16 %v274
      %v502 = vunpack.c.h.b16 %v274
      %v503 = vunpack.c.l.b16 %v275
      %v504 = vunpack.c.h.b16 %v275
      %v505 = vunpack.c.l.b16 %v276
      %v506 = vunpack.c.h.b16 %v276
      %v507 = vunpack.c.l.b16 %v277
      %v508 = vunpack.c.h.b16 %v277
      %v509 = vunpack.c.l.b16 %v278
      %v510 = vunpack.c.h.b16 %v278
      %v511 = vunpack.c.l.b16 %v279
      %v512 = vunpack.c.h.b16 %v279
      %v513 = vunpack.c.l.b16 %v280
      %v514 = vunpack.c.h.b16 %v280
      %v515 = vunpack.c.l.b16 %v281
      %v516 = vunpack.c.h.b16 %v281
      %v517 = vunpack.c.l.b16 %v282
      %v518 = vunpack.c.h.b16 %v282
      %v519 = vunpack.c.l.b16 %v283
      %v520 = vunpack.c.h.b16 %v283
      %v521 = vunpack.c.l.b16 %v284
      %v522 = vunpack.c.h.b16 %v284
      %v523 = vunpack.c.l.b16 %v285
      %v524 = vunpack.c.h.b16 %v285
      %v525 = vunpack.c.l.b16 %v286
      %v526 = vunpack.c.h.b16 %v286
      %v527 = vunpack.c.l.b16 %v287
      %v528 = vunpack.c.h.b16 %v287
      %v529 = vunpack.c.l.b16 %v288
      %v530 = vunpack.c.h.b16 %v288
      %v531 = vunpack.c.l.b16 %v289
      %v532 = vunpack.c.h.b16 %v289
      %v533 = vunpack.c.l.b16 %v290
      %v534 = vunpack.c.h.b16 %v290
      %v535 = vunpack.c.l.b16 %v291
      %v536 = vunpack.c.h.b16 %v291
      %v537 = vunpack.c.l.b16 %v292
      %v538 = vunpack.c.h.b16 %v292
      %v539 = vunpack.c.l.b16 %v293
      %v540 = vunpack.c.h.b16 %v293
      %v541 = vunpack.c.l.b16 %v294
      %v542 = vunpack.c.h.b16 %v294
      %v543 = vunpack.c.l.b16 %v295
      %v544 = vunpack.c.h.b16 %v295
      %v545 = vunpack.c.l.b16 %v296
      %v546 = vunpack.c.h.b16 %v296
      %v547 = vunpack.c.l.b16 %v297
      %v548 = vunpack.c.h.b16 %v297
      %v549 = vunpack.c.l.b16 %v298
      %v550 = vunpack.c.h.b16 %v298
      %v551 = vunpack.c.l.b16 %v299
      %v552 = vunpack.c.h.b16 %v299
      %v553 = vunpack.c.l.b16 %v300
      %v554 = vunpack.c.h.b16 %v300
      %v555 = vunpack.c.l.b16 %v301
      %v556 = vunpack.c.h.b16 %v301
      %v557 = vunpack.c.l.b16 %v302
      %v558 = vunpack.c.h.b16 %v302
      %v559 = vunpack.c.l.b16 %v303
      %v560 = vunpack.c.h.b16 %v303
      %v561 = vunpack.c.l.b16 %v304
      %v562 = vunpack.c.h.b16 %v304
      %v563 = vunpack.c.l.b16 %v305
      %v564 = vunpack.c.h.b16 %v305
      %v565 = vunpack.c.l.b16 %v306
      %v566 = vunpack.c.h.b16 %v306
      %v567 = vunpack.c.l.b16 %v307
      %v568 = vunpack.c.h.b16 %v307
      %v569 = vunpack.c.l.b16 %v308
      %v570 = vunpack.c.h.b16 %v308
      %v571 = vunpack.c.l.b16 %v309
      %v572 = vunpack.c.h.b16 %v309
      %v573 = vunpack.c.l.b16 %v310
      %v574 = vunpack.c.h.b16 %v310
      %v575 = vunpack.c.l.b16 %v311
      %v576 = vunpack.c.h.b16 %v311
      %v577 = vunpack.c.l.b16 %v312
      %v578 = vunpack.c.h.b16 %v312
      %v579 = vunpack.c.l.b16 %v313
      %v580 = vunpack.c.h.b16 %v313
      %v581 = vunpack.c.l.b16 %v314
      %v582 = vunpack.c.h.b16 %v314
      %v583 = vunpack.c.l.b16 %v315
      %v584 = vunpack.c.h.b16 %v315
      %v585 = vunpack.c.l.b16 %v316
      %v586 = vunpack.c.h.b16 %v316
      %v587 = vunpack.c.l.b16 %v317
      %v588 = vunpack.c.h.b16 %v317
      %v589 = vunpack.c.l.b16 %v318
      %v590 = vunpack.c.h.b16 %v318
      %v591 = vunpack.c.l.b16 %v319
      %v592 = vunpack.c.h.b16 %v319
      %v593 = vunpack.c.l.b16 %v320
      %v594 = vunpack.c.h.b16 %v320
      %v595 = vunpack.c.l.b16 %v321
      %v596 = vunpack.c.h.b16 %v321
      %v597 = vunpack.c.l.b16 %v322
      %v598 = vunpack.c.h.b16 %v322
      %v599 = vpack.c.b16 %v459, %v455
      %v600 = vpack.c.b16 %v460, %v456
      %v601 = vpack.c.b16 %v461, %v457
      %v602 = vpack.c.b16 %v462, %v458
      %v603 = vpack.c.b16 %v467, %v463
      %v604 = vpack.c.b16 %v468, %v464
      %v605 = vpack.c.b16 %v469, %v465
      %v606 = vpack.c.b16 %v470, %v466
      %v607 = vpack.c.b16 %v475, %v471
      %v608 = vpack.c.b16 %v476, %v472
      %v609 = vpack.c.b16 %v477, %v473
      %v610 = vpack.c.b16 %v478, %v474
      %v611 = vpack.c.b16 %v483, %v479
      %v612 = vpack.c.b16 %v484, %v480
      %v613 = vpack.c.b16 %v485, %v481
      %v614 = vpack.c.b16 %v486, %v482
      %v615 = vpack.c.b16 %v491, %v487
      %v616 = vpack.c.b16 %v492, %v488
      %v617 = vpack.c.b16 %v493, %v489
      %v618 = vpack.c.b16 %v494, %v490
      %v619 = vpack.c.b16 %v499, %v495
      %v620 = vpack.c.b16 %v500, %v496
      %v621 = vpack.c.b16 %v501, %v497
      %v622 = vpack.c.b16 %v502, %v498
      %v623 = vpack.c.b16 %v507, %v503
      %v624 = vpack.c.b16 %v508, %v504
      %v625 = vpack.c.b16 %v509, %v505
      %v626 = vpack.c.b16 %v510, %v506
      %v627 = vpack.c.b16 %v515, %v511
      %v628 = vpack.c.b16 %v516, %v512
      %v629 = vpack.c.b16 %v517, %v513
      %v630 = vpack.c.b16 %v518, %v514
      %v631 = vpack.c.b16 %v523, %v519
      %v632 = vpack.c.b16 %v524, %v520
      %v633 = vpack.c.b16 %v525, %v521
      %v634 = vpack.c.b16 %v526, %v522
      %v635 = vpack.c.b16 %v531, %v527
      %v636 = vpack.c.b16 %v532, %v528
      %v637 = vpack.c.b16 %v533, %v529
      %v638 = vpack.c.b16 %v534, %v530
      %v639 = vpack.c.b16 %v539, %v535
      %v640 = vpack.c.b16 %v540, %v536
      %v641 = vpack.c.b16 %v541, %v537
      %v642 = vpack.c.b16 %v542, %v538
      %v643 = vpack.c.b16 %v547, %v543
      %v644 = vpack.c.b16 %v548, %v544
      %v645 = vpack.c.b16 %v549, %v545
      %v646 = vpack.c.b16 %v550, %v546
      %v647 = vpack.c.b16 %v555, %v551
      %v648 = vpack.c.b16 %v556, %v552
      %v649 = vpack.c.b16 %v557, %v553
      %v650 = vpack.c.b16 %v558, %v554
      %v651 = vpack.c.b16 %v563, %v559
      %v652 = vpack.c.b16 %v564, %v560
      %v653 = vpack.c.b16 %v565, %v561
      %v654 = vpack.c.b16 %v566, %v562
      %v655 = vpack.c.b16 %v571, %v567
      %v656 = vpack.c.b16 %v572, %v568
      %v657 = vpack.c.b16 %v573, %v569
      %v658 = vpack.c.b16 %v574, %v570
      %v659 = vpack.c.b16 %v579, %v575
      %v660 = vpack.c.b16 %v580, %v576
      %v661 = vpack.c.b16 %v581, %v577
      %v662 = vpack.c.b16 %v582, %v578
      %v663 = vpack.c.b16 %v587, %v583
      %v664 = vpack.c.b16 %v588, %v584
      %v665 = vpack.c.b16 %v589, %v585
      %v666 = vpack.c.b16 %v590, %v586
      %v667 = vpack.c.b16 %v595, %v591
      %v668 = vpack.c.b16 %v596, %v592
      %v669 = vpack.c.b16 %v597, %v593
      %v670 = vpack.c.b16 %v598, %v594
      %vm743 = vcmask 261120
      %v745 = vsel %vm743, %v380, 0
      %747 = vmatprep.subr.bf16.mxu0 %v600
      %748 = vmatpush1.bf16.msra.mxu0 %v599
      %749 = vmatprep.subr.bf16.mxu0 %v604
      %750 = vmatpush1.bf16.msra.mxu0 %v603
      %751 = vmatprep.subr.bf16.mxu0 %v608
      %752 = vmatpush1.bf16.msra.mxu0 %v607
      %753 = vmatprep.subr.bf16.mxu0 %v612
      %754 = vmatpush1.bf16.msra.mxu0 %v611
      %755 = vmatprep.subr.bf16.mxu0 %v616
      %756 = vmatpush1.bf16.msra.mxu0 %v615
      %757 = vmatprep.subr.bf16.mxu0 %v620
      %758 = vmatpush1.bf16.msra.mxu0 %v619
      %759 = vmatprep.subr.bf16.mxu0 %v624
      %760 = vmatpush1.bf16.msra.mxu0 %v623
      %761 = vmatprep.subr.bf16.mxu0 %v628
      %762 = vmatpush1.bf16.msra.mxu0 %v627
      %763 = vmatprep.subr.bf16.mxu0 %v632
      %764 = vmatpush1.bf16.msra.mxu0 %v631
      %765 = vmatprep.subr.bf16.mxu0 %v636
      %766 = vmatpush1.bf16.msra.mxu0 %v635
      %767 = vmatprep.subr.bf16.mxu0 %v640
      %768 = vmatpush1.bf16.msra.mxu0 %v639
      %769 = vmatprep.subr.bf16.mxu0 %v644
      %770 = vmatpush1.bf16.msra.mxu0 %v643
      %771 = vmatprep.subr.bf16.mxu0 %v648
      %772 = vmatpush1.bf16.msra.mxu0 %v647
      %773 = vmatprep.subr.bf16.mxu0 %v652
      %774 = vmatpush1.bf16.msra.mxu0 %v651
      %775 = vmatprep.subr.bf16.mxu0 %v656
      %776 = vmatpush1.bf16.msra.mxu0 %v655
      %777 = vmatprep.subr.bf16.mxu0 %v660
      %778 = vmatpush1.bf16.msra.mxu0 %v659
      %779 = vmatprep.mubr.bf16.mxu0 %v368
      %780 = vmatmul.mubr.bf16.gmra.mrb[0].mxu0 %v356
      %v781 = vpop.f32.mrb[0].mxu0
      %v782 = vadd.f32 0.0, %v781
      %v783 = vpop.f32.mrb[0].mxu0
      %v784 = vadd.f32 0.0, %v783
      %v785 = vpop.f32.mrb[0].mxu0
      %v786 = vadd.f32 0.0, %v785
      %v787 = vpop.f32.mrb[0].mxu0
      %v788 = vadd.f32 0.0, %v787
      %789 = vdwg.mxu0
      %790 = vmatprep.subr.bf16.mxu0 %v664
      %791 = vmatpush1.bf16.msra.mxu0 %v663
      %792 = vmatprep.subr.bf16.mxu0 %v668
      %793 = vmatpush1.bf16.msra.mxu0 %v667
      %794 = vmatprep.subr.bf16.mxu0 0
      %795 = vmatpush1.bf16.msra.mxu0 0
      %796 = vmatprep.subr.bf16.mxu0 0
      %797 = vmatpush1.bf16.msra.mxu0 0
      %798 = vmatprep.subr.bf16.mxu0 0
      %799 = vmatpush1.bf16.msra.mxu0 0
      %800 = vmatprep.subr.bf16.mxu0 0
      %801 = vmatpush1.bf16.msra.mxu0 0
      %802 = vmatprep.subr.bf16.mxu0 0
      %803 = vmatpush1.bf16.msra.mxu0 0
      %804 = vmatprep.subr.bf16.mxu0 0
      %805 = vmatpush1.bf16.msra.mxu0 0
      %806 = vmatprep.subr.bf16.mxu0 0
      %807 = vmatpush1.bf16.msra.mxu0 0
      %808 = vmatprep.subr.bf16.mxu0 0
      %809 = vmatpush1.bf16.msra.mxu0 0
      %810 = vmatprep.subr.bf16.mxu0 0
      %811 = vmatpush1.bf16.msra.mxu0 0
      %812 = vmatprep.subr.bf16.mxu0 0
      %813 = vmatpush1.bf16.msra.mxu0 0
      %814 = vmatprep.subr.bf16.mxu0 0
      %815 = vmatpush1.bf16.msra.mxu0 0
      %816 = vmatprep.subr.bf16.mxu0 0
      %817 = vmatpush1.bf16.msra.mxu0 0
      %818 = vmatprep.subr.bf16.mxu0 0
      %819 = vmatpush1.bf16.msra.mxu0 0
      %820 = vmatprep.subr.bf16.mxu0 0
      %821 = vmatpush1.bf16.msra.mxu0 0
      %822 = vmatprep.mubr.bf16.mxu0 0
      %823 = vmatmul.mubr.bf16.gmra.mrb[0].mxu0 %v745
      %v824 = vpop.f32.mrb[0].mxu0
      %v825 = vadd.f32 %v782, %v824
      %v826 = vpop.f32.mrb[0].mxu0
      %v827 = vadd.f32 %v784, %v826
      %v828 = vpop.f32.mrb[0].mxu0
      %v829 = vadd.f32 %v786, %v828
      %v830 = vpop.f32.mrb[0].mxu0
      %v831 = vadd.f32 %v788, %v830
      %832 = vdwg.mxu0
      %833 = vmatprep.subr.bf16.mxu0 %v602
      %834 = vmatpush1.bf16.msra.mxu0 %v601
      %835 = vmatprep.subr.bf16.mxu0 %v606
      %836 = vmatpush1.bf16.msra.mxu0 %v605
      %837 = vmatprep.subr.bf16.mxu0 %v610
      %838 = vmatpush1.bf16.msra.mxu0 %v609
      %839 = vmatprep.subr.bf16.mxu0 %v614
      %840 = vmatpush1.bf16.msra.mxu0 %v613
      %841 = vmatprep.subr.bf16.mxu0 %v618
      %842 = vmatpush1.bf16.msra.mxu0 %v617
      %843 = vmatprep.subr.bf16.mxu0 %v622
      %844 = vmatpush1.bf16.msra.mxu0 %v621
      %845 = vmatprep.subr.bf16.mxu0 %v626
      %846 = vmatpush1.bf16.msra.mxu0 %v625
      %847 = vmatprep.subr.bf16.mxu0 %v630
      %848 = vmatpush1.bf16.msra.mxu0 %v629
      %849 = vmatprep.subr.bf16.mxu0 %v634
      %850 = vmatpush1.bf16.msra.mxu0 %v633
      %851 = vmatprep.subr.bf16.mxu0 %v638
      %852 = vmatpush1.bf16.msra.mxu0 %v637
      %853 = vmatprep.subr.bf16.mxu0 %v642
      %854 = vmatpush1.bf16.msra.mxu0 %v641
      %855 = vmatprep.subr.bf16.mxu0 %v646
      %856 = vmatpush1.bf16.msra.mxu0 %v645
      %857 = vmatprep.subr.bf16.mxu0 %v650
      %858 = vmatpush1.bf16.msra.mxu0 %v649
      %859 = vmatprep.subr.bf16.mxu0 %v654
      %860 = vmatpush1.bf16.msra.mxu0 %v653
      %861 = vmatprep.subr.bf16.mxu0 %v658
      %862 = vmatpush1.bf16.msra.mxu0 %v657
      %863 = vmatprep.subr.bf16.mxu0 %v662
      %864 = vmatpush1.bf16.msra.mxu0 %v661
      %865 = vmatprep.mubr.bf16.mxu0 %v368
      %866 = vmatmul.mubr.bf16.gmra.mrb[0].mxu0 %v356
      %v867 = vpop.f32.mrb[0].mxu0
      %v868 = vadd.f32 0.0, %v867
      %v869 = vpop.f32.mrb[0].mxu0
      %v870 = vadd.f32 0.0, %v869
      %v871 = vpop.f32.mrb[0].mxu0
      %v872 = vadd.f32 0.0, %v871
      %v873 = vpop.f32.mrb[0].mxu0
      %v874 = vadd.f32 0.0, %v873
      %875 = vdwg.mxu0
      %876 = vmatprep.subr.bf16.mxu0 %v666
      %877 = vmatpush1.bf16.msra.mxu0 %v665
      %878 = vmatprep.subr.bf16.mxu0 %v670
      %879 = vmatpush1.bf16.msra.mxu0 %v669
      %880 = vmatprep.subr.bf16.mxu0 0
      %881 = vmatpush1.bf16.msra.mxu0 0
      %882 = vmatprep.subr.bf16.mxu0 0
      %883 = vmatpush1.bf16.msra.mxu0 0
      %884 = vmatprep.subr.bf16.mxu0 0
      %885 = vmatpush1.bf16.msra.mxu0 0
      %886 = vmatprep.subr.bf16.mxu0 0
      %887 = vmatpush1.bf16.msra.mxu0 0
      %888 = vmatprep.subr.bf16.mxu0 0
      %889 = vmatpush1.bf16.msra.mxu0 0
      %890 = vmatprep.subr.bf16.mxu0 0
      %891 = vmatpush1.bf16.msra.mxu0 0
      %892 = vmatprep.subr.bf16.mxu0 0
      %893 = vmatpush1.bf16.msra.mxu0 0
      %894 = vmatprep.subr.bf16.mxu0 0
      %895 = vmatpush1.bf16.msra.mxu0 0
      %896 = vmatprep.subr.bf16.mxu0 0
      %897 = vmatpush1.bf16.msra.mxu0 0
      %898 = vmatprep.subr.bf16.mxu0 0
      %899 = vmatpush1.bf16.msra.mxu0 0
      %900 = vmatprep.subr.bf16.mxu0 0
      %901 = vmatpush1.bf16.msra.mxu0 0
      %902 = vmatprep.subr.bf16.mxu0 0
      %903 = vmatpush1.bf16.msra.mxu0 0
      %904 = vmatprep.subr.bf16.mxu0 0
      %905 = vmatpush1.bf16.msra.mxu0 0
      %906 = vmatprep.subr.bf16.mxu0 0
      %907 = vmatpush1.bf16.msra.mxu0 0
      %908 = vmatprep.mubr.bf16.mxu0 0
      %909 = vmatmul.mubr.bf16.gmra.mrb[0].mxu0 %v745
      %v910 = vpop.f32.mrb[0].mxu0
      %v911 = vadd.f32 %v868, %v910
      %v912 = vpop.f32.mrb[0].mxu0
      %v913 = vadd.f32 %v870, %v912
      %v914 = vpop.f32.mrb[0].mxu0
      %v915 = vadd.f32 %v872, %v914
      %v916 = vpop.f32.mrb[0].mxu0
      %v917 = vadd.f32 %v874, %v916
      %918 = vdwg.mxu0
      %v993 = vunpack.c.l.b16 %v178
      %v994 = vunpack.c.h.b16 %v178
      %v995 = vunpack.c.l.b16 %v179
      %v996 = vunpack.c.h.b16 %v179
      %v997 = vunpack.c.l.b16 %v180
      %v998 = vunpack.c.h.b16 %v180
      %v999 = vunpack.c.l.b16 %v181
      %v1000 = vunpack.c.h.b16 %v181
      %v1001 = vunpack.c.l.b16 %v182
      %v1002 = vunpack.c.h.b16 %v182
      %v1003 = vunpack.c.l.b16 %v183
      %v1004 = vunpack.c.h.b16 %v183
      %v1005 = vunpack.c.l.b16 %v184
      %v1006 = vunpack.c.h.b16 %v184
      %v1007 = vunpack.c.l.b16 %v185
      %v1008 = vunpack.c.h.b16 %v185
      %v1009 = vunpack.c.l.b16 %v186
      %v1010 = vunpack.c.h.b16 %v186
      %v1011 = vunpack.c.l.b16 %v187
      %v1012 = vunpack.c.h.b16 %v187
      %v1013 = vunpack.c.l.b16 %v188
      %v1014 = vunpack.c.h.b16 %v188
      %v1015 = vunpack.c.l.b16 %v189
      %v1016 = vunpack.c.h.b16 %v189
      %v1017 = vunpack.c.l.b16 %v190
      %v1018 = vunpack.c.h.b16 %v190
      %v1019 = vunpack.c.l.b16 %v191
      %v1020 = vunpack.c.h.b16 %v191
      %v1021 = vunpack.c.l.b16 %v192
      %v1022 = vunpack.c.h.b16 %v192
      %v1023 = vunpack.c.l.b16 %v193
      %v1024 = vunpack.c.h.b16 %v193
      %v1025 = vunpack.c.l.b16 %v194
      %v1026 = vunpack.c.h.b16 %v194
      %v1027 = vunpack.c.l.b16 %v195
      %v1028 = vunpack.c.h.b16 %v195
      %v1029 = vunpack.c.l.b16 %v196
      %v1030 = vunpack.c.h.b16 %v196
      %v1031 = vunpack.c.l.b16 %v197
      %v1032 = vunpack.c.h.b16 %v197
      %v1033 = vunpack.c.l.b16 %v198
      %v1034 = vunpack.c.h.b16 %v198
      %v1035 = vunpack.c.l.b16 %v199
      %v1036 = vunpack.c.h.b16 %v199
      %v1037 = vunpack.c.l.b16 %v200
      %v1038 = vunpack.c.h.b16 %v200
      %v1039 = vunpack.c.l.b16 %v201
      %v1040 = vunpack.c.h.b16 %v201
      %v1041 = vunpack.c.l.b16 %v202
      %v1042 = vunpack.c.h.b16 %v202
      %v1043 = vunpack.c.l.b16 %v203
      %v1044 = vunpack.c.h.b16 %v203
      %v1045 = vunpack.c.l.b16 %v204
      %v1046 = vunpack.c.h.b16 %v204
      %v1047 = vunpack.c.l.b16 %v205
      %v1048 = vunpack.c.h.b16 %v205
      %v1049 = vunpack.c.l.b16 %v206
      %v1050 = vunpack.c.h.b16 %v206
      %v1051 = vunpack.c.l.b16 %v207
      %v1052 = vunpack.c.h.b16 %v207
      %v1053 = vunpack.c.l.b16 %v208
      %v1054 = vunpack.c.h.b16 %v208
      %v1055 = vunpack.c.l.b16 %v209
      %v1056 = vunpack.c.h.b16 %v209
      %v1057 = vunpack.c.l.b16 %v210
      %v1058 = vunpack.c.h.b16 %v210
      %v1059 = vunpack.c.l.b16 %v211
      %v1060 = vunpack.c.h.b16 %v211
      %v1061 = vunpack.c.l.b16 %v212
      %v1062 = vunpack.c.h.b16 %v212
      %v1063 = vunpack.c.l.b16 %v213
      %v1064 = vunpack.c.h.b16 %v213
      %v1065 = vunpack.c.l.b16 %v214
      %v1066 = vunpack.c.h.b16 %v214
      %v1067 = vunpack.c.l.b16 %v215
      %v1068 = vunpack.c.h.b16 %v215
      %v1069 = vunpack.c.l.b16 %v216
      %v1070 = vunpack.c.h.b16 %v216
      %v1071 = vunpack.c.l.b16 %v217
      %v1072 = vunpack.c.h.b16 %v217
      %v1073 = vunpack.c.l.b16 %v218
      %v1074 = vunpack.c.h.b16 %v218
      %v1075 = vunpack.c.l.b16 %v219
      %v1076 = vunpack.c.h.b16 %v219
      %v1077 = vunpack.c.l.b16 %v220
      %v1078 = vunpack.c.h.b16 %v220
      %v1079 = vunpack.c.l.b16 %v221
      %v1080 = vunpack.c.h.b16 %v221
      %v1081 = vunpack.c.l.b16 %v222
      %v1082 = vunpack.c.h.b16 %v222
      %v1083 = vunpack.c.l.b16 %v223
      %v1084 = vunpack.c.h.b16 %v223
      %v1085 = vunpack.c.l.b16 %v224
      %v1086 = vunpack.c.h.b16 %v224
      %v1087 = vunpack.c.l.b16 %v225
      %v1088 = vunpack.c.h.b16 %v225
      %v1089 = vunpack.c.l.b16 %v226
      %v1090 = vunpack.c.h.b16 %v226
      %v1091 = vunpack.c.l.b16 %v227
      %v1092 = vunpack.c.h.b16 %v227
      %v1093 = vunpack.c.l.b16 %v228
      %v1094 = vunpack.c.h.b16 %v228
      %v1095 = vunpack.c.l.b16 %v229
      %v1096 = vunpack.c.h.b16 %v229
      %v1097 = vunpack.c.l.b16 %v230
      %v1098 = vunpack.c.h.b16 %v230
      %v1099 = vunpack.c.l.b16 %v231
      %v1100 = vunpack.c.h.b16 %v231
      %v1101 = vunpack.c.l.b16 %v232
      %v1102 = vunpack.c.h.b16 %v232
      %v1103 = vunpack.c.l.b16 %v233
      %v1104 = vunpack.c.h.b16 %v233
      %v1105 = vunpack.c.l.b16 %v234
      %v1106 = vunpack.c.h.b16 %v234
      %v1107 = vunpack.c.l.b16 %v235
      %v1108 = vunpack.c.h.b16 %v235
      %v1109 = vunpack.c.l.b16 %v236
      %v1110 = vunpack.c.h.b16 %v236
      %v1111 = vunpack.c.l.b16 %v237
      %v1112 = vunpack.c.h.b16 %v237
      %v1113 = vunpack.c.l.b16 %v238
      %v1114 = vunpack.c.h.b16 %v238
      %v1115 = vunpack.c.l.b16 %v239
      %v1116 = vunpack.c.h.b16 %v239
      %v1117 = vunpack.c.l.b16 %v240
      %v1118 = vunpack.c.h.b16 %v240
      %v1119 = vunpack.c.l.b16 %v241
      %v1120 = vunpack.c.h.b16 %v241
      %v1121 = vunpack.c.l.b16 %v242
      %v1122 = vunpack.c.h.b16 %v242
      %v1123 = vunpack.c.l.b16 %v243
      %v1124 = vunpack.c.h.b16 %v243
      %v1125 = vunpack.c.l.b16 %v244
      %v1126 = vunpack.c.h.b16 %v244
      %v1127 = vunpack.c.l.b16 %v245
      %v1128 = vunpack.c.h.b16 %v245
      %v1129 = vunpack.c.l.b16 %v246
      %v1130 = vunpack.c.h.b16 %v246
      %v1131 = vunpack.c.l.b16 %v247
      %v1132 = vunpack.c.h.b16 %v247
      %v1133 = vunpack.c.l.b16 %v248
      %v1134 = vunpack.c.h.b16 %v248
      %v1135 = vunpack.c.l.b16 %v249
      %v1136 = vunpack.c.h.b16 %v249
      %v1137 = vpack.c.b16 %v997, %v993
      %v1138 = vpack.c.b16 %v998, %v994
      %v1139 = vpack.c.b16 %v999, %v995
      %v1140 = vpack.c.b16 %v1000, %v996
      %v1141 = vpack.c.b16 %v1005, %v1001
      %v1142 = vpack.c.b16 %v1006, %v1002
      %v1143 = vpack.c.b16 %v1007, %v1003
      %v1144 = vpack.c.b16 %v1008, %v1004
      %v1145 = vpack.c.b16 %v1013, %v1009
      %v1146 = vpack.c.b16 %v1014, %v1010
      %v1147 = vpack.c.b16 %v1015, %v1011
      %v1148 = vpack.c.b16 %v1016, %v1012
      %v1149 = vpack.c.b16 %v1021, %v1017
      %v1150 = vpack.c.b16 %v1022, %v1018
      %v1151 = vpack.c.b16 %v1023, %v1019
      %v1152 = vpack.c.b16 %v1024, %v1020
      %v1153 = vpack.c.b16 %v1029, %v1025
      %v1154 = vpack.c.b16 %v1030, %v1026
      %v1155 = vpack.c.b16 %v1031, %v1027
      %v1156 = vpack.c.b16 %v1032, %v1028
      %v1157 = vpack.c.b16 %v1037, %v1033
      %v1158 = vpack.c.b16 %v1038, %v1034
      %v1159 = vpack.c.b16 %v1039, %v1035
      %v1160 = vpack.c.b16 %v1040, %v1036
      %v1161 = vpack.c.b16 %v1045, %v1041
      %v1162 = vpack.c.b16 %v1046, %v1042
      %v1163 = vpack.c.b16 %v1047, %v1043
      %v1164 = vpack.c.b16 %v1048, %v1044
      %v1165 = vpack.c.b16 %v1053, %v1049
      %v1166 = vpack.c.b16 %v1054, %v1050
      %v1167 = vpack.c.b16 %v1055, %v1051
      %v1168 = vpack.c.b16 %v1056, %v1052
      %v1169 = vpack.c.b16 %v1061, %v1057
      %v1170 = vpack.c.b16 %v1062, %v1058
      %v1171 = vpack.c.b16 %v1063, %v1059
      %v1172 = vpack.c.b16 %v1064, %v1060
      %v1173 = vpack.c.b16 %v1069, %v1065
      %v1174 = vpack.c.b16 %v1070, %v1066
      %v1175 = vpack.c.b16 %v1071, %v1067
      %v1176 = vpack.c.b16 %v1072, %v1068
      %v1177 = vpack.c.b16 %v1077, %v1073
      %v1178 = vpack.c.b16 %v1078, %v1074
      %v1179 = vpack.c.b16 %v1079, %v1075
      %v1180 = vpack.c.b16 %v1080, %v1076
      %v1181 = vpack.c.b16 %v1085, %v1081
      %v1182 = vpack.c.b16 %v1086, %v1082
      %v1183 = vpack.c.b16 %v1087, %v1083
      %v1184 = vpack.c.b16 %v1088, %v1084
      %v1185 = vpack.c.b16 %v1093, %v1089
      %v1186 = vpack.c.b16 %v1094, %v1090
      %v1187 = vpack.c.b16 %v1095, %v1091
      %v1188 = vpack.c.b16 %v1096, %v1092
      %v1189 = vpack.c.b16 %v1101, %v1097
      %v1190 = vpack.c.b16 %v1102, %v1098
      %v1191 = vpack.c.b16 %v1103, %v1099
      %v1192 = vpack.c.b16 %v1104, %v1100
      %v1193 = vpack.c.b16 %v1109, %v1105
      %v1194 = vpack.c.b16 %v1110, %v1106
      %v1195 = vpack.c.b16 %v1111, %v1107
      %v1196 = vpack.c.b16 %v1112, %v1108
      %v1197 = vpack.c.b16 %v1117, %v1113
      %v1198 = vpack.c.b16 %v1118, %v1114
      %v1199 = vpack.c.b16 %v1119, %v1115
      %v1200 = vpack.c.b16 %v1120, %v1116
      %v1201 = vpack.c.b16 %v1125, %v1121
      %v1202 = vpack.c.b16 %v1126, %v1122
      %v1203 = vpack.c.b16 %v1127, %v1123
      %v1204 = vpack.c.b16 %v1128, %v1124
      %v1205 = vpack.c.b16 %v1133, %v1129
      %v1206 = vpack.c.b16 %v1134, %v1130
      %v1207 = vpack.c.b16 %v1135, %v1131
      %v1208 = vpack.c.b16 %v1136, %v1132
      %v1281 = vsel %vm743, %v340, 0
      %1283 = vmatprep.subr.bf16.mxu0 %v1138
      %1284 = vmatpush1.bf16.msra.mxu0 %v1137
      %1285 = vmatprep.subr.bf16.mxu0 %v1142
      %1286 = vmatpush1.bf16.msra.mxu0 %v1141
      %1287 = vmatprep.subr.bf16.mxu0 %v1146
      %1288 = vmatpush1.bf16.msra.mxu0 %v1145
      %1289 = vmatprep.subr.bf16.mxu0 %v1150
      %1290 = vmatpush1.bf16.msra.mxu0 %v1149
      %1291 = vmatprep.subr.bf16.mxu0 %v1154
      %1292 = vmatpush1.bf16.msra.mxu0 %v1153
      %1293 = vmatprep.subr.bf16.mxu0 %v1158
      %1294 = vmatpush1.bf16.msra.mxu0 %v1157
      %1295 = vmatprep.subr.bf16.mxu0 %v1162
      %1296 = vmatpush1.bf16.msra.mxu0 %v1161
      %1297 = vmatprep.subr.bf16.mxu0 %v1166
      %1298 = vmatpush1.bf16.msra.mxu0 %v1165
      %1299 = vmatprep.subr.bf16.mxu0 %v1170
      %1300 = vmatpush1.bf16.msra.mxu0 %v1169
      %1301 = vmatprep.subr.bf16.mxu0 %v1174
      %1302 = vmatpush1.bf16.msra.mxu0 %v1173
      %1303 = vmatprep.subr.bf16.mxu0 %v1178
      %1304 = vmatpush1.bf16.msra.mxu0 %v1177
      %1305 = vmatprep.subr.bf16.mxu0 %v1182
      %1306 = vmatpush1.bf16.msra.mxu0 %v1181
      %1307 = vmatprep.subr.bf16.mxu0 %v1186
      %1308 = vmatpush1.bf16.msra.mxu0 %v1185
      %1309 = vmatprep.subr.bf16.mxu0 %v1190
      %1310 = vmatpush1.bf16.msra.mxu0 %v1189
      %1311 = vmatprep.subr.bf16.mxu0 %v1194
      %1312 = vmatpush1.bf16.msra.mxu0 %v1193
      %1313 = vmatprep.subr.bf16.mxu0 %v1198
      %1314 = vmatpush1.bf16.msra.mxu0 %v1197
      %1315 = vmatprep.mubr.bf16.mxu0 %v339
      %1316 = vmatmul.mubr.bf16.gmra.mrb[0].mxu0 %v338
      %v1317 = vpop.f32.mrb[0].mxu0
      %v1318 = vadd.f32 %v825, %v1317
      %v1319 = vpop.f32.mrb[0].mxu0
      %v1320 = vadd.f32 %v827, %v1319
      %v1321 = vpop.f32.mrb[0].mxu0
      %v1322 = vadd.f32 %v829, %v1321
      %v1323 = vpop.f32.mrb[0].mxu0
      %v1324 = vadd.f32 %v831, %v1323
      %1325 = vdwg.mxu0
      %1326 = vmatprep.subr.bf16.mxu0 %v1202
      %1327 = vmatpush1.bf16.msra.mxu0 %v1201
      %1328 = vmatprep.subr.bf16.mxu0 %v1206
      %1329 = vmatpush1.bf16.msra.mxu0 %v1205
      %1330 = vmatprep.subr.bf16.mxu0 0
      %1331 = vmatpush1.bf16.msra.mxu0 0
      %1332 = vmatprep.subr.bf16.mxu0 0
      %1333 = vmatpush1.bf16.msra.mxu0 0
      %1334 = vmatprep.subr.bf16.mxu0 0
      %1335 = vmatpush1.bf16.msra.mxu0 0
      %1336 = vmatprep.subr.bf16.mxu0 0
      %1337 = vmatpush1.bf16.msra.mxu0 0
      %1338 = vmatprep.subr.bf16.mxu0 0
      %1339 = vmatpush1.bf16.msra.mxu0 0
      %1340 = vmatprep.subr.bf16.mxu0 0
      %1341 = vmatpush1.bf16.msra.mxu0 0
      %1342 = vmatprep.subr.bf16.mxu0 0
      %1343 = vmatpush1.bf16.msra.mxu0 0
      %1344 = vmatprep.subr.bf16.mxu0 0
      %1345 = vmatpush1.bf16.msra.mxu0 0
      %1346 = vmatprep.subr.bf16.mxu0 0
      %1347 = vmatpush1.bf16.msra.mxu0 0
      %1348 = vmatprep.subr.bf16.mxu0 0
      %1349 = vmatpush1.bf16.msra.mxu0 0
      %1350 = vmatprep.subr.bf16.mxu0 0
      %1351 = vmatpush1.bf16.msra.mxu0 0
      %1352 = vmatprep.subr.bf16.mxu0 0
      %1353 = vmatpush1.bf16.msra.mxu0 0
      %1354 = vmatprep.subr.bf16.mxu0 0
      %1355 = vmatpush1.bf16.msra.mxu0 0
      %1356 = vmatprep.subr.bf16.mxu0 0
      %1357 = vmatpush1.bf16.msra.mxu0 0
      %1358 = vmatprep.mubr.bf16.mxu0 0
      %1359 = vmatmul.mubr.bf16.gmra.mrb[0].mxu0 %v1281
      %v1360 = vpop.f32.mrb[0].mxu0
      %v1361 = vadd.f32 %v1318, %v1360
      %v1362 = vpop.f32.mrb[0].mxu0
      %v1363 = vadd.f32 %v1320, %v1362
      %v1364 = vpop.f32.mrb[0].mxu0
      %v1365 = vadd.f32 %v1322, %v1364
      %v1366 = vpop.f32.mrb[0].mxu0
      %v1367 = vadd.f32 %v1324, %v1366
      %1368 = vdwg.mxu0
      %1369 = vmatprep.subr.bf16.mxu0 %v1140
      %1370 = vmatpush1.bf16.msra.mxu0 %v1139
      %1371 = vmatprep.subr.bf16.mxu0 %v1144
      %1372 = vmatpush1.bf16.msra.mxu0 %v1143
      %1373 = vmatprep.subr.bf16.mxu0 %v1148
      %1374 = vmatpush1.bf16.msra.mxu0 %v1147
      %1375 = vmatprep.subr.bf16.mxu0 %v1152
      %1376 = vmatpush1.bf16.msra.mxu0 %v1151
      %1377 = vmatprep.subr.bf16.mxu0 %v1156
      %1378 = vmatpush1.bf16.msra.mxu0 %v1155
      %1379 = vmatprep.subr.bf16.mxu0 %v1160
      %1380 = vmatpush1.bf16.msra.mxu0 %v1159
      %1381 = vmatprep.subr.bf16.mxu0 %v1164
      %1382 = vmatpush1.bf16.msra.mxu0 %v1163
      %1383 = vmatprep.subr.bf16.mxu0 %v1168
      %1384 = vmatpush1.bf16.msra.mxu0 %v1167
      %1385 = vmatprep.subr.bf16.mxu0 %v1172
      %1386 = vmatpush1.bf16.msra.mxu0 %v1171
      %1387 = vmatprep.subr.bf16.mxu0 %v1176
      %1388 = vmatpush1.bf16.msra.mxu0 %v1175
      %1389 = vmatprep.subr.bf16.mxu0 %v1180
      %1390 = vmatpush1.bf16.msra.mxu0 %v1179
      %1391 = vmatprep.subr.bf16.mxu0 %v1184
      %1392 = vmatpush1.bf16.msra.mxu0 %v1183
      %1393 = vmatprep.subr.bf16.mxu0 %v1188
      %1394 = vmatpush1.bf16.msra.mxu0 %v1187
      %1395 = vmatprep.subr.bf16.mxu0 %v1192
      %1396 = vmatpush1.bf16.msra.mxu0 %v1191
      %1397 = vmatprep.subr.bf16.mxu0 %v1196
      %1398 = vmatpush1.bf16.msra.mxu0 %v1195
      %1399 = vmatprep.subr.bf16.mxu0 %v1200
      %1400 = vmatpush1.bf16.msra.mxu0 %v1199
      %1401 = vmatprep.mubr.bf16.mxu0 %v339
      %1402 = vmatmul.mubr.bf16.gmra.mrb[0].mxu0 %v338
      %v1403 = vpop.f32.mrb[0].mxu0
      %v1404 = vadd.f32 %v911, %v1403
      %v1405 = vpop.f32.mrb[0].mxu0
      %v1406 = vadd.f32 %v913, %v1405
      %v1407 = vpop.f32.mrb[0].mxu0
      %v1408 = vadd.f32 %v915, %v1407
      %v1409 = vpop.f32.mrb[0].mxu0
      %v1410 = vadd.f32 %v917, %v1409
      %1411 = vdwg.mxu0
      %1412 = vmatprep.subr.bf16.mxu0 %v1204
      %1413 = vmatpush1.bf16.msra.mxu0 %v1203
      %1414 = vmatprep.subr.bf16.mxu0 %v1208
      %1415 = vmatpush1.bf16.msra.mxu0 %v1207
      %1416 = vmatprep.subr.bf16.mxu0 0
      %1417 = vmatpush1.bf16.msra.mxu0 0
      %1418 = vmatprep.subr.bf16.mxu0 0
      %1419 = vmatpush1.bf16.msra.mxu0 0
      %1420 = vmatprep.subr.bf16.mxu0 0
      %1421 = vmatpush1.bf16.msra.mxu0 0
      %1422 = vmatprep.subr.bf16.mxu0 0
      %1423 = vmatpush1.bf16.msra.mxu0 0
      %1424 = vmatprep.subr.bf16.mxu0 0
      %1425 = vmatpush1.bf16.msra.mxu0 0
      %1426 = vmatprep.subr.bf16.mxu0 0
      %1427 = vmatpush1.bf16.msra.mxu0 0
      %1428 = vmatprep.subr.bf16.mxu0 0
      %1429 = vmatpush1.bf16.msra.mxu0 0
      %1430 = vmatprep.subr.bf16.mxu0 0
      %1431 = vmatpush1.bf16.msra.mxu0 0
      %1432 = vmatprep.subr.bf16.mxu0 0
      %1433 = vmatpush1.bf16.msra.mxu0 0
      %1434 = vmatprep.subr.bf16.mxu0 0
      %1435 = vmatpush1.bf16.msra.mxu0 0
      %1436 = vmatprep.subr.bf16.mxu0 0
      %1437 = vmatpush1.bf16.msra.mxu0 0
      %1438 = vmatprep.subr.bf16.mxu0 0
      %1439 = vmatpush1.bf16.msra.mxu0 0
      %1440 = vmatprep.subr.bf16.mxu0 0
      %1441 = vmatpush1.bf16.msra.mxu0 0
      %1442 = vmatprep.subr.bf16.mxu0 0
      %1443 = vmatpush1.bf16.msra.mxu0 0
      %1444 = vmatprep.mubr.bf16.mxu0 0
      %1445 = vmatmul.mubr.bf16.gmra.mrb[0].mxu0 %v1281
      %v1446 = vpop.f32.mrb[0].mxu0
      %v1447 = vadd.f32 %v1404, %v1446
      %v1448 = vpop.f32.mrb[0].mxu0
      %v1449 = vadd.f32 %v1406, %v1448
      %v1450 = vpop.f32.mrb[0].mxu0
      %v1451 = vadd.f32 %v1408, %v1450
      %v1452 = vpop.f32.mrb[0].mxu0
      %v1453 = vadd.f32 %v1410, %v1452
      %1454 = vdwg.mxu0
      %s1455 = scalar_lea.vmem %s1, 1152
      %v1456 = vld [vmem:[%s1455] sm:$0xff]
      %v1457 = vld [vmem:[%s1455 + $0x8] sm:$0xff]
      %v1458 = vld [vmem:[%s1455 + $0x10] sm:$0xff]
      %v1459 = vld [vmem:[%s1455 + $0x18] sm:$0xff]
      %v1460 = vld [vmem:[%s1455 + $0x20] sm:$0xff]
      %v1461 = vld [vmem:[%s1455 + $0x28] sm:$0xff]
      %v1462 = vld [vmem:[%s1455 + $0x30] sm:$0xff]
      %v1463 = vld [vmem:[%s1455 + $0x38] sm:$0xff]
      %v1464 = vld [vmem:[%s1455 + $0x40] sm:$0xff]
      %v1465 = vld [vmem:[%s1455 + $0x48] sm:$0xff]
      %v1466 = vld [vmem:[%s1455 + $0x50] sm:$0xff]
      %v1467 = vld [vmem:[%s1455 + $0x58] sm:$0xff]
      %v1468 = vld [vmem:[%s1455 + $0x60] sm:$0xff]
      %v1469 = vld [vmem:[%s1455 + $0x68] sm:$0xff]
      %v1470 = vld [vmem:[%s1455 + $0x70] sm:$0xff]
      %v1471 = vld [vmem:[%s1455 + $0x78] sm:$0xff]
      %v1472 = vld [vmem:[%s1455 + $0x80] sm:$0xff]
      %v1473 = vld [vmem:[%s1455 + $0x88] sm:$0xff]
      %v1474 = vld [vmem:[%s1455 + $0x90] sm:$0xff]
      %v1475 = vld [vmem:[%s1455 + $0x98] sm:$0xff]
      %v1476 = vld [vmem:[%s1455 + $0xa0] sm:$0xff]
      %v1477 = vld [vmem:[%s1455 + $0xa8] sm:$0xff]
      %v1478 = vld [vmem:[%s1455 + $0xb0] sm:$0xff]
      %v1479 = vld [vmem:[%s1455 + $0xb8] sm:$0xff]
      %v1480 = vld [vmem:[%s1455 + $0xc0] sm:$0xff]
      %v1481 = vld [vmem:[%s1455 + $0xc8] sm:$0xff]
      %v1482 = vld [vmem:[%s1455 + $0xd0] sm:$0xff]
      %v1483 = vld [vmem:[%s1455 + $0xd8] sm:$0xff]
      %v1484 = vld [vmem:[%s1455 + $0xe0] sm:$0xff]
      %v1485 = vld [vmem:[%s1455 + $0xe8] sm:$0xff]
      %v1486 = vld [vmem:[%s1455 + $0xf0] sm:$0xff]
      %v1487 = vld [vmem:[%s1455 + $0xf8] sm:$0xff]
      %v1488 = vld [vmem:[%s1455 + $0x100] sm:$0xff]
      %v1489 = vld [vmem:[%s1455 + $0x108] sm:$0xff]
      %v1490 = vld [vmem:[%s1455 + $0x110] sm:$0xff]
      %v1491 = vld [vmem:[%s1455 + $0x118] sm:$0xff]
      %v1492 = vld [vmem:[%s1455 + $0x120] sm:$0xff]
      %v1493 = vld [vmem:[%s1455 + $0x128] sm:$0xff]
      %v1494 = vld [vmem:[%s1455 + $0x130] sm:$0xff]
      %v1495 = vld [vmem:[%s1455 + $0x138] sm:$0xff]
      %v1496 = vld [vmem:[%s1455 + $0x140] sm:$0xff]
      %v1497 = vld [vmem:[%s1455 + $0x148] sm:$0xff]
      %v1498 = vld [vmem:[%s1455 + $0x150] sm:$0xff]
      %v1499 = vld [vmem:[%s1455 + $0x158] sm:$0xff]
      %v1500 = vld [vmem:[%s1455 + $0x160] sm:$0xff]
      %v1501 = vld [vmem:[%s1455 + $0x168] sm:$0xff]
      %v1502 = vld [vmem:[%s1455 + $0x170] sm:$0xff]
      %v1503 = vld [vmem:[%s1455 + $0x178] sm:$0xff]
      %v1504 = vld [vmem:[%s1455 + $0x180] sm:$0xff]
      %v1505 = vld [vmem:[%s1455 + $0x188] sm:$0xff]
      %v1506 = vld [vmem:[%s1455 + $0x190] sm:$0xff]
      %v1507 = vld [vmem:[%s1455 + $0x198] sm:$0xff]
      %v1508 = vld [vmem:[%s1455 + $0x1a0] sm:$0xff]
      %v1509 = vld [vmem:[%s1455 + $0x1a8] sm:$0xff]
      %v1510 = vld [vmem:[%s1455 + $0x1b0] sm:$0xff]
      %v1511 = vld [vmem:[%s1455 + $0x1b8] sm:$0xff]
      %v1512 = vld [vmem:[%s1455 + $0x1c0] sm:$0xff]
      %v1513 = vld [vmem:[%s1455 + $0x1c8] sm:$0xff]
      %v1514 = vld [vmem:[%s1455 + $0x1d0] sm:$0xff]
      %v1515 = vld [vmem:[%s1455 + $0x1d8] sm:$0xff]
      %v1516 = vld [vmem:[%s1455 + $0x1e0] sm:$0xff]
      %v1517 = vld [vmem:[%s1455 + $0x1e8] sm:$0xff]
      %v1518 = vld [vmem:[%s1455 + $0x1f0] sm:$0xff]
      %v1519 = vld [vmem:[%s1455 + $0x1f8] sm:$0xff]
      %v1520 = vld [vmem:[%s1455 + $0x200] sm:$0xff]
      %v1521 = vld [vmem:[%s1455 + $0x208] sm:$0xff]
      %v1522 = vld [vmem:[%s1455 + $0x210] sm:$0xff]
      %v1523 = vld [vmem:[%s1455 + $0x218] sm:$0xff]
      %v1524 = vld [vmem:[%s1455 + $0x220] sm:$0xff]
      %v1525 = vld [vmem:[%s1455 + $0x228] sm:$0xff]
      %v1526 = vld [vmem:[%s1455 + $0x230] sm:$0xff]
      %v1527 = vld [vmem:[%s1455 + $0x238] sm:$0xff]
      %vm1528 = vcmask 1046528
      %v1529 = vrot.slane %v338, 1
      %v1530 = vrot.slane %v341, 1
      %v1531 = vsel %vm1528, %v1529, %v1530
      %v1532 = vrot.slane %v339, 1
      %v1533 = vrot.slane %v342, 1
      %v1534 = vsel %vm1528, %v1532, %v1533
      %v1535 = vrot.slane %v340, 1
      %v1536 = vrot.slane %v343, 1
      %v1537 = vsel %vm1528, %v1535, %v1536
      %v1612 = vunpack.c.l.b16 %v1456
      %v1613 = vunpack.c.h.b16 %v1456
      %v1614 = vunpack.c.l.b16 %v1457
      %v1615 = vunpack.c.h.b16 %v1457
      %v1616 = vunpack.c.l.b16 %v1458
      %v1617 = vunpack.c.h.b16 %v1458
      %v1618 = vunpack.c.l.b16 %v1459
      %v1619 = vunpack.c.h.b16 %v1459
      %v1620 = vunpack.c.l.b16 %v1460
      %v1621 = vunpack.c.h.b16 %v1460
      %v1622 = vunpack.c.l.b16 %v1461
      %v1623 = vunpack.c.h.b16 %v1461
      %v1624 = vunpack.c.l.b16 %v1462
      %v1625 = vunpack.c.h.b16 %v1462
      %v1626 = vunpack.c.l.b16 %v1463
      %v1627 = vunpack.c.h.b16 %v1463
      %v1628 = vunpack.c.l.b16 %v1464
      %v1629 = vunpack.c.h.b16 %v1464
      %v1630 = vunpack.c.l.b16 %v1465
      %v1631 = vunpack.c.h.b16 %v1465
      %v1632 = vunpack.c.l.b16 %v1466
      %v1633 = vunpack.c.h.b16 %v1466
      %v1634 = vunpack.c.l.b16 %v1467
      %v1635 = vunpack.c.h.b16 %v1467
      %v1636 = vunpack.c.l.b16 %v1468
      %v1637 = vunpack.c.h.b16 %v1468
      %v1638 = vunpack.c.l.b16 %v1469
      %v1639 = vunpack.c.h.b16 %v1469
      %v1640 = vunpack.c.l.b16 %v1470
      %v1641 = vunpack.c.h.b16 %v1470
      %v1642 = vunpack.c.l.b16 %v1471
      %v1643 = vunpack.c.h.b16 %v1471
      %v1644 = vunpack.c.l.b16 %v1472
      %v1645 = vunpack.c.h.b16 %v1472
      %v1646 = vunpack.c.l.b16 %v1473
      %v1647 = vunpack.c.h.b16 %v1473
      %v1648 = vunpack.c.l.b16 %v1474
      %v1649 = vunpack.c.h.b16 %v1474
      %v1650 = vunpack.c.l.b16 %v1475
      %v1651 = vunpack.c.h.b16 %v1475
      %v1652 = vunpack.c.l.b16 %v1476
      %v1653 = vunpack.c.h.b16 %v1476
      %v1654 = vunpack.c.l.b16 %v1477
      %v1655 = vunpack.c.h.b16 %v1477
      %v1656 = vunpack.c.l.b16 %v1478
      %v1657 = vunpack.c.h.b16 %v1478
      %v1658 = vunpack.c.l.b16 %v1479
      %v1659 = vunpack.c.h.b16 %v1479
      %v1660 = vunpack.c.l.b16 %v1480
      %v1661 = vunpack.c.h.b16 %v1480
      %v1662 = vunpack.c.l.b16 %v1481
      %v1663 = vunpack.c.h.b16 %v1481
      %v1664 = vunpack.c.l.b16 %v1482
      %v1665 = vunpack.c.h.b16 %v1482
      %v1666 = vunpack.c.l.b16 %v1483
      %v1667 = vunpack.c.h.b16 %v1483
      %v1668 = vunpack.c.l.b16 %v1484
      %v1669 = vunpack.c.h.b16 %v1484
      %v1670 = vunpack.c.l.b16 %v1485
      %v1671 = vunpack.c.h.b16 %v1485
      %v1672 = vunpack.c.l.b16 %v1486
      %v1673 = vunpack.c.h.b16 %v1486
      %v1674 = vunpack.c.l.b16 %v1487
      %v1675 = vunpack.c.h.b16 %v1487
      %v1676 = vunpack.c.l.b16 %v1488
      %v1677 = vunpack.c.h.b16 %v1488
      %v1678 = vunpack.c.l.b16 %v1489
      %v1679 = vunpack.c.h.b16 %v1489
      %v1680 = vunpack.c.l.b16 %v1490
      %v1681 = vunpack.c.h.b16 %v1490
      %v1682 = vunpack.c.l.b16 %v1491
      %v1683 = vunpack.c.h.b16 %v1491
      %v1684 = vunpack.c.l.b16 %v1492
      %v1685 = vunpack.c.h.b16 %v1492
      %v1686 = vunpack.c.l.b16 %v1493
      %v1687 = vunpack.c.h.b16 %v1493
      %v1688 = vunpack.c.l.b16 %v1494
      %v1689 = vunpack.c.h.b16 %v1494
      %v1690 = vunpack.c.l.b16 %v1495
      %v1691 = vunpack.c.h.b16 %v1495
      %v1692 = vunpack.c.l.b16 %v1496
      %v1693 = vunpack.c.h.b16 %v1496
      %v1694 = vunpack.c.l.b16 %v1497
      %v1695 = vunpack.c.h.b16 %v1497
      %v1696 = vunpack.c.l.b16 %v1498
      %v1697 = vunpack.c.h.b16 %v1498
      %v1698 = vunpack.c.l.b16 %v1499
      %v1699 = vunpack.c.h.b16 %v1499
      %v1700 = vunpack.c.l.b16 %v1500
      %v1701 = vunpack.c.h.b16 %v1500
      %v1702 = vunpack.c.l.b16 %v1501
      %v1703 = vunpack.c.h.b16 %v1501
      %v1704 = vunpack.c.l.b16 %v1502
      %v1705 = vunpack.c.h.b16 %v1502
      %v1706 = vunpack.c.l.b16 %v1503
      %v1707 = vunpack.c.h.b16 %v1503
      %v1708 = vunpack.c.l.b16 %v1504
      %v1709 = vunpack.c.h.b16 %v1504
      %v1710 = vunpack.c.l.b16 %v1505
      %v1711 = vunpack.c.h.b16 %v1505
      %v1712 = vunpack.c.l.b16 %v1506
      %v1713 = vunpack.c.h.b16 %v1506
      %v1714 = vunpack.c.l.b16 %v1507
      %v1715 = vunpack.c.h.b16 %v1507
      %v1716 = vunpack.c.l.b16 %v1508
      %v1717 = vunpack.c.h.b16 %v1508
      %v1718 = vunpack.c.l.b16 %v1509
      %v1719 = vunpack.c.h.b16 %v1509
      %v1720 = vunpack.c.l.b16 %v1510
      %v1721 = vunpack.c.h.b16 %v1510
      %v1722 = vunpack.c.l.b16 %v1511
      %v1723 = vunpack.c.h.b16 %v1511
      %v1724 = vunpack.c.l.b16 %v1512
      %v1725 = vunpack.c.h.b16 %v1512
      %v1726 = vunpack.c.l.b16 %v1513
      %v1727 = vunpack.c.h.b16 %v1513
      %v1728 = vunpack.c.l.b16 %v1514
      %v1729 = vunpack.c.h.b16 %v1514
      %v1730 = vunpack.c.l.b16 %v1515
      %v1731 = vunpack.c.h.b16 %v1515
      %v1732 = vunpack.c.l.b16 %v1516
      %v1733 = vunpack.c.h.b16 %v1516
      %v1734 = vunpack.c.l.b16 %v1517
      %v1735 = vunpack.c.h.b16 %v1517
      %v1736 = vunpack.c.l.b16 %v1518
      %v1737 = vunpack.c.h.b16 %v1518
      %v1738 = vunpack.c.l.b16 %v1519
      %v1739 = vunpack.c.h.b16 %v1519
      %v1740 = vunpack.c.l.b16 %v1520
      %v1741 = vunpack.c.h.b16 %v1520
      %v1742 = vunpack.c.l.b16 %v1521
      %v1743 = vunpack.c.h.b16 %v1521
      %v1744 = vunpack.c.l.b16 %v1522
      %v1745 = vunpack.c.h.b16 %v1522
      %v1746 = vunpack.c.l.b16 %v1523
      %v1747 = vunpack.c.h.b16 %v1523
      %v1748 = vunpack.c.l.b16 %v1524
      %v1749 = vunpack.c.h.b16 %v1524
      %v1750 = vunpack.c.l.b16 %v1525
      %v1751 = vunpack.c.h.b16 %v1525
      %v1752 = vunpack.c.l.b16 %v1526
      %v1753 = vunpack.c.h.b16 %v1526
      %v1754 = vunpack.c.l.b16 %v1527
      %v1755 = vunpack.c.h.b16 %v1527
      %v1756 = vpack.c.b16 %v1616, %v1612
      %v1757 = vpack.c.b16 %v1617, %v1613
      %v1758 = vpack.c.b16 %v1618, %v1614
      %v1759 = vpack.c.b16 %v1619, %v1615
      %v1760 = vpack.c.b16 %v1624, %v1620
      %v1761 = vpack.c.b16 %v1625, %v1621
      %v1762 = vpack.c.b16 %v1626, %v1622
      %v1763 = vpack.c.b16 %v1627, %v1623
      %v1764 = vpack.c.b16 %v1632, %v1628
      %v1765 = vpack.c.b16 %v1633, %v1629
      %v1766 = vpack.c.b16 %v1634, %v1630
      %v1767 = vpack.c.b16 %v1635, %v1631
      %v1768 = vpack.c.b16 %v1640, %v1636
      %v1769 = vpack.c.b16 %v1641, %v1637
      %v1770 = vpack.c.b16 %v1642, %v1638
      %v1771 = vpack.c.b16 %v1643, %v1639
      %v1772 = vpack.c.b16 %v1648, %v1644
      %v1773 = vpack.c.b16 %v1649, %v1645
      %v1774 = vpack.c.b16 %v1650, %v1646
      %v1775 = vpack.c.b16 %v1651, %v1647
      %v1776 = vpack.c.b16 %v1656, %v1652
      %v1777 = vpack.c.b16 %v1657, %v1653
      %v1778 = vpack.c.b16 %v1658, %v1654
      %v1779 = vpack.c.b16 %v1659, %v1655
      %v1780 = vpack.c.b16 %v1664, %v1660
      %v1781 = vpack.c.b16 %v1665, %v1661
      %v1782 = vpack.c.b16 %v1666, %v1662
      %v1783 = vpack.c.b16 %v1667, %v1663
      %v1784 = vpack.c.b16 %v1672, %v1668
      %v1785 = vpack.c.b16 %v1673, %v1669
      %v1786 = vpack.c.b16 %v1674, %v1670
      %v1787 = vpack.c.b16 %v1675, %v1671
      %v1788 = vpack.c.b16 %v1680, %v1676
      %v1789 = vpack.c.b16 %v1681, %v1677
      %v1790 = vpack.c.b16 %v1682, %v1678
      %v1791 = vpack.c.b16 %v1683, %v1679
      %v1792 = vpack.c.b16 %v1688, %v1684
      %v1793 = vpack.c.b16 %v1689, %v1685
      %v1794 = vpack.c.b16 %v1690, %v1686
      %v1795 = vpack.c.b16 %v1691, %v1687
      %v1796 = vpack.c.b16 %v1696, %v1692
      %v1797 = vpack.c.b16 %v1697, %v1693
      %v1798 = vpack.c.b16 %v1698, %v1694
      %v1799 = vpack.c.b16 %v1699, %v1695
      %v1800 = vpack.c.b16 %v1704, %v1700
      %v1801 = vpack.c.b16 %v1705, %v1701
      %v1802 = vpack.c.b16 %v1706, %v1702
      %v1803 = vpack.c.b16 %v1707, %v1703
      %v1804 = vpack.c.b16 %v1712, %v1708
      %v1805 = vpack.c.b16 %v1713, %v1709
      %v1806 = vpack.c.b16 %v1714, %v1710
      %v1807 = vpack.c.b16 %v1715, %v1711
      %v1808 = vpack.c.b16 %v1720, %v1716
      %v1809 = vpack.c.b16 %v1721, %v1717
      %v1810 = vpack.c.b16 %v1722, %v1718
      %v1811 = vpack.c.b16 %v1723, %v1719
      %v1812 = vpack.c.b16 %v1728, %v1724
      %v1813 = vpack.c.b16 %v1729, %v1725
      %v1814 = vpack.c.b16 %v1730, %v1726
      %v1815 = vpack.c.b16 %v1731, %v1727
      %v1816 = vpack.c.b16 %v1736, %v1732
      %v1817 = vpack.c.b16 %v1737, %v1733
      %v1818 = vpack.c.b16 %v1738, %v1734
      %v1819 = vpack.c.b16 %v1739, %v1735
      %v1820 = vpack.c.b16 %v1744, %v1740
      %v1821 = vpack.c.b16 %v1745, %v1741
      %v1822 = vpack.c.b16 %v1746, %v1742
      %v1823 = vpack.c.b16 %v1747, %v1743
      %v1824 = vpack.c.b16 %v1752, %v1748
      %v1825 = vpack.c.b16 %v1753, %v1749
      %v1826 = vpack.c.b16 %v1754, %v1750
      %v1827 = vpack.c.b16 %v1755, %v1751
      %v1901 = vsel %vm743, %v1537, 0
      %1903 = vmatprep.subr.bf16.mxu0 %v1757
      %1904 = vmatpush1.bf16.msra.mxu0 %v1756
      %1905 = vmatprep.subr.bf16.mxu0 %v1761
      %1906 = vmatpush1.bf16.msra.mxu0 %v1760
      %1907 = vmatprep.subr.bf16.mxu0 %v1765
      %1908 = vmatpush1.bf16.msra.mxu0 %v1764
      %1909 = vmatprep.subr.bf16.mxu0 %v1769
      %1910 = vmatpush1.bf16.msra.mxu0 %v1768
      %1911 = vmatprep.subr.bf16.mxu0 %v1773
      %1912 = vmatpush1.bf16.msra.mxu0 %v1772
      %1913 = vmatprep.subr.bf16.mxu0 %v1777
      %1914 = vmatpush1.bf16.msra.mxu0 %v1776
      %1915 = vmatprep.subr.bf16.mxu0 %v1781
      %1916 = vmatpush1.bf16.msra.mxu0 %v1780
      %1917 = vmatprep.subr.bf16.mxu0 %v1785
      %1918 = vmatpush1.bf16.msra.mxu0 %v1784
      %1919 = vmatprep.subr.bf16.mxu0 %v1789
      %1920 = vmatpush1.bf16.msra.mxu0 %v1788
      %1921 = vmatprep.subr.bf16.mxu0 %v1793
      %1922 = vmatpush1.bf16.msra.mxu0 %v1792
      %1923 = vmatprep.subr.bf16.mxu0 %v1797
      %1924 = vmatpush1.bf16.msra.mxu0 %v1796
      %1925 = vmatprep.subr.bf16.mxu0 %v1801
      %1926 = vmatpush1.bf16.msra.mxu0 %v1800
      %1927 = vmatprep.subr.bf16.mxu0 %v1805
      %1928 = vmatpush1.bf16.msra.mxu0 %v1804
      %1929 = vmatprep.subr.bf16.mxu0 %v1809
      %1930 = vmatpush1.bf16.msra.mxu0 %v1808
      %1931 = vmatprep.subr.bf16.mxu0 %v1813
      %1932 = vmatpush1.bf16.msra.mxu0 %v1812
      %1933 = vmatprep.subr.bf16.mxu0 %v1817
      %1934 = vmatpush1.bf16.msra.mxu0 %v1816
      %1935 = vmatprep.mubr.bf16.mxu0 %v1534
      %1936 = vmatmul.mubr.bf16.gmra.mrb[0].mxu0 %v1531
      %v1937 = vpop.f32.mrb[0].mxu0
      %v1938 = vadd.f32 0.0, %v1937
      %v1939 = vpop.f32.mrb[0].mxu0
      %v1940 = vadd.f32 0.0, %v1939
      %v1941 = vpop.f32.mrb[0].mxu0
      %v1942 = vadd.f32 0.0, %v1941
      %v1943 = vpop.f32.mrb[0].mxu0
      %v1944 = vadd.f32 0.0, %v1943
      %1945 = vdwg.mxu0
      %1946 = vmatprep.subr.bf16.mxu0 %v1821
      %1947 = vmatpush1.bf16.msra.mxu0 %v1820
      %1948 = vmatprep.subr.bf16.mxu0 %v1825
      %1949 = vmatpush1.bf16.msra.mxu0 %v1824
      %1950 = vmatprep.subr.bf16.mxu0 0
      %1951 = vmatpush1.bf16.msra.mxu0 0
      %1952 = vmatprep.subr.bf16.mxu0 0
      %1953 = vmatpush1.bf16.msra.mxu0 0
      %1954 = vmatprep.subr.bf16.mxu0 0
      %1955 = vmatpush1.bf16.msra.mxu0 0
      %1956 = vmatprep.subr.bf16.mxu0 0
      %1957 = vmatpush1.bf16.msra.mxu0 0
      %1958 = vmatprep.subr.bf16.mxu0 0
      %1959 = vmatpush1.bf16.msra.mxu0 0
      %1960 = vmatprep.subr.bf16.mxu0 0
      %1961 = vmatpush1.bf16.msra.mxu0 0
      %1962 = vmatprep.subr.bf16.mxu0 0
      %1963 = vmatpush1.bf16.msra.mxu0 0
      %1964 = vmatprep.subr.bf16.mxu0 0
      %1965 = vmatpush1.bf16.msra.mxu0 0
      %1966 = vmatprep.subr.bf16.mxu0 0
      %1967 = vmatpush1.bf16.msra.mxu0 0
      %1968 = vmatprep.subr.bf16.mxu0 0
      %1969 = vmatpush1.bf16.msra.mxu0 0
      %1970 = vmatprep.subr.bf16.mxu0 0
      %1971 = vmatpush1.bf16.msra.mxu0 0
      %1972 = vmatprep.subr.bf16.mxu0 0
      %1973 = vmatpush1.bf16.msra.mxu0 0
      %1974 = vmatprep.subr.bf16.mxu0 0
      %1975 = vmatpush1.bf16.msra.mxu0 0
      %1976 = vmatprep.subr.bf16.mxu0 0
      %1977 = vmatpush1.bf16.msra.mxu0 0
      %1978 = vmatprep.mubr.bf16.mxu0 0
      %1979 = vmatmul.mubr.bf16.gmra.mrb[0].mxu0 %v1901
      %v1980 = vpop.f32.mrb[0].mxu0
      %v1981 = vadd.f32 %v1938, %v1980
      %v1982 = vpop.f32.mrb[0].mxu0
      %v1983 = vadd.f32 %v1940, %v1982
      %v1984 = vpop.f32.mrb[0].mxu0
      %v1985 = vadd.f32 %v1942, %v1984
      %v1986 = vpop.f32.mrb[0].mxu0
      %v1987 = vadd.f32 %v1944, %v1986
      %1988 = vdwg.mxu0
      %1989 = vmatprep.subr.bf16.mxu0 %v1759
      %1990 = vmatpush1.bf16.msra.mxu0 %v1758
      %1991 = vmatprep.subr.bf16.mxu0 %v1763
      %1992 = vmatpush1.bf16.msra.mxu0 %v1762
      %1993 = vmatprep.subr.bf16.mxu0 %v1767
      %1994 = vmatpush1.bf16.msra.mxu0 %v1766
      %1995 = vmatprep.subr.bf16.mxu0 %v1771
      %1996 = vmatpush1.bf16.msra.mxu0 %v1770
      %1997 = vmatprep.subr.bf16.mxu0 %v1775
      %1998 = vmatpush1.bf16.msra.mxu0 %v1774
      %1999 = vmatprep.subr.bf16.mxu0 %v1779
      %2000 = vmatpush1.bf16.msra.mxu0 %v1778
      %2001 = vmatprep.subr.bf16.mxu0 %v1783
      %2002 = vmatpush1.bf16.msra.mxu0 %v1782
      %2003 = vmatprep.subr.bf16.mxu0 %v1787
      %2004 = vmatpush1.bf16.msra.mxu0 %v1786
      %2005 = vmatprep.subr.bf16.mxu0 %v1791
      %2006 = vmatpush1.bf16.msra.mxu0 %v1790
      %2007 = vmatprep.subr.bf16.mxu0 %v1795
      %2008 = vmatpush1.bf16.msra.mxu0 %v1794
      %2009 = vmatprep.subr.bf16.mxu0 %v1799
      %2010 = vmatpush1.bf16.msra.mxu0 %v1798
      %2011 = vmatprep.subr.bf16.mxu0 %v1803
      %2012 = vmatpush1.bf16.msra.mxu0 %v1802
      %2013 = vmatprep.subr.bf16.mxu0 %v1807
      %2014 = vmatpush1.bf16.msra.mxu0 %v1806
      %2015 = vmatprep.subr.bf16.mxu0 %v1811
      %2016 = vmatpush1.bf16.msra.mxu0 %v1810
      %2017 = vmatprep.subr.bf16.mxu0 %v1815
      %2018 = vmatpush1.bf16.msra.mxu0 %v1814
      %2019 = vmatprep.subr.bf16.mxu0 %v1819
      %2020 = vmatpush1.bf16.msra.mxu0 %v1818
      %2021 = vmatprep.mubr.bf16.mxu0 %v1534
      %2022 = vmatmul.mubr.bf16.gmra.mrb[0].mxu0 %v1531
      %v2023 = vpop.f32.mrb[0].mxu0
      %v2024 = vadd.f32 0.0, %v2023
      %v2025 = vpop.f32.mrb[0].mxu0
      %v2026 = vadd.f32 0.0, %v2025
      %v2027 = vpop.f32.mrb[0].mxu0
      %v2028 = vadd.f32 0.0, %v2027
      %v2029 = vpop.f32.mrb[0].mxu0
      %v2030 = vadd.f32 0.0, %v2029
      %2031 = vdwg.mxu0
      %2032 = vmatprep.subr.bf16.mxu0 %v1823
      %2033 = vmatpush1.bf16.msra.mxu0 %v1822
      %2034 = vmatprep.subr.bf16.mxu0 %v1827
      %2035 = vmatpush1.bf16.msra.mxu0 %v1826
      %2036 = vmatprep.subr.bf16.mxu0 0
      %2037 = vmatpush1.bf16.msra.mxu0 0
      %2038 = vmatprep.subr.bf16.mxu0 0
      %2039 = vmatpush1.bf16.msra.mxu0 0
      %2040 = vmatprep.subr.bf16.mxu0 0
      %2041 = vmatpush1.bf16.msra.mxu0 0
      %2042 = vmatprep.subr.bf16.mxu0 0
      %2043 = vmatpush1.bf16.msra.mxu0 0
      %2044 = vmatprep.subr.bf16.mxu0 0
      %2045 = vmatpush1.bf16.msra.mxu0 0
      %2046 = vmatprep.subr.bf16.mxu0 0
      %2047 = vmatpush1.bf16.msra.mxu0 0
      %2048 = vmatprep.subr.bf16.mxu0 0
      %2049 = vmatpush1.bf16.msra.mxu0 0
      %2050 = vmatprep.subr.bf16.mxu0 0
      %2051 = vmatpush1.bf16.msra.mxu0 0
      %2052 = vmatprep.subr.bf16.mxu0 0
      %2053 = vmatpush1.bf16.msra.mxu0 0
      %2054 = vmatprep.subr.bf16.mxu0 0
      %2055 = vmatpush1.bf16.msra.mxu0 0
      %2056 = vmatprep.subr.bf16.mxu0 0
      %2057 = vmatpush1.bf16.msra.mxu0 0
      %2058 = vmatprep.subr.bf16.mxu0 0
      %2059 = vmatpush1.bf16.msra.mxu0 0
      %2060 = vmatprep.subr.bf16.mxu0 0
      %2061 = vmatpush1.bf16.msra.mxu0 0
      %2062 = vmatprep.subr.bf16.mxu0 0
      %2063 = vmatpush1.bf16.msra.mxu0 0
      %2064 = vmatprep.mubr.bf16.mxu0 0
      %2065 = vmatmul.mubr.bf16.gmra.mrb[0].mxu0 %v1901
      %v2066 = vpop.f32.mrb[0].mxu0
      %v2067 = vadd.f32 %v2024, %v2066
      %v2068 = vpop.f32.mrb[0].mxu0
      %v2069 = vadd.f32 %v2026, %v2068
      %v2070 = vpop.f32.mrb[0].mxu0
      %v2071 = vadd.f32 %v2028, %v2070
      %v2072 = vpop.f32.mrb[0].mxu0
      %v2073 = vadd.f32 %v2030, %v2072
      %2074 = vdwg.mxu0
      %v2075 = vadd.f32 %v1361, %v1981
      %v2076 = vadd.f32 %v1363, %v1983
      %v2077 = vadd.f32 %v1447, %v2067
      %v2078 = vadd.f32 %v1449, %v2069
      %v2079 = vadd.f32 %v1365, %v1985
      %v2080 = vadd.f32 %v1367, %v1987
      %v2081 = vadd.f32 %v1451, %v2071
      %v2082 = vadd.f32 %v1453, %v2073
      %v2083 = vld [vmem:[%s2] sm:$0xf]
      %v2085 = vlaneseq
      %v2086 = vshrl.u32 %v2085, 7
      %v2087 = vsub.s32 0, %v2086
      %v2088 = vrot.slane %v2083, %v2087
      %v2089 = vlaneseq
      %v2090 = vshrl.u32 %v2089, 7
      %v2091 = vsub.s32 1, %v2090
      %v2092 = vrot.slane %v2083, %v2091
      %v2093 = vlaneseq
      %v2094 = vshrl.u32 %v2093, 7
      %v2095 = vsub.s32 2, %v2094
      %v2096 = vrot.slane %v2083, %v2095
      %v2097 = vlaneseq
      %v2098 = vshrl.u32 %v2097, 7
      %v2099 = vsub.s32 3, %v2098
      %v2100 = vrot.slane %v2083, %v2099
      %v2105 = vadd.f32 %v2075, %v2088
      %v2106 = vadd.f32 %v2076, %v2092
      %v2107 = vadd.f32 %v2077, %v2096
      %v2108 = vadd.f32 %v2078, %v2100
      %v2109 = vadd.f32 %v2079, %v2088
      %v2110 = vadd.f32 %v2080, %v2092
      %v2111 = vadd.f32 %v2081, %v2096
      %v2112 = vadd.f32 %v2082, %v2100
      %v2113 = vmax.f32 %v2105, 0.0
      %v2114 = vmax.f32 %v2106, 0.0
      %v2115 = vmax.f32 %v2107, 0.0
      %v2116 = vmax.f32 %v2108, 0.0
      %v2117 = vmax.f32 %v2109, 0.0
      %v2118 = vmax.f32 %v2110, 0.0
      %v2119 = vmax.f32 %v2111, 0.0
      %v2120 = vmax.f32 %v2112, 0.0
      %v2121 = vpack.c.bf16 %v2117, %v2113
      %v2122 = vpack.c.bf16 %v2118, %v2114
      %v2123 = vpack.c.bf16 %v2119, %v2115
      %v2124 = vpack.c.bf16 %v2120, %v2116
      %v2129 = vunpack.c.l.b16 %v2121
      %v2130 = vunpack.c.l.b16 %v2122
      %v2131 = vunpack.c.l.b16 %v2123
      %v2132 = vunpack.c.l.b16 %v2124
      %v2133 = vunpack.c.h.b16 %v2121
      %v2134 = vunpack.c.h.b16 %v2122
      %v2135 = vunpack.c.h.b16 %v2123
      %v2136 = vunpack.c.h.b16 %v2124
      %v2137 = vpack.c.b16 %v2130, %v2129
      %v2138 = vpack.c.b16 %v2132, %v2131
      %v2139 = vpack.c.b16 %v2134, %v2133
      %v2140 = vpack.c.b16 %v2136, %v2135
      %2145 = vst [vmem:[%s170] sm:$0xff] %v2137
      %2146 = vst [vmem:[%s170 + $0x8] sm:$0xff] %v2138
      %2147 = vst [vmem:[%s170 + $0x10] sm:$0xff] %v2139
      %2148 = vst [vmem:[%s170 + $0x18] sm:$0xff] %v2140
      %p2149 = scmp.lt.s32.totalorder %s14, 1
      %s2150 = scalar_select %p2149, %s14, 1
      %s2151 = smul.addr %s2150, 8
      %s2152 = smul.addr %s2151, 4
      %s2153 = scalar_lea.vmem %s3, %s2152
      // Predicated region
      $region33: #{net_forward.5} parent=31 // pred_check
        %p2154 = pneg %p100
      $region34: #{net_forward.5} parent=31 // pred_check_branch
        %2156 = sbr.rel (%p2154) target = $region36
      $region35: #{net_forward.5} parent=31 // pred_region
        _
      $region36: #{net_forward.5} parent=31 // pred_fallthru
        _
    $region32: #{net_forward.5} parent=5 // pred_fallthru
      _
    %p2157 = scmp.le.s32.totalorder 2, %s9
    // Predicated region
    $region37: #{net_forward.5} parent=5 // pred_check
      %p2158 = pneg %p2157
    $region38: #{net_forward.5} parent=5 // pred_check_branch
      %2160 = sbr.rel (%p2158) target = $region40
    $region39: #{net_forward.5} parent=5 // pred_region
      %s2161 = ssub.s32 %s9, 2
      // Predicated region
      $region41: #{net_forward.5} parent=39 // pred_check
        %p2162 = pneg %p106
      $region42: #{net_forward.5} parent=39 // pred_check_branch
        %2164 = sbr.rel (%p2162) target = $region44
      $region43: #{net_forward.5} parent=39 // pred_region
        %p2165 = scmp.lt.s32.totalorder %s15, 1
        %s2166 = scalar_select %p2165, %s15, 1
        %s2167 = smul.addr %s2166, 8
        %s2168 = smul.addr %s2167, 4
        %s2169 = scalar_lea.vmem %s3, %s2168
      $region44: #{net_forward.5} parent=39 // pred_fallthru
        _
    $region40: #{net_forward.5} parent=5 // pred_fallthru
      _
  $region6: #{net_forward.5} parent=0 // loop_footer
    %s13 = sadd.s32 1, %s9
  $region7: #{net_forward.5} parent=0 // loop_footer_branch
    %8 = sbr.rel target = $region3
  $region8: #{net_forward.5} parent=0 // loop_exit
    _

// kernel: net_forward.6
$region0: #{net_forward.6}
  #allocation0 [shape = 'u32[]', space=smem, size = 0x4, offset = 0x4, fixed_abs, tag = 'smem constant byte address 0x4 - core index']
  #allocation1 [shape = 'u32[144,128]{1,0:T(1,128)}', space=vmem, size = 0x12000, scoped, tag = 'internal scratch']
  %s0 = inlined_call_operand.vmem [shape: bf16[2,10,320], index: 0, kind: input, shape index: {}]
  %s1 = inlined_call_operand.vmem [shape: bf16[3,320,512], index: 1, kind: input, shape index: {}]
  %s2 = inlined_call_operand.vmem [shape: f32[1,512], index: 2, kind: input, shape index: {}]
  %s3 = inlined_call_operand.vmem [shape: bf16[2,8,512], index: 3, kind: output, shape index: {}]
  %s4 = sld [smem:[#allocation0]]
  $region45: #{net_forward.6} parent=0
    _
  %s6 = ssub.s32 1, %s4
  %s7 = scalar_select 0, %s6, %s4
  loop: start=0, step=1, limit=4
  $region2: #{net_forward.6} parent=0 // loop_pre_header
    _
  $region3: #{net_forward.6} parent=0 // loop_header
    %s9 = sphi 0, %s13
    %p10 = scmp.ge.s32.totalorder %s9, 4
    %s19 = sphi 0, %s21
    %s22 = sphi 0, %s19
    %s23 = sphi 0, %s22
    %s39 = sphi 0, %s23
    %s43 = sphi 0, %s43
    %s45 = sphi 0, %s43
    %s46 = sphi 0, %s45
    %s60 = sphi 0, %s46
    %s64 = sphi 0, %s64
    %s66 = sphi 0, %s64
    %s67 = sphi 0, %s66
    %s81 = sphi 0, %s67
    %s87 = sphi 0, %s89
    %s90 = sphi 0, %s87
    %s91 = sphi 0, %s90
    %s107 = sphi 0, %s91
  $region4: #{net_forward.6} parent=0 // loop_header_branch
    %12 = sbr.rel (%p10) target = $region8
  $region5: #{net_forward.6} parent=0 // loop_body
    %s14 = ssub.s32 %s9, 1
    %s15 = ssub.s32 %s9, 2
    %s16 = sadd.s32 %s9, 1
    %s17 = ssub.s32 %s9, %s16
    %p18 = scmp.eq.s32.totalorder %s17, 0
    %s20 = sadd.s32 %s19, 1
    %s21 = scalar_select %p18, %s19, %s20
    %p24 = pneg %p18
    %p25 = scmp.eq.s32.totalorder %s9, 1
    %p26 = por %p24, %p25
    %p27 = scmp.ne.s32.totalorder %s19, %s22
    %p28 = scmp.eq.s32.totalorder %s9, 0
    %p29 = por %p27, %p28
    %p30 = scmp.ne.s32.totalorder %s19, %s22
    %p31 = scmp.eq.s32.totalorder %s14, 1
    %p32 = por %p30, %p31
    %p33 = scmp.ne.s32.totalorder %s22, %s23
    %p34 = scmp.eq.s32.totalorder %s14, 0
    %p35 = por %p33, %p34
    %p36 = scmp.ne.s32.totalorder %s22, %s23
    %p37 = scmp.eq.s32.totalorder %s15, 1
    %p38 = por %p36, %p37
    %p40 = scmp.ne.s32.totalorder %s23, %s39
    %p41 = scmp.eq.s32.totalorder %s15, 0
    %p42 = por %p40, %p41
    %s44 = sadd.s32 %s43, 1
    %p47 = scmp.eq.s32.totalorder %s9, 1
    %p48 = scmp.ne.s32.totalorder %s43, %s45
    %p49 = scmp.eq.s32.totalorder %s9, 0
    %p50 = por %p48, %p49
    %p51 = scmp.ne.s32.totalorder %s43, %s45
    %p52 = scmp.eq.s32.totalorder %s14, 1
    %p53 = por %p51, %p52
    %p54 = scmp.ne.s32.totalorder %s45, %s46
    %p55 = scmp.eq.s32.totalorder %s14, 0
    %p56 = por %p54, %p55
    %p57 = scmp.ne.s32.totalorder %s45, %s46
    %p58 = scmp.eq.s32.totalorder %s15, 1
    %p59 = por %p57, %p58
    %p61 = scmp.ne.s32.totalorder %s46, %s60
    %p62 = scmp.eq.s32.totalorder %s15, 0
    %p63 = por %p61, %p62
    %s65 = sadd.s32 %s64, 1
    %p68 = scmp.eq.s32.totalorder %s9, 1
    %p69 = scmp.ne.s32.totalorder %s64, %s66
    %p70 = scmp.eq.s32.totalorder %s9, 0
    %p71 = por %p69, %p70
    %p72 = scmp.ne.s32.totalorder %s64, %s66
    %p73 = scmp.eq.s32.totalorder %s14, 1
    %p74 = por %p72, %p73
    %p75 = scmp.ne.s32.totalorder %s66, %s67
    %p76 = scmp.eq.s32.totalorder %s14, 0
    %p77 = por %p75, %p76
    %p78 = scmp.ne.s32.totalorder %s66, %s67
    %p79 = scmp.eq.s32.totalorder %s15, 1
    %p80 = por %p78, %p79
    %p82 = scmp.ne.s32.totalorder %s67, %s81
    %p83 = scmp.eq.s32.totalorder %s15, 0
    %p84 = por %p82, %p83
    %s85 = ssub.s32 %s9, %s16
    %p86 = scmp.eq.s32.totalorder %s85, 0
    %s88 = sadd.s32 %s87, 1
    %s89 = scalar_select %p86, %s87, %s88
    %p92 = pneg %p86
    %p93 = scmp.eq.s32.totalorder %s9, 1
    %p94 = por %p92, %p93
    %p95 = scmp.ne.s32.totalorder %s87, %s90
    %p96 = scmp.eq.s32.totalorder %s9, 0
    %p97 = por %p95, %p96
    %p98 = scmp.ne.s32.totalorder %s87, %s90
    %p99 = scmp.eq.s32.totalorder %s14, 1
    %p100 = por %p98, %p99
    %p101 = scmp.ne.s32.totalorder %s90, %s91
    %p102 = scmp.eq.s32.totalorder %s14, 0
    %p103 = por %p101, %p102
    %p104 = scmp.ne.s32.totalorder %s90, %s91
    %p105 = scmp.eq.s32.totalorder %s15, 1
    %p106 = por %p104, %p105
    %p108 = scmp.ne.s32.totalorder %s91, %s107
    %p109 = scmp.eq.s32.totalorder %s15, 0
    %p110 = por %p108, %p109
    %p111 = scmp.le.s32.totalorder 1, %s9
    %p112 = scmp.lt.s32.totalorder %s9, 3
    %p113 = pnand %p111, %p112
    %p114 = pneg %p113
    // Predicated region
    $region9: #{net_forward.6} parent=5 // pred_check
      _
    $region10: #{net_forward.6} parent=5 // pred_check_branch
      %116 = sbr.rel (%p113) target = $region12
    $region11: #{net_forward.6} parent=5 // pred_region
      %s117 = ssub.s32 %s9, 1
      // Predicated region
      $region13: #{net_forward.6} parent=11 // pred_check
        %p118 = pneg %p56
      $region14: #{net_forward.6} parent=11 // pred_check_branch
        %120 = sbr.rel (%p118) target = $region16
      $region15: #{net_forward.6} parent=11 // pred_region
        _
      $region16: #{net_forward.6} parent=11 // pred_fallthru
        _
      // Predicated region
      $region17: #{net_forward.6} parent=11 // pred_check
        %p121 = pneg %p77
      $region18: #{net_forward.6} parent=11 // pred_check_branch
        %123 = sbr.rel (%p121) target = $region20
      $region19: #{net_forward.6} parent=11 // pred_region
        _
      $region20: #{net_forward.6} parent=11 // pred_fallthru
        _
    $region12: #{net_forward.6} parent=5 // pred_fallthru
      _
    %p124 = scmp.lt.s32.totalorder %s9, 2
    // Predicated region
    $region21: #{net_forward.6} parent=5 // pred_check
      %p125 = pneg %p124
    $region22: #{net_forward.6} parent=5 // pred_check_branch
      %127 = sbr.rel (%p125) target = $region24
    $region23: #{net_forward.6} parent=5 // pred_region
      // Predicated region
      $region25: #{net_forward.6} parent=23 // pred_check
        %p128 = pneg %p29
      $region26: #{net_forward.6} parent=23 // pred_check_branch
        %130 = sbr.rel (%p128) target = $region28
      $region27: #{net_forward.6} parent=23 // pred_region
        %p131 = scmp.lt.s32.totalorder %s9, 1
        %s132 = scalar_select %p131, %s9, 1
        %s133 = smul.addr %s132, 6
        %s134 = smul.addr %s133, 4
        %s135 = scalar_lea.vmem %s0, %s134
      $region28: #{net_forward.6} parent=23 // pred_fallthru
        _
    $region24: #{net_forward.6} parent=5 // pred_fallthru
      _
    %p136 = scmp.le.s32.totalorder 1, %s9
    %p137 = scmp.lt.s32.totalorder %s9, 3
    %p138 = pnand %p136, %p137
    %p139 = pneg %p138
    // Predicated region
    $region29: #{net_forward.6} parent=5 // pred_check
      _
    $region30: #{net_forward.6} parent=5 // pred_check_branch
      %141 = sbr.rel (%p138) target = $region32
    $region31: #{net_forward.6} parent=5 // pred_region
      %s142 = ssub.s32 %s9, 1
      %p143 = scmp.lt.s32.totalorder %s14, 1
      %s144 = scalar_select %p143, %s14, 1
      %s145 = smul.addr %s144, 6
      %s146 = smul.addr %s145, 4
      %s147 = scalar_lea.vmem %s0, %s146
      %p148 = pneg %p35
      %p149 = pneg %p32
      %p150 = pneg %p56
      %p151 = pneg %p53
      %p152 = pneg %p77
      %p153 = pneg %p74
      %p154 = pneg %p103
      %p155 = pneg %p100
      %p156 = scmp.lt.s32.totalorder %s14, 1
      %s157 = scalar_select %p156, %s14, 1
      %s158 = smul.addr %s157, 4
      %s159 = smul.addr %s158, 4
      %s160 = scalar_lea.vmem %s3, %s159
      %p161 = scmp.lt.s32.totalorder %s14, 1
      %s162 = scalar_select %p161, %s14, 1
      %s163 = smul.addr %s162, 6
      %s164 = smul.addr %s163, 4
      %s165 = scalar_lea.vmem %s0, %s164
      %p166 = scmp.lt.s32.totalorder %s14, 1
      %s167 = scalar_select %p166, %s14, 1
      %s168 = smul.addr %s167, 4
      %s169 = smul.addr %s168, 4
      %s170 = scalar_lea.vmem %s3, %s169
      %v172 = vld [vmem:[%s165] sm:$0xff]
      %v173 = vld [vmem:[%s165 + $0x8] sm:$0xf]
      %v174 = vld [vmem:[%s165 + $0xc] sm:$0x11]
      %v175 = vld [vmem:[%s165 + $0x14] sm:$0x1]
      %v176 = vld [vmem:[%s1] sm:$0xff]
      %v177 = vld [vmem:[%s1 + $0x8] sm:$0xff]
      %v178 = vld [vmem:[%s1 + $0x10] sm:$0xff]
      %v179 = vld [vmem:[%s1 + $0x18] sm:$0xff]
      %v180 = vld [vmem:[%s1 + $0x20] sm:$0xff]
      %v181 = vld [vmem:[%s1 + $0x28] sm:$0xff]
      %v182 = vld [vmem:[%s1 + $0x30] sm:$0xff]
      %v183 = vld [vmem:[%s1 + $0x38] sm:$0xff]
      %v184 = vld [vmem:[%s1 + $0x40] sm:$0xff]
      %v185 = vld [vmem:[%s1 + $0x48] sm:$0xff]
      %v186 = vld [vmem:[%s1 + $0x50] sm:$0xff]
      %v187 = vld [vmem:[%s1 + $0x58] sm:$0xff]
      %v188 = vld [vmem:[%s1 + $0x60] sm:$0xff]
      %v189 = vld [vmem:[%s1 + $0x68] sm:$0xff]
      %v190 = vld [vmem:[%s1 + $0x70] sm:$0xff]
      %v191 = vld [vmem:[%s1 + $0x78] sm:$0xff]
      %v192 = vld [vmem:[%s1 + $0x80] sm:$0xff]
      %v193 = vld [vmem:[%s1 + $0x88] sm:$0xff]
      %v194 = vld [vmem:[%s1 + $0x90] sm:$0xff]
      %v195 = vld [vmem:[%s1 + $0x98] sm:$0xff]
      %v196 = vld [vmem:[%s1 + $0xa0] sm:$0xff]
      %v197 = vld [vmem:[%s1 + $0xa8] sm:$0xff]
      %v198 = vld [vmem:[%s1 + $0xb0] sm:$0xff]
      %v199 = vld [vmem:[%s1 + $0xb8] sm:$0xff]
      %v200 = vld [vmem:[%s1 + $0xc0] sm:$0xff]
      %v201 = vld [vmem:[%s1 + $0xc8] sm:$0xff]
      %v202 = vld [vmem:[%s1 + $0xd0] sm:$0xff]
      %v203 = vld [vmem:[%s1 + $0xd8] sm:$0xff]
      %v204 = vld [vmem:[%s1 + $0xe0] sm:$0xff]
      %v205 = vld [vmem:[%s1 + $0xe8] sm:$0xff]
      %v206 = vld [vmem:[%s1 + $0xf0] sm:$0xff]
      %v207 = vld [vmem:[%s1 + $0xf8] sm:$0xff]
      %v208 = vld [vmem:[%s1 + $0x100] sm:$0xff]
      %v209 = vld [vmem:[%s1 + $0x108] sm:$0xff]
      %v210 = vld [vmem:[%s1 + $0x110] sm:$0xff]
      %v211 = vld [vmem:[%s1 + $0x118] sm:$0xff]
      %v212 = vld [vmem:[%s1 + $0x120] sm:$0xff]
      %v213 = vld [vmem:[%s1 + $0x128] sm:$0xff]
      %v214 = vld [vmem:[%s1 + $0x130] sm:$0xff]
      %v215 = vld [vmem:[%s1 + $0x138] sm:$0xff]
      %v216 = vld [vmem:[%s1 + $0x140] sm:$0xff]
      %v217 = vld [vmem:[%s1 + $0x148] sm:$0xff]
      %v218 = vld [vmem:[%s1 + $0x150] sm:$0xff]
      %v219 = vld [vmem:[%s1 + $0x158] sm:$0xff]
      %v220 = vld [vmem:[%s1 + $0x160] sm:$0xff]
      %v221 = vld [vmem:[%s1 + $0x168] sm:$0xff]
      %v222 = vld [vmem:[%s1 + $0x170] sm:$0xff]
      %v223 = vld [vmem:[%s1 + $0x178] sm:$0xff]
      %v224 = vld [vmem:[%s1 + $0x180] sm:$0xff]
      %v225 = vld [vmem:[%s1 + $0x188] sm:$0xff]
      %v226 = vld [vmem:[%s1 + $0x190] sm:$0xff]
      %v227 = vld [vmem:[%s1 + $0x198] sm:$0xff]
      %v228 = vld [vmem:[%s1 + $0x1a0] sm:$0xff]
      %v229 = vld [vmem:[%s1 + $0x1a8] sm:$0xff]
      %v230 = vld [vmem:[%s1 + $0x1b0] sm:$0xff]
      %v231 = vld [vmem:[%s1 + $0x1b8] sm:$0xff]
      %v232 = vld [vmem:[%s1 + $0x1c0] sm:$0xff]
      %v233 = vld [vmem:[%s1 + $0x1c8] sm:$0xff]
      %v234 = vld [vmem:[%s1 + $0x1d0] sm:$0xff]
      %v235 = vld [vmem:[%s1 + $0x1d8] sm:$0xff]
      %v236 = vld [vmem:[%s1 + $0x1e0] sm:$0xff]
      %v237 = vld [vmem:[%s1 + $0x1e8] sm:$0xff]
      %v238 = vld [vmem:[%s1 + $0x1f0] sm:$0xff]
      %v239 = vld [vmem:[%s1 + $0x1f8] sm:$0xff]
      %v240 = vld [vmem:[%s1 + $0x200] sm:$0xff]
      %v241 = vld [vmem:[%s1 + $0x208] sm:$0xff]
      %v242 = vld [vmem:[%s1 + $0x210] sm:$0xff]
      %v243 = vld [vmem:[%s1 + $0x218] sm:$0xff]
      %v244 = vld [vmem:[%s1 + $0x220] sm:$0xff]
      %v245 = vld [vmem:[%s1 + $0x228] sm:$0xff]
      %v246 = vld [vmem:[%s1 + $0x230] sm:$0xff]
      %v247 = vld [vmem:[%s1 + $0x238] sm:$0xff]
      %v248 = vld [vmem:[%s1 + $0x240] sm:$0xff]
      %v249 = vld [vmem:[%s1 + $0x248] sm:$0xff]
      %v250 = vld [vmem:[%s1 + $0x250] sm:$0xff]
      %v251 = vld [vmem:[%s1 + $0x258] sm:$0xff]
      %v252 = vld [vmem:[%s1 + $0x260] sm:$0xff]
      %v253 = vld [vmem:[%s1 + $0x268] sm:$0xff]
      %v254 = vld [vmem:[%s1 + $0x270] sm:$0xff]
      %v255 = vld [vmem:[%s1 + $0x278] sm:$0xff]
      %s256 = scalar_lea.vmem %s1, 640
      %v257 = vld [vmem:[%s256] sm:$0xff]
      %v258 = vld [vmem:[%s256 + $0x8] sm:$0xff]
      %v259 = vld [vmem:[%s256 + $0x10] sm:$0xff]
      %v260 = vld [vmem:[%s256 + $0x18] sm:$0xff]
      %v261 = vld [vmem:[%s256 + $0x20] sm:$0xff]
      %v262 = vld [vmem:[%s256 + $0x28] sm:$0xff]
      %v263 = vld [vmem:[%s256 + $0x30] sm:$0xff]
      %v264 = vld [vmem:[%s256 + $0x38] sm:$0xff]
      %v265 = vld [vmem:[%s256 + $0x40] sm:$0xff]
      %v266 = vld [vmem:[%s256 + $0x48] sm:$0xff]
      %v267 = vld [vmem:[%s256 + $0x50] sm:$0xff]
      %v268 = vld [vmem:[%s256 + $0x58] sm:$0xff]
      %v269 = vld [vmem:[%s256 + $0x60] sm:$0xff]
      %v270 = vld [vmem:[%s256 + $0x68] sm:$0xff]
      %v271 = vld [vmem:[%s256 + $0x70] sm:$0xff]
      %v272 = vld [vmem:[%s256 + $0x78] sm:$0xff]
      %v273 = vld [vmem:[%s256 + $0x80] sm:$0xff]
      %v274 = vld [vmem:[%s256 + $0x88] sm:$0xff]
      %v275 = vld [vmem:[%s256 + $0x90] sm:$0xff]
      %v276 = vld [vmem:[%s256 + $0x98] sm:$0xff]
      %v277 = vld [vmem:[%s256 + $0xa0] sm:$0xff]
      %v278 = vld [vmem:[%s256 + $0xa8] sm:$0xff]
      %v279 = vld [vmem:[%s256 + $0xb0] sm:$0xff]
      %v280 = vld [vmem:[%s256 + $0xb8] sm:$0xff]
      %v281 = vld [vmem:[%s256 + $0xc0] sm:$0xff]
      %v282 = vld [vmem:[%s256 + $0xc8] sm:$0xff]
      %v283 = vld [vmem:[%s256 + $0xd0] sm:$0xff]
      %v284 = vld [vmem:[%s256 + $0xd8] sm:$0xff]
      %v285 = vld [vmem:[%s256 + $0xe0] sm:$0xff]
      %v286 = vld [vmem:[%s256 + $0xe8] sm:$0xff]
      %v287 = vld [vmem:[%s256 + $0xf0] sm:$0xff]
      %v288 = vld [vmem:[%s256 + $0xf8] sm:$0xff]
      %v289 = vld [vmem:[%s256 + $0x100] sm:$0xff]
      %v290 = vld [vmem:[%s256 + $0x108] sm:$0xff]
      %v291 = vld [vmem:[%s256 + $0x110] sm:$0xff]
      %v292 = vld [vmem:[%s256 + $0x118] sm:$0xff]
      %v293 = vld [vmem:[%s256 + $0x120] sm:$0xff]
      %v294 = vld [vmem:[%s256 + $0x128] sm:$0xff]
      %v295 = vld [vmem:[%s256 + $0x130] sm:$0xff]
      %v296 = vld [vmem:[%s256 + $0x138] sm:$0xff]
      %v297 = vld [vmem:[%s256 + $0x140] sm:$0xff]
      %v298 = vld [vmem:[%s256 + $0x148] sm:$0xff]
      %v299 = vld [vmem:[%s256 + $0x150] sm:$0xff]
      %v300 = vld [vmem:[%s256 + $0x158] sm:$0xff]
      %v301 = vld [vmem:[%s256 + $0x160] sm:$0xff]
      %v302 = vld [vmem:[%s256 + $0x168] sm:$0xff]
      %v303 = vld [vmem:[%s256 + $0x170] sm:$0xff]
      %v304 = vld [vmem:[%s256 + $0x178] sm:$0xff]
      %v305 = vld [vmem:[%s256 + $0x180] sm:$0xff]
      %v306 = vld [vmem:[%s256 + $0x188] sm:$0xff]
      %v307 = vld [vmem:[%s256 + $0x190] sm:$0xff]
      %v308 = vld [vmem:[%s256 + $0x198] sm:$0xff]
      %v309 = vld [vmem:[%s256 + $0x1a0] sm:$0xff]
      %v310 = vld [vmem:[%s256 + $0x1a8] sm:$0xff]
      %v311 = vld [vmem:[%s256 + $0x1b0] sm:$0xff]
      %v312 = vld [vmem:[%s256 + $0x1b8] sm:$0xff]
      %v313 = vld [vmem:[%s256 + $0x1c0] sm:$0xff]
      %v314 = vld [vmem:[%s256 + $0x1c8] sm:$0xff]
      %v315 = vld [vmem:[%s256 + $0x1d0] sm:$0xff]
      %v316 = vld [vmem:[%s256 + $0x1d8] sm:$0xff]
      %v317 = vld [vmem:[%s256 + $0x1e0] sm:$0xff]
      %v318 = vld [vmem:[%s256 + $0x1e8] sm:$0xff]
      %v319 = vld [vmem:[%s256 + $0x1f0] sm:$0xff]
      %v320 = vld [vmem:[%s256 + $0x1f8] sm:$0xff]
      %v321 = vld [vmem:[%s256 + $0x200] sm:$0xff]
      %v322 = vld [vmem:[%s256 + $0x208] sm:$0xff]
      %v323 = vld [vmem:[%s256 + $0x210] sm:$0xff]
      %v324 = vld [vmem:[%s256 + $0x218] sm:$0xff]
      %v325 = vld [vmem:[%s256 + $0x220] sm:$0xff]
      %v326 = vld [vmem:[%s256 + $0x228] sm:$0xff]
      %v327 = vld [vmem:[%s256 + $0x230] sm:$0xff]
      %v328 = vld [vmem:[%s256 + $0x238] sm:$0xff]
      %v329 = vld [vmem:[%s256 + $0x240] sm:$0xff]
      %v330 = vld [vmem:[%s256 + $0x248] sm:$0xff]
      %v331 = vld [vmem:[%s256 + $0x250] sm:$0xff]
      %v332 = vld [vmem:[%s256 + $0x258] sm:$0xff]
      %v333 = vld [vmem:[%s256 + $0x260] sm:$0xff]
      %v334 = vld [vmem:[%s256 + $0x268] sm:$0xff]
      %v335 = vld [vmem:[%s256 + $0x270] sm:$0xff]
      %v336 = vld [vmem:[%s256 + $0x278] sm:$0xff]
      %v341 = vunpack.c.l.b16 %v172
      %v342 = vunpack.c.h.b16 %v172
      %v343 = vunpack.c.l.b16 %v173
      %v344 = vunpack.c.l.b16 %v174
      %v345 = vunpack.c.h.b16 %v174
      %v346 = vunpack.c.l.b16 %v175
      %v347 = vpack.c.b16 %v344, %v341
      %v348 = vpack.c.b16 %v345, %v342
      %v349 = vpack.c.b16 %v346, %v343
      %v351 = vshrl.u32 %v347, 16
      %v353 = vshll.u32 %v347, 16
      %v355 = vrot.slane %v353, 1
      %v356 = vor.u32 %v351, %v355
      %v358 = vshrl.u32 %v348, 16
      %v360 = vshll.u32 %v348, 16
      %v362 = vrot.slane %v360, 1
      %v363 = vor.u32 %v358, %v362
      %v365 = vshrl.u32 %v349, 16
      %v367 = vshll.u32 %v349, 16
      %v369 = vrot.slane %v367, 1
      %v370 = vor.u32 %v365, %v369
      %v453 = vunpack.c.l.b16 %v257
      %v454 = vunpack.c.h.b16 %v257
      %v455 = vunpack.c.l.b16 %v258
      %v456 = vunpack.c.h.b16 %v258
      %v457 = vunpack.c.l.b16 %v259
      %v458 = vunpack.c.h.b16 %v259
      %v459 = vunpack.c.l.b16 %v260
      %v460 = vunpack.c.h.b16 %v260
      %v461 = vunpack.c.l.b16 %v261
      %v462 = vunpack.c.h.b16 %v261
      %v463 = vunpack.c.l.b16 %v262
      %v464 = vunpack.c.h.b16 %v262
      %v465 = vunpack.c.l.b16 %v263
      %v466 = vunpack.c.h.b16 %v263
      %v467 = vunpack.c.l.b16 %v264
      %v468 = vunpack.c.h.b16 %v264
      %v469 = vunpack.c.l.b16 %v265
      %v470 = vunpack.c.h.b16 %v265
      %v471 = vunpack.c.l.b16 %v266
      %v472 = vunpack.c.h.b16 %v266
      %v473 = vunpack.c.l.b16 %v267
      %v474 = vunpack.c.h.b16 %v267
      %v475 = vunpack.c.l.b16 %v268
      %v476 = vunpack.c.h.b16 %v268
      %v477 = vunpack.c.l.b16 %v269
      %v478 = vunpack.c.h.b16 %v269
      %v479 = vunpack.c.l.b16 %v270
      %v480 = vunpack.c.h.b16 %v270
      %v481 = vunpack.c.l.b16 %v271
      %v482 = vunpack.c.h.b16 %v271
      %v483 = vunpack.c.l.b16 %v272
      %v484 = vunpack.c.h.b16 %v272
      %v485 = vunpack.c.l.b16 %v273
      %v486 = vunpack.c.h.b16 %v273
      %v487 = vunpack.c.l.b16 %v274
      %v488 = vunpack.c.h.b16 %v274
      %v489 = vunpack.c.l.b16 %v275
      %v490 = vunpack.c.h.b16 %v275
      %v491 = vunpack.c.l.b16 %v276
      %v492 = vunpack.c.h.b16 %v276
      %v493 = vunpack.c.l.b16 %v277
      %v494 = vunpack.c.h.b16 %v277
      %v495 = vunpack.c.l.b16 %v278
      %v496 = vunpack.c.h.b16 %v278
      %v497 = vunpack.c.l.b16 %v279
      %v498 = vunpack.c.h.b16 %v279
      %v499 = vunpack.c.l.b16 %v280
      %v500 = vunpack.c.h.b16 %v280
      %v501 = vunpack.c.l.b16 %v281
      %v502 = vunpack.c.h.b16 %v281
      %v503 = vunpack.c.l.b16 %v282
      %v504 = vunpack.c.h.b16 %v282
      %v505 = vunpack.c.l.b16 %v283
      %v506 = vunpack.c.h.b16 %v283
      %v507 = vunpack.c.l.b16 %v284
      %v508 = vunpack.c.h.b16 %v284
      %v509 = vunpack.c.l.b16 %v285
      %v510 = vunpack.c.h.b16 %v285
      %v511 = vunpack.c.l.b16 %v286
      %v512 = vunpack.c.h.b16 %v286
      %v513 = vunpack.c.l.b16 %v287
      %v514 = vunpack.c.h.b16 %v287
      %v515 = vunpack.c.l.b16 %v288
      %v516 = vunpack.c.h.b16 %v288
      %v517 = vunpack.c.l.b16 %v289
      %v518 = vunpack.c.h.b16 %v289
      %v519 = vunpack.c.l.b16 %v290
      %v520 = vunpack.c.h.b16 %v290
      %v521 = vunpack.c.l.b16 %v291
      %v522 = vunpack.c.h.b16 %v291
      %v523 = vunpack.c.l.b16 %v292
      %v524 = vunpack.c.h.b16 %v292
      %v525 = vunpack.c.l.b16 %v293
      %v526 = vunpack.c.h.b16 %v293
      %v527 = vunpack.c.l.b16 %v294
      %v528 = vunpack.c.h.b16 %v294
      %v529 = vunpack.c.l.b16 %v295
      %v530 = vunpack.c.h.b16 %v295
      %v531 = vunpack.c.l.b16 %v296
      %v532 = vunpack.c.h.b16 %v296
      %v533 = vunpack.c.l.b16 %v297
      %v534 = vunpack.c.h.b16 %v297
      %v535 = vunpack.c.l.b16 %v298
      %v536 = vunpack.c.h.b16 %v298
      %v537 = vunpack.c.l.b16 %v299
      %v538 = vunpack.c.h.b16 %v299
      %v539 = vunpack.c.l.b16 %v300
      %v540 = vunpack.c.h.b16 %v300
      %v541 = vunpack.c.l.b16 %v301
      %v542 = vunpack.c.h.b16 %v301
      %v543 = vunpack.c.l.b16 %v302
      %v544 = vunpack.c.h.b16 %v302
      %v545 = vunpack.c.l.b16 %v303
      %v546 = vunpack.c.h.b16 %v303
      %v547 = vunpack.c.l.b16 %v304
      %v548 = vunpack.c.h.b16 %v304
      %v549 = vunpack.c.l.b16 %v305
      %v550 = vunpack.c.h.b16 %v305
      %v551 = vunpack.c.l.b16 %v306
      %v552 = vunpack.c.h.b16 %v306
      %v553 = vunpack.c.l.b16 %v307
      %v554 = vunpack.c.h.b16 %v307
      %v555 = vunpack.c.l.b16 %v308
      %v556 = vunpack.c.h.b16 %v308
      %v557 = vunpack.c.l.b16 %v309
      %v558 = vunpack.c.h.b16 %v309
      %v559 = vunpack.c.l.b16 %v310
      %v560 = vunpack.c.h.b16 %v310
      %v561 = vunpack.c.l.b16 %v311
      %v562 = vunpack.c.h.b16 %v311
      %v563 = vunpack.c.l.b16 %v312
      %v564 = vunpack.c.h.b16 %v312
      %v565 = vunpack.c.l.b16 %v313
      %v566 = vunpack.c.h.b16 %v313
      %v567 = vunpack.c.l.b16 %v314
      %v568 = vunpack.c.h.b16 %v314
      %v569 = vunpack.c.l.b16 %v315
      %v570 = vunpack.c.h.b16 %v315
      %v571 = vunpack.c.l.b16 %v316
      %v572 = vunpack.c.h.b16 %v316
      %v573 = vunpack.c.l.b16 %v317
      %v574 = vunpack.c.h.b16 %v317
      %v575 = vunpack.c.l.b16 %v318
      %v576 = vunpack.c.h.b16 %v318
      %v577 = vunpack.c.l.b16 %v319
      %v578 = vunpack.c.h.b16 %v319
      %v579 = vunpack.c.l.b16 %v320
      %v580 = vunpack.c.h.b16 %v320
      %v581 = vunpack.c.l.b16 %v321
      %v582 = vunpack.c.h.b16 %v321
      %v583 = vunpack.c.l.b16 %v322
      %v584 = vunpack.c.h.b16 %v322
      %v585 = vunpack.c.l.b16 %v323
      %v586 = vunpack.c.h.b16 %v323
      %v587 = vunpack.c.l.b16 %v324
      %v588 = vunpack.c.h.b16 %v324
      %v589 = vunpack.c.l.b16 %v325
      %v590 = vunpack.c.h.b16 %v325
      %v591 = vunpack.c.l.b16 %v326
      %v592 = vunpack.c.h.b16 %v326
      %v593 = vunpack.c.l.b16 %v327
      %v594 = vunpack.c.h.b16 %v327
      %v595 = vunpack.c.l.b16 %v328
      %v596 = vunpack.c.h.b16 %v328
      %v597 = vunpack.c.l.b16 %v329
      %v598 = vunpack.c.h.b16 %v329
      %v599 = vunpack.c.l.b16 %v330
      %v600 = vunpack.c.h.b16 %v330
      %v601 = vunpack.c.l.b16 %v331
      %v602 = vunpack.c.h.b16 %v331
      %v603 = vunpack.c.l.b16 %v332
      %v604 = vunpack.c.h.b16 %v332
      %v605 = vunpack.c.l.b16 %v333
      %v606 = vunpack.c.h.b16 %v333
      %v607 = vunpack.c.l.b16 %v334
      %v608 = vunpack.c.h.b16 %v334
      %v609 = vunpack.c.l.b16 %v335
      %v610 = vunpack.c.h.b16 %v335
      %v611 = vunpack.c.l.b16 %v336
      %v612 = vunpack.c.h.b16 %v336
      %v613 = vpack.c.b16 %v457, %v453
      %v614 = vpack.c.b16 %v458, %v454
      %v615 = vpack.c.b16 %v459, %v455
      %v616 = vpack.c.b16 %v460, %v456
      %v617 = vpack.c.b16 %v465, %v461
      %v618 = vpack.c.b16 %v466, %v462
      %v619 = vpack.c.b16 %v467, %v463
      %v620 = vpack.c.b16 %v468, %v464
      %v621 = vpack.c.b16 %v473, %v469
      %v622 = vpack.c.b16 %v474, %v470
      %v623 = vpack.c.b16 %v475, %v471
      %v624 = vpack.c.b16 %v476, %v472
      %v625 = vpack.c.b16 %v481, %v477
      %v626 = vpack.c.b16 %v482, %v478
      %v627 = vpack.c.b16 %v483, %v479
      %v628 = vpack.c.b16 %v484, %v480
      %v629 = vpack.c.b16 %v489, %v485
      %v630 = vpack.c.b16 %v490, %v486
      %v631 = vpack.c.b16 %v491, %v487
      %v632 = vpack.c.b16 %v492, %v488
      %v633 = vpack.c.b16 %v497, %v493
      %v634 = vpack.c.b16 %v498, %v494
      %v635 = vpack.c.b16 %v499, %v495
      %v636 = vpack.c.b16 %v500, %v496
      %v637 = vpack.c.b16 %v505, %v501
      %v638 = vpack.c.b16 %v506, %v502
      %v639 = vpack.c.b16 %v507, %v503
      %v640 = vpack.c.b16 %v508, %v504
      %v641 = vpack.c.b16 %v513, %v509
      %v642 = vpack.c.b16 %v514, %v510
      %v643 = vpack.c.b16 %v515, %v511
      %v644 = vpack.c.b16 %v516, %v512
      %v645 = vpack.c.b16 %v521, %v517
      %v646 = vpack.c.b16 %v522, %v518
      %v647 = vpack.c.b16 %v523, %v519
      %v648 = vpack.c.b16 %v524, %v520
      %v649 = vpack.c.b16 %v529, %v525
      %v650 = vpack.c.b16 %v530, %v526
      %v651 = vpack.c.b16 %v531, %v527
      %v652 = vpack.c.b16 %v532, %v528
      %v653 = vpack.c.b16 %v537, %v533
      %v654 = vpack.c.b16 %v538, %v534
      %v655 = vpack.c.b16 %v539, %v535
      %v656 = vpack.c.b16 %v540, %v536
      %v657 = vpack.c.b16 %v545, %v541
      %v658 = vpack.c.b16 %v546, %v542
      %v659 = vpack.c.b16 %v547, %v543
      %v660 = vpack.c.b16 %v548, %v544
      %v661 = vpack.c.b16 %v553, %v549
      %v662 = vpack.c.b16 %v554, %v550
      %v663 = vpack.c.b16 %v555, %v551
      %v664 = vpack.c.b16 %v556, %v552
      %v665 = vpack.c.b16 %v561, %v557
      %v666 = vpack.c.b16 %v562, %v558
      %v667 = vpack.c.b16 %v563, %v559
      %v668 = vpack.c.b16 %v564, %v560
      %v669 = vpack.c.b16 %v569, %v565
      %v670 = vpack.c.b16 %v570, %v566
      %v671 = vpack.c.b16 %v571, %v567
      %v672 = vpack.c.b16 %v572, %v568
      %v673 = vpack.c.b16 %v577, %v573
      %v674 = vpack.c.b16 %v578, %v574
      %v675 = vpack.c.b16 %v579, %v575
      %v676 = vpack.c.b16 %v580, %v576
      %v677 = vpack.c.b16 %v585, %v581
      %v678 = vpack.c.b16 %v586, %v582
      %v679 = vpack.c.b16 %v587, %v583
      %v680 = vpack.c.b16 %v588, %v584
      %v681 = vpack.c.b16 %v593, %v589
      %v682 = vpack.c.b16 %v594, %v590
      %v683 = vpack.c.b16 %v595, %v591
      %v684 = vpack.c.b16 %v596, %v592
      %v685 = vpack.c.b16 %v601, %v597
      %v686 = vpack.c.b16 %v602, %v598
      %v687 = vpack.c.b16 %v603, %v599
      %v688 = vpack.c.b16 %v604, %v600
      %v689 = vpack.c.b16 %v609, %v605
      %v690 = vpack.c.b16 %v610, %v606
      %v691 = vpack.c.b16 %v611, %v607
      %v692 = vpack.c.b16 %v612, %v608
      %vm773 = vcmask 523264
      %v775 = vsel %vm773, %v370, 0
      %777 = vmatprep.subr.bf16.mxu0 %v614
      %778 = vmatpush1.bf16.msra.mxu0 %v613
      %779 = vmatprep.subr.bf16.mxu0 %v618
      %780 = vmatpush1.bf16.msra.mxu0 %v617
      %781 = vmatprep.subr.bf16.mxu0 %v622
      %782 = vmatpush1.bf16.msra.mxu0 %v621
      %783 = vmatprep.subr.bf16.mxu0 %v626
      %784 = vmatpush1.bf16.msra.mxu0 %v625
      %785 = vmatprep.subr.bf16.mxu0 %v630
      %786 = vmatpush1.bf16.msra.mxu0 %v629
      %787 = vmatprep.subr.bf16.mxu0 %v634
      %788 = vmatpush1.bf16.msra.mxu0 %v633
      %789 = vmatprep.subr.bf16.mxu0 %v638
      %790 = vmatpush1.bf16.msra.mxu0 %v637
      %791 = vmatprep.subr.bf16.mxu0 %v642
      %792 = vmatpush1.bf16.msra.mxu0 %v641
      %793 = vmatprep.subr.bf16.mxu0 %v646
      %794 = vmatpush1.bf16.msra.mxu0 %v645
      %795 = vmatprep.subr.bf16.mxu0 %v650
      %796 = vmatpush1.bf16.msra.mxu0 %v649
      %797 = vmatprep.subr.bf16.mxu0 %v654
      %798 = vmatpush1.bf16.msra.mxu0 %v653
      %799 = vmatprep.subr.bf16.mxu0 %v658
      %800 = vmatpush1.bf16.msra.mxu0 %v657
      %801 = vmatprep.subr.bf16.mxu0 %v662
      %802 = vmatpush1.bf16.msra.mxu0 %v661
      %803 = vmatprep.subr.bf16.mxu0 %v666
      %804 = vmatpush1.bf16.msra.mxu0 %v665
      %805 = vmatprep.subr.bf16.mxu0 %v670
      %806 = vmatpush1.bf16.msra.mxu0 %v669
      %807 = vmatprep.subr.bf16.mxu0 %v674
      %808 = vmatpush1.bf16.msra.mxu0 %v673
      %809 = vmatprep.mubr.bf16.mxu0 %v363
      %810 = vmatmul.mubr.bf16.gmra.mrb[0].mxu0 %v356
      %v811 = vpop.f32.mrb[0].mxu0
      %v812 = vadd.f32 0.0, %v811
      %v813 = vpop.f32.mrb[0].mxu0
      %v814 = vadd.f32 0.0, %v813
      %v815 = vpop.f32.mrb[0].mxu0
      %v816 = vpop.f32.mrb[0].mxu0
      %817 = vdwg.mxu0
      %818 = vmatprep.subr.bf16.mxu0 %v678
      %819 = vmatpush1.bf16.msra.mxu0 %v677
      %820 = vmatprep.subr.bf16.mxu0 %v682
      %821 = vmatpush1.bf16.msra.mxu0 %v681
      %822 = vmatprep.subr.bf16.mxu0 %v686
      %823 = vmatpush1.bf16.msra.mxu0 %v685
      %824 = vmatprep.subr.bf16.mxu0 %v690
      %825 = vmatpush1.bf16.msra.mxu0 %v689
      %826 = vmatprep.subr.bf16.mxu0 0
      %827 = vmatpush1.bf16.msra.mxu0 0
      %828 = vmatprep.subr.bf16.mxu0 0
      %829 = vmatpush1.bf16.msra.mxu0 0
      %830 = vmatprep.subr.bf16.mxu0 0
      %831 = vmatpush1.bf16.msra.mxu0 0
      %832 = vmatprep.subr.bf16.mxu0 0
      %833 = vmatpush1.bf16.msra.mxu0 0
      %834 = vmatprep.subr.bf16.mxu0 0
      %835 = vmatpush1.bf16.msra.mxu0 0
      %836 = vmatprep.subr.bf16.mxu0 0
      %837 = vmatpush1.bf16.msra.mxu0 0
      %838 = vmatprep.subr.bf16.mxu0 0
      %839 = vmatpush1.bf16.msra.mxu0 0
      %840 = vmatprep.subr.bf16.mxu0 0
      %841 = vmatpush1.bf16.msra.mxu0 0
      %842 = vmatprep.subr.bf16.mxu0 0
      %843 = vmatpush1.bf16.msra.mxu0 0
      %844 = vmatprep.subr.bf16.mxu0 0
      %845 = vmatpush1.bf16.msra.mxu0 0
      %846 = vmatprep.subr.bf16.mxu0 0
      %847 = vmatpush1.bf16.msra.mxu0 0
      %848 = vmatprep.subr.bf16.mxu0 0
      %849 = vmatpush1.bf16.msra.mxu0 0
      %850 = vmatprep.mubr.bf16.mxu0 0
      %851 = vmatmul.mubr.bf16.gmra.mrb[0].mxu0 %v775
      %v852 = vpop.f32.mrb[0].mxu0
      %v853 = vadd.f32 %v812, %v852
      %v854 = vpop.f32.mrb[0].mxu0
      %v855 = vadd.f32 %v814, %v854
      %v856 = vpop.f32.mrb[0].mxu0
      %v857 = vpop.f32.mrb[0].mxu0
      %858 = vdwg.mxu0
      %859 = vmatprep.subr.bf16.mxu0 %v616
      %860 = vmatpush1.bf16.msra.mxu0 %v615
      %861 = vmatprep.subr.bf16.mxu0 %v620
      %862 = vmatpush1.bf16.msra.mxu0 %v619
      %863 = vmatprep.subr.bf16.mxu0 %v624
      %864 = vmatpush1.bf16.msra.mxu0 %v623
      %865 = vmatprep.subr.bf16.mxu0 %v628
      %866 = vmatpush1.bf16.msra.mxu0 %v627
      %867 = vmatprep.subr.bf16.mxu0 %v632
      %868 = vmatpush1.bf16.msra.mxu0 %v631
      %869 = vmatprep.subr.bf16.mxu0 %v636
      %870 = vmatpush1.bf16.msra.mxu0 %v635
      %871 = vmatprep.subr.bf16.mxu0 %v640
      %872 = vmatpush1.bf16.msra.mxu0 %v639
      %873 = vmatprep.subr.bf16.mxu0 %v644
      %874 = vmatpush1.bf16.msra.mxu0 %v643
      %875 = vmatprep.subr.bf16.mxu0 %v648
      %876 = vmatpush1.bf16.msra.mxu0 %v647
      %877 = vmatprep.subr.bf16.mxu0 %v652
      %878 = vmatpush1.bf16.msra.mxu0 %v651
      %879 = vmatprep.subr.bf16.mxu0 %v656
      %880 = vmatpush1.bf16.msra.mxu0 %v655
      %881 = vmatprep.subr.bf16.mxu0 %v660
      %882 = vmatpush1.bf16.msra.mxu0 %v659
      %883 = vmatprep.subr.bf16.mxu0 %v664
      %884 = vmatpush1.bf16.msra.mxu0 %v663
      %885 = vmatprep.subr.bf16.mxu0 %v668
      %886 = vmatpush1.bf16.msra.mxu0 %v667
      %887 = vmatprep.subr.bf16.mxu0 %v672
      %888 = vmatpush1.bf16.msra.mxu0 %v671
      %889 = vmatprep.subr.bf16.mxu0 %v676
      %890 = vmatpush1.bf16.msra.mxu0 %v675
      %891 = vmatprep.mubr.bf16.mxu0 %v363
      %892 = vmatmul.mubr.bf16.gmra.mrb[0].mxu0 %v356
      %v893 = vpop.f32.mrb[0].mxu0
      %v894 = vadd.f32 0.0, %v893
      %v895 = vpop.f32.mrb[0].mxu0
      %v896 = vadd.f32 0.0, %v895
      %v897 = vpop.f32.mrb[0].mxu0
      %v898 = vpop.f32.mrb[0].mxu0
      %899 = vdwg.mxu0
      %900 = vmatprep.subr.bf16.mxu0 %v680
      %901 = vmatpush1.bf16.msra.mxu0 %v679
      %902 = vmatprep.subr.bf16.mxu0 %v684
      %903 = vmatpush1.bf16.msra.mxu0 %v683
      %904 = vmatprep.subr.bf16.mxu0 %v688
      %905 = vmatpush1.bf16.msra.mxu0 %v687
      %906 = vmatprep.subr.bf16.mxu0 %v692
      %907 = vmatpush1.bf16.msra.mxu0 %v691
      %908 = vmatprep.subr.bf16.mxu0 0
      %909 = vmatpush1.bf16.msra.mxu0 0
      %910 = vmatprep.subr.bf16.mxu0 0
      %911 = vmatpush1.bf16.msra.mxu0 0
      %912 = vmatprep.subr.bf16.mxu0 0
      %913 = vmatpush1.bf16.msra.mxu0 0
      %914 = vmatprep.subr.bf16.mxu0 0
      %915 = vmatpush1.bf16.msra.mxu0 0
      %916 = vmatprep.subr.bf16.mxu0 0
      %917 = vmatpush1.bf16.msra.mxu0 0
      %918 = vmatprep.subr.bf16.mxu0 0
      %919 = vmatpush1.bf16.msra.mxu0 0
      %920 = vmatprep.subr.bf16.mxu0 0
      %921 = vmatpush1.bf16.msra.mxu0 0
      %922 = vmatprep.subr.bf16.mxu0 0
      %923 = vmatpush1.bf16.msra.mxu0 0
      %924 = vmatprep.subr.bf16.mxu0 0
      %925 = vmatpush1.bf16.msra.mxu0 0
      %926 = vmatprep.subr.bf16.mxu0 0
      %927 = vmatpush1.bf16.msra.mxu0 0
      %928 = vmatprep.subr.bf16.mxu0 0
      %929 = vmatpush1.bf16.msra.mxu0 0
      %930 = vmatprep.subr.bf16.mxu0 0
      %931 = vmatpush1.bf16.msra.mxu0 0
      %932 = vmatprep.mubr.bf16.mxu0 0
      %933 = vmatmul.mubr.bf16.gmra.mrb[0].mxu0 %v775
      %v934 = vpop.f32.mrb[0].mxu0
      %v935 = vadd.f32 %v894, %v934
      %v936 = vpop.f32.mrb[0].mxu0
      %v937 = vadd.f32 %v896, %v936
      %v938 = vpop.f32.mrb[0].mxu0
      %v939 = vpop.f32.mrb[0].mxu0
      %940 = vdwg.mxu0
      %v941 = vpack.c.b16 %v341, %v341
      %v942 = vpack.c.b16 %v342, %v342
      %v943 = vpack.c.b16 %v343, %v343
      %v1026 = vunpack.c.l.b16 %v176
      %v1027 = vunpack.c.h.b16 %v176
      %v1028 = vunpack.c.l.b16 %v177
      %v1029 = vunpack.c.h.b16 %v177
      %v1030 = vunpack.c.l.b16 %v178
      %v1031 = vunpack.c.h.b16 %v178
      %v1032 = vunpack.c.l.b16 %v179
      %v1033 = vunpack.c.h.b16 %v179
      %v1034 = vunpack.c.l.b16 %v180
      %v1035 = vunpack.c.h.b16 %v180
      %v1036 = vunpack.c.l.b16 %v181
      %v1037 = vunpack.c.h.b16 %v181
      %v1038 = vunpack.c.l.b16 %v182
      %v1039 = vunpack.c.h.b16 %v182
      %v1040 = vunpack.c.l.b16 %v183
      %v1041 = vunpack.c.h.b16 %v183
      %v1042 = vunpack.c.l.b16 %v184
      %v1043 = vunpack.c.h.b16 %v184
      %v1044 = vunpack.c.l.b16 %v185
      %v1045 = vunpack.c.h.b16 %v185
      %v1046 = vunpack.c.l.b16 %v186
      %v1047 = vunpack.c.h.b16 %v186
      %v1048 = vunpack.c.l.b16 %v187
      %v1049 = vunpack.c.h.b16 %v187
      %v1050 = vunpack.c.l.b16 %v188
      %v1051 = vunpack.c.h.b16 %v188
      %v1052 = vunpack.c.l.b16 %v189
      %v1053 = vunpack.c.h.b16 %v189
      %v1054 = vunpack.c.l.b16 %v190
      %v1055 = vunpack.c.h.b16 %v190
      %v1056 = vunpack.c.l.b16 %v191
      %v1057 = vunpack.c.h.b16 %v191
      %v1058 = vunpack.c.l.b16 %v192
      %v1059 = vunpack.c.h.b16 %v192
      %v1060 = vunpack.c.l.b16 %v193
      %v1061 = vunpack.c.h.b16 %v193
      %v1062 = vunpack.c.l.b16 %v194
      %v1063 = vunpack.c.h.b16 %v194
      %v1064 = vunpack.c.l.b16 %v195
      %v1065 = vunpack.c.h.b16 %v195
      %v1066 = vunpack.c.l.b16 %v196
      %v1067 = vunpack.c.h.b16 %v196
      %v1068 = vunpack.c.l.b16 %v197
      %v1069 = vunpack.c.h.b16 %v197
      %v1070 = vunpack.c.l.b16 %v198
      %v1071 = vunpack.c.h.b16 %v198
      %v1072 = vunpack.c.l.b16 %v199
      %v1073 = vunpack.c.h.b16 %v199
      %v1074 = vunpack.c.l.b16 %v200
      %v1075 = vunpack.c.h.b16 %v200
      %v1076 = vunpack.c.l.b16 %v201
      %v1077 = vunpack.c.h.b16 %v201
      %v1078 = vunpack.c.l.b16 %v202
      %v1079 = vunpack.c.h.b16 %v202
      %v1080 = vunpack.c.l.b16 %v203
      %v1081 = vunpack.c.h.b16 %v203
      %v1082 = vunpack.c.l.b16 %v204
      %v1083 = vunpack.c.h.b16 %v204
      %v1084 = vunpack.c.l.b16 %v205
      %v1085 = vunpack.c.h.b16 %v205
      %v1086 = vunpack.c.l.b16 %v206
      %v1087 = vunpack.c.h.b16 %v206
      %v1088 = vunpack.c.l.b16 %v207
      %v1089 = vunpack.c.h.b16 %v207
      %v1090 = vunpack.c.l.b16 %v208
      %v1091 = vunpack.c.h.b16 %v208
      %v1092 = vunpack.c.l.b16 %v209
      %v1093 = vunpack.c.h.b16 %v209
      %v1094 = vunpack.c.l.b16 %v210
      %v1095 = vunpack.c.h.b16 %v210
      %v1096 = vunpack.c.l.b16 %v211
      %v1097 = vunpack.c.h.b16 %v211
      %v1098 = vunpack.c.l.b16 %v212
      %v1099 = vunpack.c.h.b16 %v212
      %v1100 = vunpack.c.l.b16 %v213
      %v1101 = vunpack.c.h.b16 %v213
      %v1102 = vunpack.c.l.b16 %v214
      %v1103 = vunpack.c.h.b16 %v214
      %v1104 = vunpack.c.l.b16 %v215
      %v1105 = vunpack.c.h.b16 %v215
      %v1106 = vunpack.c.l.b16 %v216
      %v1107 = vunpack.c.h.b16 %v216
      %v1108 = vunpack.c.l.b16 %v217
      %v1109 = vunpack.c.h.b16 %v217
      %v1110 = vunpack.c.l.b16 %v218
      %v1111 = vunpack.c.h.b16 %v218
      %v1112 = vunpack.c.l.b16 %v219
      %v1113 = vunpack.c.h.b16 %v219
      %v1114 = vunpack.c.l.b16 %v220
      %v1115 = vunpack.c.h.b16 %v220
      %v1116 = vunpack.c.l.b16 %v221
      %v1117 = vunpack.c.h.b16 %v221
      %v1118 = vunpack.c.l.b16 %v222
      %v1119 = vunpack.c.h.b16 %v222
      %v1120 = vunpack.c.l.b16 %v223
      %v1121 = vunpack.c.h.b16 %v223
      %v1122 = vunpack.c.l.b16 %v224
      %v1123 = vunpack.c.h.b16 %v224
      %v1124 = vunpack.c.l.b16 %v225
      %v1125 = vunpack.c.h.b16 %v225
      %v1126 = vunpack.c.l.b16 %v226
      %v1127 = vunpack.c.h.b16 %v226
      %v1128 = vunpack.c.l.b16 %v227
      %v1129 = vunpack.c.h.b16 %v227
      %v1130 = vunpack.c.l.b16 %v228
      %v1131 = vunpack.c.h.b16 %v228
      %v1132 = vunpack.c.l.b16 %v229
      %v1133 = vunpack.c.h.b16 %v229
      %v1134 = vunpack.c.l.b16 %v230
      %v1135 = vunpack.c.h.b16 %v230
      %v1136 = vunpack.c.l.b16 %v231
      %v1137 = vunpack.c.h.b16 %v231
      %v1138 = vunpack.c.l.b16 %v232
      %v1139 = vunpack.c.h.b16 %v232
      %v1140 = vunpack.c.l.b16 %v233
      %v1141 = vunpack.c.h.b16 %v233
      %v1142 = vunpack.c.l.b16 %v234
      %v1143 = vunpack.c.h.b16 %v234
      %v1144 = vunpack.c.l.b16 %v235
      %v1145 = vunpack.c.h.b16 %v235
      %v1146 = vunpack.c.l.b16 %v236
      %v1147 = vunpack.c.h.b16 %v236
      %v1148 = vunpack.c.l.b16 %v237
      %v1149 = vunpack.c.h.b16 %v237
      %v1150 = vunpack.c.l.b16 %v238
      %v1151 = vunpack.c.h.b16 %v238
      %v1152 = vunpack.c.l.b16 %v239
      %v1153 = vunpack.c.h.b16 %v239
      %v1154 = vunpack.c.l.b16 %v240
      %v1155 = vunpack.c.h.b16 %v240
      %v1156 = vunpack.c.l.b16 %v241
      %v1157 = vunpack.c.h.b16 %v241
      %v1158 = vunpack.c.l.b16 %v242
      %v1159 = vunpack.c.h.b16 %v242
      %v1160 = vunpack.c.l.b16 %v243
      %v1161 = vunpack.c.h.b16 %v243
      %v1162 = vunpack.c.l.b16 %v244
      %v1163 = vunpack.c.h.b16 %v244
      %v1164 = vunpack.c.l.b16 %v245
      %v1165 = vunpack.c.h.b16 %v245
      %v1166 = vunpack.c.l.b16 %v246
      %v1167 = vunpack.c.h.b16 %v246
      %v1168 = vunpack.c.l.b16 %v247
      %v1169 = vunpack.c.h.b16 %v247
      %v1170 = vunpack.c.l.b16 %v248
      %v1171 = vunpack.c.h.b16 %v248
      %v1172 = vunpack.c.l.b16 %v249
      %v1173 = vunpack.c.h.b16 %v249
      %v1174 = vunpack.c.l.b16 %v250
      %v1175 = vunpack.c.h.b16 %v250
      %v1176 = vunpack.c.l.b16 %v251
      %v1177 = vunpack.c.h.b16 %v251
      %v1178 = vunpack.c.l.b16 %v252
      %v1179 = vunpack.c.h.b16 %v252
      %v1180 = vunpack.c.l.b16 %v253
      %v1181 = vunpack.c.h.b16 %v253
      %v1182 = vunpack.c.l.b16 %v254
      %v1183 = vunpack.c.h.b16 %v254
      %v1184 = vunpack.c.l.b16 %v255
      %v1185 = vunpack.c.h.b16 %v255
      %v1186 = vpack.c.b16 %v1030, %v1026
      %v1187 = vpack.c.b16 %v1031, %v1027
      %v1188 = vpack.c.b16 %v1032, %v1028
      %v1189 = vpack.c.b16 %v1033, %v1029
      %v1190 = vpack.c.b16 %v1038, %v1034
      %v1191 = vpack.c.b16 %v1039, %v1035
      %v1192 = vpack.c.b16 %v1040, %v1036
      %v1193 = vpack.c.b16 %v1041, %v1037
      %v1194 = vpack.c.b16 %v1046, %v1042
      %v1195 = vpack.c.b16 %v1047, %v1043
      %v1196 = vpack.c.b16 %v1048, %v1044
      %v1197 = vpack.c.b16 %v1049, %v1045
      %v1198 = vpack.c.b16 %v1054, %v1050
      %v1199 = vpack.c.b16 %v1055, %v1051
      %v1200 = vpack.c.b16 %v1056, %v1052
      %v1201 = vpack.c.b16 %v1057, %v1053
      %v1202 = vpack.c.b16 %v1062, %v1058
      %v1203 = vpack.c.b16 %v1063, %v1059
      %v1204 = vpack.c.b16 %v1064, %v1060
      %v1205 = vpack.c.b16 %v1065, %v1061
      %v1206 = vpack.c.b16 %v1070, %v1066
      %v1207 = vpack.c.b16 %v1071, %v1067
      %v1208 = vpack.c.b16 %v1072, %v1068
      %v1209 = vpack.c.b16 %v1073, %v1069
      %v1210 = vpack.c.b16 %v1078, %v1074
      %v1211 = vpack.c.b16 %v1079, %v1075
      %v1212 = vpack.c.b16 %v1080, %v1076
      %v1213 = vpack.c.b16 %v1081, %v1077
      %v1214 = vpack.c.b16 %v1086, %v1082
      %v1215 = vpack.c.b16 %v1087, %v1083
      %v1216 = vpack.c.b16 %v1088, %v1084
      %v1217 = vpack.c.b16 %v1089, %v1085
      %v1218 = vpack.c.b16 %v1094, %v1090
      %v1219 = vpack.c.b16 %v1095, %v1091
      %v1220 = vpack.c.b16 %v1096, %v1092
      %v1221 = vpack.c.b16 %v1097, %v1093
      %v1222 = vpack.c.b16 %v1102, %v1098
      %v1223 = vpack.c.b16 %v1103, %v1099
      %v1224 = vpack.c.b16 %v1104, %v1100
      %v1225 = vpack.c.b16 %v1105, %v1101
      %v1226 = vpack.c.b16 %v1110, %v1106
      %v1227 = vpack.c.b16 %v1111, %v1107
      %v1228 = vpack.c.b16 %v1112, %v1108
      %v1229 = vpack.c.b16 %v1113, %v1109
      %v1230 = vpack.c.b16 %v1118, %v1114
      %v1231 = vpack.c.b16 %v1119, %v1115
      %v1232 = vpack.c.b16 %v1120, %v1116
      %v1233 = vpack.c.b16 %v1121, %v1117
      %v1234 = vpack.c.b16 %v1126, %v1122
      %v1235 = vpack.c.b16 %v1127, %v1123
      %v1236 = vpack.c.b16 %v1128, %v1124
      %v1237 = vpack.c.b16 %v1129, %v1125
      %v1238 = vpack.c.b16 %v1134, %v1130
      %v1239 = vpack.c.b16 %v1135, %v1131
      %v1240 = vpack.c.b16 %v1136, %v1132
      %v1241 = vpack.c.b16 %v1137, %v1133
      %v1242 = vpack.c.b16 %v1142, %v1138
      %v1243 = vpack.c.b16 %v1143, %v1139
      %v1244 = vpack.c.b16 %v1144, %v1140
      %v1245 = vpack.c.b16 %v1145, %v1141
      %v1246 = vpack.c.b16 %v1150, %v1146
      %v1247 = vpack.c.b16 %v1151, %v1147
      %v1248 = vpack.c.b16 %v1152, %v1148
      %v1249 = vpack.c.b16 %v1153, %v1149
      %v1250 = vpack.c.b16 %v1158, %v1154
      %v1251 = vpack.c.b16 %v1159, %v1155
      %v1252 = vpack.c.b16 %v1160, %v1156
      %v1253 = vpack.c.b16 %v1161, %v1157
      %v1254 = vpack.c.b16 %v1166, %v1162
      %v1255 = vpack.c.b16 %v1167, %v1163
      %v1256 = vpack.c.b16 %v1168, %v1164
      %v1257 = vpack.c.b16 %v1169, %v1165
      %v1258 = vpack.c.b16 %v1174, %v1170
      %v1259 = vpack.c.b16 %v1175, %v1171
      %v1260 = vpack.c.b16 %v1176, %v1172
      %v1261 = vpack.c.b16 %v1177, %v1173
      %v1262 = vpack.c.b16 %v1182, %v1178
      %v1263 = vpack.c.b16 %v1183, %v1179
      %v1264 = vpack.c.b16 %v1184, %v1180
      %v1265 = vpack.c.b16 %v1185, %v1181
      %v1347 = vsel %vm773, %v943, 0
      %1349 = vmatprep.subr.bf16.mxu0 %v1187
      %1350 = vmatpush1.bf16.msra.mxu0 %v1186
      %1351 = vmatprep.subr.bf16.mxu0 %v1191
      %1352 = vmatpush1.bf16.msra.mxu0 %v1190
      %1353 = vmatprep.subr.bf16.mxu0 %v1195
      %1354 = vmatpush1.bf16.msra.mxu0 %v1194
      %1355 = vmatprep.subr.bf16.mxu0 %v1199
      %1356 = vmatpush1.bf16.msra.mxu0 %v1198
      %1357 = vmatprep.subr.bf16.mxu0 %v1203
      %1358 = vmatpush1.bf16.msra.mxu0 %v1202
      %1359 = vmatprep.subr.bf16.mxu0 %v1207
      %1360 = vmatpush1.bf16.msra.mxu0 %v1206
      %1361 = vmatprep.subr.bf16.mxu0 %v1211
      %1362 = vmatpush1.bf16.msra.mxu0 %v1210
      %1363 = vmatprep.subr.bf16.mxu0 %v1215
      %1364 = vmatpush1.bf16.msra.mxu0 %v1214
      %1365 = vmatprep.subr.bf16.mxu0 %v1219
      %1366 = vmatpush1.bf16.msra.mxu0 %v1218
      %1367 = vmatprep.subr.bf16.mxu0 %v1223
      %1368 = vmatpush1.bf16.msra.mxu0 %v1222
      %1369 = vmatprep.subr.bf16.mxu0 %v1227
      %1370 = vmatpush1.bf16.msra.mxu0 %v1226
      %1371 = vmatprep.subr.bf16.mxu0 %v1231
      %1372 = vmatpush1.bf16.msra.mxu0 %v1230
      %1373 = vmatprep.subr.bf16.mxu0 %v1235
      %1374 = vmatpush1.bf16.msra.mxu0 %v1234
      %1375 = vmatprep.subr.bf16.mxu0 %v1239
      %1376 = vmatpush1.bf16.msra.mxu0 %v1238
      %1377 = vmatprep.subr.bf16.mxu0 %v1243
      %1378 = vmatpush1.bf16.msra.mxu0 %v1242
      %1379 = vmatprep.subr.bf16.mxu0 %v1247
      %1380 = vmatpush1.bf16.msra.mxu0 %v1246
      %1381 = vmatprep.mubr.bf16.mxu0 %v942
      %1382 = vmatmul.mubr.bf16.gmra.mrb[0].mxu0 %v941
      %v1383 = vpop.f32.mrb[0].mxu0
      %v1384 = vadd.f32 %v853, %v1383
      %v1385 = vpop.f32.mrb[0].mxu0
      %v1386 = vadd.f32 %v855, %v1385
      %v1387 = vpop.f32.mrb[0].mxu0
      %v1388 = vpop.f32.mrb[0].mxu0
      %1389 = vdwg.mxu0
      %1390 = vmatprep.subr.bf16.mxu0 %v1251
      %1391 = vmatpush1.bf16.msra.mxu0 %v1250
      %1392 = vmatprep.subr.bf16.mxu0 %v1255
      %1393 = vmatpush1.bf16.msra.mxu0 %v1254
      %1394 = vmatprep.subr.bf16.mxu0 %v1259
      %1395 = vmatpush1.bf16.msra.mxu0 %v1258
      %1396 = vmatprep.subr.bf16.mxu0 %v1263
      %1397 = vmatpush1.bf16.msra.mxu0 %v1262
      %1398 = vmatprep.subr.bf16.mxu0 0
      %1399 = vmatpush1.bf16.msra.mxu0 0
      %1400 = vmatprep.subr.bf16.mxu0 0
      %1401 = vmatpush1.bf16.msra.mxu0 0
      %1402 = vmatprep.subr.bf16.mxu0 0
      %1403 = vmatpush1.bf16.msra.mxu0 0
      %1404 = vmatprep.subr.bf16.mxu0 0
      %1405 = vmatpush1.bf16.msra.mxu0 0
      %1406 = vmatprep.subr.bf16.mxu0 0
      %1407 = vmatpush1.bf16.msra.mxu0 0
      %1408 = vmatprep.subr.bf16.mxu0 0
      %1409 = vmatpush1.bf16.msra.mxu0 0
      %1410 = vmatprep.subr.bf16.mxu0 0
      %1411 = vmatpush1.bf16.msra.mxu0 0
      %1412 = vmatprep.subr.bf16.mxu0 0
      %1413 = vmatpush1.bf16.msra.mxu0 0
      %1414 = vmatprep.subr.bf16.mxu0 0
      %1415 = vmatpush1.bf16.msra.mxu0 0
      %1416 = vmatprep.subr.bf16.mxu0 0
      %1417 = vmatpush1.bf16.msra.mxu0 0
      %1418 = vmatprep.subr.bf16.mxu0 0
      %1419 = vmatpush1.bf16.msra.mxu0 0
      %1420 = vmatprep.subr.bf16.mxu0 0
      %1421 = vmatpush1.bf16.msra.mxu0 0
      %1422 = vmatprep.mubr.bf16.mxu0 0
      %1423 = vmatmul.mubr.bf16.gmra.mrb[0].mxu0 %v1347
      %v1424 = vpop.f32.mrb[0].mxu0
      %v1425 = vadd.f32 %v1384, %v1424
      %v1426 = vpop.f32.mrb[0].mxu0
      %v1427 = vadd.f32 %v1386, %v1426
      %v1428 = vpop.f32.mrb[0].mxu0
      %v1429 = vpop.f32.mrb[0].mxu0
      %1430 = vdwg.mxu0
      %1431 = vmatprep.subr.bf16.mxu0 %v1189
      %1432 = vmatpush1.bf16.msra.mxu0 %v1188
      %1433 = vmatprep.subr.bf16.mxu0 %v1193
      %1434 = vmatpush1.bf16.msra.mxu0 %v1192
      %1435 = vmatprep.subr.bf16.mxu0 %v1197
      %1436 = vmatpush1.bf16.msra.mxu0 %v1196
      %1437 = vmatprep.subr.bf16.mxu0 %v1201
      %1438 = vmatpush1.bf16.msra.mxu0 %v1200
      %1439 = vmatprep.subr.bf16.mxu0 %v1205
      %1440 = vmatpush1.bf16.msra.mxu0 %v1204
      %1441 = vmatprep.subr.bf16.mxu0 %v1209
      %1442 = vmatpush1.bf16.msra.mxu0 %v1208
      %1443 = vmatprep.subr.bf16.mxu0 %v1213
      %1444 = vmatpush1.bf16.msra.mxu0 %v1212
      %1445 = vmatprep.subr.bf16.mxu0 %v1217
      %1446 = vmatpush1.bf16.msra.mxu0 %v1216
      %1447 = vmatprep.subr.bf16.mxu0 %v1221
      %1448 = vmatpush1.bf16.msra.mxu0 %v1220
      %1449 = vmatprep.subr.bf16.mxu0 %v1225
      %1450 = vmatpush1.bf16.msra.mxu0 %v1224
      %1451 = vmatprep.subr.bf16.mxu0 %v1229
      %1452 = vmatpush1.bf16.msra.mxu0 %v1228
      %1453 = vmatprep.subr.bf16.mxu0 %v1233
      %1454 = vmatpush1.bf16.msra.mxu0 %v1232
      %1455 = vmatprep.subr.bf16.mxu0 %v1237
      %1456 = vmatpush1.bf16.msra.mxu0 %v1236
      %1457 = vmatprep.subr.bf16.mxu0 %v1241
      %1458 = vmatpush1.bf16.msra.mxu0 %v1240
      %1459 = vmatprep.subr.bf16.mxu0 %v1245
      %1460 = vmatpush1.bf16.msra.mxu0 %v1244
      %1461 = vmatprep.subr.bf16.mxu0 %v1249
      %1462 = vmatpush1.bf16.msra.mxu0 %v1248
      %1463 = vmatprep.mubr.bf16.mxu0 %v942
      %1464 = vmatmul.mubr.bf16.gmra.mrb[0].mxu0 %v941
      %v1465 = vpop.f32.mrb[0].mxu0
      %v1466 = vadd.f32 %v935, %v1465
      %v1467 = vpop.f32.mrb[0].mxu0
      %v1468 = vadd.f32 %v937, %v1467
      %v1469 = vpop.f32.mrb[0].mxu0
      %v1470 = vpop.f32.mrb[0].mxu0
      %1471 = vdwg.mxu0
      %1472 = vmatprep.subr.bf16.mxu0 %v1253
      %1473 = vmatpush1.bf16.msra.mxu0 %v1252
      %1474 = vmatprep.subr.bf16.mxu0 %v1257
      %1475 = vmatpush1.bf16.msra.mxu0 %v1256
      %1476 = vmatprep.subr.bf16.mxu0 %v1261
      %1477 = vmatpush1.bf16.msra.mxu0 %v1260
      %1478 = vmatprep.subr.bf16.mxu0 %v1265
      %1479 = vmatpush1.bf16.msra.mxu0 %v1264
      %1480 = vmatprep.subr.bf16.mxu0 0
      %1481 = vmatpush1.bf16.msra.mxu0 0
      %1482 = vmatprep.subr.bf16.mxu0 0
      %1483 = vmatpush1.bf16.msra.mxu0 0
      %1484 = vmatprep.subr.bf16.mxu0 0
      %1485 = vmatpush1.bf16.msra.mxu0 0
      %1486 = vmatprep.subr.bf16.mxu0 0
      %1487 = vmatpush1.bf16.msra.mxu0 0
      %1488 = vmatprep.subr.bf16.mxu0 0
      %1489 = vmatpush1.bf16.msra.mxu0 0
      %1490 = vmatprep.subr.bf16.mxu0 0
      %1491 = vmatpush1.bf16.msra.mxu0 0
      %1492 = vmatprep.subr.bf16.mxu0 0
      %1493 = vmatpush1.bf16.msra.mxu0 0
      %1494 = vmatprep.subr.bf16.mxu0 0
      %1495 = vmatpush1.bf16.msra.mxu0 0
      %1496 = vmatprep.subr.bf16.mxu0 0
      %1497 = vmatpush1.bf16.msra.mxu0 0
      %1498 = vmatprep.subr.bf16.mxu0 0
      %1499 = vmatpush1.bf16.msra.mxu0 0
      %1500 = vmatprep.subr.bf16.mxu0 0
      %1501 = vmatpush1.bf16.msra.mxu0 0
      %1502 = vmatprep.subr.bf16.mxu0 0
      %1503 = vmatpush1.bf16.msra.mxu0 0
      %1504 = vmatprep.mubr.bf16.mxu0 0
      %1505 = vmatmul.mubr.bf16.gmra.mrb[0].mxu0 %v1347
      %v1506 = vpop.f32.mrb[0].mxu0
      %v1507 = vadd.f32 %v1466, %v1506
      %v1508 = vpop.f32.mrb[0].mxu0
      %v1509 = vadd.f32 %v1468, %v1508
      %v1510 = vpop.f32.mrb[0].mxu0
      %v1511 = vpop.f32.mrb[0].mxu0
      %1512 = vdwg.mxu0
      %s1513 = scalar_lea.vmem %s1, 1280
      %v1514 = vld [vmem:[%s1513] sm:$0xff]
      %v1515 = vld [vmem:[%s1513 + $0x8] sm:$0xff]
      %v1516 = vld [vmem:[%s1513 + $0x10] sm:$0xff]
      %v1517 = vld [vmem:[%s1513 + $0x18] sm:$0xff]
      %v1518 = vld [vmem:[%s1513 + $0x20] sm:$0xff]
      %v1519 = vld [vmem:[%s1513 + $0x28] sm:$0xff]
      %v1520 = vld [vmem:[%s1513 + $0x30] sm:$0xff]
      %v1521 = vld [vmem:[%s1513 + $0x38] sm:$0xff]
      %v1522 = vld [vmem:[%s1513 + $0x40] sm:$0xff]
      %v1523 = vld [vmem:[%s1513 + $0x48] sm:$0xff]
      %v1524 = vld [vmem:[%s1513 + $0x50] sm:$0xff]
      %v1525 = vld [vmem:[%s1513 + $0x58] sm:$0xff]
      %v1526 = vld [vmem:[%s1513 + $0x60] sm:$0xff]
      %v1527 = vld [vmem:[%s1513 + $0x68] sm:$0xff]
      %v1528 = vld [vmem:[%s1513 + $0x70] sm:$0xff]
      %v1529 = vld [vmem:[%s1513 + $0x78] sm:$0xff]
      %v1530 = vld [vmem:[%s1513 + $0x80] sm:$0xff]
      %v1531 = vld [vmem:[%s1513 + $0x88] sm:$0xff]
      %v1532 = vld [vmem:[%s1513 + $0x90] sm:$0xff]
      %v1533 = vld [vmem:[%s1513 + $0x98] sm:$0xff]
      %v1534 = vld [vmem:[%s1513 + $0xa0] sm:$0xff]
      %v1535 = vld [vmem:[%s1513 + $0xa8] sm:$0xff]
      %v1536 = vld [vmem:[%s1513 + $0xb0] sm:$0xff]
      %v1537 = vld [vmem:[%s1513 + $0xb8] sm:$0xff]
      %v1538 = vld [vmem:[%s1513 + $0xc0] sm:$0xff]
      %v1539 = vld [vmem:[%s1513 + $0xc8] sm:$0xff]
      %v1540 = vld [vmem:[%s1513 + $0xd0] sm:$0xff]
      %v1541 = vld [vmem:[%s1513 + $0xd8] sm:$0xff]
      %v1542 = vld [vmem:[%s1513 + $0xe0] sm:$0xff]
      %v1543 = vld [vmem:[%s1513 + $0xe8] sm:$0xff]
      %v1544 = vld [vmem:[%s1513 + $0xf0] sm:$0xff]
      %v1545 = vld [vmem:[%s1513 + $0xf8] sm:$0xff]
      %v1546 = vld [vmem:[%s1513 + $0x100] sm:$0xff]
      %v1547 = vld [vmem:[%s1513 + $0x108] sm:$0xff]
      %v1548 = vld [vmem:[%s1513 + $0x110] sm:$0xff]
      %v1549 = vld [vmem:[%s1513 + $0x118] sm:$0xff]
      %v1550 = vld [vmem:[%s1513 + $0x120] sm:$0xff]
      %v1551 = vld [vmem:[%s1513 + $0x128] sm:$0xff]
      %v1552 = vld [vmem:[%s1513 + $0x130] sm:$0xff]
      %v1553 = vld [vmem:[%s1513 + $0x138] sm:$0xff]
      %v1554 = vld [vmem:[%s1513 + $0x140] sm:$0xff]
      %v1555 = vld [vmem:[%s1513 + $0x148] sm:$0xff]
      %v1556 = vld [vmem:[%s1513 + $0x150] sm:$0xff]
      %v1557 = vld [vmem:[%s1513 + $0x158] sm:$0xff]
      %v1558 = vld [vmem:[%s1513 + $0x160] sm:$0xff]
      %v1559 = vld [vmem:[%s1513 + $0x168] sm:$0xff]
      %v1560 = vld [vmem:[%s1513 + $0x170] sm:$0xff]
      %v1561 = vld [vmem:[%s1513 + $0x178] sm:$0xff]
      %v1562 = vld [vmem:[%s1513 + $0x180] sm:$0xff]
      %v1563 = vld [vmem:[%s1513 + $0x188] sm:$0xff]
      %v1564 = vld [vmem:[%s1513 + $0x190] sm:$0xff]
      %v1565 = vld [vmem:[%s1513 + $0x198] sm:$0xff]
      %v1566 = vld [vmem:[%s1513 + $0x1a0] sm:$0xff]
      %v1567 = vld [vmem:[%s1513 + $0x1a8] sm:$0xff]
      %v1568 = vld [vmem:[%s1513 + $0x1b0] sm:$0xff]
      %v1569 = vld [vmem:[%s1513 + $0x1b8] sm:$0xff]
      %v1570 = vld [vmem:[%s1513 + $0x1c0] sm:$0xff]
      %v1571 = vld [vmem:[%s1513 + $0x1c8] sm:$0xff]
      %v1572 = vld [vmem:[%s1513 + $0x1d0] sm:$0xff]
      %v1573 = vld [vmem:[%s1513 + $0x1d8] sm:$0xff]
      %v1574 = vld [vmem:[%s1513 + $0x1e0] sm:$0xff]
      %v1575 = vld [vmem:[%s1513 + $0x1e8] sm:$0xff]
      %v1576 = vld [vmem:[%s1513 + $0x1f0] sm:$0xff]
      %v1577 = vld [vmem:[%s1513 + $0x1f8] sm:$0xff]
      %v1578 = vld [vmem:[%s1513 + $0x200] sm:$0xff]
      %v1579 = vld [vmem:[%s1513 + $0x208] sm:$0xff]
      %v1580 = vld [vmem:[%s1513 + $0x210] sm:$0xff]
      %v1581 = vld [vmem:[%s1513 + $0x218] sm:$0xff]
      %v1582 = vld [vmem:[%s1513 + $0x220] sm:$0xff]
      %v1583 = vld [vmem:[%s1513 + $0x228] sm:$0xff]
      %v1584 = vld [vmem:[%s1513 + $0x230] sm:$0xff]
      %v1585 = vld [vmem:[%s1513 + $0x238] sm:$0xff]
      %v1586 = vld [vmem:[%s1513 + $0x240] sm:$0xff]
      %v1587 = vld [vmem:[%s1513 + $0x248] sm:$0xff]
      %v1588 = vld [vmem:[%s1513 + $0x250] sm:$0xff]
      %v1589 = vld [vmem:[%s1513 + $0x258] sm:$0xff]
      %v1590 = vld [vmem:[%s1513 + $0x260] sm:$0xff]
      %v1591 = vld [vmem:[%s1513 + $0x268] sm:$0xff]
      %v1592 = vld [vmem:[%s1513 + $0x270] sm:$0xff]
      %v1593 = vld [vmem:[%s1513 + $0x278] sm:$0xff]
      %v1594 = vrot.slane %v347, 1
      %v1595 = vrot.slane %v348, 1
      %v1596 = vrot.slane %v349, 1
      %v1679 = vunpack.c.l.b16 %v1514
      %v1680 = vunpack.c.h.b16 %v1514
      %v1681 = vunpack.c.l.b16 %v1515
      %v1682 = vunpack.c.h.b16 %v1515
      %v1683 = vunpack.c.l.b16 %v1516
      %v1684 = vunpack.c.h.b16 %v1516
      %v1685 = vunpack.c.l.b16 %v1517
      %v1686 = vunpack.c.h.b16 %v1517
      %v1687 = vunpack.c.l.b16 %v1518
      %v1688 = vunpack.c.h.b16 %v1518
      %v1689 = vunpack.c.l.b16 %v1519
      %v1690 = vunpack.c.h.b16 %v1519
      %v1691 = vunpack.c.l.b16 %v1520
      %v1692 = vunpack.c.h.b16 %v1520
      %v1693 = vunpack.c.l.b16 %v1521
      %v1694 = vunpack.c.h.b16 %v1521
      %v1695 = vunpack.c.l.b16 %v1522
      %v1696 = vunpack.c.h.b16 %v1522
      %v1697 = vunpack.c.l.b16 %v1523
      %v1698 = vunpack.c.h.b16 %v1523
      %v1699 = vunpack.c.l.b16 %v1524
      %v1700 = vunpack.c.h.b16 %v1524
      %v1701 = vunpack.c.l.b16 %v1525
      %v1702 = vunpack.c.h.b16 %v1525
      %v1703 = vunpack.c.l.b16 %v1526
      %v1704 = vunpack.c.h.b16 %v1526
      %v1705 = vunpack.c.l.b16 %v1527
      %v1706 = vunpack.c.h.b16 %v1527
      %v1707 = vunpack.c.l.b16 %v1528
      %v1708 = vunpack.c.h.b16 %v1528
      %v1709 = vunpack.c.l.b16 %v1529
      %v1710 = vunpack.c.h.b16 %v1529
      %v1711 = vunpack.c.l.b16 %v1530
      %v1712 = vunpack.c.h.b16 %v1530
      %v1713 = vunpack.c.l.b16 %v1531
      %v1714 = vunpack.c.h.b16 %v1531
      %v1715 = vunpack.c.l.b16 %v1532
      %v1716 = vunpack.c.h.b16 %v1532
      %v1717 = vunpack.c.l.b16 %v1533
      %v1718 = vunpack.c.h.b16 %v1533
      %v1719 = vunpack.c.l.b16 %v1534
      %v1720 = vunpack.c.h.b16 %v1534
      %v1721 = vunpack.c.l.b16 %v1535
      %v1722 = vunpack.c.h.b16 %v1535
      %v1723 = vunpack.c.l.b16 %v1536
      %v1724 = vunpack.c.h.b16 %v1536
      %v1725 = vunpack.c.l.b16 %v1537
      %v1726 = vunpack.c.h.b16 %v1537
      %v1727 = vunpack.c.l.b16 %v1538
      %v1728 = vunpack.c.h.b16 %v1538
      %v1729 = vunpack.c.l.b16 %v1539
      %v1730 = vunpack.c.h.b16 %v1539
      %v1731 = vunpack.c.l.b16 %v1540
      %v1732 = vunpack.c.h.b16 %v1540
      %v1733 = vunpack.c.l.b16 %v1541
      %v1734 = vunpack.c.h.b16 %v1541
      %v1735 = vunpack.c.l.b16 %v1542
      %v1736 = vunpack.c.h.b16 %v1542
      %v1737 = vunpack.c.l.b16 %v1543
      %v1738 = vunpack.c.h.b16 %v1543
      %v1739 = vunpack.c.l.b16 %v1544
      %v1740 = vunpack.c.h.b16 %v1544
      %v1741 = vunpack.c.l.b16 %v1545
      %v1742 = vunpack.c.h.b16 %v1545
      %v1743 = vunpack.c.l.b16 %v1546
      %v1744 = vunpack.c.h.b16 %v1546
      %v1745 = vunpack.c.l.b16 %v1547
      %v1746 = vunpack.c.h.b16 %v1547
      %v1747 = vunpack.c.l.b16 %v1548
      %v1748 = vunpack.c.h.b16 %v1548
      %v1749 = vunpack.c.l.b16 %v1549
      %v1750 = vunpack.c.h.b16 %v1549
      %v1751 = vunpack.c.l.b16 %v1550
      %v1752 = vunpack.c.h.b16 %v1550
      %v1753 = vunpack.c.l.b16 %v1551
      %v1754 = vunpack.c.h.b16 %v1551
      %v1755 = vunpack.c.l.b16 %v1552
      %v1756 = vunpack.c.h.b16 %v1552
      %v1757 = vunpack.c.l.b16 %v1553
      %v1758 = vunpack.c.h.b16 %v1553
      %v1759 = vunpack.c.l.b16 %v1554
      %v1760 = vunpack.c.h.b16 %v1554
      %v1761 = vunpack.c.l.b16 %v1555
      %v1762 = vunpack.c.h.b16 %v1555
      %v1763 = vunpack.c.l.b16 %v1556
      %v1764 = vunpack.c.h.b16 %v1556
      %v1765 = vunpack.c.l.b16 %v1557
      %v1766 = vunpack.c.h.b16 %v1557
      %v1767 = vunpack.c.l.b16 %v1558
      %v1768 = vunpack.c.h.b16 %v1558
      %v1769 = vunpack.c.l.b16 %v1559
      %v1770 = vunpack.c.h.b16 %v1559
      %v1771 = vunpack.c.l.b16 %v1560
      %v1772 = vunpack.c.h.b16 %v1560
      %v1773 = vunpack.c.l.b16 %v1561
      %v1774 = vunpack.c.h.b16 %v1561
      %v1775 = vunpack.c.l.b16 %v1562
      %v1776 = vunpack.c.h.b16 %v1562
      %v1777 = vunpack.c.l.b16 %v1563
      %v1778 = vunpack.c.h.b16 %v1563
      %v1779 = vunpack.c.l.b16 %v1564
      %v1780 = vunpack.c.h.b16 %v1564
      %v1781 = vunpack.c.l.b16 %v1565
      %v1782 = vunpack.c.h.b16 %v1565
      %v1783 = vunpack.c.l.b16 %v1566
      %v1784 = vunpack.c.h.b16 %v1566
      %v1785 = vunpack.c.l.b16 %v1567
      %v1786 = vunpack.c.h.b16 %v1567
      %v1787 = vunpack.c.l.b16 %v1568
      %v1788 = vunpack.c.h.b16 %v1568
      %v1789 = vunpack.c.l.b16 %v1569
      %v1790 = vunpack.c.h.b16 %v1569
      %v1791 = vunpack.c.l.b16 %v1570
      %v1792 = vunpack.c.h.b16 %v1570
      %v1793 = vunpack.c.l.b16 %v1571
      %v1794 = vunpack.c.h.b16 %v1571
      %v1795 = vunpack.c.l.b16 %v1572
      %v1796 = vunpack.c.h.b16 %v1572
      %v1797 = vunpack.c.l.b16 %v1573
      %v1798 = vunpack.c.h.b16 %v1573
      %v1799 = vunpack.c.l.b16 %v1574
      %v1800 = vunpack.c.h.b16 %v1574
      %v1801 = vunpack.c.l.b16 %v1575
      %v1802 = vunpack.c.h.b16 %v1575
      %v1803 = vunpack.c.l.b16 %v1576
      %v1804 = vunpack.c.h.b16 %v1576
      %v1805 = vunpack.c.l.b16 %v1577
      %v1806 = vunpack.c.h.b16 %v1577
      %v1807 = vunpack.c.l.b16 %v1578
      %v1808 = vunpack.c.h.b16 %v1578
      %v1809 = vunpack.c.l.b16 %v1579
      %v1810 = vunpack.c.h.b16 %v1579
      %v1811 = vunpack.c.l.b16 %v1580
      %v1812 = vunpack.c.h.b16 %v1580
      %v1813 = vunpack.c.l.b16 %v1581
      %v1814 = vunpack.c.h.b16 %v1581
      %v1815 = vunpack.c.l.b16 %v1582
      %v1816 = vunpack.c.h.b16 %v1582
      %v1817 = vunpack.c.l.b16 %v1583
      %v1818 = vunpack.c.h.b16 %v1583
      %v1819 = vunpack.c.l.b16 %v1584
      %v1820 = vunpack.c.h.b16 %v1584
      %v1821 = vunpack.c.l.b16 %v1585
      %v1822 = vunpack.c.h.b16 %v1585
      %v1823 = vunpack.c.l.b16 %v1586
      %v1824 = vunpack.c.h.b16 %v1586
      %v1825 = vunpack.c.l.b16 %v1587
      %v1826 = vunpack.c.h.b16 %v1587
      %v1827 = vunpack.c.l.b16 %v1588
      %v1828 = vunpack.c.h.b16 %v1588
      %v1829 = vunpack.c.l.b16 %v1589
      %v1830 = vunpack.c.h.b16 %v1589
      %v1831 = vunpack.c.l.b16 %v1590
      %v1832 = vunpack.c.h.b16 %v1590
      %v1833 = vunpack.c.l.b16 %v1591
      %v1834 = vunpack.c.h.b16 %v1591
      %v1835 = vunpack.c.l.b16 %v1592
      %v1836 = vunpack.c.h.b16 %v1592
      %v1837 = vunpack.c.l.b16 %v1593
      %v1838 = vunpack.c.h.b16 %v1593
      %v1839 = vpack.c.b16 %v1683, %v1679
      %v1840 = vpack.c.b16 %v1684, %v1680
      %v1841 = vpack.c.b16 %v1685, %v1681
      %v1842 = vpack.c.b16 %v1686, %v1682
      %v1843 = vpack.c.b16 %v1691, %v1687
      %v1844 = vpack.c.b16 %v1692, %v1688
      %v1845 = vpack.c.b16 %v1693, %v1689
      %v1846 = vpack.c.b16 %v1694, %v1690
      %v1847 = vpack.c.b16 %v1699, %v1695
      %v1848 = vpack.c.b16 %v1700, %v1696
      %v1849 = vpack.c.b16 %v1701, %v1697
      %v1850 = vpack.c.b16 %v1702, %v1698
      %v1851 = vpack.c.b16 %v1707, %v1703
      %v1852 = vpack.c.b16 %v1708, %v1704
      %v1853 = vpack.c.b16 %v1709, %v1705
      %v1854 = vpack.c.b16 %v1710, %v1706
      %v1855 = vpack.c.b16 %v1715, %v1711
      %v1856 = vpack.c.b16 %v1716, %v1712
      %v1857 = vpack.c.b16 %v1717, %v1713
      %v1858 = vpack.c.b16 %v1718, %v1714
      %v1859 = vpack.c.b16 %v1723, %v1719
      %v1860 = vpack.c.b16 %v1724, %v1720
      %v1861 = vpack.c.b16 %v1725, %v1721
      %v1862 = vpack.c.b16 %v1726, %v1722
      %v1863 = vpack.c.b16 %v1731, %v1727
      %v1864 = vpack.c.b16 %v1732, %v1728
      %v1865 = vpack.c.b16 %v1733, %v1729
      %v1866 = vpack.c.b16 %v1734, %v1730
      %v1867 = vpack.c.b16 %v1739, %v1735
      %v1868 = vpack.c.b16 %v1740, %v1736
      %v1869 = vpack.c.b16 %v1741, %v1737
      %v1870 = vpack.c.b16 %v1742, %v1738
      %v1871 = vpack.c.b16 %v1747, %v1743
      %v1872 = vpack.c.b16 %v1748, %v1744
      %v1873 = vpack.c.b16 %v1749, %v1745
      %v1874 = vpack.c.b16 %v1750, %v1746
      %v1875 = vpack.c.b16 %v1755, %v1751
      %v1876 = vpack.c.b16 %v1756, %v1752
      %v1877 = vpack.c.b16 %v1757, %v1753
      %v1878 = vpack.c.b16 %v1758, %v1754
      %v1879 = vpack.c.b16 %v1763, %v1759
      %v1880 = vpack.c.b16 %v1764, %v1760
      %v1881 = vpack.c.b16 %v1765, %v1761
      %v1882 = vpack.c.b16 %v1766, %v1762
      %v1883 = vpack.c.b16 %v1771, %v1767
      %v1884 = vpack.c.b16 %v1772, %v1768
      %v1885 = vpack.c.b16 %v1773, %v1769
      %v1886 = vpack.c.b16 %v1774, %v1770
      %v1887 = vpack.c.b16 %v1779, %v1775
      %v1888 = vpack.c.b16 %v1780, %v1776
      %v1889 = vpack.c.b16 %v1781, %v1777
      %v1890 = vpack.c.b16 %v1782, %v1778
      %v1891 = vpack.c.b16 %v1787, %v1783
      %v1892 = vpack.c.b16 %v1788, %v1784
      %v1893 = vpack.c.b16 %v1789, %v1785
      %v1894 = vpack.c.b16 %v1790, %v1786
      %v1895 = vpack.c.b16 %v1795, %v1791
      %v1896 = vpack.c.b16 %v1796, %v1792
      %v1897 = vpack.c.b16 %v1797, %v1793
      %v1898 = vpack.c.b16 %v1798, %v1794
      %v1899 = vpack.c.b16 %v1803, %v1799
      %v1900 = vpack.c.b16 %v1804, %v1800
      %v1901 = vpack.c.b16 %v1805, %v1801
      %v1902 = vpack.c.b16 %v1806, %v1802
      %v1903 = vpack.c.b16 %v1811, %v1807
      %v1904 = vpack.c.b16 %v1812, %v1808
      %v1905 = vpack.c.b16 %v1813, %v1809
      %v1906 = vpack.c.b16 %v1814, %v1810
      %v1907 = vpack.c.b16 %v1819, %v1815
      %v1908 = vpack.c.b16 %v1820, %v1816
      %v1909 = vpack.c.b16 %v1821, %v1817
      %v1910 = vpack.c.b16 %v1822, %v1818
      %v1911 = vpack.c.b16 %v1827, %v1823
      %v1912 = vpack.c.b16 %v1828, %v1824
      %v1913 = vpack.c.b16 %v1829, %v1825
      %v1914 = vpack.c.b16 %v1830, %v1826
      %v1915 = vpack.c.b16 %v1835, %v1831
      %v1916 = vpack.c.b16 %v1836, %v1832
      %v1917 = vpack.c.b16 %v1837, %v1833
      %v1918 = vpack.c.b16 %v1838, %v1834
      %v2000 = vsel %vm773, %v1596, 0
      %2002 = vmatprep.subr.bf16.mxu0 %v1840
      %2003 = vmatpush1.bf16.msra.mxu0 %v1839
      %2004 = vmatprep.subr.bf16.mxu0 %v1844
      %2005 = vmatpush1.bf16.msra.mxu0 %v1843
      %2006 = vmatprep.subr.bf16.mxu0 %v1848
      %2007 = vmatpush1.bf16.msra.mxu0 %v1847
      %2008 = vmatprep.subr.bf16.mxu0 %v1852
      %2009 = vmatpush1.bf16.msra.mxu0 %v1851
      %2010 = vmatprep.subr.bf16.mxu0 %v1856
      %2011 = vmatpush1.bf16.msra.mxu0 %v1855
      %2012 = vmatprep.subr.bf16.mxu0 %v1860
      %2013 = vmatpush1.bf16.msra.mxu0 %v1859
      %2014 = vmatprep.subr.bf16.mxu0 %v1864
      %2015 = vmatpush1.bf16.msra.mxu0 %v1863
      %2016 = vmatprep.subr.bf16.mxu0 %v1868
      %2017 = vmatpush1.bf16.msra.mxu0 %v1867
      %2018 = vmatprep.subr.bf16.mxu0 %v1872
      %2019 = vmatpush1.bf16.msra.mxu0 %v1871
      %2020 = vmatprep.subr.bf16.mxu0 %v1876
      %2021 = vmatpush1.bf16.msra.mxu0 %v1875
      %2022 = vmatprep.subr.bf16.mxu0 %v1880
      %2023 = vmatpush1.bf16.msra.mxu0 %v1879
      %2024 = vmatprep.subr.bf16.mxu0 %v1884
      %2025 = vmatpush1.bf16.msra.mxu0 %v1883
      %2026 = vmatprep.subr.bf16.mxu0 %v1888
      %2027 = vmatpush1.bf16.msra.mxu0 %v1887
      %2028 = vmatprep.subr.bf16.mxu0 %v1892
      %2029 = vmatpush1.bf16.msra.mxu0 %v1891
      %2030 = vmatprep.subr.bf16.mxu0 %v1896
      %2031 = vmatpush1.bf16.msra.mxu0 %v1895
      %2032 = vmatprep.subr.bf16.mxu0 %v1900
      %2033 = vmatpush1.bf16.msra.mxu0 %v1899
      %2034 = vmatprep.mubr.bf16.mxu0 %v1595
      %2035 = vmatmul.mubr.bf16.gmra.mrb[0].mxu0 %v1594
      %v2036 = vpop.f32.mrb[0].mxu0
      %v2037 = vadd.f32 0.0, %v2036
      %v2038 = vpop.f32.mrb[0].mxu0
      %v2039 = vadd.f32 0.0, %v2038
      %v2040 = vpop.f32.mrb[0].mxu0
      %v2041 = vpop.f32.mrb[0].mxu0
      %2042 = vdwg.mxu0
      %2043 = vmatprep.subr.bf16.mxu0 %v1904
      %2044 = vmatpush1.bf16.msra.mxu0 %v1903
      %2045 = vmatprep.subr.bf16.mxu0 %v1908
      %2046 = vmatpush1.bf16.msra.mxu0 %v1907
      %2047 = vmatprep.subr.bf16.mxu0 %v1912
      %2048 = vmatpush1.bf16.msra.mxu0 %v1911
      %2049 = vmatprep.subr.bf16.mxu0 %v1916
      %2050 = vmatpush1.bf16.msra.mxu0 %v1915
      %2051 = vmatprep.subr.bf16.mxu0 0
      %2052 = vmatpush1.bf16.msra.mxu0 0
      %2053 = vmatprep.subr.bf16.mxu0 0
      %2054 = vmatpush1.bf16.msra.mxu0 0
      %2055 = vmatprep.subr.bf16.mxu0 0
      %2056 = vmatpush1.bf16.msra.mxu0 0
      %2057 = vmatprep.subr.bf16.mxu0 0
      %2058 = vmatpush1.bf16.msra.mxu0 0
      %2059 = vmatprep.subr.bf16.mxu0 0
      %2060 = vmatpush1.bf16.msra.mxu0 0
      %2061 = vmatprep.subr.bf16.mxu0 0
      %2062 = vmatpush1.bf16.msra.mxu0 0
      %2063 = vmatprep.subr.bf16.mxu0 0
      %2064 = vmatpush1.bf16.msra.mxu0 0
      %2065 = vmatprep.subr.bf16.mxu0 0
      %2066 = vmatpush1.bf16.msra.mxu0 0
      %2067 = vmatprep.subr.bf16.mxu0 0
      %2068 = vmatpush1.bf16.msra.mxu0 0
      %2069 = vmatprep.subr.bf16.mxu0 0
      %2070 = vmatpush1.bf16.msra.mxu0 0
      %2071 = vmatprep.subr.bf16.mxu0 0
      %2072 = vmatpush1.bf16.msra.mxu0 0
      %2073 = vmatprep.subr.bf16.mxu0 0
      %2074 = vmatpush1.bf16.msra.mxu0 0
      %2075 = vmatprep.mubr.bf16.mxu0 0
      %2076 = vmatmul.mubr.bf16.gmra.mrb[0].mxu0 %v2000
      %v2077 = vpop.f32.mrb[0].mxu0
      %v2078 = vadd.f32 %v2037, %v2077
      %v2079 = vpop.f32.mrb[0].mxu0
      %v2080 = vadd.f32 %v2039, %v2079
      %v2081 = vpop.f32.mrb[0].mxu0
      %v2082 = vpop.f32.mrb[0].mxu0
      %2083 = vdwg.mxu0
      %2084 = vmatprep.subr.bf16.mxu0 %v1842
      %2085 = vmatpush1.bf16.msra.mxu0 %v1841
      %2086 = vmatprep.subr.bf16.mxu0 %v1846
      %2087 = vmatpush1.bf16.msra.mxu0 %v1845
      %2088 = vmatprep.subr.bf16.mxu0 %v1850
      %2089 = vmatpush1.bf16.msra.mxu0 %v1849
      %2090 = vmatprep.subr.bf16.mxu0 %v1854
      %2091 = vmatpush1.bf16.msra.mxu0 %v1853
      %2092 = vmatprep.subr.bf16.mxu0 %v1858
      %2093 = vmatpush1.bf16.msra.mxu0 %v1857
      %2094 = vmatprep.subr.bf16.mxu0 %v1862
      %2095 = vmatpush1.bf16.msra.mxu0 %v1861
      %2096 = vmatprep.subr.bf16.mxu0 %v1866
      %2097 = vmatpush1.bf16.msra.mxu0 %v1865
      %2098 = vmatprep.subr.bf16.mxu0 %v1870
      %2099 = vmatpush1.bf16.msra.mxu0 %v1869
      %2100 = vmatprep.subr.bf16.mxu0 %v1874
      %2101 = vmatpush1.bf16.msra.mxu0 %v1873
      %2102 = vmatprep.subr.bf16.mxu0 %v1878
      %2103 = vmatpush1.bf16.msra.mxu0 %v1877
      %2104 = vmatprep.subr.bf16.mxu0 %v1882
      %2105 = vmatpush1.bf16.msra.mxu0 %v1881
      %2106 = vmatprep.subr.bf16.mxu0 %v1886
      %2107 = vmatpush1.bf16.msra.mxu0 %v1885
      %2108 = vmatprep.subr.bf16.mxu0 %v1890
      %2109 = vmatpush1.bf16.msra.mxu0 %v1889
      %2110 = vmatprep.subr.bf16.mxu0 %v1894
      %2111 = vmatpush1.bf16.msra.mxu0 %v1893
      %2112 = vmatprep.subr.bf16.mxu0 %v1898
      %2113 = vmatpush1.bf16.msra.mxu0 %v1897
      %2114 = vmatprep.subr.bf16.mxu0 %v1902
      %2115 = vmatpush1.bf16.msra.mxu0 %v1901
      %2116 = vmatprep.mubr.bf16.mxu0 %v1595
      %2117 = vmatmul.mubr.bf16.gmra.mrb[0].mxu0 %v1594
      %v2118 = vpop.f32.mrb[0].mxu0
      %v2119 = vadd.f32 0.0, %v2118
      %v2120 = vpop.f32.mrb[0].mxu0
      %v2121 = vadd.f32 0.0, %v2120
      %v2122 = vpop.f32.mrb[0].mxu0
      %v2123 = vpop.f32.mrb[0].mxu0
      %2124 = vdwg.mxu0
      %2125 = vmatprep.subr.bf16.mxu0 %v1906
      %2126 = vmatpush1.bf16.msra.mxu0 %v1905
      %2127 = vmatprep.subr.bf16.mxu0 %v1910
      %2128 = vmatpush1.bf16.msra.mxu0 %v1909
      %2129 = vmatprep.subr.bf16.mxu0 %v1914
      %2130 = vmatpush1.bf16.msra.mxu0 %v1913
      %2131 = vmatprep.subr.bf16.mxu0 %v1918
      %2132 = vmatpush1.bf16.msra.mxu0 %v1917
      %2133 = vmatprep.subr.bf16.mxu0 0
      %2134 = vmatpush1.bf16.msra.mxu0 0
      %2135 = vmatprep.subr.bf16.mxu0 0
      %2136 = vmatpush1.bf16.msra.mxu0 0
      %2137 = vmatprep.subr.bf16.mxu0 0
      %2138 = vmatpush1.bf16.msra.mxu0 0
      %2139 = vmatprep.subr.bf16.mxu0 0
      %2140 = vmatpush1.bf16.msra.mxu0 0
      %2141 = vmatprep.subr.bf16.mxu0 0
      %2142 = vmatpush1.bf16.msra.mxu0 0
      %2143 = vmatprep.subr.bf16.mxu0 0
      %2144 = vmatpush1.bf16.msra.mxu0 0
      %2145 = vmatprep.subr.bf16.mxu0 0
      %2146 = vmatpush1.bf16.msra.mxu0 0
      %2147 = vmatprep.subr.bf16.mxu0 0
      %2148 = vmatpush1.bf16.msra.mxu0 0
      %2149 = vmatprep.subr.bf16.mxu0 0
      %2150 = vmatpush1.bf16.msra.mxu0 0
      %2151 = vmatprep.subr.bf16.mxu0 0
      %2152 = vmatpush1.bf16.msra.mxu0 0
      %2153 = vmatprep.subr.bf16.mxu0 0
      %2154 = vmatpush1.bf16.msra.mxu0 0
      %2155 = vmatprep.subr.bf16.mxu0 0
      %2156 = vmatpush1.bf16.msra.mxu0 0
      %2157 = vmatprep.mubr.bf16.mxu0 0
      %2158 = vmatmul.mubr.bf16.gmra.mrb[0].mxu0 %v2000
      %v2159 = vpop.f32.mrb[0].mxu0
      %v2160 = vadd.f32 %v2119, %v2159
      %v2161 = vpop.f32.mrb[0].mxu0
      %v2162 = vadd.f32 %v2121, %v2161
      %v2163 = vpop.f32.mrb[0].mxu0
      %v2164 = vpop.f32.mrb[0].mxu0
      %2165 = vdwg.mxu0
      %v2166 = vadd.f32 %v1425, %v2078
      %v2167 = vadd.f32 %v1427, %v2080
      %v2168 = vadd.f32 %v1507, %v2160
      %v2169 = vadd.f32 %v1509, %v2162
      %v2170 = vld [vmem:[%s2] sm:$0xf]
      %v2172 = vlaneseq
      %v2173 = vshrl.u32 %v2172, 7
      %v2174 = vsub.s32 0, %v2173
      %v2175 = vrot.slane %v2170, %v2174
      %v2176 = vlaneseq
      %v2177 = vshrl.u32 %v2176, 7
      %v2178 = vsub.s32 1, %v2177
      %v2179 = vrot.slane %v2170, %v2178
      %v2180 = vlaneseq
      %v2181 = vshrl.u32 %v2180, 7
      %v2182 = vsub.s32 2, %v2181
      %v2183 = vrot.slane %v2170, %v2182
      %v2184 = vlaneseq
      %v2185 = vshrl.u32 %v2184, 7
      %v2186 = vsub.s32 3, %v2185
      %v2187 = vrot.slane %v2170, %v2186
      %v2192 = vadd.f32 %v2166, %v2175
      %v2193 = vadd.f32 %v2167, %v2179
      %v2194 = vadd.f32 %v2168, %v2183
      %v2195 = vadd.f32 %v2169, %v2187
      %v2196 = vmax.f32 %v2192, 0.0
      %v2197 = vmax.f32 %v2193, 0.0
      %v2198 = vmax.f32 %v2194, 0.0
      %v2199 = vmax.f32 %v2195, 0.0
      %v2200 = vpack.c.bf16 %v2196, %v2196
      %v2201 = vpack.c.bf16 %v2197, %v2197
      %v2202 = vpack.c.bf16 %v2198, %v2198
      %v2203 = vpack.c.bf16 %v2199, %v2199
      %v2208 = vunpack.c.l.b16 %v2200
      %v2209 = vunpack.c.l.b16 %v2201
      %v2210 = vunpack.c.l.b16 %v2202
      %v2211 = vunpack.c.l.b16 %v2203
      %v2212 = vpack.c.b16 %v2209, %v2208
      %v2213 = vpack.c.b16 %v2211, %v2210
      %2216 = vst [vmem:[%s170] sm:$0xff] %v2212
      %2217 = vst [vmem:[%s170 + $0x8] sm:$0xff] %v2213
      %p2218 = scmp.lt.s32.totalorder %s14, 1
      %s2219 = scalar_select %p2218, %s14, 1
      %s2220 = smul.addr %s2219, 4
      %s2221 = smul.addr %s2220, 4
      %s2222 = scalar_lea.vmem %s3, %s2221
      // Predicated region
      $region33: #{net_forward.6} parent=31 // pred_check
        %p2223 = pneg %p100
      $region34: #{net_forward.6} parent=31 // pred_check_branch
        %2225 = sbr.rel (%p2223) target = $region36
      $region35: #{net_forward.6} parent=31 // pred_region
        _
      $region36: #{net_forward.6} parent=31 // pred_fallthru
        _
    $region32: #{net_forward.6} parent=5 // pred_fallthru
      _
    %p2226 = scmp.le.s32.totalorder 2, %s9
    // Predicated region
    $region37: #{net_forward.6} parent=5 // pred_check
      %p2227 = pneg %p2226
    $region38: #{net_forward.6} parent=5 // pred_check_branch
      %2229 = sbr.rel (%p2227) target = $region40
    $region39: #{net_forward.6} parent=5 // pred_region
      %s2230 = ssub.s32 %s9, 2
      // Predicated region
      $region41: #{net_forward.6} parent=39 // pred_check
        %p2231 = pneg %p106
      $region42: #{net_forward.6} parent=39 // pred_check_branch
        %2233 = sbr.rel (%p2231) target = $region44
      $region43: #{net_forward.6} parent=39 // pred_region
        %p2234 = scmp.lt.s32.totalorder %s15, 1
        %s2235 = scalar_select %p2234, %s15, 1
        %s2236 = smul.addr %s2235, 4
        %s2237 = smul.addr %s2236, 4
        %s2238 = scalar_lea.vmem %s3, %s2237
      $region44: #{net_forward.6} parent=39 // pred_fallthru
        _
    $region40: #{net_forward.6} parent=5 // pred_fallthru
      _
  $region6: #{net_forward.6} parent=0 // loop_footer
    %s13 = sadd.s32 1, %s9
  $region7: #{net_forward.6} parent=0 // loop_footer_branch
    %8 = sbr.rel target = $region3
  $region8: #{net_forward.6} parent=0 // loop_exit
    _

// kernel: net_forward.7
$region0: #{net_forward.7}
  #allocation0 [shape = 'u32[]', space=smem, size = 0x4, offset = 0x4, fixed_abs, tag = 'smem constant byte address 0x4 - core index']
  #allocation1 [shape = 'u32[144,128]{1,0:T(1,128)}', space=vmem, size = 0x12000, scoped, tag = 'internal scratch']
  %s0 = inlined_call_operand.vmem [shape: bf16[2,1024], index: 0, kind: input, shape index: {}]
  %s1 = inlined_call_operand.vmem [shape: bf16[1024,512], index: 1, kind: input, shape index: {}]
  %s2 = inlined_call_operand.vmem [shape: f32[1,512], index: 2, kind: input, shape index: {}]
  %s3 = inlined_call_operand.vmem [shape: bf16[512,256], index: 3, kind: input, shape index: {}]
  %s4 = inlined_call_operand.vmem [shape: f32[1,256], index: 4, kind: input, shape index: {}]
  %s5 = inlined_call_operand.vmem [shape: bf16[256,10], index: 5, kind: input, shape index: {}]
  %s6 = inlined_call_operand.vmem [shape: f32[1,10], index: 6, kind: input, shape index: {}]
  %s7 = inlined_call_operand.hbm [shape: f32[2,10], index: 7, kind: output, shape index: {}]
  %s8 = sld [smem:[#allocation0]]
  $region38: #{net_forward.7} parent=0
    _
  %s10 = ssub.s32 1, %s8
  %s11 = scalar_select 0, %s10, %s8
  $region1: #{net_forward.7} parent=0
    #allocation2 [shape = 'u8[1024]{0}', space=vmem, size = 0x400, scoped, tag = 'output window, operand 0, single buffered']
    #allocation3 [shape = 's32[1]{0}', space=sflag, size = 0x4, scoped, tag = 'scoped memory for net_forward.7']
    %12 = vsyncpa [#allocation3], 0
    // Predicated region
    $region2: #{net_forward.7} parent=1 // pred_check
      _
    $region3: #{net_forward.7} parent=1 // pred_check_branch
      %14 = sbr.rel (0) target = $region5
    $region4: #{net_forward.7} parent=1 // pred_region
      _
    $region5: #{net_forward.7} parent=1 // pred_fallthru
      _
    // Predicated region
    $region6: #{net_forward.7} parent=1 // pred_check
      _
    $region7: #{net_forward.7} parent=1 // pred_check_branch
      %16 = sbr.rel (0) target = $region9
    $region8: #{net_forward.7} parent=1 // pred_region
      _
    $region9: #{net_forward.7} parent=1 // pred_fallthru
      _
    // Predicated region
    $region10: #{net_forward.7} parent=1 // pred_check
      _
    $region11: #{net_forward.7} parent=1 // pred_check_branch
      %18 = sbr.rel (0) target = $region13
    $region12: #{net_forward.7} parent=1 // pred_region
      _
    $region13: #{net_forward.7} parent=1 // pred_fallthru
      _
    // Predicated region
    $region14: #{net_forward.7} parent=1 // pred_check
      _
    $region15: #{net_forward.7} parent=1 // pred_check_branch
      %20 = sbr.rel (0) target = $region17
    $region16: #{net_forward.7} parent=1 // pred_region
      _
    $region17: #{net_forward.7} parent=1 // pred_fallthru
      _
    // Predicated region
    $region18: #{net_forward.7} parent=1 // pred_check
      _
    $region19: #{net_forward.7} parent=1 // pred_check_branch
      %22 = sbr.rel (0) target = $region21
    $region20: #{net_forward.7} parent=1 // pred_region
      _
    $region21: #{net_forward.7} parent=1 // pred_fallthru
      _
    // Predicated region
    $region22: #{net_forward.7} parent=1 // pred_check
      _
    $region23: #{net_forward.7} parent=1 // pred_check_branch
      %24 = sbr.rel (0) target = $region25
    $region24: #{net_forward.7} parent=1 // pred_region
      _
    $region25: #{net_forward.7} parent=1 // pred_fallthru
      _
    // Predicated region
    $region26: #{net_forward.7} parent=1 // pred_check
      _
    $region27: #{net_forward.7} parent=1 // pred_check_branch
      %26 = sbr.rel (0) target = $region29
    $region28: #{net_forward.7} parent=1 // pred_region
      _
    $region29: #{net_forward.7} parent=1 // pred_fallthru
      _
    %v28 = vld [vmem:[%s0] sm:$0xff]
    %v29 = vld [vmem:[%s1] sm:$0xff]
    %v30 = vld [vmem:[%s1 + $0x8] sm:$0xff]
    %v31 = vld [vmem:[%s1 + $0x10] sm:$0xff]
    %v32 = vld [vmem:[%s1 + $0x18] sm:$0xff]
    %v33 = vld [vmem:[%s1 + $0x20] sm:$0xff]
    %v34 = vld [vmem:[%s1 + $0x28] sm:$0xff]
    %v35 = vld [vmem:[%s1 + $0x30] sm:$0xff]
    %v36 = vld [vmem:[%s1 + $0x38] sm:$0xff]
    %v37 = vld [vmem:[%s1 + $0x40] sm:$0xff]
    %v38 = vld [vmem:[%s1 + $0x48] sm:$0xff]
    %v39 = vld [vmem:[%s1 + $0x50] sm:$0xff]
    %v40 = vld [vmem:[%s1 + $0x58] sm:$0xff]
    %v41 = vld [vmem:[%s1 + $0x60] sm:$0xff]
    %v42 = vld [vmem:[%s1 + $0x68] sm:$0xff]
    %v43 = vld [vmem:[%s1 + $0x70] sm:$0xff]
    %v44 = vld [vmem:[%s1 + $0x78] sm:$0xff]
    %v45 = vld [vmem:[%s1 + $0x80] sm:$0xff]
    %v46 = vld [vmem:[%s1 + $0x88] sm:$0xff]
    %v47 = vld [vmem:[%s1 + $0x90] sm:$0xff]
    %v48 = vld [vmem:[%s1 + $0x98] sm:$0xff]
    %v49 = vld [vmem:[%s1 + $0xa0] sm:$0xff]
    %v50 = vld [vmem:[%s1 + $0xa8] sm:$0xff]
    %v51 = vld [vmem:[%s1 + $0xb0] sm:$0xff]
    %v52 = vld [vmem:[%s1 + $0xb8] sm:$0xff]
    %v53 = vld [vmem:[%s1 + $0xc0] sm:$0xff]
    %v54 = vld [vmem:[%s1 + $0xc8] sm:$0xff]
    %v55 = vld [vmem:[%s1 + $0xd0] sm:$0xff]
    %v56 = vld [vmem:[%s1 + $0xd8] sm:$0xff]
    %v57 = vld [vmem:[%s1 + $0xe0] sm:$0xff]
    %v58 = vld [vmem:[%s1 + $0xe8] sm:$0xff]
    %v59 = vld [vmem:[%s1 + $0xf0] sm:$0xff]
    %v60 = vld [vmem:[%s1 + $0xf8] sm:$0xff]
    %v61 = vld [vmem:[%s1 + $0x100] sm:$0xff]
    %v62 = vld [vmem:[%s1 + $0x108] sm:$0xff]
    %v63 = vld [vmem:[%s1 + $0x110] sm:$0xff]
    %v64 = vld [vmem:[%s1 + $0x118] sm:$0xff]
    %v65 = vld [vmem:[%s1 + $0x120] sm:$0xff]
    %v66 = vld [vmem:[%s1 + $0x128] sm:$0xff]
    %v67 = vld [vmem:[%s1 + $0x130] sm:$0xff]
    %v68 = vld [vmem:[%s1 + $0x138] sm:$0xff]
    %v69 = vld [vmem:[%s1 + $0x140] sm:$0xff]
    %v70 = vld [vmem:[%s1 + $0x148] sm:$0xff]
    %v71 = vld [vmem:[%s1 + $0x150] sm:$0xff]
    %v72 = vld [vmem:[%s1 + $0x158] sm:$0xff]
    %v73 = vld [vmem:[%s1 + $0x160] sm:$0xff]
    %v74 = vld [vmem:[%s1 + $0x168] sm:$0xff]
    %v75 = vld [vmem:[%s1 + $0x170] sm:$0xff]
    %v76 = vld [vmem:[%s1 + $0x178] sm:$0xff]
    %v77 = vld [vmem:[%s1 + $0x180] sm:$0xff]
    %v78 = vld [vmem:[%s1 + $0x188] sm:$0xff]
    %v79 = vld [vmem:[%s1 + $0x190] sm:$0xff]
    %v80 = vld [vmem:[%s1 + $0x198] sm:$0xff]
    %v81 = vld [vmem:[%s1 + $0x1a0] sm:$0xff]
    %v82 = vld [vmem:[%s1 + $0x1a8] sm:$0xff]
    %v83 = vld [vmem:[%s1 + $0x1b0] sm:$0xff]
    %v84 = vld [vmem:[%s1 + $0x1b8] sm:$0xff]
    %v85 = vld [vmem:[%s1 + $0x1c0] sm:$0xff]
    %v86 = vld [vmem:[%s1 + $0x1c8] sm:$0xff]
    %v87 = vld [vmem:[%s1 + $0x1d0] sm:$0xff]
    %v88 = vld [vmem:[%s1 + $0x1d8] sm:$0xff]
    %v89 = vld [vmem:[%s1 + $0x1e0] sm:$0xff]
    %v90 = vld [vmem:[%s1 + $0x1e8] sm:$0xff]
    %v91 = vld [vmem:[%s1 + $0x1f0] sm:$0xff]
    %v92 = vld [vmem:[%s1 + $0x1f8] sm:$0xff]
    %v93 = vld [vmem:[%s1 + $0x200] sm:$0xff]
    %v94 = vld [vmem:[%s1 + $0x208] sm:$0xff]
    %v95 = vld [vmem:[%s1 + $0x210] sm:$0xff]
    %v96 = vld [vmem:[%s1 + $0x218] sm:$0xff]
    %v97 = vld [vmem:[%s1 + $0x220] sm:$0xff]
    %v98 = vld [vmem:[%s1 + $0x228] sm:$0xff]
    %v99 = vld [vmem:[%s1 + $0x230] sm:$0xff]
    %v100 = vld [vmem:[%s1 + $0x238] sm:$0xff]
    %v101 = vld [vmem:[%s1 + $0x240] sm:$0xff]
    %v102 = vld [vmem:[%s1 + $0x248] sm:$0xff]
    %v103 = vld [vmem:[%s1 + $0x250] sm:$0xff]
    %v104 = vld [vmem:[%s1 + $0x258] sm:$0xff]
    %v105 = vld [vmem:[%s1 + $0x260] sm:$0xff]
    %v106 = vld [vmem:[%s1 + $0x268] sm:$0xff]
    %v107 = vld [vmem:[%s1 + $0x270] sm:$0xff]
    %v108 = vld [vmem:[%s1 + $0x278] sm:$0xff]
    %v109 = vld [vmem:[%s1 + $0x280] sm:$0xff]
    %v110 = vld [vmem:[%s1 + $0x288] sm:$0xff]
    %v111 = vld [vmem:[%s1 + $0x290] sm:$0xff]
    %v112 = vld [vmem:[%s1 + $0x298] sm:$0xff]
    %v113 = vld [vmem:[%s1 + $0x2a0] sm:$0xff]
    %v114 = vld [vmem:[%s1 + $0x2a8] sm:$0xff]
    %v115 = vld [vmem:[%s1 + $0x2b0] sm:$0xff]
    %v116 = vld [vmem:[%s1 + $0x2b8] sm:$0xff]
    %v117 = vld [vmem:[%s1 + $0x2c0] sm:$0xff]
    %v118 = vld [vmem:[%s1 + $0x2c8] sm:$0xff]
    %v119 = vld [vmem:[%s1 + $0x2d0] sm:$0xff]
    %v120 = vld [vmem:[%s1 + $0x2d8] sm:$0xff]
    %v121 = vld [vmem:[%s1 + $0x2e0] sm:$0xff]
    %v122 = vld [vmem:[%s1 + $0x2e8] sm:$0xff]
    %v123 = vld [vmem:[%s1 + $0x2f0] sm:$0xff]
    %v124 = vld [vmem:[%s1 + $0x2f8] sm:$0xff]
    %v125 = vld [vmem:[%s1 + $0x300] sm:$0xff]
    %v126 = vld [vmem:[%s1 + $0x308] sm:$0xff]
    %v127 = vld [vmem:[%s1 + $0x310] sm:$0xff]
    %v128 = vld [vmem:[%s1 + $0x318] sm:$0xff]
    %v129 = vld [vmem:[%s1 + $0x320] sm:$0xff]
    %v130 = vld [vmem:[%s1 + $0x328] sm:$0xff]
    %v131 = vld [vmem:[%s1 + $0x330] sm:$0xff]
    %v132 = vld [vmem:[%s1 + $0x338] sm:$0xff]
    %v133 = vld [vmem:[%s1 + $0x340] sm:$0xff]
    %v134 = vld [vmem:[%s1 + $0x348] sm:$0xff]
    %v135 = vld [vmem:[%s1 + $0x350] sm:$0xff]
    %v136 = vld [vmem:[%s1 + $0x358] sm:$0xff]
    %v137 = vld [vmem:[%s1 + $0x360] sm:$0xff]
    %v138 = vld [vmem:[%s1 + $0x368] sm:$0xff]
    %v139 = vld [vmem:[%s1 + $0x370] sm:$0xff]
    %v140 = vld [vmem:[%s1 + $0x378] sm:$0xff]
    %v141 = vld [vmem:[%s1 + $0x380] sm:$0xff]
    %v142 = vld [vmem:[%s1 + $0x388] sm:$0xff]
    %v143 = vld [vmem:[%s1 + $0x390] sm:$0xff]
    %v144 = vld [vmem:[%s1 + $0x398] sm:$0xff]
    %v145 = vld [vmem:[%s1 + $0x3a0] sm:$0xff]
    %v146 = vld [vmem:[%s1 + $0x3a8] sm:$0xff]
    %v147 = vld [vmem:[%s1 + $0x3b0] sm:$0xff]
    %v148 = vld [vmem:[%s1 + $0x3b8] sm:$0xff]
    %v149 = vld [vmem:[%s1 + $0x3c0] sm:$0xff]
    %v150 = vld [vmem:[%s1 + $0x3c8] sm:$0xff]
    %v151 = vld [vmem:[%s1 + $0x3d0] sm:$0xff]
    %v152 = vld [vmem:[%s1 + $0x3d8] sm:$0xff]
    %v153 = vld [vmem:[%s1 + $0x3e0] sm:$0xff]
    %v154 = vld [vmem:[%s1 + $0x3e8] sm:$0xff]
    %v155 = vld [vmem:[%s1 + $0x3f0] sm:$0xff]
    %v156 = vld [vmem:[%s1 + $0x3f8] sm:$0xff]
    %v157 = vld [vmem:[%s1 + $0x400] sm:$0xff]
    %v158 = vld [vmem:[%s1 + $0x408] sm:$0xff]
    %v159 = vld [vmem:[%s1 + $0x410] sm:$0xff]
    %v160 = vld [vmem:[%s1 + $0x418] sm:$0xff]
    %v161 = vld [vmem:[%s1 + $0x420] sm:$0xff]
    %v162 = vld [vmem:[%s1 + $0x428] sm:$0xff]
    %v163 = vld [vmem:[%s1 + $0x430] sm:$0xff]
    %v164 = vld [vmem:[%s1 + $0x438] sm:$0xff]
    %v165 = vld [vmem:[%s1 + $0x440] sm:$0xff]
    %v166 = vld [vmem:[%s1 + $0x448] sm:$0xff]
    %v167 = vld [vmem:[%s1 + $0x450] sm:$0xff]
    %v168 = vld [vmem:[%s1 + $0x458] sm:$0xff]
    %v169 = vld [vmem:[%s1 + $0x460] sm:$0xff]
    %v170 = vld [vmem:[%s1 + $0x468] sm:$0xff]
    %v171 = vld [vmem:[%s1 + $0x470] sm:$0xff]
    %v172 = vld [vmem:[%s1 + $0x478] sm:$0xff]
    %v173 = vld [vmem:[%s1 + $0x480] sm:$0xff]
    %v174 = vld [vmem:[%s1 + $0x488] sm:$0xff]
    %v175 = vld [vmem:[%s1 + $0x490] sm:$0xff]
    %v176 = vld [vmem:[%s1 + $0x498] sm:$0xff]
    %v177 = vld [vmem:[%s1 + $0x4a0] sm:$0xff]
    %v178 = vld [vmem:[%s1 + $0x4a8] sm:$0xff]
    %v179 = vld [vmem:[%s1 + $0x4b0] sm:$0xff]
    %v180 = vld [vmem:[%s1 + $0x4b8] sm:$0xff]
    %v181 = vld [vmem:[%s1 + $0x4c0] sm:$0xff]
    %v182 = vld [vmem:[%s1 + $0x4c8] sm:$0xff]
    %v183 = vld [vmem:[%s1 + $0x4d0] sm:$0xff]
    %v184 = vld [vmem:[%s1 + $0x4d8] sm:$0xff]
    %v185 = vld [vmem:[%s1 + $0x4e0] sm:$0xff]
    %v186 = vld [vmem:[%s1 + $0x4e8] sm:$0xff]
    %v187 = vld [vmem:[%s1 + $0x4f0] sm:$0xff]
    %v188 = vld [vmem:[%s1 + $0x4f8] sm:$0xff]
    %v189 = vld [vmem:[%s1 + $0x500] sm:$0xff]
    %v190 = vld [vmem:[%s1 + $0x508] sm:$0xff]
    %v191 = vld [vmem:[%s1 + $0x510] sm:$0xff]
    %v192 = vld [vmem:[%s1 + $0x518] sm:$0xff]
    %v193 = vld [vmem:[%s1 + $0x520] sm:$0xff]
    %v194 = vld [vmem:[%s1 + $0x528] sm:$0xff]
    %v195 = vld [vmem:[%s1 + $0x530] sm:$0xff]
    %v196 = vld [vmem:[%s1 + $0x538] sm:$0xff]
    %v197 = vld [vmem:[%s1 + $0x540] sm:$0xff]
    %v198 = vld [vmem:[%s1 + $0x548] sm:$0xff]
    %v199 = vld [vmem:[%s1 + $0x550] sm:$0xff]
    %v200 = vld [vmem:[%s1 + $0x558] sm:$0xff]
    %v201 = vld [vmem:[%s1 + $0x560] sm:$0xff]
    %v202 = vld [vmem:[%s1 + $0x568] sm:$0xff]
    %v203 = vld [vmem:[%s1 + $0x570] sm:$0xff]
    %v204 = vld [vmem:[%s1 + $0x578] sm:$0xff]
    %v205 = vld [vmem:[%s1 + $0x580] sm:$0xff]
    %v206 = vld [vmem:[%s1 + $0x588] sm:$0xff]
    %v207 = vld [vmem:[%s1 + $0x590] sm:$0xff]
    %v208 = vld [vmem:[%s1 + $0x598] sm:$0xff]
    %v209 = vld [vmem:[%s1 + $0x5a0] sm:$0xff]
    %v210 = vld [vmem:[%s1 + $0x5a8] sm:$0xff]
    %v211 = vld [vmem:[%s1 + $0x5b0] sm:$0xff]
    %v212 = vld [vmem:[%s1 + $0x5b8] sm:$0xff]
    %v213 = vld [vmem:[%s1 + $0x5c0] sm:$0xff]
    %v214 = vld [vmem:[%s1 + $0x5c8] sm:$0xff]
    %v215 = vld [vmem:[%s1 + $0x5d0] sm:$0xff]
    %v216 = vld [vmem:[%s1 + $0x5d8] sm:$0xff]
    %v217 = vld [vmem:[%s1 + $0x5e0] sm:$0xff]
    %v218 = vld [vmem:[%s1 + $0x5e8] sm:$0xff]
    %v219 = vld [vmem:[%s1 + $0x5f0] sm:$0xff]
    %v220 = vld [vmem:[%s1 + $0x5f8] sm:$0xff]
    %v221 = vld [vmem:[%s1 + $0x600] sm:$0xff]
    %v222 = vld [vmem:[%s1 + $0x608] sm:$0xff]
    %v223 = vld [vmem:[%s1 + $0x610] sm:$0xff]
    %v224 = vld [vmem:[%s1 + $0x618] sm:$0xff]
    %v225 = vld [vmem:[%s1 + $0x620] sm:$0xff]
    %v226 = vld [vmem:[%s1 + $0x628] sm:$0xff]
    %v227 = vld [vmem:[%s1 + $0x630] sm:$0xff]
    %v228 = vld [vmem:[%s1 + $0x638] sm:$0xff]
    %v229 = vld [vmem:[%s1 + $0x640] sm:$0xff]
    %v230 = vld [vmem:[%s1 + $0x648] sm:$0xff]
    %v231 = vld [vmem:[%s1 + $0x650] sm:$0xff]
    %v232 = vld [vmem:[%s1 + $0x658] sm:$0xff]
    %v233 = vld [vmem:[%s1 + $0x660] sm:$0xff]
    %v234 = vld [vmem:[%s1 + $0x668] sm:$0xff]
    %v235 = vld [vmem:[%s1 + $0x670] sm:$0xff]
    %v236 = vld [vmem:[%s1 + $0x678] sm:$0xff]
    %v237 = vld [vmem:[%s1 + $0x680] sm:$0xff]
    %v238 = vld [vmem:[%s1 + $0x688] sm:$0xff]
    %v239 = vld [vmem:[%s1 + $0x690] sm:$0xff]
    %v240 = vld [vmem:[%s1 + $0x698] sm:$0xff]
    %v241 = vld [vmem:[%s1 + $0x6a0] sm:$0xff]
    %v242 = vld [vmem:[%s1 + $0x6a8] sm:$0xff]
    %v243 = vld [vmem:[%s1 + $0x6b0] sm:$0xff]
    %v244 = vld [vmem:[%s1 + $0x6b8] sm:$0xff]
    %v245 = vld [vmem:[%s1 + $0x6c0] sm:$0xff]
    %v246 = vld [vmem:[%s1 + $0x6c8] sm:$0xff]
    %v247 = vld [vmem:[%s1 + $0x6d0] sm:$0xff]
    %v248 = vld [vmem:[%s1 + $0x6d8] sm:$0xff]
    %v249 = vld [vmem:[%s1 + $0x6e0] sm:$0xff]
    %v250 = vld [vmem:[%s1 + $0x6e8] sm:$0xff]
    %v251 = vld [vmem:[%s1 + $0x6f0] sm:$0xff]
    %v252 = vld [vmem:[%s1 + $0x6f8] sm:$0xff]
    %v253 = vld [vmem:[%s1 + $0x700] sm:$0xff]
    %v254 = vld [vmem:[%s1 + $0x708] sm:$0xff]
    %v255 = vld [vmem:[%s1 + $0x710] sm:$0xff]
    %v256 = vld [vmem:[%s1 + $0x718] sm:$0xff]
    %v257 = vld [vmem:[%s1 + $0x720] sm:$0xff]
    %v258 = vld [vmem:[%s1 + $0x728] sm:$0xff]
    %v259 = vld [vmem:[%s1 + $0x730] sm:$0xff]
    %v260 = vld [vmem:[%s1 + $0x738] sm:$0xff]
    %v261 = vld [vmem:[%s1 + $0x740] sm:$0xff]
    %v262 = vld [vmem:[%s1 + $0x748] sm:$0xff]
    %v263 = vld [vmem:[%s1 + $0x750] sm:$0xff]
    %v264 = vld [vmem:[%s1 + $0x758] sm:$0xff]
    %v265 = vld [vmem:[%s1 + $0x760] sm:$0xff]
    %v266 = vld [vmem:[%s1 + $0x768] sm:$0xff]
    %v267 = vld [vmem:[%s1 + $0x770] sm:$0xff]
    %v268 = vld [vmem:[%s1 + $0x778] sm:$0xff]
    %v269 = vld [vmem:[%s1 + $0x780] sm:$0xff]
    %v270 = vld [vmem:[%s1 + $0x788] sm:$0xff]
    %v271 = vld [vmem:[%s1 + $0x790] sm:$0xff]
    %v272 = vld [vmem:[%s1 + $0x798] sm:$0xff]
    %v273 = vld [vmem:[%s1 + $0x7a0] sm:$0xff]
    %v274 = vld [vmem:[%s1 + $0x7a8] sm:$0xff]
    %v275 = vld [vmem:[%s1 + $0x7b0] sm:$0xff]
    %v276 = vld [vmem:[%s1 + $0x7b8] sm:$0xff]
    %v277 = vld [vmem:[%s1 + $0x7c0] sm:$0xff]
    %v278 = vld [vmem:[%s1 + $0x7c8] sm:$0xff]
    %v279 = vld [vmem:[%s1 + $0x7d0] sm:$0xff]
    %v280 = vld [vmem:[%s1 + $0x7d8] sm:$0xff]
    %v281 = vld [vmem:[%s1 + $0x7e0] sm:$0xff]
    %v282 = vld [vmem:[%s1 + $0x7e8] sm:$0xff]
    %v283 = vld [vmem:[%s1 + $0x7f0] sm:$0xff]
    %v284 = vld [vmem:[%s1 + $0x7f8] sm:$0xff]
    %v285 = vld [vmem:[%s2] sm:$0xf]
    %v287 = vlaneseq
    %v288 = vshrl.u32 %v287, 7
    %v289 = vsub.s32 0, %v288
    %v290 = vrot.slane %v285, %v289
    %v291 = vlaneseq
    %v292 = vshrl.u32 %v291, 7
    %v293 = vsub.s32 1, %v292
    %v294 = vrot.slane %v285, %v293
    %v295 = vlaneseq
    %v296 = vshrl.u32 %v295, 7
    %v297 = vsub.s32 2, %v296
    %v298 = vrot.slane %v285, %v297
    %v299 = vlaneseq
    %v300 = vshrl.u32 %v299, 7
    %v301 = vsub.s32 3, %v300
    %v302 = vrot.slane %v285, %v301
    %v308 = vcombine.high %v28, %v28
    %v310 = vunpack.c.l.s4 1966171168
    %v311 = vunpack.c.0.s8 %v310
    %v312 = vlaneseq
    %v313 = vshrl.u32 %v312, 7
    %v314 = vsub.s32 %v311, %v313
    %v315 = vrot.slane %v28, %v314
    %v317 = vunpack.c.l.s4 1966171168
    %v318 = vunpack.c.0.s8 %v317
    %v319 = vlaneseq
    %v320 = vshrl.u32 %v319, 7
    %v321 = vsub.s32 %v318, %v320
    %v322 = vrot.slane %v308, %v321
    %v323 = vcombine.high %v315, %v315
    %v324 = vcombine.high %v322, %v322
    %v326 = vunpack.c.l.s4 1966171168
    %v327 = vunpack.c.0.s8 %v326
    %v328 = vlaneseq
    %v329 = vshrl.u32 %v328, 7
    %v330 = vsub.s32 %v327, %v329
    %v331 = vrot.slane %v315, %v330
    %v333 = vunpack.c.l.s4 1966171168
    %v334 = vunpack.c.0.s8 %v333
    %v335 = vlaneseq
    %v336 = vshrl.u32 %v335, 7
    %v337 = vsub.s32 %v334, %v336
    %v338 = vrot.slane %v322, %v337
    %v340 = vunpack.c.l.s4 1966171168
    %v341 = vunpack.c.0.s8 %v340
    %v342 = vlaneseq
    %v343 = vshrl.u32 %v342, 7
    %v344 = vsub.s32 %v341, %v343
    %v345 = vrot.slane %v323, %v344
    %v347 = vunpack.c.l.s4 1966171168
    %v348 = vunpack.c.0.s8 %v347
    %v349 = vlaneseq
    %v350 = vshrl.u32 %v349, 7
    %v351 = vsub.s32 %v348, %v350
    %v352 = vrot.slane %v324, %v351
    %v353 = vcombine.high %v331, %v331
    %v354 = vcombine.high %v338, %v338
    %v355 = vcombine.high %v345, %v345
    %v356 = vcombine.high %v352, %v352
    %v621 = vunpack.c.l.b16 %v29
    %v622 = vunpack.c.h.b16 %v29
    %v623 = vunpack.c.l.b16 %v30
    %v624 = vunpack.c.h.b16 %v30
    %v625 = vunpack.c.l.b16 %v31
    %v626 = vunpack.c.h.b16 %v31
    %v627 = vunpack.c.l.b16 %v32
    %v628 = vunpack.c.h.b16 %v32
    %v629 = vunpack.c.l.b16 %v33
    %v630 = vunpack.c.h.b16 %v33
    %v631 = vunpack.c.l.b16 %v34
    %v632 = vunpack.c.h.b16 %v34
    %v633 = vunpack.c.l.b16 %v35
    %v634 = vunpack.c.h.b16 %v35
    %v635 = vunpack.c.l.b16 %v36
    %v636 = vunpack.c.h.b16 %v36
    %v637 = vunpack.c.l.b16 %v37
    %v638 = vunpack.c.h.b16 %v37
    %v639 = vunpack.c.l.b16 %v38
    %v640 = vunpack.c.h.b16 %v38
    %v641 = vunpack.c.l.b16 %v39
    %v642 = vunpack.c.h.b16 %v39
    %v643 = vunpack.c.l.b16 %v40
    %v644 = vunpack.c.h.b16 %v40
    %v645 = vunpack.c.l.b16 %v41
    %v646 = vunpack.c.h.b16 %v41
    %v647 = vunpack.c.l.b16 %v42
    %v648 = vunpack.c.h.b16 %v42
    %v649 = vunpack.c.l.b16 %v43
    %v650 = vunpack.c.h.b16 %v43
    %v651 = vunpack.c.l.b16 %v44
    %v652 = vunpack.c.h.b16 %v44
    %v653 = vunpack.c.l.b16 %v45
    %v654 = vunpack.c.h.b16 %v45
    %v655 = vunpack.c.l.b16 %v46
    %v656 = vunpack.c.h.b16 %v46
    %v657 = vunpack.c.l.b16 %v47
    %v658 = vunpack.c.h.b16 %v47
    %v659 = vunpack.c.l.b16 %v48
    %v660 = vunpack.c.h.b16 %v48
    %v661 = vunpack.c.l.b16 %v49
    %v662 = vunpack.c.h.b16 %v49
    %v663 = vunpack.c.l.b16 %v50
    %v664 = vunpack.c.h.b16 %v50
    %v665 = vunpack.c.l.b16 %v51
    %v666 = vunpack.c.h.b16 %v51
    %v667 = vunpack.c.l.b16 %v52
    %v668 = vunpack.c.h.b16 %v52
    %v669 = vunpack.c.l.b16 %v53
    %v670 = vunpack.c.h.b16 %v53
    %v671 = vunpack.c.l.b16 %v54
    %v672 = vunpack.c.h.b16 %v54
    %v673 = vunpack.c.l.b16 %v55
    %v674 = vunpack.c.h.b16 %v55
    %v675 = vunpack.c.l.b16 %v56
    %v676 = vunpack.c.h.b16 %v56
    %v677 = vunpack.c.l.b16 %v57
    %v678 = vunpack.c.h.b16 %v57
    %v679 = vunpack.c.l.b16 %v58
    %v680 = vunpack.c.h.b16 %v58
    %v681 = vunpack.c.l.b16 %v59
    %v682 = vunpack.c.h.b16 %v59
    %v683 = vunpack.c.l.b16 %v60
    %v684 = vunpack.c.h.b16 %v60
    %v685 = vunpack.c.l.b16 %v61
    %v686 = vunpack.c.h.b16 %v61
    %v687 = vunpack.c.l.b16 %v62
    %v688 = vunpack.c.h.b16 %v62
    %v689 = vunpack.c.l.b16 %v63
    %v690 = vunpack.c.h.b16 %v63
    %v691 = vunpack.c.l.b16 %v64
    %v692 = vunpack.c.h.b16 %v64
    %v693 = vunpack.c.l.b16 %v65
    %v694 = vunpack.c.h.b16 %v65
    %v695 = vunpack.c.l.b16 %v66
    %v696 = vunpack.c.h.b16 %v66
    %v697 = vunpack.c.l.b16 %v67
    %v698 = vunpack.c.h.b16 %v67
    %v699 = vunpack.c.l.b16 %v68
    %v700 = vunpack.c.h.b16 %v68
    %v701 = vunpack.c.l.b16 %v69
    %v702 = vunpack.c.h.b16 %v69
    %v703 = vunpack.c.l.b16 %v70
    %v704 = vunpack.c.h.b16 %v70
    %v705 = vunpack.c.l.b16 %v71
    %v706 = vunpack.c.h.b16 %v71
    %v707 = vunpack.c.l.b16 %v72
    %v708 = vunpack.c.h.b16 %v72
    %v709 = vunpack.c.l.b16 %v73
    %v710 = vunpack.c.h.b16 %v73
    %v711 = vunpack.c.l.b16 %v74
    %v712 = vunpack.c.h.b16 %v74
    %v713 = vunpack.c.l.b16 %v75
    %v714 = vunpack.c.h.b16 %v75
    %v715 = vunpack.c.l.b16 %v76
    %v716 = vunpack.c.h.b16 %v76
    %v717 = vunpack.c.l.b16 %v77
    %v718 = vunpack.c.h.b16 %v77
    %v719 = vunpack.c.l.b16 %v78
    %v720 = vunpack.c.h.b16 %v78
    %v721 = vunpack.c.l.b16 %v79
    %v722 = vunpack.c.h.b16 %v79
    %v723 = vunpack.c.l.b16 %v80
    %v724 = vunpack.c.h.b16 %v80
    %v725 = vunpack.c.l.b16 %v81
    %v726 = vunpack.c.h.b16 %v81
    %v727 = vunpack.c.l.b16 %v82
    %v728 = vunpack.c.h.b16 %v82
    %v729 = vunpack.c.l.b16 %v83
    %v730 = vunpack.c.h.b16 %v83
    %v731 = vunpack.c.l.b16 %v84
    %v732 = vunpack.c.h.b16 %v84
    %v733 = vunpack.c.l.b16 %v85
    %v734 = vunpack.c.h.b16 %v85
    %v735 = vunpack.c.l.b16 %v86
    %v736 = vunpack.c.h.b16 %v86
    %v737 = vunpack.c.l.b16 %v87
    %v738 = vunpack.c.h.b16 %v87
    %v739 = vunpack.c.l.b16 %v88
    %v740 = vunpack.c.h.b16 %v88
    %v741 = vunpack.c.l.b16 %v89
    %v742 = vunpack.c.h.b16 %v89
    %v743 = vunpack.c.l.b16 %v90
    %v744 = vunpack.c.h.b16 %v90
    %v745 = vunpack.c.l.b16 %v91
    %v746 = vunpack.c.h.b16 %v91
    %v747 = vunpack.c.l.b16 %v92
    %v748 = vunpack.c.h.b16 %v92
    %v749 = vunpack.c.l.b16 %v93
    %v750 = vunpack.c.h.b16 %v93
    %v751 = vunpack.c.l.b16 %v94
    %v752 = vunpack.c.h.b16 %v94
    %v753 = vunpack.c.l.b16 %v95
    %v754 = vunpack.c.h.b16 %v95
    %v755 = vunpack.c.l.b16 %v96
    %v756 = vunpack.c.h.b16 %v96
    %v757 = vunpack.c.l.b16 %v97
    %v758 = vunpack.c.h.b16 %v97
    %v759 = vunpack.c.l.b16 %v98
    %v760 = vunpack.c.h.b16 %v98
    %v761 = vunpack.c.l.b16 %v99
    %v762 = vunpack.c.h.b16 %v99
    %v763 = vunpack.c.l.b16 %v100
    %v764 = vunpack.c.h.b16 %v100
    %v765 = vunpack.c.l.b16 %v101
    %v766 = vunpack.c.h.b16 %v101
    %v767 = vunpack.c.l.b16 %v102
    %v768 = vunpack.c.h.b16 %v102
    %v769 = vunpack.c.l.b16 %v103
    %v770 = vunpack.c.h.b16 %v103
    %v771 = vunpack.c.l.b16 %v104
    %v772 = vunpack.c.h.b16 %v104
    %v773 = vunpack.c.l.b16 %v105
    %v774 = vunpack.c.h.b16 %v105
    %v775 = vunpack.c.l.b16 %v106
    %v776 = vunpack.c.h.b16 %v106
    %v777 = vunpack.c.l.b16 %v107
    %v778 = vunpack.c.h.b16 %v107
    %v779 = vunpack.c.l.b16 %v108
    %v780 = vunpack.c.h.b16 %v108
    %v781 = vunpack.c.l.b16 %v109
    %v782 = vunpack.c.h.b16 %v109
    %v783 = vunpack.c.l.b16 %v110
    %v784 = vunpack.c.h.b16 %v110
    %v785 = vunpack.c.l.b16 %v111
    %v786 = vunpack.c.h.b16 %v111
    %v787 = vunpack.c.l.b16 %v112
    %v788 = vunpack.c.h.b16 %v112
    %v789 = vunpack.c.l.b16 %v113
    %v790 = vunpack.c.h.b16 %v113
    %v791 = vunpack.c.l.b16 %v114
    %v792 = vunpack.c.h.b16 %v114
    %v793 = vunpack.c.l.b16 %v115
    %v794 = vunpack.c.h.b16 %v115
    %v795 = vunpack.c.l.b16 %v116
    %v796 = vunpack.c.h.b16 %v116
    %v797 = vunpack.c.l.b16 %v117
    %v798 = vunpack.c.h.b16 %v117
    %v799 = vunpack.c.l.b16 %v118
    %v800 = vunpack.c.h.b16 %v118
    %v801 = vunpack.c.l.b16 %v119
    %v802 = vunpack.c.h.b16 %v119
    %v803 = vunpack.c.l.b16 %v120
    %v804 = vunpack.c.h.b16 %v120
    %v805 = vunpack.c.l.b16 %v121
    %v806 = vunpack.c.h.b16 %v121
    %v807 = vunpack.c.l.b16 %v122
    %v808 = vunpack.c.h.b16 %v122
    %v809 = vunpack.c.l.b16 %v123
    %v810 = vunpack.c.h.b16 %v123
    %v811 = vunpack.c.l.b16 %v124
    %v812 = vunpack.c.h.b16 %v124
    %v813 = vunpack.c.l.b16 %v125
    %v814 = vunpack.c.h.b16 %v125
    %v815 = vunpack.c.l.b16 %v126
    %v816 = vunpack.c.h.b16 %v126
    %v817 = vunpack.c.l.b16 %v127
    %v818 = vunpack.c.h.b16 %v127
    %v819 = vunpack.c.l.b16 %v128
    %v820 = vunpack.c.h.b16 %v128
    %v821 = vunpack.c.l.b16 %v129
    %v822 = vunpack.c.h.b16 %v129
    %v823 = vunpack.c.l.b16 %v130
    %v824 = vunpack.c.h.b16 %v130
    %v825 = vunpack.c.l.b16 %v131
    %v826 = vunpack.c.h.b16 %v131
    %v827 = vunpack.c.l.b16 %v132
    %v828 = vunpack.c.h.b16 %v132
    %v829 = vunpack.c.l.b16 %v133
    %v830 = vunpack.c.h.b16 %v133
    %v831 = vunpack.c.l.b16 %v134
    %v832 = vunpack.c.h.b16 %v134
    %v833 = vunpack.c.l.b16 %v135
    %v834 = vunpack.c.h.b16 %v135
    %v835 = vunpack.c.l.b16 %v136
    %v836 = vunpack.c.h.b16 %v136
    %v837 = vunpack.c.l.b16 %v137
    %v838 = vunpack.c.h.b16 %v137
    %v839 = vunpack.c.l.b16 %v138
    %v840 = vunpack.c.h.b16 %v138
    %v841 = vunpack.c.l.b16 %v139
    %v842 = vunpack.c.h.b16 %v139
    %v843 = vunpack.c.l.b16 %v140
    %v844 = vunpack.c.h.b16 %v140
    %v845 = vunpack.c.l.b16 %v141
    %v846 = vunpack.c.h.b16 %v141
    %v847 = vunpack.c.l.b16 %v142
    %v848 = vunpack.c.h.b16 %v142
    %v849 = vunpack.c.l.b16 %v143
    %v850 = vunpack.c.h.b16 %v143
    %v851 = vunpack.c.l.b16 %v144
    %v852 = vunpack.c.h.b16 %v144
    %v853 = vunpack.c.l.b16 %v145
    %v854 = vunpack.c.h.b16 %v145
    %v855 = vunpack.c.l.b16 %v146
    %v856 = vunpack.c.h.b16 %v146
    %v857 = vunpack.c.l.b16 %v147
    %v858 = vunpack.c.h.b16 %v147
    %v859 = vunpack.c.l.b16 %v148
    %v860 = vunpack.c.h.b16 %v148
    %v861 = vunpack.c.l.b16 %v149
    %v862 = vunpack.c.h.b16 %v149
    %v863 = vunpack.c.l.b16 %v150
    %v864 = vunpack.c.h.b16 %v150
    %v865 = vunpack.c.l.b16 %v151
    %v866 = vunpack.c.h.b16 %v151
    %v867 = vunpack.c.l.b16 %v152
    %v868 = vunpack.c.h.b16 %v152
    %v869 = vunpack.c.l.b16 %v153
    %v870 = vunpack.c.h.b16 %v153
    %v871 = vunpack.c.l.b16 %v154
    %v872 = vunpack.c.h.b16 %v154
    %v873 = vunpack.c.l.b16 %v155
    %v874 = vunpack.c.h.b16 %v155
    %v875 = vunpack.c.l.b16 %v156
    %v876 = vunpack.c.h.b16 %v156
    %v877 = vunpack.c.l.b16 %v157
    %v878 = vunpack.c.h.b16 %v157
    %v879 = vunpack.c.l.b16 %v158
    %v880 = vunpack.c.h.b16 %v158
    %v881 = vunpack.c.l.b16 %v159
    %v882 = vunpack.c.h.b16 %v159
    %v883 = vunpack.c.l.b16 %v160
    %v884 = vunpack.c.h.b16 %v160
    %v885 = vunpack.c.l.b16 %v161
    %v886 = vunpack.c.h.b16 %v161
    %v887 = vunpack.c.l.b16 %v162
    %v888 = vunpack.c.h.b16 %v162
    %v889 = vunpack.c.l.b16 %v163
    %v890 = vunpack.c.h.b16 %v163
    %v891 = vunpack.c.l.b16 %v164
    %v892 = vunpack.c.h.b16 %v164
    %v893 = vunpack.c.l.b16 %v165
    %v894 = vunpack.c.h.b16 %v165
    %v895 = vunpack.c.l.b16 %v166
    %v896 = vunpack.c.h.b16 %v166
    %v897 = vunpack.c.l.b16 %v167
    %v898 = vunpack.c.h.b16 %v167
    %v899 = vunpack.c.l.b16 %v168
    %v900 = vunpack.c.h.b16 %v168
    %v901 = vunpack.c.l.b16 %v169
    %v902 = vunpack.c.h.b16 %v169
    %v903 = vunpack.c.l.b16 %v170
    %v904 = vunpack.c.h.b16 %v170
    %v905 = vunpack.c.l.b16 %v171
    %v906 = vunpack.c.h.b16 %v171
    %v907 = vunpack.c.l.b16 %v172
    %v908 = vunpack.c.h.b16 %v172
    %v909 = vunpack.c.l.b16 %v173
    %v910 = vunpack.c.h.b16 %v173
    %v911 = vunpack.c.l.b16 %v174
    %v912 = vunpack.c.h.b16 %v174
    %v913 = vunpack.c.l.b16 %v175
    %v914 = vunpack.c.h.b16 %v175
    %v915 = vunpack.c.l.b16 %v176
    %v916 = vunpack.c.h.b16 %v176
    %v917 = vunpack.c.l.b16 %v177
    %v918 = vunpack.c.h.b16 %v177
    %v919 = vunpack.c.l.b16 %v178
    %v920 = vunpack.c.h.b16 %v178
    %v921 = vunpack.c.l.b16 %v179
    %v922 = vunpack.c.h.b16 %v179
    %v923 = vunpack.c.l.b16 %v180
    %v924 = vunpack.c.h.b16 %v180
    %v925 = vunpack.c.l.b16 %v181
    %v926 = vunpack.c.h.b16 %v181
    %v927 = vunpack.c.l.b16 %v182
    %v928 = vunpack.c.h.b16 %v182
    %v929 = vunpack.c.l.b16 %v183
    %v930 = vunpack.c.h.b16 %v183
    %v931 = vunpack.c.l.b16 %v184
    %v932 = vunpack.c.h.b16 %v184
    %v933 = vunpack.c.l.b16 %v185
    %v934 = vunpack.c.h.b16 %v185
    %v935 = vunpack.c.l.b16 %v186
    %v936 = vunpack.c.h.b16 %v186
    %v937 = vunpack.c.l.b16 %v187
    %v938 = vunpack.c.h.b16 %v187
    %v939 = vunpack.c.l.b16 %v188
    %v940 = vunpack.c.h.b16 %v188
    %v941 = vunpack.c.l.b16 %v189
    %v942 = vunpack.c.h.b16 %v189
    %v943 = vunpack.c.l.b16 %v190
    %v944 = vunpack.c.h.b16 %v190
    %v945 = vunpack.c.l.b16 %v191
    %v946 = vunpack.c.h.b16 %v191
    %v947 = vunpack.c.l.b16 %v192
    %v948 = vunpack.c.h.b16 %v192
    %v949 = vunpack.c.l.b16 %v193
    %v950 = vunpack.c.h.b16 %v193
    %v951 = vunpack.c.l.b16 %v194
    %v952 = vunpack.c.h.b16 %v194
    %v953 = vunpack.c.l.b16 %v195
    %v954 = vunpack.c.h.b16 %v195
    %v955 = vunpack.c.l.b16 %v196
    %v956 = vunpack.c.h.b16 %v196
    %v957 = vunpack.c.l.b16 %v197
    %v958 = vunpack.c.h.b16 %v197
    %v959 = vunpack.c.l.b16 %v198
    %v960 = vunpack.c.h.b16 %v198
    %v961 = vunpack.c.l.b16 %v199
    %v962 = vunpack.c.h.b16 %v199
    %v963 = vunpack.c.l.b16 %v200
    %v964 = vunpack.c.h.b16 %v200
    %v965 = vunpack.c.l.b16 %v201
    %v966 = vunpack.c.h.b16 %v201
    %v967 = vunpack.c.l.b16 %v202
    %v968 = vunpack.c.h.b16 %v202
    %v969 = vunpack.c.l.b16 %v203
    %v970 = vunpack.c.h.b16 %v203
    %v971 = vunpack.c.l.b16 %v204
    %v972 = vunpack.c.h.b16 %v204
    %v973 = vunpack.c.l.b16 %v205
    %v974 = vunpack.c.h.b16 %v205
    %v975 = vunpack.c.l.b16 %v206
    %v976 = vunpack.c.h.b16 %v206
    %v977 = vunpack.c.l.b16 %v207
    %v978 = vunpack.c.h.b16 %v207
    %v979 = vunpack.c.l.b16 %v208
    %v980 = vunpack.c.h.b16 %v208
    %v981 = vunpack.c.l.b16 %v209
    %v982 = vunpack.c.h.b16 %v209
    %v983 = vunpack.c.l.b16 %v210
    %v984 = vunpack.c.h.b16 %v210
    %v985 = vunpack.c.l.b16 %v211
    %v986 = vunpack.c.h.b16 %v211
    %v987 = vunpack.c.l.b16 %v212
    %v988 = vunpack.c.h.b16 %v212
    %v989 = vunpack.c.l.b16 %v213
    %v990 = vunpack.c.h.b16 %v213
    %v991 = vunpack.c.l.b16 %v214
    %v992 = vunpack.c.h.b16 %v214
    %v993 = vunpack.c.l.b16 %v215
    %v994 = vunpack.c.h.b16 %v215
    %v995 = vunpack.c.l.b16 %v216
    %v996 = vunpack.c.h.b16 %v216
    %v997 = vunpack.c.l.b16 %v217
    %v998 = vunpack.c.h.b16 %v217
    %v999 = vunpack.c.l.b16 %v218
    %v1000 = vunpack.c.h.b16 %v218
    %v1001 = vunpack.c.l.b16 %v219
    %v1002 = vunpack.c.h.b16 %v219
    %v1003 = vunpack.c.l.b16 %v220
    %v1004 = vunpack.c.h.b16 %v220
    %v1005 = vunpack.c.l.b16 %v221
    %v1006 = vunpack.c.h.b16 %v221
    %v1007 = vunpack.c.l.b16 %v222
    %v1008 = vunpack.c.h.b16 %v222
    %v1009 = vunpack.c.l.b16 %v223
    %v1010 = vunpack.c.h.b16 %v223
    %v1011 = vunpack.c.l.b16 %v224
    %v1012 = vunpack.c.h.b16 %v224
    %v1013 = vunpack.c.l.b16 %v225
    %v1014 = vunpack.c.h.b16 %v225
    %v1015 = vunpack.c.l.b16 %v226
    %v1016 = vunpack.c.h.b16 %v226
    %v1017 = vunpack.c.l.b16 %v227
    %v1018 = vunpack.c.h.b16 %v227
    %v1019 = vunpack.c.l.b16 %v228
    %v1020 = vunpack.c.h.b16 %v228
    %v1021 = vunpack.c.l.b16 %v229
    %v1022 = vunpack.c.h.b16 %v229
    %v1023 = vunpack.c.l.b16 %v230
    %v1024 = vunpack.c.h.b16 %v230
    %v1025 = vunpack.c.l.b16 %v231
    %v1026 = vunpack.c.h.b16 %v231
    %v1027 = vunpack.c.l.b16 %v232
    %v1028 = vunpack.c.h.b16 %v232
    %v1029 = vunpack.c.l.b16 %v233
    %v1030 = vunpack.c.h.b16 %v233
    %v1031 = vunpack.c.l.b16 %v234
    %v1032 = vunpack.c.h.b16 %v234
    %v1033 = vunpack.c.l.b16 %v235
    %v1034 = vunpack.c.h.b16 %v235
    %v1035 = vunpack.c.l.b16 %v236
    %v1036 = vunpack.c.h.b16 %v236
    %v1037 = vunpack.c.l.b16 %v237
    %v1038 = vunpack.c.h.b16 %v237
    %v1039 = vunpack.c.l.b16 %v238
    %v1040 = vunpack.c.h.b16 %v238
    %v1041 = vunpack.c.l.b16 %v239
    %v1042 = vunpack.c.h.b16 %v239
    %v1043 = vunpack.c.l.b16 %v240
    %v1044 = vunpack.c.h.b16 %v240
    %v1045 = vunpack.c.l.b16 %v241
    %v1046 = vunpack.c.h.b16 %v241
    %v1047 = vunpack.c.l.b16 %v242
    %v1048 = vunpack.c.h.b16 %v242
    %v1049 = vunpack.c.l.b16 %v243
    %v1050 = vunpack.c.h.b16 %v243
    %v1051 = vunpack.c.l.b16 %v244
    %v1052 = vunpack.c.h.b16 %v244
    %v1053 = vunpack.c.l.b16 %v245
    %v1054 = vunpack.c.h.b16 %v245
    %v1055 = vunpack.c.l.b16 %v246
    %v1056 = vunpack.c.h.b16 %v246
    %v1057 = vunpack.c.l.b16 %v247
    %v1058 = vunpack.c.h.b16 %v247
    %v1059 = vunpack.c.l.b16 %v248
    %v1060 = vunpack.c.h.b16 %v248
    %v1061 = vunpack.c.l.b16 %v249
    %v1062 = vunpack.c.h.b16 %v249
    %v1063 = vunpack.c.l.b16 %v250
    %v1064 = vunpack.c.h.b16 %v250
    %v1065 = vunpack.c.l.b16 %v251
    %v1066 = vunpack.c.h.b16 %v251
    %v1067 = vunpack.c.l.b16 %v252
    %v1068 = vunpack.c.h.b16 %v252
    %v1069 = vunpack.c.l.b16 %v253
    %v1070 = vunpack.c.h.b16 %v253
    %v1071 = vunpack.c.l.b16 %v254
    %v1072 = vunpack.c.h.b16 %v254
    %v1073 = vunpack.c.l.b16 %v255
    %v1074 = vunpack.c.h.b16 %v255
    %v1075 = vunpack.c.l.b16 %v256
    %v1076 = vunpack.c.h.b16 %v256
    %v1077 = vunpack.c.l.b16 %v257
    %v1078 = vunpack.c.h.b16 %v257
    %v1079 = vunpack.c.l.b16 %v258
    %v1080 = vunpack.c.h.b16 %v258
    %v1081 = vunpack.c.l.b16 %v259
    %v1082 = vunpack.c.h.b16 %v259
    %v1083 = vunpack.c.l.b16 %v260
    %v1084 = vunpack.c.h.b16 %v260
    %v1085 = vunpack.c.l.b16 %v261
    %v1086 = vunpack.c.h.b16 %v261
    %v1087 = vunpack.c.l.b16 %v262
    %v1088 = vunpack.c.h.b16 %v262
    %v1089 = vunpack.c.l.b16 %v263
    %v1090 = vunpack.c.h.b16 %v263
    %v1091 = vunpack.c.l.b16 %v264
    %v1092 = vunpack.c.h.b16 %v264
    %v1093 = vunpack.c.l.b16 %v265
    %v1094 = vunpack.c.h.b16 %v265
    %v1095 = vunpack.c.l.b16 %v266
    %v1096 = vunpack.c.h.b16 %v266
    %v1097 = vunpack.c.l.b16 %v267
    %v1098 = vunpack.c.h.b16 %v267
    %v1099 = vunpack.c.l.b16 %v268
    %v1100 = vunpack.c.h.b16 %v268
    %v1101 = vunpack.c.l.b16 %v269
    %v1102 = vunpack.c.h.b16 %v269
    %v1103 = vunpack.c.l.b16 %v270
    %v1104 = vunpack.c.h.b16 %v270
    %v1105 = vunpack.c.l.b16 %v271
    %v1106 = vunpack.c.h.b16 %v271
    %v1107 = vunpack.c.l.b16 %v272
    %v1108 = vunpack.c.h.b16 %v272
    %v1109 = vunpack.c.l.b16 %v273
    %v1110 = vunpack.c.h.b16 %v273
    %v1111 = vunpack.c.l.b16 %v274
    %v1112 = vunpack.c.h.b16 %v274
    %v1113 = vunpack.c.l.b16 %v275
    %v1114 = vunpack.c.h.b16 %v275
    %v1115 = vunpack.c.l.b16 %v276
    %v1116 = vunpack.c.h.b16 %v276
    %v1117 = vunpack.c.l.b16 %v277
    %v1118 = vunpack.c.h.b16 %v277
    %v1119 = vunpack.c.l.b16 %v278
    %v1120 = vunpack.c.h.b16 %v278
    %v1121 = vunpack.c.l.b16 %v279
    %v1122 = vunpack.c.h.b16 %v279
    %v1123 = vunpack.c.l.b16 %v280
    %v1124 = vunpack.c.h.b16 %v280
    %v1125 = vunpack.c.l.b16 %v281
    %v1126 = vunpack.c.h.b16 %v281
    %v1127 = vunpack.c.l.b16 %v282
    %v1128 = vunpack.c.h.b16 %v282
    %v1129 = vunpack.c.l.b16 %v283
    %v1130 = vunpack.c.h.b16 %v283
    %v1131 = vunpack.c.l.b16 %v284
    %v1132 = vunpack.c.h.b16 %v284
    %v1133 = vpack.c.b16 %v625, %v621
    %v1134 = vpack.c.b16 %v626, %v622
    %v1135 = vpack.c.b16 %v627, %v623
    %v1136 = vpack.c.b16 %v628, %v624
    %v1137 = vpack.c.b16 %v633, %v629
    %v1138 = vpack.c.b16 %v634, %v630
    %v1139 = vpack.c.b16 %v635, %v631
    %v1140 = vpack.c.b16 %v636, %v632
    %v1141 = vpack.c.b16 %v641, %v637
    %v1142 = vpack.c.b16 %v642, %v638
    %v1143 = vpack.c.b16 %v643, %v639
    %v1144 = vpack.c.b16 %v644, %v640
    %v1145 = vpack.c.b16 %v649, %v645
    %v1146 = vpack.c.b16 %v650, %v646
    %v1147 = vpack.c.b16 %v651, %v647
    %v1148 = vpack.c.b16 %v652, %v648
    %v1149 = vpack.c.b16 %v657, %v653
    %v1150 = vpack.c.b16 %v658, %v654
    %v1151 = vpack.c.b16 %v659, %v655
    %v1152 = vpack.c.b16 %v660, %v656
    %v1153 = vpack.c.b16 %v665, %v661
    %v1154 = vpack.c.b16 %v666, %v662
    %v1155 = vpack.c.b16 %v667, %v663
    %v1156 = vpack.c.b16 %v668, %v664
    %v1157 = vpack.c.b16 %v673, %v669
    %v1158 = vpack.c.b16 %v674, %v670
    %v1159 = vpack.c.b16 %v675, %v671
    %v1160 = vpack.c.b16 %v676, %v672
    %v1161 = vpack.c.b16 %v681, %v677
    %v1162 = vpack.c.b16 %v682, %v678
    %v1163 = vpack.c.b16 %v683, %v679
    %v1164 = vpack.c.b16 %v684, %v680
    %v1165 = vpack.c.b16 %v689, %v685
    %v1166 = vpack.c.b16 %v690, %v686
    %v1167 = vpack.c.b16 %v691, %v687
    %v1168 = vpack.c.b16 %v692, %v688
    %v1169 = vpack.c.b16 %v697, %v693
    %v1170 = vpack.c.b16 %v698, %v694
    %v1171 = vpack.c.b16 %v699, %v695
    %v1172 = vpack.c.b16 %v700, %v696
    %v1173 = vpack.c.b16 %v705, %v701
    %v1174 = vpack.c.b16 %v706, %v702
    %v1175 = vpack.c.b16 %v707, %v703
    %v1176 = vpack.c.b16 %v708, %v704
    %v1177 = vpack.c.b16 %v713, %v709
    %v1178 = vpack.c.b16 %v714, %v710
    %v1179 = vpack.c.b16 %v715, %v711
    %v1180 = vpack.c.b16 %v716, %v712
    %v1181 = vpack.c.b16 %v721, %v717
    %v1182 = vpack.c.b16 %v722, %v718
    %v1183 = vpack.c.b16 %v723, %v719
    %v1184 = vpack.c.b16 %v724, %v720
    %v1185 = vpack.c.b16 %v729, %v725
    %v1186 = vpack.c.b16 %v730, %v726
    %v1187 = vpack.c.b16 %v731, %v727
    %v1188 = vpack.c.b16 %v732, %v728
    %v1189 = vpack.c.b16 %v737, %v733
    %v1190 = vpack.c.b16 %v738, %v734
    %v1191 = vpack.c.b16 %v739, %v735
    %v1192 = vpack.c.b16 %v740, %v736
    %v1193 = vpack.c.b16 %v745, %v741
    %v1194 = vpack.c.b16 %v746, %v742
    %v1195 = vpack.c.b16 %v747, %v743
    %v1196 = vpack.c.b16 %v748, %v744
    %v1197 = vpack.c.b16 %v753, %v749
    %v1198 = vpack.c.b16 %v754, %v750
    %v1199 = vpack.c.b16 %v755, %v751
    %v1200 = vpack.c.b16 %v756, %v752
    %v1201 = vpack.c.b16 %v761, %v757
    %v1202 = vpack.c.b16 %v762, %v758
    %v1203 = vpack.c.b16 %v763, %v759
    %v1204 = vpack.c.b16 %v764, %v760
    %v1205 = vpack.c.b16 %v769, %v765
    %v1206 = vpack.c.b16 %v770, %v766
    %v1207 = vpack.c.b16 %v771, %v767
    %v1208 = vpack.c.b16 %v772, %v768
    %v1209 = vpack.c.b16 %v777, %v773
    %v1210 = vpack.c.b16 %v778, %v774
    %v1211 = vpack.c.b16 %v779, %v775
    %v1212 = vpack.c.b16 %v780, %v776
    %v1213 = vpack.c.b16 %v785, %v781
    %v1214 = vpack.c.b16 %v786, %v782
    %v1215 = vpack.c.b16 %v787, %v783
    %v1216 = vpack.c.b16 %v788, %v784
    %v1217 = vpack.c.b16 %v793, %v789
    %v1218 = vpack.c.b16 %v794, %v790
    %v1219 = vpack.c.b16 %v795, %v791
    %v1220 = vpack.c.b16 %v796, %v792
    %v1221 = vpack.c.b16 %v801, %v797
    %v1222 = vpack.c.b16 %v802, %v798
    %v1223 = vpack.c.b16 %v803, %v799
    %v1224 = vpack.c.b16 %v804, %v800
    %v1225 = vpack.c.b16 %v809, %v805
    %v1226 = vpack.c.b16 %v810, %v806
    %v1227 = vpack.c.b16 %v811, %v807
    %v1228 = vpack.c.b16 %v812, %v808
    %v1229 = vpack.c.b16 %v817, %v813
    %v1230 = vpack.c.b16 %v818, %v814
    %v1231 = vpack.c.b16 %v819, %v815
    %v1232 = vpack.c.b16 %v820, %v816
    %v1233 = vpack.c.b16 %v825, %v821
    %v1234 = vpack.c.b16 %v826, %v822
    %v1235 = vpack.c.b16 %v827, %v823
    %v1236 = vpack.c.b16 %v828, %v824
    %v1237 = vpack.c.b16 %v833, %v829
    %v1238 = vpack.c.b16 %v834, %v830
    %v1239 = vpack.c.b16 %v835, %v831
    %v1240 = vpack.c.b16 %v836, %v832
    %v1241 = vpack.c.b16 %v841, %v837
    %v1242 = vpack.c.b16 %v842, %v838
    %v1243 = vpack.c.b16 %v843, %v839
    %v1244 = vpack.c.b16 %v844, %v840
    %v1245 = vpack.c.b16 %v849, %v845
    %v1246 = vpack.c.b16 %v850, %v846
    %v1247 = vpack.c.b16 %v851, %v847
    %v1248 = vpack.c.b16 %v852, %v848
    %v1249 = vpack.c.b16 %v857, %v853
    %v1250 = vpack.c.b16 %v858, %v854
    %v1251 = vpack.c.b16 %v859, %v855
    %v1252 = vpack.c.b16 %v860, %v856
    %v1253 = vpack.c.b16 %v865, %v861
    %v1254 = vpack.c.b16 %v866, %v862
    %v1255 = vpack.c.b16 %v867, %v863
    %v1256 = vpack.c.b16 %v868, %v864
    %v1257 = vpack.c.b16 %v873, %v869
    %v1258 = vpack.c.b16 %v874, %v870
    %v1259 = vpack.c.b16 %v875, %v871
    %v1260 = vpack.c.b16 %v876, %v872
    %v1261 = vpack.c.b16 %v881, %v877
    %v1262 = vpack.c.b16 %v882, %v878
    %v1263 = vpack.c.b16 %v883, %v879
    %v1264 = vpack.c.b16 %v884, %v880
    %v1265 = vpack.c.b16 %v889, %v885
    %v1266 = vpack.c.b16 %v890, %v886
    %v1267 = vpack.c.b16 %v891, %v887
    %v1268 = vpack.c.b16 %v892, %v888
    %v1269 = vpack.c.b16 %v897, %v893
    %v1270 = vpack.c.b16 %v898, %v894
    %v1271 = vpack.c.b16 %v899, %v895
    %v1272 = vpack.c.b16 %v900, %v896
    %v1273 = vpack.c.b16 %v905, %v901
    %v1274 = vpack.c.b16 %v906, %v902
    %v1275 = vpack.c.b16 %v907, %v903
    %v1276 = vpack.c.b16 %v908, %v904
    %v1277 = vpack.c.b16 %v913, %v909
    %v1278 = vpack.c.b16 %v914, %v910
    %v1279 = vpack.c.b16 %v915, %v911
    %v1280 = vpack.c.b16 %v916, %v912
    %v1281 = vpack.c.b16 %v921, %v917
    %v1282 = vpack.c.b16 %v922, %v918
    %v1283 = vpack.c.b16 %v923, %v919
    %v1284 = vpack.c.b16 %v924, %v920
    %v1285 = vpack.c.b16 %v929, %v925
    %v1286 = vpack.c.b16 %v930, %v926
    %v1287 = vpack.c.b16 %v931, %v927
    %v1288 = vpack.c.b16 %v932, %v928
    %v1289 = vpack.c.b16 %v937, %v933
    %v1290 = vpack.c.b16 %v938, %v934
    %v1291 = vpack.c.b16 %v939, %v935
    %v1292 = vpack.c.b16 %v940, %v936
    %v1293 = vpack.c.b16 %v945, %v941
    %v1294 = vpack.c.b16 %v946, %v942
    %v1295 = vpack.c.b16 %v947, %v943
    %v1296 = vpack.c.b16 %v948, %v944
    %v1297 = vpack.c.b16 %v953, %v949
    %v1298 = vpack.c.b16 %v954, %v950
    %v1299 = vpack.c.b16 %v955, %v951
    %v1300 = vpack.c.b16 %v956, %v952
    %v1301 = vpack.c.b16 %v961, %v957
    %v1302 = vpack.c.b16 %v962, %v958
    %v1303 = vpack.c.b16 %v963, %v959
    %v1304 = vpack.c.b16 %v964, %v960
    %v1305 = vpack.c.b16 %v969, %v965
    %v1306 = vpack.c.b16 %v970, %v966
    %v1307 = vpack.c.b16 %v971, %v967
    %v1308 = vpack.c.b16 %v972, %v968
    %v1309 = vpack.c.b16 %v977, %v973
    %v1310 = vpack.c.b16 %v978, %v974
    %v1311 = vpack.c.b16 %v979, %v975
    %v1312 = vpack.c.b16 %v980, %v976
    %v1313 = vpack.c.b16 %v985, %v981
    %v1314 = vpack.c.b16 %v986, %v982
    %v1315 = vpack.c.b16 %v987, %v983
    %v1316 = vpack.c.b16 %v988, %v984
    %v1317 = vpack.c.b16 %v993, %v989
    %v1318 = vpack.c.b16 %v994, %v990
    %v1319 = vpack.c.b16 %v995, %v991
    %v1320 = vpack.c.b16 %v996, %v992
    %v1321 = vpack.c.b16 %v1001, %v997
    %v1322 = vpack.c.b16 %v1002, %v998
    %v1323 = vpack.c.b16 %v1003, %v999
    %v1324 = vpack.c.b16 %v1004, %v1000
    %v1325 = vpack.c.b16 %v1009, %v1005
    %v1326 = vpack.c.b16 %v1010, %v1006
    %v1327 = vpack.c.b16 %v1011, %v1007
    %v1328 = vpack.c.b16 %v1012, %v1008
    %v1329 = vpack.c.b16 %v1017, %v1013
    %v1330 = vpack.c.b16 %v1018, %v1014
    %v1331 = vpack.c.b16 %v1019, %v1015
    %v1332 = vpack.c.b16 %v1020, %v1016
    %v1333 = vpack.c.b16 %v1025, %v1021
    %v1334 = vpack.c.b16 %v1026, %v1022
    %v1335 = vpack.c.b16 %v1027, %v1023
    %v1336 = vpack.c.b16 %v1028, %v1024
    %v1337 = vpack.c.b16 %v1033, %v1029
    %v1338 = vpack.c.b16 %v1034, %v1030
    %v1339 = vpack.c.b16 %v1035, %v1031
    %v1340 = vpack.c.b16 %v1036, %v1032
    %v1341 = vpack.c.b16 %v1041, %v1037
    %v1342 = vpack.c.b16 %v1042, %v1038
    %v1343 = vpack.c.b16 %v1043, %v1039
    %v1344 = vpack.c.b16 %v1044, %v1040
    %v1345 = vpack.c.b16 %v1049, %v1045
    %v1346 = vpack.c.b16 %v1050, %v1046
    %v1347 = vpack.c.b16 %v1051, %v1047
    %v1348 = vpack.c.b16 %v1052, %v1048
    %v1349 = vpack.c.b16 %v1057, %v1053
    %v1350 = vpack.c.b16 %v1058, %v1054
    %v1351 = vpack.c.b16 %v1059, %v1055
    %v1352 = vpack.c.b16 %v1060, %v1056
    %v1353 = vpack.c.b16 %v1065, %v1061
    %v1354 = vpack.c.b16 %v1066, %v1062
    %v1355 = vpack.c.b16 %v1067, %v1063
    %v1356 = vpack.c.b16 %v1068, %v1064
    %v1357 = vpack.c.b16 %v1073, %v1069
    %v1358 = vpack.c.b16 %v1074, %v1070
    %v1359 = vpack.c.b16 %v1075, %v1071
    %v1360 = vpack.c.b16 %v1076, %v1072
    %v1361 = vpack.c.b16 %v1081, %v1077
    %v1362 = vpack.c.b16 %v1082, %v1078
    %v1363 = vpack.c.b16 %v1083, %v1079
    %v1364 = vpack.c.b16 %v1084, %v1080
    %v1365 = vpack.c.b16 %v1089, %v1085
    %v1366 = vpack.c.b16 %v1090, %v1086
    %v1367 = vpack.c.b16 %v1091, %v1087
    %v1368 = vpack.c.b16 %v1092, %v1088
    %v1369 = vpack.c.b16 %v1097, %v1093
    %v1370 = vpack.c.b16 %v1098, %v1094
    %v1371 = vpack.c.b16 %v1099, %v1095
    %v1372 = vpack.c.b16 %v1100, %v1096
    %v1373 = vpack.c.b16 %v1105, %v1101
    %v1374 = vpack.c.b16 %v1106, %v1102
    %v1375 = vpack.c.b16 %v1107, %v1103
    %v1376 = vpack.c.b16 %v1108, %v1104
    %v1377 = vpack.c.b16 %v1113, %v1109
    %v1378 = vpack.c.b16 %v1114, %v1110
    %v1379 = vpack.c.b16 %v1115, %v1111
    %v1380 = vpack.c.b16 %v1116, %v1112
    %v1381 = vpack.c.b16 %v1121, %v1117
    %v1382 = vpack.c.b16 %v1122, %v1118
    %v1383 = vpack.c.b16 %v1123, %v1119
    %v1384 = vpack.c.b16 %v1124, %v1120
    %v1385 = vpack.c.b16 %v1129, %v1125
    %v1386 = vpack.c.b16 %v1130, %v1126
    %v1387 = vpack.c.b16 %v1131, %v1127
    %v1388 = vpack.c.b16 %v1132, %v1128
    %1645 = vmatprep.subr.bf16.mxu0 %v1134
    %1646 = vmatpush1.bf16.msra.mxu0 %v1133
    %1647 = vmatprep.subr.bf16.mxu0 %v1138
    %1648 = vmatpush1.bf16.msra.mxu0 %v1137
    %1649 = vmatprep.subr.bf16.mxu0 %v1142
    %1650 = vmatpush1.bf16.msra.mxu0 %v1141
    %1651 = vmatprep.subr.bf16.mxu0 %v1146
    %1652 = vmatpush1.bf16.msra.mxu0 %v1145
    %1653 = vmatprep.subr.bf16.mxu0 %v1150
    %1654 = vmatpush1.bf16.msra.mxu0 %v1149
    %1655 = vmatprep.subr.bf16.mxu0 %v1154
    %1656 = vmatpush1.bf16.msra.mxu0 %v1153
    %1657 = vmatprep.subr.bf16.mxu0 %v1158
    %1658 = vmatpush1.bf16.msra.mxu0 %v1157
    %1659 = vmatprep.subr.bf16.mxu0 %v1162
    %1660 = vmatpush1.bf16.msra.mxu0 %v1161
    %1661 = vmatprep.subr.bf16.mxu0 %v1166
    %1662 = vmatpush1.bf16.msra.mxu0 %v1165
    %1663 = vmatprep.subr.bf16.mxu0 %v1170
    %1664 = vmatpush1.bf16.msra.mxu0 %v1169
    %1665 = vmatprep.subr.bf16.mxu0 %v1174
    %1666 = vmatpush1.bf16.msra.mxu0 %v1173
    %1667 = vmatprep.subr.bf16.mxu0 %v1178
    %1668 = vmatpush1.bf16.msra.mxu0 %v1177
    %1669 = vmatprep.subr.bf16.mxu0 %v1182
    %1670 = vmatpush1.bf16.msra.mxu0 %v1181
    %1671 = vmatprep.subr.bf16.mxu0 %v1186
    %1672 = vmatpush1.bf16.msra.mxu0 %v1185
    %1673 = vmatprep.subr.bf16.mxu0 %v1190
    %1674 = vmatpush1.bf16.msra.mxu0 %v1189
    %1675 = vmatprep.subr.bf16.mxu0 %v1194
    %1676 = vmatpush1.bf16.msra.mxu0 %v1193
    %1677 = vmatprep.mubr.bf16.mxu0 %v345
    %1678 = vmatmul.mubr.bf16.gmra.mrb[0].mxu0 %v331
    %v1679 = vpop.f32.mrb[0].mxu0
    %v1680 = vadd.f32 %v290, %v1679
    %v1681 = vpop.f32.mrb[0].mxu0
    %v1682 = vadd.f32 %v294, %v1681
    %v1683 = vpop.f32.mrb[0].mxu0
    %v1684 = vpop.f32.mrb[0].mxu0
    %1685 = vdwg.mxu0
    %1686 = vmatprep.subr.bf16.mxu0 %v1198
    %1687 = vmatpush1.bf16.msra.mxu0 %v1197
    %1688 = vmatprep.subr.bf16.mxu0 %v1202
    %1689 = vmatpush1.bf16.msra.mxu0 %v1201
    %1690 = vmatprep.subr.bf16.mxu0 %v1206
    %1691 = vmatpush1.bf16.msra.mxu0 %v1205
    %1692 = vmatprep.subr.bf16.mxu0 %v1210
    %1693 = vmatpush1.bf16.msra.mxu0 %v1209
    %1694 = vmatprep.subr.bf16.mxu0 %v1214
    %1695 = vmatpush1.bf16.msra.mxu0 %v1213
    %1696 = vmatprep.subr.bf16.mxu0 %v1218
    %1697 = vmatpush1.bf16.msra.mxu0 %v1217
    %1698 = vmatprep.subr.bf16.mxu0 %v1222
    %1699 = vmatpush1.bf16.msra.mxu0 %v1221
    %1700 = vmatprep.subr.bf16.mxu0 %v1226
    %1701 = vmatpush1.bf16.msra.mxu0 %v1225
    %1702 = vmatprep.subr.bf16.mxu0 %v1230
    %1703 = vmatpush1.bf16.msra.mxu0 %v1229
    %1704 = vmatprep.subr.bf16.mxu0 %v1234
    %1705 = vmatpush1.bf16.msra.mxu0 %v1233
    %1706 = vmatprep.subr.bf16.mxu0 %v1238
    %1707 = vmatpush1.bf16.msra.mxu0 %v1237
    %1708 = vmatprep.subr.bf16.mxu0 %v1242
    %1709 = vmatpush1.bf16.msra.mxu0 %v1241
    %1710 = vmatprep.subr.bf16.mxu0 %v1246
    %1711 = vmatpush1.bf16.msra.mxu0 %v1245
    %1712 = vmatprep.subr.bf16.mxu0 %v1250
    %1713 = vmatpush1.bf16.msra.mxu0 %v1249
    %1714 = vmatprep.subr.bf16.mxu0 %v1254
    %1715 = vmatpush1.bf16.msra.mxu0 %v1253
    %1716 = vmatprep.subr.bf16.mxu0 %v1258
    %1717 = vmatpush1.bf16.msra.mxu0 %v1257
    %1718 = vmatprep.mubr.bf16.mxu0 %v355
    %1719 = vmatmul.mubr.bf16.gmra.mrb[0].mxu0 %v353
    %v1720 = vpop.f32.mrb[0].mxu0
    %v1721 = vadd.f32 %v1680, %v1720
    %v1722 = vpop.f32.mrb[0].mxu0
    %v1723 = vadd.f32 %v1682, %v1722
    %v1724 = vpop.f32.mrb[0].mxu0
    %v1725 = vpop.f32.mrb[0].mxu0
    %1726 = vdwg.mxu0
    %1727 = vmatprep.subr.bf16.mxu0 %v1262
    %1728 = vmatpush1.bf16.msra.mxu0 %v1261
    %1729 = vmatprep.subr.bf16.mxu0 %v1266
    %1730 = vmatpush1.bf16.msra.mxu0 %v1265
    %1731 = vmatprep.subr.bf16.mxu0 %v1270
    %1732 = vmatpush1.bf16.msra.mxu0 %v1269
    %1733 = vmatprep.subr.bf16.mxu0 %v1274
    %1734 = vmatpush1.bf16.msra.mxu0 %v1273
    %1735 = vmatprep.subr.bf16.mxu0 %v1278
    %1736 = vmatpush1.bf16.msra.mxu0 %v1277
    %1737 = vmatprep.subr.bf16.mxu0 %v1282
    %1738 = vmatpush1.bf16.msra.mxu0 %v1281
    %1739 = vmatprep.subr.bf16.mxu0 %v1286
    %1740 = vmatpush1.bf16.msra.mxu0 %v1285
    %1741 = vmatprep.subr.bf16.mxu0 %v1290
    %1742 = vmatpush1.bf16.msra.mxu0 %v1289
    %1743 = vmatprep.subr.bf16.mxu0 %v1294
    %1744 = vmatpush1.bf16.msra.mxu0 %v1293
    %1745 = vmatprep.subr.bf16.mxu0 %v1298
    %1746 = vmatpush1.bf16.msra.mxu0 %v1297
    %1747 = vmatprep.subr.bf16.mxu0 %v1302
    %1748 = vmatpush1.bf16.msra.mxu0 %v1301
    %1749 = vmatprep.subr.bf16.mxu0 %v1306
    %1750 = vmatpush1.bf16.msra.mxu0 %v1305
    %1751 = vmatprep.subr.bf16.mxu0 %v1310
    %1752 = vmatpush1.bf16.msra.mxu0 %v1309
    %1753 = vmatprep.subr.bf16.mxu0 %v1314
    %1754 = vmatpush1.bf16.msra.mxu0 %v1313
    %1755 = vmatprep.subr.bf16.mxu0 %v1318
    %1756 = vmatpush1.bf16.msra.mxu0 %v1317
    %1757 = vmatprep.subr.bf16.mxu0 %v1322
    %1758 = vmatpush1.bf16.msra.mxu0 %v1321
    %1759 = vmatprep.mubr.bf16.mxu0 %v352
    %1760 = vmatmul.mubr.bf16.gmra.mrb[0].mxu0 %v338
    %v1761 = vpop.f32.mrb[0].mxu0
    %v1762 = vadd.f32 %v1721, %v1761
    %v1763 = vpop.f32.mrb[0].mxu0
    %v1764 = vadd.f32 %v1723, %v1763
    %v1765 = vpop.f32.mrb[0].mxu0
    %v1766 = vpop.f32.mrb[0].mxu0
    %1767 = vdwg.mxu0
    %1768 = vmatprep.subr.bf16.mxu0 %v1326
    %1769 = vmatpush1.bf16.msra.mxu0 %v1325
    %1770 = vmatprep.subr.bf16.mxu0 %v1330
    %1771 = vmatpush1.bf16.msra.mxu0 %v1329
    %1772 = vmatprep.subr.bf16.mxu0 %v1334
    %1773 = vmatpush1.bf16.msra.mxu0 %v1333
    %1774 = vmatprep.subr.bf16.mxu0 %v1338
    %1775 = vmatpush1.bf16.msra.mxu0 %v1337
    %1776 = vmatprep.subr.bf16.mxu0 %v1342
    %1777 = vmatpush1.bf16.msra.mxu0 %v1341
    %1778 = vmatprep.subr.bf16.mxu0 %v1346
    %1779 = vmatpush1.bf16.msra.mxu0 %v1345
    %1780 = vmatprep.subr.bf16.mxu0 %v1350
    %1781 = vmatpush1.bf16.msra.mxu0 %v1349
    %1782 = vmatprep.subr.bf16.mxu0 %v1354
    %1783 = vmatpush1.bf16.msra.mxu0 %v1353
    %1784 = vmatprep.subr.bf16.mxu0 %v1358
    %1785 = vmatpush1.bf16.msra.mxu0 %v1357
    %1786 = vmatprep.subr.bf16.mxu0 %v1362
    %1787 = vmatpush1.bf16.msra.mxu0 %v1361
    %1788 = vmatprep.subr.bf16.mxu0 %v1366
    %1789 = vmatpush1.bf16.msra.mxu0 %v1365
    %1790 = vmatprep.subr.bf16.mxu0 %v1370
    %1791 = vmatpush1.bf16.msra.mxu0 %v1369
    %1792 = vmatprep.subr.bf16.mxu0 %v1374
    %1793 = vmatpush1.bf16.msra.mxu0 %v1373
    %1794 = vmatprep.subr.bf16.mxu0 %v1378
    %1795 = vmatpush1.bf16.msra.mxu0 %v1377
    %1796 = vmatprep.subr.bf16.mxu0 %v1382
    %1797 = vmatpush1.bf16.msra.mxu0 %v1381
    %1798 = vmatprep.subr.bf16.mxu0 %v1386
    %1799 = vmatpush1.bf16.msra.mxu0 %v1385
    %1800 = vmatprep.mubr.bf16.mxu0 %v356
    %1801 = vmatmul.mubr.bf16.gmra.mrb[0].mxu0 %v354
    %v1802 = vpop.f32.mrb[0].mxu0
    %v1803 = vadd.f32 %v1762, %v1802
    %v1804 = vpop.f32.mrb[0].mxu0
    %v1805 = vadd.f32 %v1764, %v1804
    %v1806 = vpop.f32.mrb[0].mxu0
    %v1807 = vpop.f32.mrb[0].mxu0
    %1808 = vdwg.mxu0
    %1809 = vmatprep.subr.bf16.mxu0 %v1136
    %1810 = vmatpush1.bf16.msra.mxu0 %v1135
    %1811 = vmatprep.subr.bf16.mxu0 %v1140
    %1812 = vmatpush1.bf16.msra.mxu0 %v1139
    %1813 = vmatprep.subr.bf16.mxu0 %v1144
    %1814 = vmatpush1.bf16.msra.mxu0 %v1143
    %1815 = vmatprep.subr.bf16.mxu0 %v1148
    %1816 = vmatpush1.bf16.msra.mxu0 %v1147
    %1817 = vmatprep.subr.bf16.mxu0 %v1152
    %1818 = vmatpush1.bf16.msra.mxu0 %v1151
    %1819 = vmatprep.subr.bf16.mxu0 %v1156
    %1820 = vmatpush1.bf16.msra.mxu0 %v1155
    %1821 = vmatprep.subr.bf16.mxu0 %v1160
    %1822 = vmatpush1.bf16.msra.mxu0 %v1159
    %1823 = vmatprep.subr.bf16.mxu0 %v1164
    %1824 = vmatpush1.bf16.msra.mxu0 %v1163
    %1825 = vmatprep.subr.bf16.mxu0 %v1168
    %1826 = vmatpush1.bf16.msra.mxu0 %v1167
    %1827 = vmatprep.subr.bf16.mxu0 %v1172
    %1828 = vmatpush1.bf16.msra.mxu0 %v1171
    %1829 = vmatprep.subr.bf16.mxu0 %v1176
    %1830 = vmatpush1.bf16.msra.mxu0 %v1175
    %1831 = vmatprep.subr.bf16.mxu0 %v1180
    %1832 = vmatpush1.bf16.msra.mxu0 %v1179
    %1833 = vmatprep.subr.bf16.mxu0 %v1184
    %1834 = vmatpush1.bf16.msra.mxu0 %v1183
    %1835 = vmatprep.subr.bf16.mxu0 %v1188
    %1836 = vmatpush1.bf16.msra.mxu0 %v1187
    %1837 = vmatprep.subr.bf16.mxu0 %v1192
    %1838 = vmatpush1.bf16.msra.mxu0 %v1191
    %1839 = vmatprep.subr.bf16.mxu0 %v1196
    %1840 = vmatpush1.bf16.msra.mxu0 %v1195
    %1841 = vmatprep.mubr.bf16.mxu0 %v345
    %1842 = vmatmul.mubr.bf16.gmra.mrb[0].mxu0 %v331
    %v1843 = vpop.f32.mrb[0].mxu0
    %v1844 = vadd.f32 %v298, %v1843
    %v1845 = vpop.f32.mrb[0].mxu0
    %v1846 = vadd.f32 %v302, %v1845
    %v1847 = vpop.f32.mrb[0].mxu0
    %v1848 = vpop.f32.mrb[0].mxu0
    %1849 = vdwg.mxu0
    %1850 = vmatprep.subr.bf16.mxu0 %v1200
    %1851 = vmatpush1.bf16.msra.mxu0 %v1199
    %1852 = vmatprep.subr.bf16.mxu0 %v1204
    %1853 = vmatpush1.bf16.msra.mxu0 %v1203
    %1854 = vmatprep.subr.bf16.mxu0 %v1208
    %1855 = vmatpush1.bf16.msra.mxu0 %v1207
    %1856 = vmatprep.subr.bf16.mxu0 %v1212
    %1857 = vmatpush1.bf16.msra.mxu0 %v1211
    %1858 = vmatprep.subr.bf16.mxu0 %v1216
    %1859 = vmatpush1.bf16.msra.mxu0 %v1215
    %1860 = vmatprep.subr.bf16.mxu0 %v1220
    %1861 = vmatpush1.bf16.msra.mxu0 %v1219
    %1862 = vmatprep.subr.bf16.mxu0 %v1224
    %1863 = vmatpush1.bf16.msra.mxu0 %v1223
    %1864 = vmatprep.subr.bf16.mxu0 %v1228
    %1865 = vmatpush1.bf16.msra.mxu0 %v1227
    %1866 = vmatprep.subr.bf16.mxu0 %v1232
    %1867 = vmatpush1.bf16.msra.mxu0 %v1231
    %1868 = vmatprep.subr.bf16.mxu0 %v1236
    %1869 = vmatpush1.bf16.msra.mxu0 %v1235
    %1870 = vmatprep.subr.bf16.mxu0 %v1240
    %1871 = vmatpush1.bf16.msra.mxu0 %v1239
    %1872 = vmatprep.subr.bf16.mxu0 %v1244
    %1873 = vmatpush1.bf16.msra.mxu0 %v1243
    %1874 = vmatprep.subr.bf16.mxu0 %v1248
    %1875 = vmatpush1.bf16.msra.mxu0 %v1247
    %1876 = vmatprep.subr.bf16.mxu0 %v1252
    %1877 = vmatpush1.bf16.msra.mxu0 %v1251
    %1878 = vmatprep.subr.bf16.mxu0 %v1256
    %1879 = vmatpush1.bf16.msra.mxu0 %v1255
    %1880 = vmatprep.subr.bf16.mxu0 %v1260
    %1881 = vmatpush1.bf16.msra.mxu0 %v1259
    %1882 = vmatprep.mubr.bf16.mxu0 %v355
    %1883 = vmatmul.mubr.bf16.gmra.mrb[0].mxu0 %v353
    %v1884 = vpop.f32.mrb[0].mxu0
    %v1885 = vadd.f32 %v1844, %v1884
    %v1886 = vpop.f32.mrb[0].mxu0
    %v1887 = vadd.f32 %v1846, %v1886
    %v1888 = vpop.f32.mrb[0].mxu0
    %v1889 = vpop.f32.mrb[0].mxu0
    %1890 = vdwg.mxu0
    %1891 = vmatprep.subr.bf16.mxu0 %v1264
    %1892 = vmatpush1.bf16.msra.mxu0 %v1263
    %1893 = vmatprep.subr.bf16.mxu0 %v1268
    %1894 = vmatpush1.bf16.msra.mxu0 %v1267
    %1895 = vmatprep.subr.bf16.mxu0 %v1272
    %1896 = vmatpush1.bf16.msra.mxu0 %v1271
    %1897 = vmatprep.subr.bf16.mxu0 %v1276
    %1898 = vmatpush1.bf16.msra.mxu0 %v1275
    %1899 = vmatprep.subr.bf16.mxu0 %v1280
    %1900 = vmatpush1.bf16.msra.mxu0 %v1279
    %1901 = vmatprep.subr.bf16.mxu0 %v1284
    %1902 = vmatpush1.bf16.msra.mxu0 %v1283
    %1903 = vmatprep.subr.bf16.mxu0 %v1288
    %1904 = vmatpush1.bf16.msra.mxu0 %v1287
    %1905 = vmatprep.subr.bf16.mxu0 %v1292
    %1906 = vmatpush1.bf16.msra.mxu0 %v1291
    %1907 = vmatprep.subr.bf16.mxu0 %v1296
    %1908 = vmatpush1.bf16.msra.mxu0 %v1295
    %1909 = vmatprep.subr.bf16.mxu0 %v1300
    %1910 = vmatpush1.bf16.msra.mxu0 %v1299
    %1911 = vmatprep.subr.bf16.mxu0 %v1304
    %1912 = vmatpush1.bf16.msra.mxu0 %v1303
    %1913 = vmatprep.subr.bf16.mxu0 %v1308
    %1914 = vmatpush1.bf16.msra.mxu0 %v1307
    %1915 = vmatprep.subr.bf16.mxu0 %v1312
    %1916 = vmatpush1.bf16.msra.mxu0 %v1311
    %1917 = vmatprep.subr.bf16.mxu0 %v1316
    %1918 = vmatpush1.bf16.msra.mxu0 %v1315
    %1919 = vmatprep.subr.bf16.mxu0 %v1320
    %1920 = vmatpush1.bf16.msra.mxu0 %v1319
    %1921 = vmatprep.subr.bf16.mxu0 %v1324
    %1922 = vmatpush1.bf16.msra.mxu0 %v1323
    %1923 = vmatprep.mubr.bf16.mxu0 %v352
    %1924 = vmatmul.mubr.bf16.gmra.mrb[0].mxu0 %v338
    %v1925 = vpop.f32.mrb[0].mxu0
    %v1926 = vadd.f32 %v1885, %v1925
    %v1927 = vpop.f32.mrb[0].mxu0
    %v1928 = vadd.f32 %v1887, %v1927
    %v1929 = vpop.f32.mrb[0].mxu0
    %v1930 = vpop.f32.mrb[0].mxu0
    %1931 = vdwg.mxu0
    %1932 = vmatprep.subr.bf16.mxu0 %v1328
    %1933 = vmatpush1.bf16.msra.mxu0 %v1327
    %1934 = vmatprep.subr.bf16.mxu0 %v1332
    %1935 = vmatpush1.bf16.msra.mxu0 %v1331
    %1936 = vmatprep.subr.bf16.mxu0 %v1336
    %1937 = vmatpush1.bf16.msra.mxu0 %v1335
    %1938 = vmatprep.subr.bf16.mxu0 %v1340
    %1939 = vmatpush1.bf16.msra.mxu0 %v1339
    %1940 = vmatprep.subr.bf16.mxu0 %v1344
    %1941 = vmatpush1.bf16.msra.mxu0 %v1343
    %1942 = vmatprep.subr.bf16.mxu0 %v1348
    %1943 = vmatpush1.bf16.msra.mxu0 %v1347
    %1944 = vmatprep.subr.bf16.mxu0 %v1352
    %1945 = vmatpush1.bf16.msra.mxu0 %v1351
    %1946 = vmatprep.subr.bf16.mxu0 %v1356
    %1947 = vmatpush1.bf16.msra.mxu0 %v1355
    %1948 = vmatprep.subr.bf16.mxu0 %v1360
    %1949 = vmatpush1.bf16.msra.mxu0 %v1359
    %1950 = vmatprep.subr.bf16.mxu0 %v1364
    %1951 = vmatpush1.bf16.msra.mxu0 %v1363
    %1952 = vmatprep.subr.bf16.mxu0 %v1368
    %1953 = vmatpush1.bf16.msra.mxu0 %v1367
    %1954 = vmatprep.subr.bf16.mxu0 %v1372
    %1955 = vmatpush1.bf16.msra.mxu0 %v1371
    %1956 = vmatprep.subr.bf16.mxu0 %v1376
    %1957 = vmatpush1.bf16.msra.mxu0 %v1375
    %1958 = vmatprep.subr.bf16.mxu0 %v1380
    %1959 = vmatpush1.bf16.msra.mxu0 %v1379
    %1960 = vmatprep.subr.bf16.mxu0 %v1384
    %1961 = vmatpush1.bf16.msra.mxu0 %v1383
    %1962 = vmatprep.subr.bf16.mxu0 %v1388
    %1963 = vmatpush1.bf16.msra.mxu0 %v1387
    %1964 = vmatprep.mubr.bf16.mxu0 %v356
    %1965 = vmatmul.mubr.bf16.gmra.mrb[0].mxu0 %v354
    %v1966 = vpop.f32.mrb[0].mxu0
    %v1967 = vadd.f32 %v1926, %v1966
    %v1968 = vpop.f32.mrb[0].mxu0
    %v1969 = vadd.f32 %v1928, %v1968
    %v1970 = vpop.f32.mrb[0].mxu0
    %v1971 = vpop.f32.mrb[0].mxu0
    %1972 = vdwg.mxu0
    %v1973 = vmax.f32 %v1803, 0.0
    %v1974 = vmax.f32 %v1805, 0.0
    %v1975 = vmax.f32 %v1967, 0.0
    %v1976 = vmax.f32 %v1969, 0.0
    %v1977 = vpack.c.bf16 %v1973, %v1973
    %v1978 = vpack.c.bf16 %v1974, %v1974
    %v1979 = vpack.c.bf16 %v1975, %v1975
    %v1980 = vpack.c.bf16 %v1976, %v1976
    %v1981 = vld [vmem:[%s3] sm:$0xff]
    %v1982 = vld [vmem:[%s3 + $0x8] sm:$0xff]
    %v1983 = vld [vmem:[%s3 + $0x10] sm:$0xff]
    %v1984 = vld [vmem:[%s3 + $0x18] sm:$0xff]
    %v1985 = vld [vmem:[%s3 + $0x20] sm:$0xff]
    %v1986 = vld [vmem:[%s3 + $0x28] sm:$0xff]
    %v1987 = vld [vmem:[%s3 + $0x30] sm:$0xff]
    %v1988 = vld [vmem:[%s3 + $0x38] sm:$0xff]
    %v1989 = vld [vmem:[%s3 + $0x40] sm:$0xff]
    %v1990 = vld [vmem:[%s3 + $0x48] sm:$0xff]
    %v1991 = vld [vmem:[%s3 + $0x50] sm:$0xff]
    %v1992 = vld [vmem:[%s3 + $0x58] sm:$0xff]
    %v1993 = vld [vmem:[%s3 + $0x60] sm:$0xff]
    %v1994 = vld [vmem:[%s3 + $0x68] sm:$0xff]
    %v1995 = vld [vmem:[%s3 + $0x70] sm:$0xff]
    %v1996 = vld [vmem:[%s3 + $0x78] sm:$0xff]
    %v1997 = vld [vmem:[%s3 + $0x80] sm:$0xff]
    %v1998 = vld [vmem:[%s3 + $0x88] sm:$0xff]
    %v1999 = vld [vmem:[%s3 + $0x90] sm:$0xff]
    %v2000 = vld [vmem:[%s3 + $0x98] sm:$0xff]
    %v2001 = vld [vmem:[%s3 + $0xa0] sm:$0xff]
    %v2002 = vld [vmem:[%s3 + $0xa8] sm:$0xff]
    %v2003 = vld [vmem:[%s3 + $0xb0] sm:$0xff]
    %v2004 = vld [vmem:[%s3 + $0xb8] sm:$0xff]
    %v2005 = vld [vmem:[%s3 + $0xc0] sm:$0xff]
    %v2006 = vld [vmem:[%s3 + $0xc8] sm:$0xff]
    %v2007 = vld [vmem:[%s3 + $0xd0] sm:$0xff]
    %v2008 = vld [vmem:[%s3 + $0xd8] sm:$0xff]
    %v2009 = vld [vmem:[%s3 + $0xe0] sm:$0xff]
    %v2010 = vld [vmem:[%s3 + $0xe8] sm:$0xff]
    %v2011 = vld [vmem:[%s3 + $0xf0] sm:$0xff]
    %v2012 = vld [vmem:[%s3 + $0xf8] sm:$0xff]
    %v2013 = vld [vmem:[%s3 + $0x100] sm:$0xff]
    %v2014 = vld [vmem:[%s3 + $0x108] sm:$0xff]
    %v2015 = vld [vmem:[%s3 + $0x110] sm:$0xff]
    %v2016 = vld [vmem:[%s3 + $0x118] sm:$0xff]
    %v2017 = vld [vmem:[%s3 + $0x120] sm:$0xff]
    %v2018 = vld [vmem:[%s3 + $0x128] sm:$0xff]
    %v2019 = vld [vmem:[%s3 + $0x130] sm:$0xff]
    %v2020 = vld [vmem:[%s3 + $0x138] sm:$0xff]
    %v2021 = vld [vmem:[%s3 + $0x140] sm:$0xff]
    %v2022 = vld [vmem:[%s3 + $0x148] sm:$0xff]
    %v2023 = vld [vmem:[%s3 + $0x150] sm:$0xff]
    %v2024 = vld [vmem:[%s3 + $0x158] sm:$0xff]
    %v2025 = vld [vmem:[%s3 + $0x160] sm:$0xff]
    %v2026 = vld [vmem:[%s3 + $0x168] sm:$0xff]
    %v2027 = vld [vmem:[%s3 + $0x170] sm:$0xff]
    %v2028 = vld [vmem:[%s3 + $0x178] sm:$0xff]
    %v2029 = vld [vmem:[%s3 + $0x180] sm:$0xff]
    %v2030 = vld [vmem:[%s3 + $0x188] sm:$0xff]
    %v2031 = vld [vmem:[%s3 + $0x190] sm:$0xff]
    %v2032 = vld [vmem:[%s3 + $0x198] sm:$0xff]
    %v2033 = vld [vmem:[%s3 + $0x1a0] sm:$0xff]
    %v2034 = vld [vmem:[%s3 + $0x1a8] sm:$0xff]
    %v2035 = vld [vmem:[%s3 + $0x1b0] sm:$0xff]
    %v2036 = vld [vmem:[%s3 + $0x1b8] sm:$0xff]
    %v2037 = vld [vmem:[%s3 + $0x1c0] sm:$0xff]
    %v2038 = vld [vmem:[%s3 + $0x1c8] sm:$0xff]
    %v2039 = vld [vmem:[%s3 + $0x1d0] sm:$0xff]
    %v2040 = vld [vmem:[%s3 + $0x1d8] sm:$0xff]
    %v2041 = vld [vmem:[%s3 + $0x1e0] sm:$0xff]
    %v2042 = vld [vmem:[%s3 + $0x1e8] sm:$0xff]
    %v2043 = vld [vmem:[%s3 + $0x1f0] sm:$0xff]
    %v2044 = vld [vmem:[%s3 + $0x1f8] sm:$0xff]
    %v2045 = vld [vmem:[%s4] sm:$0x3]
    %v2047 = vlaneseq
    %v2048 = vshrl.u32 %v2047, 7
    %v2049 = vsub.s32 0, %v2048
    %v2050 = vrot.slane %v2045, %v2049
    %v2051 = vlaneseq
    %v2052 = vshrl.u32 %v2051, 7
    %v2053 = vsub.s32 1, %v2052
    %v2054 = vrot.slane %v2045, %v2053
    %v2121 = vunpack.c.l.b16 %v1981
    %v2122 = vunpack.c.h.b16 %v1981
    %v2123 = vunpack.c.l.b16 %v1982
    %v2124 = vunpack.c.h.b16 %v1982
    %v2125 = vunpack.c.l.b16 %v1983
    %v2126 = vunpack.c.h.b16 %v1983
    %v2127 = vunpack.c.l.b16 %v1984
    %v2128 = vunpack.c.h.b16 %v1984
    %v2129 = vunpack.c.l.b16 %v1985
    %v2130 = vunpack.c.h.b16 %v1985
    %v2131 = vunpack.c.l.b16 %v1986
    %v2132 = vunpack.c.h.b16 %v1986
    %v2133 = vunpack.c.l.b16 %v1987
    %v2134 = vunpack.c.h.b16 %v1987
    %v2135 = vunpack.c.l.b16 %v1988
    %v2136 = vunpack.c.h.b16 %v1988
    %v2137 = vunpack.c.l.b16 %v1989
    %v2138 = vunpack.c.h.b16 %v1989
    %v2139 = vunpack.c.l.b16 %v1990
    %v2140 = vunpack.c.h.b16 %v1990
    %v2141 = vunpack.c.l.b16 %v1991
    %v2142 = vunpack.c.h.b16 %v1991
    %v2143 = vunpack.c.l.b16 %v1992
    %v2144 = vunpack.c.h.b16 %v1992
    %v2145 = vunpack.c.l.b16 %v1993
    %v2146 = vunpack.c.h.b16 %v1993
    %v2147 = vunpack.c.l.b16 %v1994
    %v2148 = vunpack.c.h.b16 %v1994
    %v2149 = vunpack.c.l.b16 %v1995
    %v2150 = vunpack.c.h.b16 %v1995
    %v2151 = vunpack.c.l.b16 %v1996
    %v2152 = vunpack.c.h.b16 %v1996
    %v2153 = vunpack.c.l.b16 %v1997
    %v2154 = vunpack.c.h.b16 %v1997
    %v2155 = vunpack.c.l.b16 %v1998
    %v2156 = vunpack.c.h.b16 %v1998
    %v2157 = vunpack.c.l.b16 %v1999
    %v2158 = vunpack.c.h.b16 %v1999
    %v2159 = vunpack.c.l.b16 %v2000
    %v2160 = vunpack.c.h.b16 %v2000
    %v2161 = vunpack.c.l.b16 %v2001
    %v2162 = vunpack.c.h.b16 %v2001
    %v2163 = vunpack.c.l.b16 %v2002
    %v2164 = vunpack.c.h.b16 %v2002
    %v2165 = vunpack.c.l.b16 %v2003
    %v2166 = vunpack.c.h.b16 %v2003
    %v2167 = vunpack.c.l.b16 %v2004
    %v2168 = vunpack.c.h.b16 %v2004
    %v2169 = vunpack.c.l.b16 %v2005
    %v2170 = vunpack.c.h.b16 %v2005
    %v2171 = vunpack.c.l.b16 %v2006
    %v2172 = vunpack.c.h.b16 %v2006
    %v2173 = vunpack.c.l.b16 %v2007
    %v2174 = vunpack.c.h.b16 %v2007
    %v2175 = vunpack.c.l.b16 %v2008
    %v2176 = vunpack.c.h.b16 %v2008
    %v2177 = vunpack.c.l.b16 %v2009
    %v2178 = vunpack.c.h.b16 %v2009
    %v2179 = vunpack.c.l.b16 %v2010
    %v2180 = vunpack.c.h.b16 %v2010
    %v2181 = vunpack.c.l.b16 %v2011
    %v2182 = vunpack.c.h.b16 %v2011
    %v2183 = vunpack.c.l.b16 %v2012
    %v2184 = vunpack.c.h.b16 %v2012
    %v2185 = vunpack.c.l.b16 %v2013
    %v2186 = vunpack.c.h.b16 %v2013
    %v2187 = vunpack.c.l.b16 %v2014
    %v2188 = vunpack.c.h.b16 %v2014
    %v2189 = vunpack.c.l.b16 %v2015
    %v2190 = vunpack.c.h.b16 %v2015
    %v2191 = vunpack.c.l.b16 %v2016
    %v2192 = vunpack.c.h.b16 %v2016
    %v2193 = vunpack.c.l.b16 %v2017
    %v2194 = vunpack.c.h.b16 %v2017
    %v2195 = vunpack.c.l.b16 %v2018
    %v2196 = vunpack.c.h.b16 %v2018
    %v2197 = vunpack.c.l.b16 %v2019
    %v2198 = vunpack.c.h.b16 %v2019
    %v2199 = vunpack.c.l.b16 %v2020
    %v2200 = vunpack.c.h.b16 %v2020
    %v2201 = vunpack.c.l.b16 %v2021
    %v2202 = vunpack.c.h.b16 %v2021
    %v2203 = vunpack.c.l.b16 %v2022
    %v2204 = vunpack.c.h.b16 %v2022
    %v2205 = vunpack.c.l.b16 %v2023
    %v2206 = vunpack.c.h.b16 %v2023
    %v2207 = vunpack.c.l.b16 %v2024
    %v2208 = vunpack.c.h.b16 %v2024
    %v2209 = vunpack.c.l.b16 %v2025
    %v2210 = vunpack.c.h.b16 %v2025
    %v2211 = vunpack.c.l.b16 %v2026
    %v2212 = vunpack.c.h.b16 %v2026
    %v2213 = vunpack.c.l.b16 %v2027
    %v2214 = vunpack.c.h.b16 %v2027
    %v2215 = vunpack.c.l.b16 %v2028
    %v2216 = vunpack.c.h.b16 %v2028
    %v2217 = vunpack.c.l.b16 %v2029
    %v2218 = vunpack.c.h.b16 %v2029
    %v2219 = vunpack.c.l.b16 %v2030
    %v2220 = vunpack.c.h.b16 %v2030
    %v2221 = vunpack.c.l.b16 %v2031
    %v2222 = vunpack.c.h.b16 %v2031
    %v2223 = vunpack.c.l.b16 %v2032
    %v2224 = vunpack.c.h.b16 %v2032
    %v2225 = vunpack.c.l.b16 %v2033
    %v2226 = vunpack.c.h.b16 %v2033
    %v2227 = vunpack.c.l.b16 %v2034
    %v2228 = vunpack.c.h.b16 %v2034
    %v2229 = vunpack.c.l.b16 %v2035
    %v2230 = vunpack.c.h.b16 %v2035
    %v2231 = vunpack.c.l.b16 %v2036
    %v2232 = vunpack.c.h.b16 %v2036
    %v2233 = vunpack.c.l.b16 %v2037
    %v2234 = vunpack.c.h.b16 %v2037
    %v2235 = vunpack.c.l.b16 %v2038
    %v2236 = vunpack.c.h.b16 %v2038
    %v2237 = vunpack.c.l.b16 %v2039
    %v2238 = vunpack.c.h.b16 %v2039
    %v2239 = vunpack.c.l.b16 %v2040
    %v2240 = vunpack.c.h.b16 %v2040
    %v2241 = vunpack.c.l.b16 %v2041
    %v2242 = vunpack.c.h.b16 %v2041
    %v2243 = vunpack.c.l.b16 %v2042
    %v2244 = vunpack.c.h.b16 %v2042
    %v2245 = vunpack.c.l.b16 %v2043
    %v2246 = vunpack.c.h.b16 %v2043
    %v2247 = vunpack.c.l.b16 %v2044
    %v2248 = vunpack.c.h.b16 %v2044
    %v2249 = vpack.c.b16 %v2123, %v2121
    %v2250 = vpack.c.b16 %v2124, %v2122
    %v2251 = vpack.c.b16 %v2127, %v2125
    %v2252 = vpack.c.b16 %v2128, %v2126
    %v2253 = vpack.c.b16 %v2131, %v2129
    %v2254 = vpack.c.b16 %v2132, %v2130
    %v2255 = vpack.c.b16 %v2135, %v2133
    %v2256 = vpack.c.b16 %v2136, %v2134
    %v2257 = vpack.c.b16 %v2139, %v2137
    %v2258 = vpack.c.b16 %v2140, %v2138
    %v2259 = vpack.c.b16 %v2143, %v2141
    %v2260 = vpack.c.b16 %v2144, %v2142
    %v2261 = vpack.c.b16 %v2147, %v2145
    %v2262 = vpack.c.b16 %v2148, %v2146
    %v2263 = vpack.c.b16 %v2151, %v2149
    %v2264 = vpack.c.b16 %v2152, %v2150
    %v2265 = vpack.c.b16 %v2155, %v2153
    %v2266 = vpack.c.b16 %v2156, %v2154
    %v2267 = vpack.c.b16 %v2159, %v2157
    %v2268 = vpack.c.b16 %v2160, %v2158
    %v2269 = vpack.c.b16 %v2163, %v2161
    %v2270 = vpack.c.b16 %v2164, %v2162
    %v2271 = vpack.c.b16 %v2167, %v2165
    %v2272 = vpack.c.b16 %v2168, %v2166
    %v2273 = vpack.c.b16 %v2171, %v2169
    %v2274 = vpack.c.b16 %v2172, %v2170
    %v2275 = vpack.c.b16 %v2175, %v2173
    %v2276 = vpack.c.b16 %v2176, %v2174
    %v2277 = vpack.c.b16 %v2179, %v2177
    %v2278 = vpack.c.b16 %v2180, %v2178
    %v2279 = vpack.c.b16 %v2183, %v2181
    %v2280 = vpack.c.b16 %v2184, %v2182
    %v2281 = vpack.c.b16 %v2187, %v2185
    %v2282 = vpack.c.b16 %v2188, %v2186
    %v2283 = vpack.c.b16 %v2191, %v2189
    %v2284 = vpack.c.b16 %v2192, %v2190
    %v2285 = vpack.c.b16 %v2195, %v2193
    %v2286 = vpack.c.b16 %v2196, %v2194
    %v2287 = vpack.c.b16 %v2199, %v2197
    %v2288 = vpack.c.b16 %v2200, %v2198
    %v2289 = vpack.c.b16 %v2203, %v2201
    %v2290 = vpack.c.b16 %v2204, %v2202
    %v2291 = vpack.c.b16 %v2207, %v2205
    %v2292 = vpack.c.b16 %v2208, %v2206
    %v2293 = vpack.c.b16 %v2211, %v2209
    %v2294 = vpack.c.b16 %v2212, %v2210
    %v2295 = vpack.c.b16 %v2215, %v2213
    %v2296 = vpack.c.b16 %v2216, %v2214
    %v2297 = vpack.c.b16 %v2219, %v2217
    %v2298 = vpack.c.b16 %v2220, %v2218
    %v2299 = vpack.c.b16 %v2223, %v2221
    %v2300 = vpack.c.b16 %v2224, %v2222
    %v2301 = vpack.c.b16 %v2227, %v2225
    %v2302 = vpack.c.b16 %v2228, %v2226
    %v2303 = vpack.c.b16 %v2231, %v2229
    %v2304 = vpack.c.b16 %v2232, %v2230
    %v2305 = vpack.c.b16 %v2235, %v2233
    %v2306 = vpack.c.b16 %v2236, %v2234
    %v2307 = vpack.c.b16 %v2239, %v2237
    %v2308 = vpack.c.b16 %v2240, %v2238
    %v2309 = vpack.c.b16 %v2243, %v2241
    %v2310 = vpack.c.b16 %v2244, %v2242
    %v2311 = vpack.c.b16 %v2247, %v2245
    %v2312 = vpack.c.b16 %v2248, %v2246
    %2377 = vmatprep.subr.bf16.mxu0 %v2250
    %2378 = vmatpush1.bf16.msra.mxu0 %v2249
    %2379 = vmatprep.subr.bf16.mxu0 %v2252
    %2380 = vmatpush1.bf16.msra.mxu0 %v2251
    %2381 = vmatprep.subr.bf16.mxu0 %v2254
    %2382 = vmatpush1.bf16.msra.mxu0 %v2253
    %2383 = vmatprep.subr.bf16.mxu0 %v2256
    %2384 = vmatpush1.bf16.msra.mxu0 %v2255
    %2385 = vmatprep.subr.bf16.mxu0 %v2258
    %2386 = vmatpush1.bf16.msra.mxu0 %v2257
    %2387 = vmatprep.subr.bf16.mxu0 %v2260
    %2388 = vmatpush1.bf16.msra.mxu0 %v2259
    %2389 = vmatprep.subr.bf16.mxu0 %v2262
    %2390 = vmatpush1.bf16.msra.mxu0 %v2261
    %2391 = vmatprep.subr.bf16.mxu0 %v2264
    %2392 = vmatpush1.bf16.msra.mxu0 %v2263
    %2393 = vmatprep.subr.bf16.mxu0 %v2266
    %2394 = vmatpush1.bf16.msra.mxu0 %v2265
    %2395 = vmatprep.subr.bf16.mxu0 %v2268
    %2396 = vmatpush1.bf16.msra.mxu0 %v2267
    %2397 = vmatprep.subr.bf16.mxu0 %v2270
    %2398 = vmatpush1.bf16.msra.mxu0 %v2269
    %2399 = vmatprep.subr.bf16.mxu0 %v2272
    %2400 = vmatpush1.bf16.msra.mxu0 %v2271
    %2401 = vmatprep.subr.bf16.mxu0 %v2274
    %2402 = vmatpush1.bf16.msra.mxu0 %v2273
    %2403 = vmatprep.subr.bf16.mxu0 %v2276
    %2404 = vmatpush1.bf16.msra.mxu0 %v2275
    %2405 = vmatprep.subr.bf16.mxu0 %v2278
    %2406 = vmatpush1.bf16.msra.mxu0 %v2277
    %2407 = vmatprep.subr.bf16.mxu0 %v2280
    %2408 = vmatpush1.bf16.msra.mxu0 %v2279
    %2409 = vmatprep.mubr.bf16.mxu0 %v1978
    %2410 = vmatmul.mubr.bf16.gmra.mrb[0].mxu0 %v1977
    %v2411 = vpop.f32.mrb[0].mxu0
    %v2412 = vadd.f32 %v2050, %v2411
    %v2413 = vpop.f32.mrb[0].mxu0
    %v2414 = vadd.f32 %v2054, %v2413
    %v2415 = vpop.f32.mrb[0].mxu0
    %v2416 = vpop.f32.mrb[0].mxu0
    %2417 = vdwg.mxu0
    %2418 = vmatprep.subr.bf16.mxu0 %v2282
    %2419 = vmatpush1.bf16.msra.mxu0 %v2281
    %2420 = vmatprep.subr.bf16.mxu0 %v2284
    %2421 = vmatpush1.bf16.msra.mxu0 %v2283
    %2422 = vmatprep.subr.bf16.mxu0 %v2286
    %2423 = vmatpush1.bf16.msra.mxu0 %v2285
    %2424 = vmatprep.subr.bf16.mxu0 %v2288
    %2425 = vmatpush1.bf16.msra.mxu0 %v2287
    %2426 = vmatprep.subr.bf16.mxu0 %v2290
    %2427 = vmatpush1.bf16.msra.mxu0 %v2289
    %2428 = vmatprep.subr.bf16.mxu0 %v2292
    %2429 = vmatpush1.bf16.msra.mxu0 %v2291
    %2430 = vmatprep.subr.bf16.mxu0 %v2294
    %2431 = vmatpush1.bf16.msra.mxu0 %v2293
    %2432 = vmatprep.subr.bf16.mxu0 %v2296
    %2433 = vmatpush1.bf16.msra.mxu0 %v2295
    %2434 = vmatprep.subr.bf16.mxu0 %v2298
    %2435 = vmatpush1.bf16.msra.mxu0 %v2297
    %2436 = vmatprep.subr.bf16.mxu0 %v2300
    %2437 = vmatpush1.bf16.msra.mxu0 %v2299
    %2438 = vmatprep.subr.bf16.mxu0 %v2302
    %2439 = vmatpush1.bf16.msra.mxu0 %v2301
    %2440 = vmatprep.subr.bf16.mxu0 %v2304
    %2441 = vmatpush1.bf16.msra.mxu0 %v2303
    %2442 = vmatprep.subr.bf16.mxu0 %v2306
    %2443 = vmatpush1.bf16.msra.mxu0 %v2305
    %2444 = vmatprep.subr.bf16.mxu0 %v2308
    %2445 = vmatpush1.bf16.msra.mxu0 %v2307
    %2446 = vmatprep.subr.bf16.mxu0 %v2310
    %2447 = vmatpush1.bf16.msra.mxu0 %v2309
    %2448 = vmatprep.subr.bf16.mxu0 %v2312
    %2449 = vmatpush1.bf16.msra.mxu0 %v2311
    %2450 = vmatprep.mubr.bf16.mxu0 %v1980
    %2451 = vmatmul.mubr.bf16.gmra.mrb[0].mxu0 %v1979
    %v2452 = vpop.f32.mrb[0].mxu0
    %v2453 = vadd.f32 %v2412, %v2452
    %v2454 = vpop.f32.mrb[0].mxu0
    %v2455 = vadd.f32 %v2414, %v2454
    %v2456 = vpop.f32.mrb[0].mxu0
    %v2457 = vpop.f32.mrb[0].mxu0
    %2458 = vdwg.mxu0
    %v2459 = vmax.f32 %v2453, 0.0
    %v2460 = vmax.f32 %v2455, 0.0
    %v2461 = vpack.c.bf16 %v2459, %v2459
    %v2462 = vpack.c.bf16 %v2460, %v2460
    %v2463 = vld [vmem:[%s5] sm:$0xf]
    %v2464 = vld [vmem:[%s5 + $0x4] sm:$0xf]
    %v2465 = vld [vmem:[%s5 + $0x8] sm:$0xf]
    %v2466 = vld [vmem:[%s5 + $0xc] sm:$0xf]
    %v2467 = vld [vmem:[%s5 + $0x10] sm:$0xf]
    %v2468 = vld [vmem:[%s5 + $0x14] sm:$0xf]
    %v2469 = vld [vmem:[%s5 + $0x18] sm:$0xf]
    %v2470 = vld [vmem:[%s5 + $0x1c] sm:$0xf]
    %v2471 = vld [vmem:[%s5 + $0x20] sm:$0xf]
    %v2472 = vld [vmem:[%s5 + $0x24] sm:$0xf]
    %v2473 = vld [vmem:[%s5 + $0x28] sm:$0xf]
    %v2474 = vld [vmem:[%s5 + $0x2c] sm:$0xf]
    %v2475 = vld [vmem:[%s5 + $0x30] sm:$0xf]
    %v2476 = vld [vmem:[%s5 + $0x34] sm:$0xf]
    %v2477 = vld [vmem:[%s5 + $0x38] sm:$0xf]
    %v2478 = vld [vmem:[%s5 + $0x3c] sm:$0xf]
    %v2479 = vld [vmem:[%s5 + $0x40] sm:$0xf]
    %v2480 = vld [vmem:[%s5 + $0x44] sm:$0xf]
    %v2481 = vld [vmem:[%s5 + $0x48] sm:$0xf]
    %v2482 = vld [vmem:[%s5 + $0x4c] sm:$0xf]
    %v2483 = vld [vmem:[%s5 + $0x50] sm:$0xf]
    %v2484 = vld [vmem:[%s5 + $0x54] sm:$0xf]
    %v2485 = vld [vmem:[%s5 + $0x58] sm:$0xf]
    %v2486 = vld [vmem:[%s5 + $0x5c] sm:$0xf]
    %v2487 = vld [vmem:[%s5 + $0x60] sm:$0xf]
    %v2488 = vld [vmem:[%s5 + $0x64] sm:$0xf]
    %v2489 = vld [vmem:[%s5 + $0x68] sm:$0xf]
    %v2490 = vld [vmem:[%s5 + $0x6c] sm:$0xf]
    %v2491 = vld [vmem:[%s5 + $0x70] sm:$0xf]
    %v2492 = vld [vmem:[%s5 + $0x74] sm:$0xf]
    %v2493 = vld [vmem:[%s5 + $0x78] sm:$0xf]
    %v2494 = vld [vmem:[%s5 + $0x7c] sm:$0xf]
    %v2495 = vld [vmem:[%s6] sm:$0x1]
    %v2497 = vlaneseq
    %v2498 = vshrl.u32 %v2497, 7
    %v2499 = vsub.s32 0, %v2498
    %v2500 = vrot.slane %v2495, %v2499
    %v2534 = vunpack.c.l.b16 %v2463
    %v2535 = vunpack.c.l.b16 %v2464
    %v2536 = vunpack.c.l.b16 %v2465
    %v2537 = vunpack.c.l.b16 %v2466
    %v2538 = vunpack.c.l.b16 %v2467
    %v2539 = vunpack.c.l.b16 %v2468
    %v2540 = vunpack.c.l.b16 %v2469
    %v2541 = vunpack.c.l.b16 %v2470
    %v2542 = vunpack.c.l.b16 %v2471
    %v2543 = vunpack.c.l.b16 %v2472
    %v2544 = vunpack.c.l.b16 %v2473
    %v2545 = vunpack.c.l.b16 %v2474
    %v2546 = vunpack.c.l.b16 %v2475
    %v2547 = vunpack.c.l.b16 %v2476
    %v2548 = vunpack.c.l.b16 %v2477
    %v2549 = vunpack.c.l.b16 %v2478
    %v2550 = vunpack.c.l.b16 %v2479
    %v2551 = vunpack.c.l.b16 %v2480
    %v2552 = vunpack.c.l.b16 %v2481
    %v2553 = vunpack.c.l.b16 %v2482
    %v2554 = vunpack.c.l.b16 %v2483
    %v2555 = vunpack.c.l.b16 %v2484
    %v2556 = vunpack.c.l.b16 %v2485
    %v2557 = vunpack.c.l.b16 %v2486
    %v2558 = vunpack.c.l.b16 %v2487
    %v2559 = vunpack.c.l.b16 %v2488
    %v2560 = vunpack.c.l.b16 %v2489
    %v2561 = vunpack.c.l.b16 %v2490
    %v2562 = vunpack.c.l.b16 %v2491
    %v2563 = vunpack.c.l.b16 %v2492
    %v2564 = vunpack.c.l.b16 %v2493
    %v2565 = vunpack.c.l.b16 %v2494
    %v2566 = vpack.c.b16 %v2535, %v2534
    %v2567 = vpack.c.b16 %v2537, %v2536
    %v2568 = vpack.c.b16 %v2539, %v2538
    %v2569 = vpack.c.b16 %v2541, %v2540
    %v2570 = vpack.c.b16 %v2543, %v2542
    %v2571 = vpack.c.b16 %v2545, %v2544
    %v2572 = vpack.c.b16 %v2547, %v2546
    %v2573 = vpack.c.b16 %v2549, %v2548
    %v2574 = vpack.c.b16 %v2551, %v2550
    %v2575 = vpack.c.b16 %v2553, %v2552
    %v2576 = vpack.c.b16 %v2555, %v2554
    %v2577 = vpack.c.b16 %v2557, %v2556
    %v2578 = vpack.c.b16 %v2559, %v2558
    %v2579 = vpack.c.b16 %v2561, %v2560
    %v2580 = vpack.c.b16 %v2563, %v2562
    %v2581 = vpack.c.b16 %v2565, %v2564
    %2598 = vmatprep.subr.bf16.mxu0 0
    %2599 = vmatpush1.bf16.msra.mxu0 %v2566
    %2600 = vmatprep.subr.bf16.mxu0 0
    %2601 = vmatpush1.bf16.msra.mxu0 %v2567
    %2602 = vmatprep.subr.bf16.mxu0 0
    %2603 = vmatpush1.bf16.msra.mxu0 %v2568
    %2604 = vmatprep.subr.bf16.mxu0 0
    %2605 = vmatpush1.bf16.msra.mxu0 %v2569
    %2606 = vmatprep.subr.bf16.mxu0 0
    %2607 = vmatpush1.bf16.msra.mxu0 %v2570
    %2608 = vmatprep.subr.bf16.mxu0 0
    %2609 = vmatpush1.bf16.msra.mxu0 %v2571
    %2610 = vmatprep.subr.bf16.mxu0 0
    %2611 = vmatpush1.bf16.msra.mxu0 %v2572
    %2612 = vmatprep.subr.bf16.mxu0 0
    %2613 = vmatpush1.bf16.msra.mxu0 %v2573
    %2614 = vmatprep.subr.bf16.mxu0 0
    %2615 = vmatpush1.bf16.msra.mxu0 %v2574
    %2616 = vmatprep.subr.bf16.mxu0 0
    %2617 = vmatpush1.bf16.msra.mxu0 %v2575
    %2618 = vmatprep.subr.bf16.mxu0 0
    %2619 = vmatpush1.bf16.msra.mxu0 %v2576
    %2620 = vmatprep.subr.bf16.mxu0 0
    %2621 = vmatpush1.bf16.msra.mxu0 %v2577
    %2622 = vmatprep.subr.bf16.mxu0 0
    %2623 = vmatpush1.bf16.msra.mxu0 %v2578
    %2624 = vmatprep.subr.bf16.mxu0 0
    %2625 = vmatpush1.bf16.msra.mxu0 %v2579
    %2626 = vmatprep.subr.bf16.mxu0 0
    %2627 = vmatpush1.bf16.msra.mxu0 %v2580
    %2628 = vmatprep.subr.bf16.mxu0 0
    %2629 = vmatpush1.bf16.msra.mxu0 %v2581
    %2630 = vmatprep.mubr.bf16.mxu0 %v2462
    %2631 = vmatmul.mubr.bf16.gmra.mrb[0].mxu0 %v2461
    %v2632 = vpop.f32.mrb[0].mxu0
    %v2633 = vadd.f32 %v2500, %v2632
    %v2634 = vpop.f32.mrb[0].mxu0
    %v2635 = vpop.f32.mrb[0].mxu0
    %v2636 = vpop.f32.mrb[0].mxu0
    %2637 = vdwg.mxu0
    %vm2638 = vcmask 74752
    %2639 = vst.msk [vmem:[#allocation2] sm:$0x3] %vm2638, %v2633
    // Predicated region
    $region30: #{net_forward.7} parent=1 // pred_check
      _
    $region31: #{net_forward.7} parent=1 // pred_check_branch
      %2641 = sbr.rel (0) target = $region33
    $region32: #{net_forward.7} parent=1 // pred_region
      %s2643 = ssub.s32 32, 32
      %2644 = vsyncadd [#allocation3], %s2643
      %s2646 = sshll.u32 [#allocation2], 4
      %s2647 = int_to_ptr.vmem [resolvable:$true] %s2646
      %2649 = dma.vmem_to_hbm [thread:$0]  %s2647, 32, %s7, [#allocation3]
    $region33: #{net_forward.7} parent=1 // pred_fallthru
      _
    // Predicated region
    $region34: #{net_forward.7} parent=1 // pred_check
      _
    $region35: #{net_forward.7} parent=1 // pred_check_branch
      %2651 = sbr.rel (0) target = $region37
    $region36: #{net_forward.7} parent=1 // pred_region
      %2652 = dma.done [#allocation3], 32
    $region37: #{net_forward.7} parent=1 // pred_fallthru
      _
    %2653 = vsyncpa [#allocation3], 1

</llo_original>
